<compile_context>
chip_gen: v6e
topology: v6e:2x2x1
jax: 0.10.0
libtpu: 0.0.40
codegen_flags: <defaults>
</compile_context>

<pallas_src>
import jax
import jax.numpy as jnp
from jax.experimental import pallas as pl
from jax.experimental.pallas import tpu as pltpu


# ----------------------------------------------------------------------------
# Pallas kernels
# ----------------------------------------------------------------------------
def _matmul_bias_relu_kernel(x_ref, w_ref, b_ref, o_ref):
    # x: (tm, K) bf16, w: (K, Cout) bf16, b: (1, Cout) f32 -> o: (tm, Cout)
    # Epilogue stays in f32 on the accumulator; cast only at the store.
    acc = jnp.dot(x_ref[...], w_ref[...], preferred_element_type=jnp.float32)
    o_ref[...] = jnp.maximum(acc + b_ref[...], 0.0).astype(o_ref.dtype)


def _stem_kernel(x_ref, w_ref, b_ref, o0_ref, o1_ref, o2_ref):
    # Fused three 1x1 stems: one (tm,896)x(896,768) matmul, split into three
    # lane-contiguous 256-wide bf16 outputs (their consumers are bf16 matmuls).
    acc = jnp.dot(x_ref[...], w_ref[...], preferred_element_type=jnp.float32)
    y = jnp.maximum(acc + b_ref[...], 0.0)
    o0_ref[...] = y[:, 0:256].astype(o0_ref.dtype)
    o1_ref[...] = y[:, 256:512].astype(o1_ref.dtype)
    o2_ref[...] = y[:, 512:768].astype(o2_ref.dtype)


# ----------------------------------------------------------------------------
# Tiling helpers
# ----------------------------------------------------------------------------
def _round_up(x, m):
    return (x + m - 1) // m * m


def _choose_tm(M):
    """Row-tile size for the M (= N*Ho*Wo) axis.

    Targets ~256-row tiles but keeps padding waste small
    (tm = round_up(cdiv(M, n_tiles), 8)), and uses >= 2 tiles for moderately
    sized M so a 2-TensorCore chip (v7x) can shard the "parallel" M axis;
    on 1-TC chips the extra grid step costs ~0.35 us.
    """
    if M <= 64:
        return _round_up(M, 8)
    n_tiles = max(2, -(-M // 256))
    return _round_up(-(-M // n_tiles), 8)


def _im2col_3x3(x, stride, Ho, Wo):
    """x: (B, H, W, C) bf16 -> (B*Ho*Wo, 9*C); tap order ky-major, kx-minor."""
    B, H, W, C = x.shape
    cols = []
    for ky in range(3):
        for kx in range(3):
            sl = x[:,
                   ky:ky + stride * (Ho - 1) + 1:stride,
                   kx:kx + stride * (Wo - 1) + 1:stride,
                   :]
            cols.append(sl.reshape(B * Ho * Wo, C))
    return jnp.concatenate(cols, axis=-1)


# ----------------------------------------------------------------------------
# Pallas wrappers
# ----------------------------------------------------------------------------
def stem_1x1(x, w_bf, bias):
    """Fused 1x1 stems: relu(x @ W + b) with W (896, 768) bf16 (BN folded),
    returning three (N,H,W,256) bf16 tensors (branch0/1/2 stems)."""
    N, H, W, C = x.shape
    M = N * H * W
    x_bf = x.reshape(M, C).astype(jnp.bfloat16)   # cast once, before padding
    tm = _choose_tm(M)
    M_pad = _round_up(M, tm)
    if M_pad != M:
        x_bf = jnp.pad(x_bf, ((0, M_pad - M), (0, 0)))

    outs = pl.pallas_call(
        _stem_kernel,
        out_shape=tuple(jax.ShapeDtypeStruct((M_pad, 256), jnp.bfloat16)
                        for _ in range(3)),
        grid=(M_pad // tm,),
        in_specs=[
            pl.BlockSpec((tm, C), lambda i: (i, 0)),
            pl.BlockSpec((C, 768), lambda i: (0, 0)),
            pl.BlockSpec((1, 768), lambda i: (0, 0)),
        ],
        out_specs=tuple(pl.BlockSpec((tm, 256), lambda i: (i, 0))
                        for _ in range(3)),
        compiler_params=pltpu.CompilerParams(
            dimension_semantics=("parallel",)),
    )(x_bf, w_bf, bias)
    return tuple(o[:M].reshape(N, H, W, 256) for o in outs)


def conv3x3_bn_relu(x, w_bf, bias, *, stride, padding=0,
                    out_dtype=jnp.float32):
    """3x3 BasicConv2d as a single im2col matmul.
    x: NHWC bf16, w_bf: (9*Cin, Cout) bf16 (BN folded), bias: (1, Cout) f32."""
    if padding:
        x = jnp.pad(x, ((0, 0), (padding, padding), (padding, padding), (0, 0)))
    N, H, W, Cin = x.shape
    Cout = w_bf.shape[-1]
    Ho = (H - 3) // stride + 1
    Wo = (W - 3) // stride + 1
    M = N * Ho * Wo
    K = 9 * Cin

    cols = _im2col_3x3(x, stride, Ho, Wo)                 # (M, K) bf16
    tm = _choose_tm(M)
    M_pad = _round_up(M, tm)
    if M_pad != M:
        cols = jnp.pad(cols, ((0, M_pad - M), (0, 0)))

    out = pl.pallas_call(
        _matmul_bias_relu_kernel,
        out_shape=jax.ShapeDtypeStruct((M_pad, Cout), out_dtype),
        grid=(M_pad // tm,),
        in_specs=[
            pl.BlockSpec((tm, K), lambda i: (i, 0)),
            pl.BlockSpec((K, Cout), lambda i: (0, 0)),
            pl.BlockSpec((1, Cout), lambda i: (0, 0)),
        ],
        out_specs=pl.BlockSpec((tm, Cout), lambda i: (i, 0)),
        compiler_params=pltpu.CompilerParams(
            dimension_semantics=("parallel",)),
    )(cols, w_bf, bias)
    out = out[:M] if M_pad != M else out
    return out.reshape(N, Ho, Wo, Cout)


def conv3x3_pair(xa, xb, w_pair, b_pair, *, stride):
    """Two shape-identical 3x3 convs (Cin=Cout=256 here) as ONE pallas_call
    with a leading 'parallel' pair axis.  Returns (ya, yb) in f32."""
    N, H, W, Cin = xa.shape
    assert xb.shape == xa.shape
    Cout = w_pair.shape[-1]
    Ho = (H - 3) // stride + 1
    Wo = (W - 3) // stride + 1
    M = N * Ho * Wo
    K = 9 * Cin

    # Stack the two (small, bf16) inputs, then build ONE im2col slab.
    xab = jnp.stack([xa, xb], axis=0).reshape(2 * N, H, W, Cin)
    cols = _im2col_3x3(xab, stride, Ho, Wo).reshape(2, M, K)   # (2, M, K) bf16

    tm = _choose_tm(M)
    M_pad = _round_up(M, tm)
    if M_pad != M:
        cols = jnp.pad(cols, ((0, 0), (0, M_pad - M), (0, 0)))

    out = pl.pallas_call(
        _matmul_bias_relu_kernel,
        out_shape=jax.ShapeDtypeStruct((2, M_pad, Cout), jnp.float32),
        grid=(2, M_pad // tm),
        in_specs=[
            pl.BlockSpec((None, tm, K), lambda p, i: (p, i, 0)),
            pl.BlockSpec((None, K, Cout), lambda p, i: (p, 0, 0)),
            pl.BlockSpec((None, 1, Cout), lambda p, i: (p, 0, 0)),
        ],
        out_specs=pl.BlockSpec((None, tm, Cout), lambda p, i: (p, i, 0)),
        compiler_params=pltpu.CompilerParams(
            dimension_semantics=("parallel", "parallel")),
    )(cols, w_pair, b_pair)

    out = out[:, :M] if M_pad != M else out
    ya = out[0].reshape(N, Ho, Wo, Cout)
    yb = out[1].reshape(N, Ho, Wo, Cout)
    return ya, yb


def maxpool3x3_s2(x):
    """MaxPool2d(kernel=3, stride=2, no padding, floor). x: NHWC f32 (exact).
    Plain JAX strided-slice max fold (XLA fuses it; no 9x slab, no grid steps)."""
    N, H, W, C = x.shape
    Ho = (H - 3) // 2 + 1
    Wo = (W - 3) // 2 + 1
    out = None
    for ky in range(3):
        for kx in range(3):
            sl = x[:, ky:ky + 2 * (Ho - 1) + 1:2, kx:kx + 2 * (Wo - 1) + 1:2, :]
            out = sl if out is None else jnp.maximum(out, sl)
    return out


# ----------------------------------------------------------------------------
# Parameter construction (deterministic, synthetic) + offline prep
# ----------------------------------------------------------------------------
_BN_EPS = 1e-3


def _init_basic_conv_raw(key, cin, cout, k):
    kw_, kg, kb, km, kv = jax.random.split(key, 5)
    fan_in = cin * k * k
    w = jax.random.normal(kw_, (cout, cin, k, k), jnp.float32) / jnp.sqrt(fan_in)
    gamma = 1.0 + 0.1 * jax.random.normal(kg, (cout,), jnp.float32)
    beta = 0.1 * jax.random.normal(kb, (cout,), jnp.float32)
    run_mean = 0.1 * jax.random.normal(km, (cout,), jnp.float32)
    run_var = jnp.abs(1.0 + 0.1 * jax.random.normal(kv, (cout,), jnp.float32))
    # fold BN (inference mode) into per-channel scale & bias
    scale = gamma / jnp.sqrt(run_var + _BN_EPS)
    bias = beta - run_mean * scale
    return w, scale, bias


def _prep_1x1(w, scale, bias):
    # (Cout, Cin, 1, 1) -> (Cin, Cout); fold BN scale into weights; bf16.
    cout, cin = w.shape[0], w.shape[1]
    wmat = w.reshape(cout, cin).T * scale[None, :]
    return wmat.astype(jnp.bfloat16), bias.reshape(1, cout).astype(jnp.float32)


def _prep_3x3(w, scale, bias):
    # (Cout, Cin, 3, 3) -> (9*Cin, Cout); row index = (ky*3+kx)*Cin + c,
    # matching _im2col_3x3's tap/channel order; fold BN scale; bf16.
    cout, cin = w.shape[0], w.shape[1]
    wt = jnp.transpose(w, (2, 3, 1, 0)).reshape(9 * cin, cout) * scale[None, :]
    return wt.astype(jnp.bfloat16), bias.reshape(1, cout).astype(jnp.float32)


def init_mixed_7a_params(key):
    ks = jax.random.split(key, 7)
    raw = {
        "b0_0": _init_basic_conv_raw(ks[0], 896, 256, 1),
        "b0_1": _init_basic_conv_raw(ks[1], 256, 384, 3),
        "b1_0": _init_basic_conv_raw(ks[2], 896, 256, 1),
        "b1_1": _init_basic_conv_raw(ks[3], 256, 256, 3),
        "b2_0": _init_basic_conv_raw(ks[4], 896, 256, 1),
        "b2_1": _init_basic_conv_raw(ks[5], 256, 256, 3),
        "b2_2": _init_basic_conv_raw(ks[6], 256, 256, 3),
    }
    # fuse the three 1x1 stems into one (896, 768) matmul (order: b0, b1, b2)
    stems = [_prep_1x1(*raw[name]) for name in ("b0_0", "b1_0", "b2_0")]
    params = {
        "stem_w": jnp.concatenate([s[0] for s in stems], axis=1),  # (896,768) bf16
        "stem_b": jnp.concatenate([s[1] for s in stems], axis=1),  # (1,768) f32
    }
    b0_1_w, b0_1_b = _prep_3x3(*raw["b0_1"])
    b2_1_w, b2_1_b = _prep_3x3(*raw["b2_1"])
    b1_1_w, b1_1_b = _prep_3x3(*raw["b1_1"])
    b2_2_w, b2_2_b = _prep_3x3(*raw["b2_2"])
    params["b0_1_w"], params["b0_1_b"] = b0_1_w, b0_1_b
    params["b2_1_w"], params["b2_1_b"] = b2_1_w, b2_1_b
    # the two identical stride-2 (2304 x 256) convs run as one paired call
    params["pair_w"] = jnp.stack([b1_1_w, b2_2_w], axis=0)   # (2, 2304, 256) bf16
    params["pair_b"] = jnp.stack([b1_1_b, b2_2_b], axis=0)   # (2, 1, 256) f32
    return params


# ----------------------------------------------------------------------------
# Mixed_7a forward
# ----------------------------------------------------------------------------
@jax.jit
def mixed_7a_forward(x_nchw, params):
    # external NCHW (PyTorch) -> internal NHWC -> external NCHW
    x = jnp.transpose(x_nchw, (0, 2, 3, 1)).astype(jnp.float32)

    # fused 1x1 stems: one wide matmul, three bf16 outputs (one per branch)
    s0, s1, s2 = stem_1x1(x, params["stem_w"], params["stem_b"])

    # branch0: 1x1 s1 -> 3x3 s2 (Cout=384), f32 (feeds the concat)
    b0 = conv3x3_bn_relu(s0, params["b0_1_w"], params["b0_1_b"],
                         stride=2, out_dtype=jnp.float32)
    # branch2 first conv: 3x3 s1 pad1, bf16 (feeds another bf16 matmul)
    b2a = conv3x3_bn_relu(s2, params["b2_1_w"], params["b2_1_b"],
                          stride=1, padding=1, out_dtype=jnp.bfloat16)
    # branch1 3x3 s2 and branch2 final 3x3 s2: identical shapes -> one paired call
    b1, b2 = conv3x3_pair(s1, b2a, params["pair_w"], params["pair_b"], stride=2)
    # branch3: maxpool 3x3 s2 (exact f32)
    b3 = maxpool3x3_s2(x)

    out = jnp.concatenate([b0, b1, b2, b3], axis=-1)   # NHWC, C = 384+256+256+896
    return jnp.transpose(out, (0, 3, 1, 2))            # back to NCHW


# ----------------------------------------------------------------------------
# Plain-XLA reference (same bf16-folded weights / bf16 inter-layer handoffs)
# ----------------------------------------------------------------------------
@jax.jit
def _ref_forward(x_nchw, params):
    f32 = jnp.float32
    x = jnp.transpose(x_nchw, (0, 2, 3, 1)).astype(f32)
    N, H, W, _ = x.shape
    q = lambda a: a.astype(jnp.bfloat16).astype(f32)   # mimic bf16 handoff

    stem = jnp.maximum(
        q(x).reshape(N * H * W, 896) @ params["stem_w"].astype(f32)
        + params["stem_b"].astype(f32), 0.0).reshape(N, H, W, 768)
    s0, s1, s2 = stem[..., :256], stem[..., 256:512], stem[..., 512:]

    def conv3(x_, w_flat, b, stride, padding):
        cin, cout = x_.shape[-1], w_flat.shape[-1]
        w_hwio = w_flat.astype(f32).reshape(3, 3, cin, cout)
        y = jax.lax.conv_general_dilated(
            x_, w_hwio, (stride, stride),
            [(padding, padding), (padding, padding)],
            dimension_numbers=("NHWC", "HWIO", "NHWC"),
            precision=jax.lax.Precision.HIGHEST)
        return jnp.maximum(y + b.astype(f32).reshape(1, 1, 1, -1), 0.0)

    b0 = conv3(q(s0), params["b0_1_w"], params["b0_1_b"], 2, 0)
    b2a = q(conv3(q(s2), params["b2_1_w"], params["b2_1_b"], 1, 1))
    b1 = conv3(q(s1), params["pair_w"][0], params["pair_b"][0], 2, 0)
    b2 = conv3(b2a, params["pair_w"][1], params["pair_b"][1], 2, 0)
    b3 = maxpool3x3_s2(x)
    out = jnp.concatenate([b0, b1, b2, b3], axis=-1)
    return jnp.transpose(out, (0, 3, 1, 2))


# ----------------------------------------------------------------------------
if __name__ == "__main__":
    key = jax.random.PRNGKey(0)
    k_in, k_par = jax.random.split(key)

    # Cin=896 is fixed by the module; keep N/H/W small.
    N, C, H, W = 2, 896, 9, 9
    x = jax.random.normal(k_in, (N, C, H, W), jnp.float32)
    params = init_mixed_7a_params(k_par)

    out = jax.block_until_ready(mixed_7a_forward(x, params))

    expected_c = 384 + 256 + 256 + 896
    expected_hw = (H - 3) // 2 + 1
    assert out.shape == (N, expected_c, expected_hw, expected_hw), out.shape
    assert bool(jnp.all(jnp.isfinite(out)))

    # Numerical sanity vs XLA reference (bf16 weights/handoffs -> loose abs tol).
    ref = jax.block_until_ready(_ref_forward(x, params))
    max_err = float(jnp.max(jnp.abs(out - ref)))
    assert max_err < 1e-1, f"max abs err vs reference: {max_err}"

    print("KERNEL_OK")
</pallas_src>

<mosaic_0001>
module attributes {stable_mosaic.version = 11 : i64} {
  func.func @_stem_kernel(%arg0: i32, %arg1: memref<88x896xbf16, #tpu.memory_space<vmem>>, %arg2: memref<896x768xbf16, #tpu.memory_space<vmem>>, %arg3: memref<1x768xf32, #tpu.memory_space<vmem>>, %arg4: memref<88x256xbf16, #tpu.memory_space<vmem>>, %arg5: memref<88x256xbf16, #tpu.memory_space<vmem>>, %arg6: memref<88x256xbf16, #tpu.memory_space<vmem>>) attributes {dimension_semantics = [#tpu.dimension_semantics<parallel>], iteration_bounds = array<i64: 2>, scalar_prefetch = 0 : i64, scratch_operands = 0 : i64, tpu.core_type = #tpu.core_type<tc>, window_params = [{transform_indices = @transform_0, window_bounds = array<i64: 88, 896>}, {pipeline_mode = #tpu.pipeline_mode<synchronous>, transform_indices = @transform_1, window_bounds = array<i64: 896, 768>}, {pipeline_mode = #tpu.pipeline_mode<synchronous>, transform_indices = @transform_2, window_bounds = array<i64: 1, 768>}, {transform_indices = @transform_3, window_bounds = array<i64: 88, 256>}, {transform_indices = @transform_4, window_bounds = array<i64: 88, 256>}, {transform_indices = @transform_5, window_bounds = array<i64: 88, 256>}]} {
    %c0 = arith.constant 0 : index
    %c0_0 = arith.constant 0 : index
    %0 = vector.load %arg1[%c0, %c0_0] : memref<88x896xbf16, #tpu.memory_space<vmem>>, vector<88x896xbf16>
    %c0_1 = arith.constant 0 : index
    %c0_2 = arith.constant 0 : index
    %1 = vector.load %arg2[%c0_1, %c0_2] : memref<896x768xbf16, #tpu.memory_space<vmem>>, vector<896x768xbf16>
    %cst = arith.constant dense<0.000000e+00> : vector<88x768xf32>
    %2 = tpu.matmul %0, %1, %cst {dimension_numbers = #tpu.dot_dimension_numbers<[1], [0], [0], [1], [0, 0, 1, 1], [], []>} : vector<88x896xbf16>, vector<896x768xbf16>, vector<88x768xf32> -> vector<88x768xf32>
    %c0_3 = arith.constant 0 : index
    %c0_4 = arith.constant 0 : index
    %3 = vector.load %arg3[%c0_3, %c0_4] : memref<1x768xf32, #tpu.memory_space<vmem>>, vector<1x768xf32>
    %4 = vector.broadcast %3 : vector<1x768xf32> to vector<88x768xf32>
    %5 = arith.addf %2, %4 : vector<88x768xf32>
    %cst_5 = arith.constant 0.000000e+00 : f32
    %6 = vector.broadcast %cst_5 : f32 to vector<88x768xf32>
    %7 = arith.maximumf %5, %6 : vector<88x768xf32>
    %8 = vector.extract_strided_slice %7 {offsets = [0, 0], sizes = [88, 256], strides = [1, 1]} : vector<88x768xf32> to vector<88x256xf32>
    %9 = arith.truncf %8 : vector<88x256xf32> to vector<88x256xbf16>
    %c0_6 = arith.constant 0 : index
    %c0_7 = arith.constant 0 : index
    %10 = vector.load %arg4[%c0_6, %c0_7] : memref<88x256xbf16, #tpu.memory_space<vmem>>, vector<88x256xbf16>
    tpu.vector_store %arg4[%c0_6, %c0_7], %9 {strides = array<i32>} : memref<88x256xbf16, #tpu.memory_space<vmem>>, vector<88x256xbf16>,
    %11 = vector.extract_strided_slice %7 {offsets = [0, 256], sizes = [88, 256], strides = [1, 1]} : vector<88x768xf32> to vector<88x256xf32>
    %12 = arith.truncf %11 : vector<88x256xf32> to vector<88x256xbf16>
    %c0_8 = arith.constant 0 : index
    %c0_9 = arith.constant 0 : index
    %13 = vector.load %arg5[%c0_8, %c0_9] : memref<88x256xbf16, #tpu.memory_space<vmem>>, vector<88x256xbf16>
    tpu.vector_store %arg5[%c0_8, %c0_9], %12 {strides = array<i32>} : memref<88x256xbf16, #tpu.memory_space<vmem>>, vector<88x256xbf16>,
    %14 = vector.extract_strided_slice %7 {offsets = [0, 512], sizes = [88, 256], strides = [1, 1]} : vector<88x768xf32> to vector<88x256xf32>
    %15 = arith.truncf %14 : vector<88x256xf32> to vector<88x256xbf16>
    %c0_10 = arith.constant 0 : index
    %c0_11 = arith.constant 0 : index
    %16 = vector.load %arg6[%c0_10, %c0_11] : memref<88x256xbf16, #tpu.memory_space<vmem>>, vector<88x256xbf16>
    tpu.vector_store %arg6[%c0_10, %c0_11], %15 {strides = array<i32>} : memref<88x256xbf16, #tpu.memory_space<vmem>>, vector<88x256xbf16>,
    return
  }
  func.func @transform_0(%arg0: i32) -> (i32, i32) {
    %c0_i32 = arith.constant 0 : i32
    %c0_i32_0 = arith.constant 0 : i32
    return %arg0, %c0_i32 : i32, i32
  }
  func.func @transform_1(%arg0: i32) -> (i32, i32) {
    %c0_i32 = arith.constant 0 : i32
    %c0_i32_0 = arith.constant 0 : i32
    %c0_i32_1 = arith.constant 0 : i32
    return %c0_i32, %c0_i32_0 : i32, i32
  }
  func.func @transform_2(%arg0: i32) -> (i32, i32) {
    %c0_i32 = arith.constant 0 : i32
    %c0_i32_0 = arith.constant 0 : i32
    %c0_i32_1 = arith.constant 0 : i32
    return %c0_i32, %c0_i32_0 : i32, i32
  }
  func.func @transform_3(%arg0: i32) -> (i32, i32) {
    %c0_i32 = arith.constant 0 : i32
    %c0_i32_0 = arith.constant 0 : i32
    return %arg0, %c0_i32 : i32, i32
  }
  func.func @transform_4(%arg0: i32) -> (i32, i32) {
    %c0_i32 = arith.constant 0 : i32
    %c0_i32_0 = arith.constant 0 : i32
    return %arg0, %c0_i32 : i32, i32
  }
  func.func @transform_5(%arg0: i32) -> (i32, i32) {
    %c0_i32 = arith.constant 0 : i32
    %c0_i32_0 = arith.constant 0 : i32
    return %arg0, %c0_i32 : i32, i32
  }
}

module attributes {stable_mosaic.version = 11 : i64} {
  func.func @_matmul_bias_relu_kernel(%arg0: i32, %arg1: memref<32x2304xbf16, #tpu.memory_space<vmem>>, %arg2: memref<2304x384xbf16, #tpu.memory_space<vmem>>, %arg3: memref<1x384xf32, #tpu.memory_space<vmem>>, %arg4: memref<32x384xf32, #tpu.memory_space<vmem>>) attributes {dimension_semantics = [#tpu.dimension_semantics<parallel>], iteration_bounds = array<i64: 1>, scalar_prefetch = 0 : i64, scratch_operands = 0 : i64, tpu.core_type = #tpu.core_type<tc>, window_params = [{transform_indices = @transform_0, window_bounds = array<i64: 32, 2304>}, {pipeline_mode = #tpu.pipeline_mode<synchronous>, transform_indices = @transform_1, window_bounds = array<i64: 2304, 384>}, {pipeline_mode = #tpu.pipeline_mode<synchronous>, transform_indices = @transform_2, window_bounds = array<i64: 1, 384>}, {transform_indices = @transform_3, window_bounds = array<i64: 32, 384>}]} {
    %c0 = arith.constant 0 : index
    %c0_0 = arith.constant 0 : index
    %0 = vector.load %arg1[%c0, %c0_0] : memref<32x2304xbf16, #tpu.memory_space<vmem>>, vector<32x2304xbf16>
    %c0_1 = arith.constant 0 : index
    %c0_2 = arith.constant 0 : index
    %1 = vector.load %arg2[%c0_1, %c0_2] : memref<2304x384xbf16, #tpu.memory_space<vmem>>, vector<2304x384xbf16>
    %cst = arith.constant dense<0.000000e+00> : vector<32x384xf32>
    %2 = tpu.matmul %0, %1, %cst {dimension_numbers = #tpu.dot_dimension_numbers<[1], [0], [0], [1], [0, 0, 1, 1], [], []>} : vector<32x2304xbf16>, vector<2304x384xbf16>, vector<32x384xf32> -> vector<32x384xf32>
    %c0_3 = arith.constant 0 : index
    %c0_4 = arith.constant 0 : index
    %3 = vector.load %arg3[%c0_3, %c0_4] : memref<1x384xf32, #tpu.memory_space<vmem>>, vector<1x384xf32>
    %4 = vector.broadcast %3 : vector<1x384xf32> to vector<32x384xf32>
    %5 = arith.addf %2, %4 : vector<32x384xf32>
    %cst_5 = arith.constant 0.000000e+00 : f32
    %6 = vector.broadcast %cst_5 : f32 to vector<32x384xf32>
    %7 = arith.maximumf %5, %6 : vector<32x384xf32>
    %c0_6 = arith.constant 0 : index
    %c0_7 = arith.constant 0 : index
    %8 = vector.load %arg4[%c0_6, %c0_7] : memref<32x384xf32, #tpu.memory_space<vmem>>, vector<32x384xf32>
    tpu.vector_store %arg4[%c0_6, %c0_7], %7 {strides = array<i32>} : memref<32x384xf32, #tpu.memory_space<vmem>>, vector<32x384xf32>,
    return
  }
  func.func @transform_0(%arg0: i32) -> (i32, i32) {
    %c0_i32 = arith.constant 0 : i32
    %c0_i32_0 = arith.constant 0 : i32
    return %arg0, %c0_i32 : i32, i32
  }
  func.func @transform_1(%arg0: i32) -> (i32, i32) {
    %c0_i32 = arith.constant 0 : i32
    %c0_i32_0 = arith.constant 0 : i32
    %c0_i32_1 = arith.constant 0 : i32
    return %c0_i32, %c0_i32_0 : i32, i32
  }
  func.func @transform_2(%arg0: i32) -> (i32, i32) {
    %c0_i32 = arith.constant 0 : i32
    %c0_i32_0 = arith.constant 0 : i32
    %c0_i32_1 = arith.constant 0 : i32
    return %c0_i32, %c0_i32_0 : i32, i32
  }
  func.func @transform_3(%arg0: i32) -> (i32, i32) {
    %c0_i32 = arith.constant 0 : i32
    %c0_i32_0 = arith.constant 0 : i32
    return %arg0, %c0_i32 : i32, i32
  }
}

module attributes {stable_mosaic.version = 11 : i64} {
  func.func @_matmul_bias_relu_kernel(%arg0: i32, %arg1: memref<88x2304xbf16, #tpu.memory_space<vmem>>, %arg2: memref<2304x256xbf16, #tpu.memory_space<vmem>>, %arg3: memref<1x256xf32, #tpu.memory_space<vmem>>, %arg4: memref<88x256xbf16, #tpu.memory_space<vmem>>) attributes {dimension_semantics = [#tpu.dimension_semantics<parallel>], iteration_bounds = array<i64: 2>, scalar_prefetch = 0 : i64, scratch_operands = 0 : i64, tpu.core_type = #tpu.core_type<tc>, window_params = [{transform_indices = @transform_0, window_bounds = array<i64: 88, 2304>}, {pipeline_mode = #tpu.pipeline_mode<synchronous>, transform_indices = @transform_1, window_bounds = array<i64: 2304, 256>}, {pipeline_mode = #tpu.pipeline_mode<synchronous>, transform_indices = @transform_2, window_bounds = array<i64: 1, 256>}, {transform_indices = @transform_3, window_bounds = array<i64: 88, 256>}]} {
    %c0 = arith.constant 0 : index
    %c0_0 = arith.constant 0 : index
    %0 = vector.load %arg1[%c0, %c0_0] : memref<88x2304xbf16, #tpu.memory_space<vmem>>, vector<88x2304xbf16>
    %c0_1 = arith.constant 0 : index
    %c0_2 = arith.constant 0 : index
    %1 = vector.load %arg2[%c0_1, %c0_2] : memref<2304x256xbf16, #tpu.memory_space<vmem>>, vector<2304x256xbf16>
    %cst = arith.constant dense<0.000000e+00> : vector<88x256xf32>
    %2 = tpu.matmul %0, %1, %cst {dimension_numbers = #tpu.dot_dimension_numbers<[1], [0], [0], [1], [0, 0, 1, 1], [], []>} : vector<88x2304xbf16>, vector<2304x256xbf16>, vector<88x256xf32> -> vector<88x256xf32>
    %c0_3 = arith.constant 0 : index
    %c0_4 = arith.constant 0 : index
    %3 = vector.load %arg3[%c0_3, %c0_4] : memref<1x256xf32, #tpu.memory_space<vmem>>, vector<1x256xf32>
    %4 = vector.broadcast %3 : vector<1x256xf32> to vector<88x256xf32>
    %5 = arith.addf %2, %4 : vector<88x256xf32>
    %cst_5 = arith.constant 0.000000e+00 : f32
    %6 = vector.broadcast %cst_5 : f32 to vector<88x256xf32>
    %7 = arith.maximumf %5, %6 : vector<88x256xf32>
    %8 = arith.truncf %7 : vector<88x256xf32> to vector<88x256xbf16>
    %c0_6 = arith.constant 0 : index
    %c0_7 = arith.constant 0 : index
    %9 = vector.load %arg4[%c0_6, %c0_7] : memref<88x256xbf16, #tpu.memory_space<vmem>>, vector<88x256xbf16>
    tpu.vector_store %arg4[%c0_6, %c0_7], %8 {strides = array<i32>} : memref<88x256xbf16, #tpu.memory_space<vmem>>, vector<88x256xbf16>,
    return
  }
  func.func @transform_0(%arg0: i32) -> (i32, i32) {
    %c0_i32 = arith.constant 0 : i32
    %c0_i32_0 = arith.constant 0 : i32
    return %arg0, %c0_i32 : i32, i32
  }
  func.func @transform_1(%arg0: i32) -> (i32, i32) {
    %c0_i32 = arith.constant 0 : i32
    %c0_i32_0 = arith.constant 0 : i32
    %c0_i32_1 = arith.constant 0 : i32
    return %c0_i32, %c0_i32_0 : i32, i32
  }
  func.func @transform_2(%arg0: i32) -> (i32, i32) {
    %c0_i32 = arith.constant 0 : i32
    %c0_i32_0 = arith.constant 0 : i32
    %c0_i32_1 = arith.constant 0 : i32
    return %c0_i32, %c0_i32_0 : i32, i32
  }
  func.func @transform_3(%arg0: i32) -> (i32, i32) {
    %c0_i32 = arith.constant 0 : i32
    %c0_i32_0 = arith.constant 0 : i32
    return %arg0, %c0_i32 : i32, i32
  }
}

module attributes {stable_mosaic.version = 11 : i64} {
  func.func @_matmul_bias_relu_kernel(%arg0: i32, %arg1: i32, %arg2: memref<1x32x2304xbf16, #tpu.memory_space<vmem>>, %arg3: memref<1x2304x256xbf16, #tpu.memory_space<vmem>>, %arg4: memref<1x1x256xf32, #tpu.memory_space<vmem>>, %arg5: memref<1x32x256xf32, #tpu.memory_space<vmem>>) attributes {dimension_semantics = [#tpu.dimension_semantics<parallel>, #tpu.dimension_semantics<parallel>], iteration_bounds = array<i64: 2, 1>, scalar_prefetch = 0 : i64, scratch_operands = 0 : i64, tpu.core_type = #tpu.core_type<tc>, window_params = [{transform_indices = @transform_0, window_bounds = array<i64: 1, 32, 2304>}, {transform_indices = @transform_1, window_bounds = array<i64: 1, 2304, 256>}, {transform_indices = @transform_2, window_bounds = array<i64: 1, 1, 256>}, {transform_indices = @transform_3, window_bounds = array<i64: 1, 32, 256>}]} {
    %c0 = arith.constant 0 : index
    %c0_0 = arith.constant 0 : index
    %c0_1 = arith.constant 0 : index
    %0 = vector.load %arg2[%c0, %c0_0, %c0_1] : memref<1x32x2304xbf16, #tpu.memory_space<vmem>>, vector<1x32x2304xbf16>
    %1 = vector.shape_cast %0 : vector<1x32x2304xbf16> to vector<32x2304xbf16>
    %c0_2 = arith.constant 0 : index
    %c0_3 = arith.constant 0 : index
    %c0_4 = arith.constant 0 : index
    %2 = vector.load %arg3[%c0_2, %c0_3, %c0_4] : memref<1x2304x256xbf16, #tpu.memory_space<vmem>>, vector<1x2304x256xbf16>
    %3 = vector.shape_cast %2 : vector<1x2304x256xbf16> to vector<2304x256xbf16>
    %cst = arith.constant dense<0.000000e+00> : vector<32x256xf32>
    %4 = tpu.matmul %1, %3, %cst {dimension_numbers = #tpu.dot_dimension_numbers<[1], [0], [0], [1], [0, 0, 1, 1], [], []>} : vector<32x2304xbf16>, vector<2304x256xbf16>, vector<32x256xf32> -> vector<32x256xf32>
    %c0_5 = arith.constant 0 : index
    %c0_6 = arith.constant 0 : index
    %c0_7 = arith.constant 0 : index
    %5 = vector.load %arg4[%c0_5, %c0_6, %c0_7] : memref<1x1x256xf32, #tpu.memory_space<vmem>>, vector<1x1x256xf32>
    %6 = vector.shape_cast %5 : vector<1x1x256xf32> to vector<1x256xf32>
    %7 = vector.broadcast %6 : vector<1x256xf32> to vector<32x256xf32>
    %8 = arith.addf %4, %7 : vector<32x256xf32>
    %cst_8 = arith.constant 0.000000e+00 : f32
    %9 = vector.broadcast %cst_8 : f32 to vector<32x256xf32>
    %10 = arith.maximumf %8, %9 : vector<32x256xf32>
    %c0_9 = arith.constant 0 : index
    %c0_10 = arith.constant 0 : index
    %c0_11 = arith.constant 0 : index
    %11 = vector.load %arg5[%c0_9, %c0_10, %c0_11] : memref<1x32x256xf32, #tpu.memory_space<vmem>>, vector<1x32x256xf32>
    %12 = vector.shape_cast %11 : vector<1x32x256xf32> to vector<32x256xf32>
    %13 = vector.shape_cast %10 : vector<32x256xf32> to vector<1x32x256xf32>
    tpu.vector_store %arg5[%c0_9, %c0_10, %c0_11], %13 {strides = array<i32>} : memref<1x32x256xf32, #tpu.memory_space<vmem>>, vector<1x32x256xf32>,
    return
  }
  func.func @transform_0(%arg0: i32, %arg1: i32) -> (i32, i32, i32) {
    %c0_i32 = arith.constant 0 : i32
    %c0_i32_0 = arith.constant 0 : i32
    return %arg0, %arg1, %c0_i32 : i32, i32, i32
  }
  func.func @transform_1(%arg0: i32, %arg1: i32) -> (i32, i32, i32) {
    %c0_i32 = arith.constant 0 : i32
    %c0_i32_0 = arith.constant 0 : i32
    %c0_i32_1 = arith.constant 0 : i32
    return %arg0, %c0_i32, %c0_i32_0 : i32, i32, i32
  }
  func.func @transform_2(%arg0: i32, %arg1: i32) -> (i32, i32, i32) {
    %c0_i32 = arith.constant 0 : i32
    %c0_i32_0 = arith.constant 0 : i32
    %c0_i32_1 = arith.constant 0 : i32
    return %arg0, %c0_i32, %c0_i32_0 : i32, i32, i32
  }
  func.func @transform_3(%arg0: i32, %arg1: i32) -> (i32, i32, i32) {
    %c0_i32 = arith.constant 0 : i32
    %c0_i32_0 = arith.constant 0 : i32
    return %arg0, %arg1, %c0_i32 : i32, i32, i32
  }
}

</mosaic_0001>

<llo_original>
// kernel: mixed_7a_forward.4
$region0: #{mixed_7a_forward.4}
  #allocation0 [shape = 'u32[]', space=smem, size = 0x4, offset = 0x4, fixed_abs, tag = 'smem constant byte address 0x4 - core index']
  #allocation1 [shape = 'u32[144,128]{1,0:T(1,128)}', space=vmem, size = 0x12000, scoped, tag = 'internal scratch']
  %s0 = inlined_call_operand.vmem [shape: bf16[176,896], index: 0, kind: input, shape index: {}]
  %s1 = inlined_call_operand.vmem [shape: bf16[896,768], index: 1, kind: input, shape index: {}]
  %s2 = inlined_call_operand.vmem [shape: f32[1,768], index: 2, kind: input, shape index: {}]
  %s3 = inlined_call_operand.vmem [shape: bf16[176,256], index: 3, kind: output, shape index: {0}]
  %s4 = inlined_call_operand.vmem [shape: bf16[176,256], index: 4, kind: output, shape index: {1}]
  %s5 = inlined_call_operand.vmem [shape: bf16[176,256], index: 5, kind: output, shape index: {2}]
  %6 = xla_tuple %s3, %s4, %s5
  %s7 = sld [smem:[#allocation0]]
  $region61: #{mixed_7a_forward.4} parent=0
    _
  %s9 = ssub.s32 1, %s7
  %s10 = scalar_select 0, %s9, %s7
  loop: start=0, step=1, limit=4
  $region2: #{mixed_7a_forward.4} parent=0 // loop_pre_header
    _
  $region3: #{mixed_7a_forward.4} parent=0 // loop_header
    %s12 = sphi 0, %s16
    %p13 = scmp.ge.s32.totalorder %s12, 4
    %s22 = sphi 0, %s24
    %s25 = sphi 0, %s22
    %s26 = sphi 0, %s25
    %s42 = sphi 0, %s26
    %s46 = sphi 0, %s46
    %s48 = sphi 0, %s46
    %s49 = sphi 0, %s48
    %s63 = sphi 0, %s49
    %s67 = sphi 0, %s67
    %s69 = sphi 0, %s67
    %s70 = sphi 0, %s69
    %s84 = sphi 0, %s70
    %s90 = sphi 0, %s92
    %s93 = sphi 0, %s90
    %s94 = sphi 0, %s93
    %s110 = sphi 0, %s94
    %s116 = sphi 0, %s118
    %s119 = sphi 0, %s116
    %s120 = sphi 0, %s119
    %s136 = sphi 0, %s120
    %s142 = sphi 0, %s144
    %s145 = sphi 0, %s142
    %s146 = sphi 0, %s145
    %s162 = sphi 0, %s146
  $region4: #{mixed_7a_forward.4} parent=0 // loop_header_branch
    %15 = sbr.rel (%p13) target = $region8
  $region5: #{mixed_7a_forward.4} parent=0 // loop_body
    %s17 = ssub.s32 %s12, 1
    %s18 = ssub.s32 %s12, 2
    %s19 = sadd.s32 %s12, 1
    %s20 = ssub.s32 %s12, %s19
    %p21 = scmp.eq.s32.totalorder %s20, 0
    %s23 = sadd.s32 %s22, 1
    %s24 = scalar_select %p21, %s22, %s23
    %p27 = pneg %p21
    %p28 = scmp.eq.s32.totalorder %s12, 1
    %p29 = por %p27, %p28
    %p30 = scmp.ne.s32.totalorder %s22, %s25
    %p31 = scmp.eq.s32.totalorder %s12, 0
    %p32 = por %p30, %p31
    %p33 = scmp.ne.s32.totalorder %s22, %s25
    %p34 = scmp.eq.s32.totalorder %s17, 1
    %p35 = por %p33, %p34
    %p36 = scmp.ne.s32.totalorder %s25, %s26
    %p37 = scmp.eq.s32.totalorder %s17, 0
    %p38 = por %p36, %p37
    %p39 = scmp.ne.s32.totalorder %s25, %s26
    %p40 = scmp.eq.s32.totalorder %s18, 1
    %p41 = por %p39, %p40
    %p43 = scmp.ne.s32.totalorder %s26, %s42
    %p44 = scmp.eq.s32.totalorder %s18, 0
    %p45 = por %p43, %p44
    %s47 = sadd.s32 %s46, 1
    %p50 = scmp.eq.s32.totalorder %s12, 1
    %p51 = scmp.ne.s32.totalorder %s46, %s48
    %p52 = scmp.eq.s32.totalorder %s12, 0
    %p53 = por %p51, %p52
    %p54 = scmp.ne.s32.totalorder %s46, %s48
    %p55 = scmp.eq.s32.totalorder %s17, 1
    %p56 = por %p54, %p55
    %p57 = scmp.ne.s32.totalorder %s48, %s49
    %p58 = scmp.eq.s32.totalorder %s17, 0
    %p59 = por %p57, %p58
    %p60 = scmp.ne.s32.totalorder %s48, %s49
    %p61 = scmp.eq.s32.totalorder %s18, 1
    %p62 = por %p60, %p61
    %p64 = scmp.ne.s32.totalorder %s49, %s63
    %p65 = scmp.eq.s32.totalorder %s18, 0
    %p66 = por %p64, %p65
    %s68 = sadd.s32 %s67, 1
    %p71 = scmp.eq.s32.totalorder %s12, 1
    %p72 = scmp.ne.s32.totalorder %s67, %s69
    %p73 = scmp.eq.s32.totalorder %s12, 0
    %p74 = por %p72, %p73
    %p75 = scmp.ne.s32.totalorder %s67, %s69
    %p76 = scmp.eq.s32.totalorder %s17, 1
    %p77 = por %p75, %p76
    %p78 = scmp.ne.s32.totalorder %s69, %s70
    %p79 = scmp.eq.s32.totalorder %s17, 0
    %p80 = por %p78, %p79
    %p81 = scmp.ne.s32.totalorder %s69, %s70
    %p82 = scmp.eq.s32.totalorder %s18, 1
    %p83 = por %p81, %p82
    %p85 = scmp.ne.s32.totalorder %s70, %s84
    %p86 = scmp.eq.s32.totalorder %s18, 0
    %p87 = por %p85, %p86
    %s88 = ssub.s32 %s12, %s19
    %p89 = scmp.eq.s32.totalorder %s88, 0
    %s91 = sadd.s32 %s90, 1
    %s92 = scalar_select %p89, %s90, %s91
    %p95 = pneg %p89
    %p96 = scmp.eq.s32.totalorder %s12, 1
    %p97 = por %p95, %p96
    %p98 = scmp.ne.s32.totalorder %s90, %s93
    %p99 = scmp.eq.s32.totalorder %s12, 0
    %p100 = por %p98, %p99
    %p101 = scmp.ne.s32.totalorder %s90, %s93
    %p102 = scmp.eq.s32.totalorder %s17, 1
    %p103 = por %p101, %p102
    %p104 = scmp.ne.s32.totalorder %s93, %s94
    %p105 = scmp.eq.s32.totalorder %s17, 0
    %p106 = por %p104, %p105
    %p107 = scmp.ne.s32.totalorder %s93, %s94
    %p108 = scmp.eq.s32.totalorder %s18, 1
    %p109 = por %p107, %p108
    %p111 = scmp.ne.s32.totalorder %s94, %s110
    %p112 = scmp.eq.s32.totalorder %s18, 0
    %p113 = por %p111, %p112
    %s114 = ssub.s32 %s12, %s19
    %p115 = scmp.eq.s32.totalorder %s114, 0
    %s117 = sadd.s32 %s116, 1
    %s118 = scalar_select %p115, %s116, %s117
    %p121 = pneg %p115
    %p122 = scmp.eq.s32.totalorder %s12, 1
    %p123 = por %p121, %p122
    %p124 = scmp.ne.s32.totalorder %s116, %s119
    %p125 = scmp.eq.s32.totalorder %s12, 0
    %p126 = por %p124, %p125
    %p127 = scmp.ne.s32.totalorder %s116, %s119
    %p128 = scmp.eq.s32.totalorder %s17, 1
    %p129 = por %p127, %p128
    %p130 = scmp.ne.s32.totalorder %s119, %s120
    %p131 = scmp.eq.s32.totalorder %s17, 0
    %p132 = por %p130, %p131
    %p133 = scmp.ne.s32.totalorder %s119, %s120
    %p134 = scmp.eq.s32.totalorder %s18, 1
    %p135 = por %p133, %p134
    %p137 = scmp.ne.s32.totalorder %s120, %s136
    %p138 = scmp.eq.s32.totalorder %s18, 0
    %p139 = por %p137, %p138
    %s140 = ssub.s32 %s12, %s19
    %p141 = scmp.eq.s32.totalorder %s140, 0
    %s143 = sadd.s32 %s142, 1
    %s144 = scalar_select %p141, %s142, %s143
    %p147 = pneg %p141
    %p148 = scmp.eq.s32.totalorder %s12, 1
    %p149 = por %p147, %p148
    %p150 = scmp.ne.s32.totalorder %s142, %s145
    %p151 = scmp.eq.s32.totalorder %s12, 0
    %p152 = por %p150, %p151
    %p153 = scmp.ne.s32.totalorder %s142, %s145
    %p154 = scmp.eq.s32.totalorder %s17, 1
    %p155 = por %p153, %p154
    %p156 = scmp.ne.s32.totalorder %s145, %s146
    %p157 = scmp.eq.s32.totalorder %s17, 0
    %p158 = por %p156, %p157
    %p159 = scmp.ne.s32.totalorder %s145, %s146
    %p160 = scmp.eq.s32.totalorder %s18, 1
    %p161 = por %p159, %p160
    %p163 = scmp.ne.s32.totalorder %s146, %s162
    %p164 = scmp.eq.s32.totalorder %s18, 0
    %p165 = por %p163, %p164
    %p166 = scmp.le.s32.totalorder 1, %s12
    %p167 = scmp.lt.s32.totalorder %s12, 3
    %p168 = pnand %p166, %p167
    %p169 = pneg %p168
    // Predicated region
    $region9: #{mixed_7a_forward.4} parent=5 // pred_check
      _
    $region10: #{mixed_7a_forward.4} parent=5 // pred_check_branch
      %171 = sbr.rel (%p168) target = $region12
    $region11: #{mixed_7a_forward.4} parent=5 // pred_region
      %s172 = ssub.s32 %s12, 1
      // Predicated region
      $region13: #{mixed_7a_forward.4} parent=11 // pred_check
        %p173 = pneg %p59
      $region14: #{mixed_7a_forward.4} parent=11 // pred_check_branch
        %175 = sbr.rel (%p173) target = $region16
      $region15: #{mixed_7a_forward.4} parent=11 // pred_region
        _
      $region16: #{mixed_7a_forward.4} parent=11 // pred_fallthru
        _
      // Predicated region
      $region17: #{mixed_7a_forward.4} parent=11 // pred_check
        %p176 = pneg %p80
      $region18: #{mixed_7a_forward.4} parent=11 // pred_check_branch
        %178 = sbr.rel (%p176) target = $region20
      $region19: #{mixed_7a_forward.4} parent=11 // pred_region
        _
      $region20: #{mixed_7a_forward.4} parent=11 // pred_fallthru
        _
    $region12: #{mixed_7a_forward.4} parent=5 // pred_fallthru
      _
    %p179 = scmp.lt.s32.totalorder %s12, 2
    // Predicated region
    $region21: #{mixed_7a_forward.4} parent=5 // pred_check
      %p180 = pneg %p179
    $region22: #{mixed_7a_forward.4} parent=5 // pred_check_branch
      %182 = sbr.rel (%p180) target = $region24
    $region23: #{mixed_7a_forward.4} parent=5 // pred_region
      // Predicated region
      $region25: #{mixed_7a_forward.4} parent=23 // pred_check
        %p183 = pneg %p32
      $region26: #{mixed_7a_forward.4} parent=23 // pred_check_branch
        %185 = sbr.rel (%p183) target = $region28
      $region27: #{mixed_7a_forward.4} parent=23 // pred_region
        %s186 = smul.u32 11, %s12
        %p187 = scmp.lt.s32.totalorder %s186, 21
        %s188 = scalar_select %p187, %s186, 21
        %s189 = smul.addr %s188, 7
        %s190 = smul.addr %s189, 4
        %s191 = scalar_lea.vmem %s0, %s190
        %s192 = smul.u32 11, %s12
      $region28: #{mixed_7a_forward.4} parent=23 // pred_fallthru
        _
    $region24: #{mixed_7a_forward.4} parent=5 // pred_fallthru
      _
    %p193 = scmp.le.s32.totalorder 1, %s12
    %p194 = scmp.lt.s32.totalorder %s12, 3
    %p195 = pnand %p193, %p194
    %p196 = pneg %p195
    // Predicated region
    $region29: #{mixed_7a_forward.4} parent=5 // pred_check
      _
    $region30: #{mixed_7a_forward.4} parent=5 // pred_check_branch
      %198 = sbr.rel (%p195) target = $region32
    $region31: #{mixed_7a_forward.4} parent=5 // pred_region
      %s199 = ssub.s32 %s12, 1
      %s200 = smul.u32 11, %s17
      %p201 = scmp.lt.s32.totalorder %s200, 21
      %s202 = scalar_select %p201, %s200, 21
      %s203 = smul.addr %s202, 7
      %s204 = smul.addr %s203, 4
      %s205 = scalar_lea.vmem %s0, %s204
      %p206 = pneg %p38
      %p207 = pneg %p35
      %p208 = pneg %p59
      %p209 = pneg %p56
      %p210 = pneg %p80
      %p211 = pneg %p77
      %p212 = pneg %p106
      %p213 = pneg %p103
      %s214 = smul.u32 11, %s17
      %p215 = scmp.lt.s32.totalorder %s214, 21
      %s216 = scalar_select %p215, %s214, 21
      %s217 = smul.addr %s216, 2
      %s218 = smul.addr %s217, 4
      %s219 = scalar_lea.vmem %s3, %s218
      %p220 = pneg %p132
      %p221 = pneg %p129
      %s222 = smul.u32 11, %s17
      %p223 = scmp.lt.s32.totalorder %s222, 21
      %s224 = scalar_select %p223, %s222, 21
      %s225 = smul.addr %s224, 2
      %s226 = smul.addr %s225, 4
      %s227 = scalar_lea.vmem %s4, %s226
      %p228 = pneg %p158
      %p229 = pneg %p155
      %s230 = smul.u32 11, %s17
      %p231 = scmp.lt.s32.totalorder %s230, 21
      %s232 = scalar_select %p231, %s230, 21
      %s233 = smul.addr %s232, 2
      %s234 = smul.addr %s233, 4
      %s235 = scalar_lea.vmem %s5, %s234
      %s236 = smul.u32 11, %s17
      %p237 = scmp.lt.s32.totalorder %s236, 21
      %s238 = scalar_select %p237, %s236, 21
      %s239 = smul.addr %s238, 7
      %s240 = smul.addr %s239, 4
      %s241 = scalar_lea.vmem %s0, %s240
      %s242 = smul.u32 11, %s17
      %s243 = smul.u32 11, %s17
      %p244 = scmp.lt.s32.totalorder %s243, 21
      %s245 = scalar_select %p244, %s243, 21
      %s246 = smul.addr %s245, 2
      %s247 = smul.addr %s246, 4
      %s248 = scalar_lea.vmem %s3, %s247
      %s249 = smul.u32 11, %s17
      %s250 = smul.u32 11, %s17
      %p251 = scmp.lt.s32.totalorder %s250, 21
      %s252 = scalar_select %p251, %s250, 21
      %s253 = smul.addr %s252, 2
      %s254 = smul.addr %s253, 4
      %s255 = scalar_lea.vmem %s4, %s254
      %s256 = smul.u32 11, %s17
      %s257 = smul.u32 11, %s17
      %p258 = scmp.lt.s32.totalorder %s257, 21
      %s259 = scalar_select %p258, %s257, 21
      %s260 = smul.addr %s259, 2
      %s261 = smul.addr %s260, 4
      %s262 = scalar_lea.vmem %s5, %s261
      %s263 = smul.u32 11, %s17
      %v265 = vld [vmem:[%s241] sm:$0xff]
      %v266 = vld [vmem:[%s241 + $0x8] sm:$0xff]
      %v267 = vld [vmem:[%s241 + $0x10] sm:$0xff]
      %v268 = vld [vmem:[%s241 + $0x18] sm:$0xf]
      %v269 = vld [vmem:[%s241 + $0x1c] sm:$0xff]
      %v270 = vld [vmem:[%s241 + $0x24] sm:$0xff]
      %v271 = vld [vmem:[%s241 + $0x2c] sm:$0xff]
      %v272 = vld [vmem:[%s241 + $0x34] sm:$0xf]
      %v273 = vld [vmem:[%s241 + $0x38] sm:$0xff]
      %v274 = vld [vmem:[%s241 + $0x40] sm:$0xff]
      %v275 = vld [vmem:[%s241 + $0x48] sm:$0xff]
      %v276 = vld [vmem:[%s241 + $0x50] sm:$0xf]
      %v277 = vld [vmem:[%s241 + $0x54] sm:$0xff]
      %v278 = vld [vmem:[%s241 + $0x5c] sm:$0xff]
      %v279 = vld [vmem:[%s241 + $0x64] sm:$0xff]
      %v280 = vld [vmem:[%s241 + $0x6c] sm:$0xf]
      %v281 = vld [vmem:[%s241 + $0x70] sm:$0xff]
      %v282 = vld [vmem:[%s241 + $0x78] sm:$0xff]
      %v283 = vld [vmem:[%s241 + $0x80] sm:$0xff]
      %v284 = vld [vmem:[%s241 + $0x88] sm:$0xf]
      %v285 = vld [vmem:[%s241 + $0x8c] sm:$0xff]
      %v286 = vld [vmem:[%s241 + $0x94] sm:$0xff]
      %v287 = vld [vmem:[%s241 + $0x9c] sm:$0xff]
      %v288 = vld [vmem:[%s241 + $0xa4] sm:$0xf]
      %v289 = vld [vmem:[%s241 + $0xa8] sm:$0xff]
      %v290 = vld [vmem:[%s241 + $0xb0] sm:$0xff]
      %v291 = vld [vmem:[%s241 + $0xb8] sm:$0xff]
      %v292 = vld [vmem:[%s241 + $0xc0] sm:$0xf]
      %v293 = vld [vmem:[%s241 + $0xc4] sm:$0xff]
      %v294 = vld [vmem:[%s241 + $0xcc] sm:$0xff]
      %v295 = vld [vmem:[%s241 + $0xd4] sm:$0xff]
      %v296 = vld [vmem:[%s241 + $0xdc] sm:$0xf]
      %v297 = vld [vmem:[%s241 + $0xe0] sm:$0xff]
      %v298 = vld [vmem:[%s241 + $0xe8] sm:$0xff]
      %v299 = vld [vmem:[%s241 + $0xf0] sm:$0xff]
      %v300 = vld [vmem:[%s241 + $0xf8] sm:$0xf]
      %v301 = vld [vmem:[%s241 + $0xfc] sm:$0xff]
      %v302 = vld [vmem:[%s241 + $0x104] sm:$0xff]
      %v303 = vld [vmem:[%s241 + $0x10c] sm:$0xff]
      %v304 = vld [vmem:[%s241 + $0x114] sm:$0xf]
      %v305 = vld [vmem:[%s241 + $0x118] sm:$0xff]
      %v306 = vld [vmem:[%s241 + $0x120] sm:$0xff]
      %v307 = vld [vmem:[%s241 + $0x128] sm:$0xff]
      %v308 = vld [vmem:[%s241 + $0x130] sm:$0xf]
      %v309 = vld [vmem:[%s1] sm:$0xff]
      %v310 = vld [vmem:[%s1 + $0x8] sm:$0xff]
      %v311 = vld [vmem:[%s1 + $0x10] sm:$0xff]
      %v312 = vld [vmem:[%s1 + $0x18] sm:$0xff]
      %v313 = vld [vmem:[%s1 + $0x20] sm:$0xff]
      %v314 = vld [vmem:[%s1 + $0x28] sm:$0xff]
      %v315 = vld [vmem:[%s1 + $0x30] sm:$0xff]
      %v316 = vld [vmem:[%s1 + $0x38] sm:$0xff]
      %v317 = vld [vmem:[%s1 + $0x40] sm:$0xff]
      %v318 = vld [vmem:[%s1 + $0x48] sm:$0xff]
      %v319 = vld [vmem:[%s1 + $0x50] sm:$0xff]
      %v320 = vld [vmem:[%s1 + $0x58] sm:$0xff]
      %v321 = vld [vmem:[%s1 + $0x60] sm:$0xff]
      %v322 = vld [vmem:[%s1 + $0x68] sm:$0xff]
      %v323 = vld [vmem:[%s1 + $0x70] sm:$0xff]
      %v324 = vld [vmem:[%s1 + $0x78] sm:$0xff]
      %v325 = vld [vmem:[%s1 + $0x80] sm:$0xff]
      %v326 = vld [vmem:[%s1 + $0x88] sm:$0xff]
      %v327 = vld [vmem:[%s1 + $0x90] sm:$0xff]
      %v328 = vld [vmem:[%s1 + $0x98] sm:$0xff]
      %v329 = vld [vmem:[%s1 + $0xa0] sm:$0xff]
      %v330 = vld [vmem:[%s1 + $0xa8] sm:$0xff]
      %v331 = vld [vmem:[%s1 + $0xb0] sm:$0xff]
      %v332 = vld [vmem:[%s1 + $0xb8] sm:$0xff]
      %v333 = vld [vmem:[%s1 + $0xc0] sm:$0xff]
      %v334 = vld [vmem:[%s1 + $0xc8] sm:$0xff]
      %v335 = vld [vmem:[%s1 + $0xd0] sm:$0xff]
      %v336 = vld [vmem:[%s1 + $0xd8] sm:$0xff]
      %v337 = vld [vmem:[%s1 + $0xe0] sm:$0xff]
      %v338 = vld [vmem:[%s1 + $0xe8] sm:$0xff]
      %v339 = vld [vmem:[%s1 + $0xf0] sm:$0xff]
      %v340 = vld [vmem:[%s1 + $0xf8] sm:$0xff]
      %v341 = vld [vmem:[%s1 + $0x100] sm:$0xff]
      %v342 = vld [vmem:[%s1 + $0x108] sm:$0xff]
      %v343 = vld [vmem:[%s1 + $0x110] sm:$0xff]
      %v344 = vld [vmem:[%s1 + $0x118] sm:$0xff]
      %v345 = vld [vmem:[%s1 + $0x120] sm:$0xff]
      %v346 = vld [vmem:[%s1 + $0x128] sm:$0xff]
      %v347 = vld [vmem:[%s1 + $0x130] sm:$0xff]
      %v348 = vld [vmem:[%s1 + $0x138] sm:$0xff]
      %v349 = vld [vmem:[%s1 + $0x140] sm:$0xff]
      %v350 = vld [vmem:[%s1 + $0x148] sm:$0xff]
      %v351 = vld [vmem:[%s1 + $0x150] sm:$0xff]
      %v352 = vld [vmem:[%s1 + $0x158] sm:$0xff]
      %v353 = vld [vmem:[%s1 + $0x160] sm:$0xff]
      %v354 = vld [vmem:[%s1 + $0x168] sm:$0xff]
      %v355 = vld [vmem:[%s1 + $0x170] sm:$0xff]
      %v356 = vld [vmem:[%s1 + $0x178] sm:$0xff]
      %v357 = vld [vmem:[%s1 + $0x180] sm:$0xff]
      %v358 = vld [vmem:[%s1 + $0x188] sm:$0xff]
      %v359 = vld [vmem:[%s1 + $0x190] sm:$0xff]
      %v360 = vld [vmem:[%s1 + $0x198] sm:$0xff]
      %v361 = vld [vmem:[%s1 + $0x1a0] sm:$0xff]
      %v362 = vld [vmem:[%s1 + $0x1a8] sm:$0xff]
      %v363 = vld [vmem:[%s1 + $0x1b0] sm:$0xff]
      %v364 = vld [vmem:[%s1 + $0x1b8] sm:$0xff]
      %v365 = vld [vmem:[%s1 + $0x1c0] sm:$0xff]
      %v366 = vld [vmem:[%s1 + $0x1c8] sm:$0xff]
      %v367 = vld [vmem:[%s1 + $0x1d0] sm:$0xff]
      %v368 = vld [vmem:[%s1 + $0x1d8] sm:$0xff]
      %v369 = vld [vmem:[%s1 + $0x1e0] sm:$0xff]
      %v370 = vld [vmem:[%s1 + $0x1e8] sm:$0xff]
      %v371 = vld [vmem:[%s1 + $0x1f0] sm:$0xff]
      %v372 = vld [vmem:[%s1 + $0x1f8] sm:$0xff]
      %v373 = vld [vmem:[%s1 + $0x200] sm:$0xff]
      %v374 = vld [vmem:[%s1 + $0x208] sm:$0xff]
      %v375 = vld [vmem:[%s1 + $0x210] sm:$0xff]
      %v376 = vld [vmem:[%s1 + $0x218] sm:$0xff]
      %v377 = vld [vmem:[%s1 + $0x220] sm:$0xff]
      %v378 = vld [vmem:[%s1 + $0x228] sm:$0xff]
      %v379 = vld [vmem:[%s1 + $0x230] sm:$0xff]
      %v380 = vld [vmem:[%s1 + $0x238] sm:$0xff]
      %v381 = vld [vmem:[%s1 + $0x240] sm:$0xff]
      %v382 = vld [vmem:[%s1 + $0x248] sm:$0xff]
      %v383 = vld [vmem:[%s1 + $0x250] sm:$0xff]
      %v384 = vld [vmem:[%s1 + $0x258] sm:$0xff]
      %v385 = vld [vmem:[%s1 + $0x260] sm:$0xff]
      %v386 = vld [vmem:[%s1 + $0x268] sm:$0xff]
      %v387 = vld [vmem:[%s1 + $0x270] sm:$0xff]
      %v388 = vld [vmem:[%s1 + $0x278] sm:$0xff]
      %v389 = vld [vmem:[%s1 + $0x280] sm:$0xff]
      %v390 = vld [vmem:[%s1 + $0x288] sm:$0xff]
      %v391 = vld [vmem:[%s1 + $0x290] sm:$0xff]
      %v392 = vld [vmem:[%s1 + $0x298] sm:$0xff]
      %v393 = vld [vmem:[%s1 + $0x2a0] sm:$0xff]
      %v394 = vld [vmem:[%s1 + $0x2a8] sm:$0xff]
      %v395 = vld [vmem:[%s1 + $0x2b0] sm:$0xff]
      %v396 = vld [vmem:[%s1 + $0x2b8] sm:$0xff]
      %v397 = vld [vmem:[%s1 + $0x2c0] sm:$0xff]
      %v398 = vld [vmem:[%s1 + $0x2c8] sm:$0xff]
      %v399 = vld [vmem:[%s1 + $0x2d0] sm:$0xff]
      %v400 = vld [vmem:[%s1 + $0x2d8] sm:$0xff]
      %v401 = vld [vmem:[%s1 + $0x2e0] sm:$0xff]
      %v402 = vld [vmem:[%s1 + $0x2e8] sm:$0xff]
      %v403 = vld [vmem:[%s1 + $0x2f0] sm:$0xff]
      %v404 = vld [vmem:[%s1 + $0x2f8] sm:$0xff]
      %v405 = vld [vmem:[%s1 + $0x300] sm:$0xff]
      %v406 = vld [vmem:[%s1 + $0x308] sm:$0xff]
      %v407 = vld [vmem:[%s1 + $0x310] sm:$0xff]
      %v408 = vld [vmem:[%s1 + $0x318] sm:$0xff]
      %v409 = vld [vmem:[%s1 + $0x320] sm:$0xff]
      %v410 = vld [vmem:[%s1 + $0x328] sm:$0xff]
      %v411 = vld [vmem:[%s1 + $0x330] sm:$0xff]
      %v412 = vld [vmem:[%s1 + $0x338] sm:$0xff]
      %v413 = vld [vmem:[%s1 + $0x340] sm:$0xff]
      %v414 = vld [vmem:[%s1 + $0x348] sm:$0xff]
      %v415 = vld [vmem:[%s1 + $0x350] sm:$0xff]
      %v416 = vld [vmem:[%s1 + $0x358] sm:$0xff]
      %v417 = vld [vmem:[%s1 + $0x360] sm:$0xff]
      %v418 = vld [vmem:[%s1 + $0x368] sm:$0xff]
      %v419 = vld [vmem:[%s1 + $0x370] sm:$0xff]
      %v420 = vld [vmem:[%s1 + $0x378] sm:$0xff]
      %v421 = vld [vmem:[%s1 + $0x380] sm:$0xff]
      %v422 = vld [vmem:[%s1 + $0x388] sm:$0xff]
      %v423 = vld [vmem:[%s1 + $0x390] sm:$0xff]
      %v424 = vld [vmem:[%s1 + $0x398] sm:$0xff]
      %v425 = vld [vmem:[%s1 + $0x3a0] sm:$0xff]
      %v426 = vld [vmem:[%s1 + $0x3a8] sm:$0xff]
      %v427 = vld [vmem:[%s1 + $0x3b0] sm:$0xff]
      %v428 = vld [vmem:[%s1 + $0x3b8] sm:$0xff]
      %v429 = vld [vmem:[%s1 + $0x3c0] sm:$0xff]
      %v430 = vld [vmem:[%s1 + $0x3c8] sm:$0xff]
      %v431 = vld [vmem:[%s1 + $0x3d0] sm:$0xff]
      %v432 = vld [vmem:[%s1 + $0x3d8] sm:$0xff]
      %v433 = vld [vmem:[%s1 + $0x3e0] sm:$0xff]
      %v434 = vld [vmem:[%s1 + $0x3e8] sm:$0xff]
      %v435 = vld [vmem:[%s1 + $0x3f0] sm:$0xff]
      %v436 = vld [vmem:[%s1 + $0x3f8] sm:$0xff]
      %v437 = vld [vmem:[%s1 + $0x400] sm:$0xff]
      %v438 = vld [vmem:[%s1 + $0x408] sm:$0xff]
      %v439 = vld [vmem:[%s1 + $0x410] sm:$0xff]
      %v440 = vld [vmem:[%s1 + $0x418] sm:$0xff]
      %v441 = vld [vmem:[%s1 + $0x420] sm:$0xff]
      %v442 = vld [vmem:[%s1 + $0x428] sm:$0xff]
      %v443 = vld [vmem:[%s1 + $0x430] sm:$0xff]
      %v444 = vld [vmem:[%s1 + $0x438] sm:$0xff]
      %v445 = vld [vmem:[%s1 + $0x440] sm:$0xff]
      %v446 = vld [vmem:[%s1 + $0x448] sm:$0xff]
      %v447 = vld [vmem:[%s1 + $0x450] sm:$0xff]
      %v448 = vld [vmem:[%s1 + $0x458] sm:$0xff]
      %v449 = vld [vmem:[%s1 + $0x460] sm:$0xff]
      %v450 = vld [vmem:[%s1 + $0x468] sm:$0xff]
      %v451 = vld [vmem:[%s1 + $0x470] sm:$0xff]
      %v452 = vld [vmem:[%s1 + $0x478] sm:$0xff]
      %v453 = vld [vmem:[%s1 + $0x480] sm:$0xff]
      %v454 = vld [vmem:[%s1 + $0x488] sm:$0xff]
      %v455 = vld [vmem:[%s1 + $0x490] sm:$0xff]
      %v456 = vld [vmem:[%s1 + $0x498] sm:$0xff]
      %v457 = vld [vmem:[%s1 + $0x4a0] sm:$0xff]
      %v458 = vld [vmem:[%s1 + $0x4a8] sm:$0xff]
      %v459 = vld [vmem:[%s1 + $0x4b0] sm:$0xff]
      %v460 = vld [vmem:[%s1 + $0x4b8] sm:$0xff]
      %v461 = vld [vmem:[%s1 + $0x4c0] sm:$0xff]
      %v462 = vld [vmem:[%s1 + $0x4c8] sm:$0xff]
      %v463 = vld [vmem:[%s1 + $0x4d0] sm:$0xff]
      %v464 = vld [vmem:[%s1 + $0x4d8] sm:$0xff]
      %v465 = vld [vmem:[%s1 + $0x4e0] sm:$0xff]
      %v466 = vld [vmem:[%s1 + $0x4e8] sm:$0xff]
      %v467 = vld [vmem:[%s1 + $0x4f0] sm:$0xff]
      %v468 = vld [vmem:[%s1 + $0x4f8] sm:$0xff]
      %v469 = vld [vmem:[%s1 + $0x500] sm:$0xff]
      %v470 = vld [vmem:[%s1 + $0x508] sm:$0xff]
      %v471 = vld [vmem:[%s1 + $0x510] sm:$0xff]
      %v472 = vld [vmem:[%s1 + $0x518] sm:$0xff]
      %v473 = vld [vmem:[%s1 + $0x520] sm:$0xff]
      %v474 = vld [vmem:[%s1 + $0x528] sm:$0xff]
      %v475 = vld [vmem:[%s1 + $0x530] sm:$0xff]
      %v476 = vld [vmem:[%s1 + $0x538] sm:$0xff]
      %v477 = vld [vmem:[%s1 + $0x540] sm:$0xff]
      %v478 = vld [vmem:[%s1 + $0x548] sm:$0xff]
      %v479 = vld [vmem:[%s1 + $0x550] sm:$0xff]
      %v480 = vld [vmem:[%s1 + $0x558] sm:$0xff]
      %v481 = vld [vmem:[%s1 + $0x560] sm:$0xff]
      %v482 = vld [vmem:[%s1 + $0x568] sm:$0xff]
      %v483 = vld [vmem:[%s1 + $0x570] sm:$0xff]
      %v484 = vld [vmem:[%s1 + $0x578] sm:$0xff]
      %v485 = vld [vmem:[%s1 + $0x580] sm:$0xff]
      %v486 = vld [vmem:[%s1 + $0x588] sm:$0xff]
      %v487 = vld [vmem:[%s1 + $0x590] sm:$0xff]
      %v488 = vld [vmem:[%s1 + $0x598] sm:$0xff]
      %v489 = vld [vmem:[%s1 + $0x5a0] sm:$0xff]
      %v490 = vld [vmem:[%s1 + $0x5a8] sm:$0xff]
      %v491 = vld [vmem:[%s1 + $0x5b0] sm:$0xff]
      %v492 = vld [vmem:[%s1 + $0x5b8] sm:$0xff]
      %v493 = vld [vmem:[%s1 + $0x5c0] sm:$0xff]
      %v494 = vld [vmem:[%s1 + $0x5c8] sm:$0xff]
      %v495 = vld [vmem:[%s1 + $0x5d0] sm:$0xff]
      %v496 = vld [vmem:[%s1 + $0x5d8] sm:$0xff]
      %v497 = vld [vmem:[%s1 + $0x5e0] sm:$0xff]
      %v498 = vld [vmem:[%s1 + $0x5e8] sm:$0xff]
      %v499 = vld [vmem:[%s1 + $0x5f0] sm:$0xff]
      %v500 = vld [vmem:[%s1 + $0x5f8] sm:$0xff]
      %v501 = vld [vmem:[%s1 + $0x600] sm:$0xff]
      %v502 = vld [vmem:[%s1 + $0x608] sm:$0xff]
      %v503 = vld [vmem:[%s1 + $0x610] sm:$0xff]
      %v504 = vld [vmem:[%s1 + $0x618] sm:$0xff]
      %v505 = vld [vmem:[%s1 + $0x620] sm:$0xff]
      %v506 = vld [vmem:[%s1 + $0x628] sm:$0xff]
      %v507 = vld [vmem:[%s1 + $0x630] sm:$0xff]
      %v508 = vld [vmem:[%s1 + $0x638] sm:$0xff]
      %v509 = vld [vmem:[%s1 + $0x640] sm:$0xff]
      %v510 = vld [vmem:[%s1 + $0x648] sm:$0xff]
      %v511 = vld [vmem:[%s1 + $0x650] sm:$0xff]
      %v512 = vld [vmem:[%s1 + $0x658] sm:$0xff]
      %v513 = vld [vmem:[%s1 + $0x660] sm:$0xff]
      %v514 = vld [vmem:[%s1 + $0x668] sm:$0xff]
      %v515 = vld [vmem:[%s1 + $0x670] sm:$0xff]
      %v516 = vld [vmem:[%s1 + $0x678] sm:$0xff]
      %v517 = vld [vmem:[%s1 + $0x680] sm:$0xff]
      %v518 = vld [vmem:[%s1 + $0x688] sm:$0xff]
      %v519 = vld [vmem:[%s1 + $0x690] sm:$0xff]
      %v520 = vld [vmem:[%s1 + $0x698] sm:$0xff]
      %v521 = vld [vmem:[%s1 + $0x6a0] sm:$0xff]
      %v522 = vld [vmem:[%s1 + $0x6a8] sm:$0xff]
      %v523 = vld [vmem:[%s1 + $0x6b0] sm:$0xff]
      %v524 = vld [vmem:[%s1 + $0x6b8] sm:$0xff]
      %v525 = vld [vmem:[%s1 + $0x6c0] sm:$0xff]
      %v526 = vld [vmem:[%s1 + $0x6c8] sm:$0xff]
      %v527 = vld [vmem:[%s1 + $0x6d0] sm:$0xff]
      %v528 = vld [vmem:[%s1 + $0x6d8] sm:$0xff]
      %v529 = vld [vmem:[%s1 + $0x6e0] sm:$0xff]
      %v530 = vld [vmem:[%s1 + $0x6e8] sm:$0xff]
      %v531 = vld [vmem:[%s1 + $0x6f0] sm:$0xff]
      %v532 = vld [vmem:[%s1 + $0x6f8] sm:$0xff]
      %v533 = vld [vmem:[%s1 + $0x700] sm:$0xff]
      %v534 = vld [vmem:[%s1 + $0x708] sm:$0xff]
      %v535 = vld [vmem:[%s1 + $0x710] sm:$0xff]
      %v536 = vld [vmem:[%s1 + $0x718] sm:$0xff]
      %v537 = vld [vmem:[%s1 + $0x720] sm:$0xff]
      %v538 = vld [vmem:[%s1 + $0x728] sm:$0xff]
      %v539 = vld [vmem:[%s1 + $0x730] sm:$0xff]
      %v540 = vld [vmem:[%s1 + $0x738] sm:$0xff]
      %v541 = vld [vmem:[%s1 + $0x740] sm:$0xff]
      %v542 = vld [vmem:[%s1 + $0x748] sm:$0xff]
      %v543 = vld [vmem:[%s1 + $0x750] sm:$0xff]
      %v544 = vld [vmem:[%s1 + $0x758] sm:$0xff]
      %v545 = vld [vmem:[%s1 + $0x760] sm:$0xff]
      %v546 = vld [vmem:[%s1 + $0x768] sm:$0xff]
      %v547 = vld [vmem:[%s1 + $0x770] sm:$0xff]
      %v548 = vld [vmem:[%s1 + $0x778] sm:$0xff]
      %v549 = vld [vmem:[%s1 + $0x780] sm:$0xff]
      %v550 = vld [vmem:[%s1 + $0x788] sm:$0xff]
      %v551 = vld [vmem:[%s1 + $0x790] sm:$0xff]
      %v552 = vld [vmem:[%s1 + $0x798] sm:$0xff]
      %v553 = vld [vmem:[%s1 + $0x7a0] sm:$0xff]
      %v554 = vld [vmem:[%s1 + $0x7a8] sm:$0xff]
      %v555 = vld [vmem:[%s1 + $0x7b0] sm:$0xff]
      %v556 = vld [vmem:[%s1 + $0x7b8] sm:$0xff]
      %v557 = vld [vmem:[%s1 + $0x7c0] sm:$0xff]
      %v558 = vld [vmem:[%s1 + $0x7c8] sm:$0xff]
      %v559 = vld [vmem:[%s1 + $0x7d0] sm:$0xff]
      %v560 = vld [vmem:[%s1 + $0x7d8] sm:$0xff]
      %v561 = vld [vmem:[%s1 + $0x7e0] sm:$0xff]
      %v562 = vld [vmem:[%s1 + $0x7e8] sm:$0xff]
      %v563 = vld [vmem:[%s1 + $0x7f0] sm:$0xff]
      %v564 = vld [vmem:[%s1 + $0x7f8] sm:$0xff]
      %v565 = vld [vmem:[%s1 + $0x800] sm:$0xff]
      %v566 = vld [vmem:[%s1 + $0x808] sm:$0xff]
      %v567 = vld [vmem:[%s1 + $0x810] sm:$0xff]
      %v568 = vld [vmem:[%s1 + $0x818] sm:$0xff]
      %v569 = vld [vmem:[%s1 + $0x820] sm:$0xff]
      %v570 = vld [vmem:[%s1 + $0x828] sm:$0xff]
      %v571 = vld [vmem:[%s1 + $0x830] sm:$0xff]
      %v572 = vld [vmem:[%s1 + $0x838] sm:$0xff]
      %v573 = vld [vmem:[%s1 + $0x840] sm:$0xff]
      %v574 = vld [vmem:[%s1 + $0x848] sm:$0xff]
      %v575 = vld [vmem:[%s1 + $0x850] sm:$0xff]
      %v576 = vld [vmem:[%s1 + $0x858] sm:$0xff]
      %v577 = vld [vmem:[%s1 + $0x860] sm:$0xff]
      %v578 = vld [vmem:[%s1 + $0x868] sm:$0xff]
      %v579 = vld [vmem:[%s1 + $0x870] sm:$0xff]
      %v580 = vld [vmem:[%s1 + $0x878] sm:$0xff]
      %v581 = vld [vmem:[%s1 + $0x880] sm:$0xff]
      %v582 = vld [vmem:[%s1 + $0x888] sm:$0xff]
      %v583 = vld [vmem:[%s1 + $0x890] sm:$0xff]
      %v584 = vld [vmem:[%s1 + $0x898] sm:$0xff]
      %v585 = vld [vmem:[%s1 + $0x8a0] sm:$0xff]
      %v586 = vld [vmem:[%s1 + $0x8a8] sm:$0xff]
      %v587 = vld [vmem:[%s1 + $0x8b0] sm:$0xff]
      %v588 = vld [vmem:[%s1 + $0x8b8] sm:$0xff]
      %v589 = vld [vmem:[%s1 + $0x8c0] sm:$0xff]
      %v590 = vld [vmem:[%s1 + $0x8c8] sm:$0xff]
      %v591 = vld [vmem:[%s1 + $0x8d0] sm:$0xff]
      %v592 = vld [vmem:[%s1 + $0x8d8] sm:$0xff]
      %v593 = vld [vmem:[%s1 + $0x8e0] sm:$0xff]
      %v594 = vld [vmem:[%s1 + $0x8e8] sm:$0xff]
      %v595 = vld [vmem:[%s1 + $0x8f0] sm:$0xff]
      %v596 = vld [vmem:[%s1 + $0x8f8] sm:$0xff]
      %v597 = vld [vmem:[%s1 + $0x900] sm:$0xff]
      %v598 = vld [vmem:[%s1 + $0x908] sm:$0xff]
      %v599 = vld [vmem:[%s1 + $0x910] sm:$0xff]
      %v600 = vld [vmem:[%s1 + $0x918] sm:$0xff]
      %v601 = vld [vmem:[%s1 + $0x920] sm:$0xff]
      %v602 = vld [vmem:[%s1 + $0x928] sm:$0xff]
      %v603 = vld [vmem:[%s1 + $0x930] sm:$0xff]
      %v604 = vld [vmem:[%s1 + $0x938] sm:$0xff]
      %v605 = vld [vmem:[%s1 + $0x940] sm:$0xff]
      %v606 = vld [vmem:[%s1 + $0x948] sm:$0xff]
      %v607 = vld [vmem:[%s1 + $0x950] sm:$0xff]
      %v608 = vld [vmem:[%s1 + $0x958] sm:$0xff]
      %v609 = vld [vmem:[%s1 + $0x960] sm:$0xff]
      %v610 = vld [vmem:[%s1 + $0x968] sm:$0xff]
      %v611 = vld [vmem:[%s1 + $0x970] sm:$0xff]
      %v612 = vld [vmem:[%s1 + $0x978] sm:$0xff]
      %v613 = vld [vmem:[%s1 + $0x980] sm:$0xff]
      %v614 = vld [vmem:[%s1 + $0x988] sm:$0xff]
      %v615 = vld [vmem:[%s1 + $0x990] sm:$0xff]
      %v616 = vld [vmem:[%s1 + $0x998] sm:$0xff]
      %v617 = vld [vmem:[%s1 + $0x9a0] sm:$0xff]
      %v618 = vld [vmem:[%s1 + $0x9a8] sm:$0xff]
      %v619 = vld [vmem:[%s1 + $0x9b0] sm:$0xff]
      %v620 = vld [vmem:[%s1 + $0x9b8] sm:$0xff]
      %v621 = vld [vmem:[%s1 + $0x9c0] sm:$0xff]
      %v622 = vld [vmem:[%s1 + $0x9c8] sm:$0xff]
      %v623 = vld [vmem:[%s1 + $0x9d0] sm:$0xff]
      %v624 = vld [vmem:[%s1 + $0x9d8] sm:$0xff]
      %v625 = vld [vmem:[%s1 + $0x9e0] sm:$0xff]
      %v626 = vld [vmem:[%s1 + $0x9e8] sm:$0xff]
      %v627 = vld [vmem:[%s1 + $0x9f0] sm:$0xff]
      %v628 = vld [vmem:[%s1 + $0x9f8] sm:$0xff]
      %v629 = vld [vmem:[%s1 + $0xa00] sm:$0xff]
      %v630 = vld [vmem:[%s1 + $0xa08] sm:$0xff]
      %v631 = vld [vmem:[%s1 + $0xa10] sm:$0xff]
      %v632 = vld [vmem:[%s1 + $0xa18] sm:$0xff]
      %v633 = vld [vmem:[%s1 + $0xa20] sm:$0xff]
      %v634 = vld [vmem:[%s1 + $0xa28] sm:$0xff]
      %v635 = vld [vmem:[%s1 + $0xa30] sm:$0xff]
      %v636 = vld [vmem:[%s1 + $0xa38] sm:$0xff]
      %v637 = vld [vmem:[%s1 + $0xa40] sm:$0xff]
      %v638 = vld [vmem:[%s1 + $0xa48] sm:$0xff]
      %v639 = vld [vmem:[%s1 + $0xa50] sm:$0xff]
      %v640 = vld [vmem:[%s1 + $0xa58] sm:$0xff]
      %v641 = vld [vmem:[%s1 + $0xa60] sm:$0xff]
      %v642 = vld [vmem:[%s1 + $0xa68] sm:$0xff]
      %v643 = vld [vmem:[%s1 + $0xa70] sm:$0xff]
      %v644 = vld [vmem:[%s1 + $0xa78] sm:$0xff]
      %v645 = vld [vmem:[%s2] sm:$0x3f]
      %v647 = vlaneseq
      %v648 = vshrl.u32 %v647, 7
      %v649 = vsub.s32 0, %v648
      %v650 = vrot.slane %v645, %v649
      %v651 = vlaneseq
      %v652 = vshrl.u32 %v651, 7
      %v653 = vsub.s32 1, %v652
      %v654 = vrot.slane %v645, %v653
      %v655 = vlaneseq
      %v656 = vshrl.u32 %v655, 7
      %v657 = vsub.s32 2, %v656
      %v658 = vrot.slane %v645, %v657
      %v659 = vlaneseq
      %v660 = vshrl.u32 %v659, 7
      %v661 = vsub.s32 3, %v660
      %v662 = vrot.slane %v645, %v661
      %v663 = vlaneseq
      %v664 = vshrl.u32 %v663, 7
      %v665 = vsub.s32 4, %v664
      %v666 = vrot.slane %v645, %v665
      %v667 = vlaneseq
      %v668 = vshrl.u32 %v667, 7
      %v669 = vsub.s32 5, %v668
      %v670 = vrot.slane %v645, %v669
      %v721 = vunpack.c.l.b16 %v265
      %v722 = vunpack.c.h.b16 %v265
      %v723 = vunpack.c.l.b16 %v266
      %v724 = vunpack.c.h.b16 %v266
      %v725 = vunpack.c.l.b16 %v267
      %v726 = vunpack.c.h.b16 %v267
      %v727 = vunpack.c.l.b16 %v268
      %v728 = vunpack.c.l.b16 %v269
      %v729 = vunpack.c.h.b16 %v269
      %v730 = vunpack.c.l.b16 %v270
      %v731 = vunpack.c.h.b16 %v270
      %v732 = vunpack.c.l.b16 %v271
      %v733 = vunpack.c.h.b16 %v271
      %v734 = vunpack.c.l.b16 %v272
      %v735 = vunpack.c.l.b16 %v273
      %v736 = vunpack.c.h.b16 %v273
      %v737 = vunpack.c.l.b16 %v274
      %v738 = vunpack.c.h.b16 %v274
      %v739 = vunpack.c.l.b16 %v275
      %v740 = vunpack.c.h.b16 %v275
      %v741 = vunpack.c.l.b16 %v276
      %v742 = vunpack.c.l.b16 %v277
      %v743 = vunpack.c.h.b16 %v277
      %v744 = vunpack.c.l.b16 %v278
      %v745 = vunpack.c.h.b16 %v278
      %v746 = vunpack.c.l.b16 %v279
      %v747 = vunpack.c.h.b16 %v279
      %v748 = vunpack.c.l.b16 %v280
      %v749 = vunpack.c.l.b16 %v281
      %v750 = vunpack.c.h.b16 %v281
      %v751 = vunpack.c.l.b16 %v282
      %v752 = vunpack.c.h.b16 %v282
      %v753 = vunpack.c.l.b16 %v283
      %v754 = vunpack.c.h.b16 %v283
      %v755 = vunpack.c.l.b16 %v284
      %v756 = vunpack.c.l.b16 %v285
      %v757 = vunpack.c.h.b16 %v285
      %v758 = vunpack.c.l.b16 %v286
      %v759 = vunpack.c.h.b16 %v286
      %v760 = vunpack.c.l.b16 %v287
      %v761 = vunpack.c.h.b16 %v287
      %v762 = vunpack.c.l.b16 %v288
      %v763 = vunpack.c.l.b16 %v289
      %v764 = vunpack.c.h.b16 %v289
      %v765 = vunpack.c.l.b16 %v290
      %v766 = vunpack.c.h.b16 %v290
      %v767 = vunpack.c.l.b16 %v291
      %v768 = vunpack.c.h.b16 %v291
      %v769 = vunpack.c.l.b16 %v292
      %v770 = vunpack.c.l.b16 %v293
      %v771 = vunpack.c.h.b16 %v293
      %v772 = vunpack.c.l.b16 %v294
      %v773 = vunpack.c.h.b16 %v294
      %v774 = vunpack.c.l.b16 %v295
      %v775 = vunpack.c.h.b16 %v295
      %v776 = vunpack.c.l.b16 %v296
      %v777 = vunpack.c.l.b16 %v297
      %v778 = vunpack.c.h.b16 %v297
      %v779 = vunpack.c.l.b16 %v298
      %v780 = vunpack.c.h.b16 %v298
      %v781 = vunpack.c.l.b16 %v299
      %v782 = vunpack.c.h.b16 %v299
      %v783 = vunpack.c.l.b16 %v300
      %v784 = vunpack.c.l.b16 %v301
      %v785 = vunpack.c.h.b16 %v301
      %v786 = vunpack.c.l.b16 %v302
      %v787 = vunpack.c.h.b16 %v302
      %v788 = vunpack.c.l.b16 %v303
      %v789 = vunpack.c.h.b16 %v303
      %v790 = vunpack.c.l.b16 %v304
      %v791 = vunpack.c.l.b16 %v305
      %v792 = vunpack.c.h.b16 %v305
      %v793 = vunpack.c.l.b16 %v306
      %v794 = vunpack.c.h.b16 %v306
      %v795 = vunpack.c.l.b16 %v307
      %v796 = vunpack.c.h.b16 %v307
      %v797 = vunpack.c.l.b16 %v308
      %v798 = vpack.c.b16 %v728, %v721
      %v799 = vpack.c.b16 %v729, %v722
      %v800 = vpack.c.b16 %v730, %v723
      %v801 = vpack.c.b16 %v731, %v724
      %v802 = vpack.c.b16 %v732, %v725
      %v803 = vpack.c.b16 %v733, %v726
      %v804 = vpack.c.b16 %v734, %v727
      %v805 = vpack.c.b16 %v742, %v735
      %v806 = vpack.c.b16 %v743, %v736
      %v807 = vpack.c.b16 %v744, %v737
      %v808 = vpack.c.b16 %v745, %v738
      %v809 = vpack.c.b16 %v746, %v739
      %v810 = vpack.c.b16 %v747, %v740
      %v811 = vpack.c.b16 %v748, %v741
      %v812 = vpack.c.b16 %v756, %v749
      %v813 = vpack.c.b16 %v757, %v750
      %v814 = vpack.c.b16 %v758, %v751
      %v815 = vpack.c.b16 %v759, %v752
      %v816 = vpack.c.b16 %v760, %v753
      %v817 = vpack.c.b16 %v761, %v754
      %v818 = vpack.c.b16 %v762, %v755
      %v819 = vpack.c.b16 %v770, %v763
      %v820 = vpack.c.b16 %v771, %v764
      %v821 = vpack.c.b16 %v772, %v765
      %v822 = vpack.c.b16 %v773, %v766
      %v823 = vpack.c.b16 %v774, %v767
      %v824 = vpack.c.b16 %v775, %v768
      %v825 = vpack.c.b16 %v776, %v769
      %v826 = vpack.c.b16 %v784, %v777
      %v827 = vpack.c.b16 %v785, %v778
      %v828 = vpack.c.b16 %v786, %v779
      %v829 = vpack.c.b16 %v787, %v780
      %v830 = vpack.c.b16 %v788, %v781
      %v831 = vpack.c.b16 %v789, %v782
      %v832 = vpack.c.b16 %v790, %v783
      %v833 = vpack.c.b16 %v791, %v791
      %v834 = vpack.c.b16 %v792, %v792
      %v835 = vpack.c.b16 %v793, %v793
      %v836 = vpack.c.b16 %v794, %v794
      %v837 = vpack.c.b16 %v795, %v795
      %v838 = vpack.c.b16 %v796, %v796
      %v839 = vpack.c.b16 %v797, %v797
      %v1218 = vunpack.c.l.b16 %v309
      %v1219 = vunpack.c.h.b16 %v309
      %v1220 = vunpack.c.l.b16 %v310
      %v1221 = vunpack.c.h.b16 %v310
      %v1222 = vunpack.c.l.b16 %v311
      %v1223 = vunpack.c.h.b16 %v311
      %v1224 = vunpack.c.l.b16 %v312
      %v1225 = vunpack.c.h.b16 %v312
      %v1226 = vunpack.c.l.b16 %v313
      %v1227 = vunpack.c.h.b16 %v313
      %v1228 = vunpack.c.l.b16 %v314
      %v1229 = vunpack.c.h.b16 %v314
      %v1230 = vunpack.c.l.b16 %v315
      %v1231 = vunpack.c.h.b16 %v315
      %v1232 = vunpack.c.l.b16 %v316
      %v1233 = vunpack.c.h.b16 %v316
      %v1234 = vunpack.c.l.b16 %v317
      %v1235 = vunpack.c.h.b16 %v317
      %v1236 = vunpack.c.l.b16 %v318
      %v1237 = vunpack.c.h.b16 %v318
      %v1238 = vunpack.c.l.b16 %v319
      %v1239 = vunpack.c.h.b16 %v319
      %v1240 = vunpack.c.l.b16 %v320
      %v1241 = vunpack.c.h.b16 %v320
      %v1242 = vunpack.c.l.b16 %v321
      %v1243 = vunpack.c.h.b16 %v321
      %v1244 = vunpack.c.l.b16 %v322
      %v1245 = vunpack.c.h.b16 %v322
      %v1246 = vunpack.c.l.b16 %v323
      %v1247 = vunpack.c.h.b16 %v323
      %v1248 = vunpack.c.l.b16 %v324
      %v1249 = vunpack.c.h.b16 %v324
      %v1250 = vunpack.c.l.b16 %v325
      %v1251 = vunpack.c.h.b16 %v325
      %v1252 = vunpack.c.l.b16 %v326
      %v1253 = vunpack.c.h.b16 %v326
      %v1254 = vunpack.c.l.b16 %v327
      %v1255 = vunpack.c.h.b16 %v327
      %v1256 = vunpack.c.l.b16 %v328
      %v1257 = vunpack.c.h.b16 %v328
      %v1258 = vunpack.c.l.b16 %v329
      %v1259 = vunpack.c.h.b16 %v329
      %v1260 = vunpack.c.l.b16 %v330
      %v1261 = vunpack.c.h.b16 %v330
      %v1262 = vunpack.c.l.b16 %v331
      %v1263 = vunpack.c.h.b16 %v331
      %v1264 = vunpack.c.l.b16 %v332
      %v1265 = vunpack.c.h.b16 %v332
      %v1266 = vunpack.c.l.b16 %v333
      %v1267 = vunpack.c.h.b16 %v333
      %v1268 = vunpack.c.l.b16 %v334
      %v1269 = vunpack.c.h.b16 %v334
      %v1270 = vunpack.c.l.b16 %v335
      %v1271 = vunpack.c.h.b16 %v335
      %v1272 = vunpack.c.l.b16 %v336
      %v1273 = vunpack.c.h.b16 %v336
      %v1274 = vunpack.c.l.b16 %v337
      %v1275 = vunpack.c.h.b16 %v337
      %v1276 = vunpack.c.l.b16 %v338
      %v1277 = vunpack.c.h.b16 %v338
      %v1278 = vunpack.c.l.b16 %v339
      %v1279 = vunpack.c.h.b16 %v339
      %v1280 = vunpack.c.l.b16 %v340
      %v1281 = vunpack.c.h.b16 %v340
      %v1282 = vunpack.c.l.b16 %v341
      %v1283 = vunpack.c.h.b16 %v341
      %v1284 = vunpack.c.l.b16 %v342
      %v1285 = vunpack.c.h.b16 %v342
      %v1286 = vunpack.c.l.b16 %v343
      %v1287 = vunpack.c.h.b16 %v343
      %v1288 = vunpack.c.l.b16 %v344
      %v1289 = vunpack.c.h.b16 %v344
      %v1290 = vunpack.c.l.b16 %v345
      %v1291 = vunpack.c.h.b16 %v345
      %v1292 = vunpack.c.l.b16 %v346
      %v1293 = vunpack.c.h.b16 %v346
      %v1294 = vunpack.c.l.b16 %v347
      %v1295 = vunpack.c.h.b16 %v347
      %v1296 = vunpack.c.l.b16 %v348
      %v1297 = vunpack.c.h.b16 %v348
      %v1298 = vunpack.c.l.b16 %v349
      %v1299 = vunpack.c.h.b16 %v349
      %v1300 = vunpack.c.l.b16 %v350
      %v1301 = vunpack.c.h.b16 %v350
      %v1302 = vunpack.c.l.b16 %v351
      %v1303 = vunpack.c.h.b16 %v351
      %v1304 = vunpack.c.l.b16 %v352
      %v1305 = vunpack.c.h.b16 %v352
      %v1306 = vunpack.c.l.b16 %v353
      %v1307 = vunpack.c.h.b16 %v353
      %v1308 = vunpack.c.l.b16 %v354
      %v1309 = vunpack.c.h.b16 %v354
      %v1310 = vunpack.c.l.b16 %v355
      %v1311 = vunpack.c.h.b16 %v355
      %v1312 = vunpack.c.l.b16 %v356
      %v1313 = vunpack.c.h.b16 %v356
      %v1314 = vunpack.c.l.b16 %v357
      %v1315 = vunpack.c.h.b16 %v357
      %v1316 = vunpack.c.l.b16 %v358
      %v1317 = vunpack.c.h.b16 %v358
      %v1318 = vunpack.c.l.b16 %v359
      %v1319 = vunpack.c.h.b16 %v359
      %v1320 = vunpack.c.l.b16 %v360
      %v1321 = vunpack.c.h.b16 %v360
      %v1322 = vunpack.c.l.b16 %v361
      %v1323 = vunpack.c.h.b16 %v361
      %v1324 = vunpack.c.l.b16 %v362
      %v1325 = vunpack.c.h.b16 %v362
      %v1326 = vunpack.c.l.b16 %v363
      %v1327 = vunpack.c.h.b16 %v363
      %v1328 = vunpack.c.l.b16 %v364
      %v1329 = vunpack.c.h.b16 %v364
      %v1330 = vunpack.c.l.b16 %v365
      %v1331 = vunpack.c.h.b16 %v365
      %v1332 = vunpack.c.l.b16 %v366
      %v1333 = vunpack.c.h.b16 %v366
      %v1334 = vunpack.c.l.b16 %v367
      %v1335 = vunpack.c.h.b16 %v367
      %v1336 = vunpack.c.l.b16 %v368
      %v1337 = vunpack.c.h.b16 %v368
      %v1338 = vunpack.c.l.b16 %v369
      %v1339 = vunpack.c.h.b16 %v369
      %v1340 = vunpack.c.l.b16 %v370
      %v1341 = vunpack.c.h.b16 %v370
      %v1342 = vunpack.c.l.b16 %v371
      %v1343 = vunpack.c.h.b16 %v371
      %v1344 = vunpack.c.l.b16 %v372
      %v1345 = vunpack.c.h.b16 %v372
      %v1346 = vunpack.c.l.b16 %v373
      %v1347 = vunpack.c.h.b16 %v373
      %v1348 = vunpack.c.l.b16 %v374
      %v1349 = vunpack.c.h.b16 %v374
      %v1350 = vunpack.c.l.b16 %v375
      %v1351 = vunpack.c.h.b16 %v375
      %v1352 = vunpack.c.l.b16 %v376
      %v1353 = vunpack.c.h.b16 %v376
      %v1354 = vunpack.c.l.b16 %v377
      %v1355 = vunpack.c.h.b16 %v377
      %v1356 = vunpack.c.l.b16 %v378
      %v1357 = vunpack.c.h.b16 %v378
      %v1358 = vunpack.c.l.b16 %v379
      %v1359 = vunpack.c.h.b16 %v379
      %v1360 = vunpack.c.l.b16 %v380
      %v1361 = vunpack.c.h.b16 %v380
      %v1362 = vunpack.c.l.b16 %v381
      %v1363 = vunpack.c.h.b16 %v381
      %v1364 = vunpack.c.l.b16 %v382
      %v1365 = vunpack.c.h.b16 %v382
      %v1366 = vunpack.c.l.b16 %v383
      %v1367 = vunpack.c.h.b16 %v383
      %v1368 = vunpack.c.l.b16 %v384
      %v1369 = vunpack.c.h.b16 %v384
      %v1370 = vunpack.c.l.b16 %v385
      %v1371 = vunpack.c.h.b16 %v385
      %v1372 = vunpack.c.l.b16 %v386
      %v1373 = vunpack.c.h.b16 %v386
      %v1374 = vunpack.c.l.b16 %v387
      %v1375 = vunpack.c.h.b16 %v387
      %v1376 = vunpack.c.l.b16 %v388
      %v1377 = vunpack.c.h.b16 %v388
      %v1378 = vunpack.c.l.b16 %v389
      %v1379 = vunpack.c.h.b16 %v389
      %v1380 = vunpack.c.l.b16 %v390
      %v1381 = vunpack.c.h.b16 %v390
      %v1382 = vunpack.c.l.b16 %v391
      %v1383 = vunpack.c.h.b16 %v391
      %v1384 = vunpack.c.l.b16 %v392
      %v1385 = vunpack.c.h.b16 %v392
      %v1386 = vunpack.c.l.b16 %v393
      %v1387 = vunpack.c.h.b16 %v393
      %v1388 = vunpack.c.l.b16 %v394
      %v1389 = vunpack.c.h.b16 %v394
      %v1390 = vunpack.c.l.b16 %v395
      %v1391 = vunpack.c.h.b16 %v395
      %v1392 = vunpack.c.l.b16 %v396
      %v1393 = vunpack.c.h.b16 %v396
      %v1394 = vunpack.c.l.b16 %v397
      %v1395 = vunpack.c.h.b16 %v397
      %v1396 = vunpack.c.l.b16 %v398
      %v1397 = vunpack.c.h.b16 %v398
      %v1398 = vunpack.c.l.b16 %v399
      %v1399 = vunpack.c.h.b16 %v399
      %v1400 = vunpack.c.l.b16 %v400
      %v1401 = vunpack.c.h.b16 %v400
      %v1402 = vunpack.c.l.b16 %v401
      %v1403 = vunpack.c.h.b16 %v401
      %v1404 = vunpack.c.l.b16 %v402
      %v1405 = vunpack.c.h.b16 %v402
      %v1406 = vunpack.c.l.b16 %v403
      %v1407 = vunpack.c.h.b16 %v403
      %v1408 = vunpack.c.l.b16 %v404
      %v1409 = vunpack.c.h.b16 %v404
      %v1410 = vunpack.c.l.b16 %v405
      %v1411 = vunpack.c.h.b16 %v405
      %v1412 = vunpack.c.l.b16 %v406
      %v1413 = vunpack.c.h.b16 %v406
      %v1414 = vunpack.c.l.b16 %v407
      %v1415 = vunpack.c.h.b16 %v407
      %v1416 = vunpack.c.l.b16 %v408
      %v1417 = vunpack.c.h.b16 %v408
      %v1418 = vunpack.c.l.b16 %v409
      %v1419 = vunpack.c.h.b16 %v409
      %v1420 = vunpack.c.l.b16 %v410
      %v1421 = vunpack.c.h.b16 %v410
      %v1422 = vunpack.c.l.b16 %v411
      %v1423 = vunpack.c.h.b16 %v411
      %v1424 = vunpack.c.l.b16 %v412
      %v1425 = vunpack.c.h.b16 %v412
      %v1426 = vunpack.c.l.b16 %v413
      %v1427 = vunpack.c.h.b16 %v413
      %v1428 = vunpack.c.l.b16 %v414
      %v1429 = vunpack.c.h.b16 %v414
      %v1430 = vunpack.c.l.b16 %v415
      %v1431 = vunpack.c.h.b16 %v415
      %v1432 = vunpack.c.l.b16 %v416
      %v1433 = vunpack.c.h.b16 %v416
      %v1434 = vunpack.c.l.b16 %v417
      %v1435 = vunpack.c.h.b16 %v417
      %v1436 = vunpack.c.l.b16 %v418
      %v1437 = vunpack.c.h.b16 %v418
      %v1438 = vunpack.c.l.b16 %v419
      %v1439 = vunpack.c.h.b16 %v419
      %v1440 = vunpack.c.l.b16 %v420
      %v1441 = vunpack.c.h.b16 %v420
      %v1442 = vunpack.c.l.b16 %v421
      %v1443 = vunpack.c.h.b16 %v421
      %v1444 = vunpack.c.l.b16 %v422
      %v1445 = vunpack.c.h.b16 %v422
      %v1446 = vunpack.c.l.b16 %v423
      %v1447 = vunpack.c.h.b16 %v423
      %v1448 = vunpack.c.l.b16 %v424
      %v1449 = vunpack.c.h.b16 %v424
      %v1450 = vunpack.c.l.b16 %v425
      %v1451 = vunpack.c.h.b16 %v425
      %v1452 = vunpack.c.l.b16 %v426
      %v1453 = vunpack.c.h.b16 %v426
      %v1454 = vunpack.c.l.b16 %v427
      %v1455 = vunpack.c.h.b16 %v427
      %v1456 = vunpack.c.l.b16 %v428
      %v1457 = vunpack.c.h.b16 %v428
      %v1458 = vunpack.c.l.b16 %v429
      %v1459 = vunpack.c.h.b16 %v429
      %v1460 = vunpack.c.l.b16 %v430
      %v1461 = vunpack.c.h.b16 %v430
      %v1462 = vunpack.c.l.b16 %v431
      %v1463 = vunpack.c.h.b16 %v431
      %v1464 = vunpack.c.l.b16 %v432
      %v1465 = vunpack.c.h.b16 %v432
      %v1466 = vunpack.c.l.b16 %v433
      %v1467 = vunpack.c.h.b16 %v433
      %v1468 = vunpack.c.l.b16 %v434
      %v1469 = vunpack.c.h.b16 %v434
      %v1470 = vunpack.c.l.b16 %v435
      %v1471 = vunpack.c.h.b16 %v435
      %v1472 = vunpack.c.l.b16 %v436
      %v1473 = vunpack.c.h.b16 %v436
      %v1474 = vunpack.c.l.b16 %v437
      %v1475 = vunpack.c.h.b16 %v437
      %v1476 = vunpack.c.l.b16 %v438
      %v1477 = vunpack.c.h.b16 %v438
      %v1478 = vunpack.c.l.b16 %v439
      %v1479 = vunpack.c.h.b16 %v439
      %v1480 = vunpack.c.l.b16 %v440
      %v1481 = vunpack.c.h.b16 %v440
      %v1482 = vunpack.c.l.b16 %v441
      %v1483 = vunpack.c.h.b16 %v441
      %v1484 = vunpack.c.l.b16 %v442
      %v1485 = vunpack.c.h.b16 %v442
      %v1486 = vunpack.c.l.b16 %v443
      %v1487 = vunpack.c.h.b16 %v443
      %v1488 = vunpack.c.l.b16 %v444
      %v1489 = vunpack.c.h.b16 %v444
      %v1490 = vunpack.c.l.b16 %v445
      %v1491 = vunpack.c.h.b16 %v445
      %v1492 = vunpack.c.l.b16 %v446
      %v1493 = vunpack.c.h.b16 %v446
      %v1494 = vunpack.c.l.b16 %v447
      %v1495 = vunpack.c.h.b16 %v447
      %v1496 = vunpack.c.l.b16 %v448
      %v1497 = vunpack.c.h.b16 %v448
      %v1498 = vunpack.c.l.b16 %v449
      %v1499 = vunpack.c.h.b16 %v449
      %v1500 = vunpack.c.l.b16 %v450
      %v1501 = vunpack.c.h.b16 %v450
      %v1502 = vunpack.c.l.b16 %v451
      %v1503 = vunpack.c.h.b16 %v451
      %v1504 = vunpack.c.l.b16 %v452
      %v1505 = vunpack.c.h.b16 %v452
      %v1506 = vunpack.c.l.b16 %v453
      %v1507 = vunpack.c.h.b16 %v453
      %v1508 = vunpack.c.l.b16 %v454
      %v1509 = vunpack.c.h.b16 %v454
      %v1510 = vunpack.c.l.b16 %v455
      %v1511 = vunpack.c.h.b16 %v455
      %v1512 = vunpack.c.l.b16 %v456
      %v1513 = vunpack.c.h.b16 %v456
      %v1514 = vunpack.c.l.b16 %v457
      %v1515 = vunpack.c.h.b16 %v457
      %v1516 = vunpack.c.l.b16 %v458
      %v1517 = vunpack.c.h.b16 %v458
      %v1518 = vunpack.c.l.b16 %v459
      %v1519 = vunpack.c.h.b16 %v459
      %v1520 = vunpack.c.l.b16 %v460
      %v1521 = vunpack.c.h.b16 %v460
      %v1522 = vunpack.c.l.b16 %v461
      %v1523 = vunpack.c.h.b16 %v461
      %v1524 = vunpack.c.l.b16 %v462
      %v1525 = vunpack.c.h.b16 %v462
      %v1526 = vunpack.c.l.b16 %v463
      %v1527 = vunpack.c.h.b16 %v463
      %v1528 = vunpack.c.l.b16 %v464
      %v1529 = vunpack.c.h.b16 %v464
      %v1530 = vunpack.c.l.b16 %v465
      %v1531 = vunpack.c.h.b16 %v465
      %v1532 = vunpack.c.l.b16 %v466
      %v1533 = vunpack.c.h.b16 %v466
      %v1534 = vunpack.c.l.b16 %v467
      %v1535 = vunpack.c.h.b16 %v467
      %v1536 = vunpack.c.l.b16 %v468
      %v1537 = vunpack.c.h.b16 %v468
      %v1538 = vunpack.c.l.b16 %v469
      %v1539 = vunpack.c.h.b16 %v469
      %v1540 = vunpack.c.l.b16 %v470
      %v1541 = vunpack.c.h.b16 %v470
      %v1542 = vunpack.c.l.b16 %v471
      %v1543 = vunpack.c.h.b16 %v471
      %v1544 = vunpack.c.l.b16 %v472
      %v1545 = vunpack.c.h.b16 %v472
      %v1546 = vunpack.c.l.b16 %v473
      %v1547 = vunpack.c.h.b16 %v473
      %v1548 = vunpack.c.l.b16 %v474
      %v1549 = vunpack.c.h.b16 %v474
      %v1550 = vunpack.c.l.b16 %v475
      %v1551 = vunpack.c.h.b16 %v475
      %v1552 = vunpack.c.l.b16 %v476
      %v1553 = vunpack.c.h.b16 %v476
      %v1554 = vunpack.c.l.b16 %v477
      %v1555 = vunpack.c.h.b16 %v477
      %v1556 = vunpack.c.l.b16 %v478
      %v1557 = vunpack.c.h.b16 %v478
      %v1558 = vunpack.c.l.b16 %v479
      %v1559 = vunpack.c.h.b16 %v479
      %v1560 = vunpack.c.l.b16 %v480
      %v1561 = vunpack.c.h.b16 %v480
      %v1562 = vunpack.c.l.b16 %v481
      %v1563 = vunpack.c.h.b16 %v481
      %v1564 = vunpack.c.l.b16 %v482
      %v1565 = vunpack.c.h.b16 %v482
      %v1566 = vunpack.c.l.b16 %v483
      %v1567 = vunpack.c.h.b16 %v483
      %v1568 = vunpack.c.l.b16 %v484
      %v1569 = vunpack.c.h.b16 %v484
      %v1570 = vunpack.c.l.b16 %v485
      %v1571 = vunpack.c.h.b16 %v485
      %v1572 = vunpack.c.l.b16 %v486
      %v1573 = vunpack.c.h.b16 %v486
      %v1574 = vunpack.c.l.b16 %v487
      %v1575 = vunpack.c.h.b16 %v487
      %v1576 = vunpack.c.l.b16 %v488
      %v1577 = vunpack.c.h.b16 %v488
      %v1578 = vunpack.c.l.b16 %v489
      %v1579 = vunpack.c.h.b16 %v489
      %v1580 = vunpack.c.l.b16 %v490
      %v1581 = vunpack.c.h.b16 %v490
      %v1582 = vunpack.c.l.b16 %v491
      %v1583 = vunpack.c.h.b16 %v491
      %v1584 = vunpack.c.l.b16 %v492
      %v1585 = vunpack.c.h.b16 %v492
      %v1586 = vunpack.c.l.b16 %v493
      %v1587 = vunpack.c.h.b16 %v493
      %v1588 = vunpack.c.l.b16 %v494
      %v1589 = vunpack.c.h.b16 %v494
      %v1590 = vunpack.c.l.b16 %v495
      %v1591 = vunpack.c.h.b16 %v495
      %v1592 = vunpack.c.l.b16 %v496
      %v1593 = vunpack.c.h.b16 %v496
      %v1594 = vunpack.c.l.b16 %v497
      %v1595 = vunpack.c.h.b16 %v497
      %v1596 = vunpack.c.l.b16 %v498
      %v1597 = vunpack.c.h.b16 %v498
      %v1598 = vunpack.c.l.b16 %v499
      %v1599 = vunpack.c.h.b16 %v499
      %v1600 = vunpack.c.l.b16 %v500
      %v1601 = vunpack.c.h.b16 %v500
      %v1602 = vunpack.c.l.b16 %v501
      %v1603 = vunpack.c.h.b16 %v501
      %v1604 = vunpack.c.l.b16 %v502
      %v1605 = vunpack.c.h.b16 %v502
      %v1606 = vunpack.c.l.b16 %v503
      %v1607 = vunpack.c.h.b16 %v503
      %v1608 = vunpack.c.l.b16 %v504
      %v1609 = vunpack.c.h.b16 %v504
      %v1610 = vunpack.c.l.b16 %v505
      %v1611 = vunpack.c.h.b16 %v505
      %v1612 = vunpack.c.l.b16 %v506
      %v1613 = vunpack.c.h.b16 %v506
      %v1614 = vunpack.c.l.b16 %v507
      %v1615 = vunpack.c.h.b16 %v507
      %v1616 = vunpack.c.l.b16 %v508
      %v1617 = vunpack.c.h.b16 %v508
      %v1618 = vunpack.c.l.b16 %v509
      %v1619 = vunpack.c.h.b16 %v509
      %v1620 = vunpack.c.l.b16 %v510
      %v1621 = vunpack.c.h.b16 %v510
      %v1622 = vunpack.c.l.b16 %v511
      %v1623 = vunpack.c.h.b16 %v511
      %v1624 = vunpack.c.l.b16 %v512
      %v1625 = vunpack.c.h.b16 %v512
      %v1626 = vunpack.c.l.b16 %v513
      %v1627 = vunpack.c.h.b16 %v513
      %v1628 = vunpack.c.l.b16 %v514
      %v1629 = vunpack.c.h.b16 %v514
      %v1630 = vunpack.c.l.b16 %v515
      %v1631 = vunpack.c.h.b16 %v515
      %v1632 = vunpack.c.l.b16 %v516
      %v1633 = vunpack.c.h.b16 %v516
      %v1634 = vunpack.c.l.b16 %v517
      %v1635 = vunpack.c.h.b16 %v517
      %v1636 = vunpack.c.l.b16 %v518
      %v1637 = vunpack.c.h.b16 %v518
      %v1638 = vunpack.c.l.b16 %v519
      %v1639 = vunpack.c.h.b16 %v519
      %v1640 = vunpack.c.l.b16 %v520
      %v1641 = vunpack.c.h.b16 %v520
      %v1642 = vunpack.c.l.b16 %v521
      %v1643 = vunpack.c.h.b16 %v521
      %v1644 = vunpack.c.l.b16 %v522
      %v1645 = vunpack.c.h.b16 %v522
      %v1646 = vunpack.c.l.b16 %v523
      %v1647 = vunpack.c.h.b16 %v523
      %v1648 = vunpack.c.l.b16 %v524
      %v1649 = vunpack.c.h.b16 %v524
      %v1650 = vunpack.c.l.b16 %v525
      %v1651 = vunpack.c.h.b16 %v525
      %v1652 = vunpack.c.l.b16 %v526
      %v1653 = vunpack.c.h.b16 %v526
      %v1654 = vunpack.c.l.b16 %v527
      %v1655 = vunpack.c.h.b16 %v527
      %v1656 = vunpack.c.l.b16 %v528
      %v1657 = vunpack.c.h.b16 %v528
      %v1658 = vunpack.c.l.b16 %v529
      %v1659 = vunpack.c.h.b16 %v529
      %v1660 = vunpack.c.l.b16 %v530
      %v1661 = vunpack.c.h.b16 %v530
      %v1662 = vunpack.c.l.b16 %v531
      %v1663 = vunpack.c.h.b16 %v531
      %v1664 = vunpack.c.l.b16 %v532
      %v1665 = vunpack.c.h.b16 %v532
      %v1666 = vunpack.c.l.b16 %v533
      %v1667 = vunpack.c.h.b16 %v533
      %v1668 = vunpack.c.l.b16 %v534
      %v1669 = vunpack.c.h.b16 %v534
      %v1670 = vunpack.c.l.b16 %v535
      %v1671 = vunpack.c.h.b16 %v535
      %v1672 = vunpack.c.l.b16 %v536
      %v1673 = vunpack.c.h.b16 %v536
      %v1674 = vunpack.c.l.b16 %v537
      %v1675 = vunpack.c.h.b16 %v537
      %v1676 = vunpack.c.l.b16 %v538
      %v1677 = vunpack.c.h.b16 %v538
      %v1678 = vunpack.c.l.b16 %v539
      %v1679 = vunpack.c.h.b16 %v539
      %v1680 = vunpack.c.l.b16 %v540
      %v1681 = vunpack.c.h.b16 %v540
      %v1682 = vunpack.c.l.b16 %v541
      %v1683 = vunpack.c.h.b16 %v541
      %v1684 = vunpack.c.l.b16 %v542
      %v1685 = vunpack.c.h.b16 %v542
      %v1686 = vunpack.c.l.b16 %v543
      %v1687 = vunpack.c.h.b16 %v543
      %v1688 = vunpack.c.l.b16 %v544
      %v1689 = vunpack.c.h.b16 %v544
      %v1690 = vunpack.c.l.b16 %v545
      %v1691 = vunpack.c.h.b16 %v545
      %v1692 = vunpack.c.l.b16 %v546
      %v1693 = vunpack.c.h.b16 %v546
      %v1694 = vunpack.c.l.b16 %v547
      %v1695 = vunpack.c.h.b16 %v547
      %v1696 = vunpack.c.l.b16 %v548
      %v1697 = vunpack.c.h.b16 %v548
      %v1698 = vunpack.c.l.b16 %v549
      %v1699 = vunpack.c.h.b16 %v549
      %v1700 = vunpack.c.l.b16 %v550
      %v1701 = vunpack.c.h.b16 %v550
      %v1702 = vunpack.c.l.b16 %v551
      %v1703 = vunpack.c.h.b16 %v551
      %v1704 = vunpack.c.l.b16 %v552
      %v1705 = vunpack.c.h.b16 %v552
      %v1706 = vunpack.c.l.b16 %v553
      %v1707 = vunpack.c.h.b16 %v553
      %v1708 = vunpack.c.l.b16 %v554
      %v1709 = vunpack.c.h.b16 %v554
      %v1710 = vunpack.c.l.b16 %v555
      %v1711 = vunpack.c.h.b16 %v555
      %v1712 = vunpack.c.l.b16 %v556
      %v1713 = vunpack.c.h.b16 %v556
      %v1714 = vunpack.c.l.b16 %v557
      %v1715 = vunpack.c.h.b16 %v557
      %v1716 = vunpack.c.l.b16 %v558
      %v1717 = vunpack.c.h.b16 %v558
      %v1718 = vunpack.c.l.b16 %v559
      %v1719 = vunpack.c.h.b16 %v559
      %v1720 = vunpack.c.l.b16 %v560
      %v1721 = vunpack.c.h.b16 %v560
      %v1722 = vunpack.c.l.b16 %v561
      %v1723 = vunpack.c.h.b16 %v561
      %v1724 = vunpack.c.l.b16 %v562
      %v1725 = vunpack.c.h.b16 %v562
      %v1726 = vunpack.c.l.b16 %v563
      %v1727 = vunpack.c.h.b16 %v563
      %v1728 = vunpack.c.l.b16 %v564
      %v1729 = vunpack.c.h.b16 %v564
      %v1730 = vunpack.c.l.b16 %v565
      %v1731 = vunpack.c.h.b16 %v565
      %v1732 = vunpack.c.l.b16 %v566
      %v1733 = vunpack.c.h.b16 %v566
      %v1734 = vunpack.c.l.b16 %v567
      %v1735 = vunpack.c.h.b16 %v567
      %v1736 = vunpack.c.l.b16 %v568
      %v1737 = vunpack.c.h.b16 %v568
      %v1738 = vunpack.c.l.b16 %v569
      %v1739 = vunpack.c.h.b16 %v569
      %v1740 = vunpack.c.l.b16 %v570
      %v1741 = vunpack.c.h.b16 %v570
      %v1742 = vunpack.c.l.b16 %v571
      %v1743 = vunpack.c.h.b16 %v571
      %v1744 = vunpack.c.l.b16 %v572
      %v1745 = vunpack.c.h.b16 %v572
      %v1746 = vunpack.c.l.b16 %v573
      %v1747 = vunpack.c.h.b16 %v573
      %v1748 = vunpack.c.l.b16 %v574
      %v1749 = vunpack.c.h.b16 %v574
      %v1750 = vunpack.c.l.b16 %v575
      %v1751 = vunpack.c.h.b16 %v575
      %v1752 = vunpack.c.l.b16 %v576
      %v1753 = vunpack.c.h.b16 %v576
      %v1754 = vunpack.c.l.b16 %v577
      %v1755 = vunpack.c.h.b16 %v577
      %v1756 = vunpack.c.l.b16 %v578
      %v1757 = vunpack.c.h.b16 %v578
      %v1758 = vunpack.c.l.b16 %v579
      %v1759 = vunpack.c.h.b16 %v579
      %v1760 = vunpack.c.l.b16 %v580
      %v1761 = vunpack.c.h.b16 %v580
      %v1762 = vunpack.c.l.b16 %v581
      %v1763 = vunpack.c.h.b16 %v581
      %v1764 = vunpack.c.l.b16 %v582
      %v1765 = vunpack.c.h.b16 %v582
      %v1766 = vunpack.c.l.b16 %v583
      %v1767 = vunpack.c.h.b16 %v583
      %v1768 = vunpack.c.l.b16 %v584
      %v1769 = vunpack.c.h.b16 %v584
      %v1770 = vunpack.c.l.b16 %v585
      %v1771 = vunpack.c.h.b16 %v585
      %v1772 = vunpack.c.l.b16 %v586
      %v1773 = vunpack.c.h.b16 %v586
      %v1774 = vunpack.c.l.b16 %v587
      %v1775 = vunpack.c.h.b16 %v587
      %v1776 = vunpack.c.l.b16 %v588
      %v1777 = vunpack.c.h.b16 %v588
      %v1778 = vunpack.c.l.b16 %v589
      %v1779 = vunpack.c.h.b16 %v589
      %v1780 = vunpack.c.l.b16 %v590
      %v1781 = vunpack.c.h.b16 %v590
      %v1782 = vunpack.c.l.b16 %v591
      %v1783 = vunpack.c.h.b16 %v591
      %v1784 = vunpack.c.l.b16 %v592
      %v1785 = vunpack.c.h.b16 %v592
      %v1786 = vunpack.c.l.b16 %v593
      %v1787 = vunpack.c.h.b16 %v593
      %v1788 = vunpack.c.l.b16 %v594
      %v1789 = vunpack.c.h.b16 %v594
      %v1790 = vunpack.c.l.b16 %v595
      %v1791 = vunpack.c.h.b16 %v595
      %v1792 = vunpack.c.l.b16 %v596
      %v1793 = vunpack.c.h.b16 %v596
      %v1794 = vunpack.c.l.b16 %v597
      %v1795 = vunpack.c.h.b16 %v597
      %v1796 = vunpack.c.l.b16 %v598
      %v1797 = vunpack.c.h.b16 %v598
      %v1798 = vunpack.c.l.b16 %v599
      %v1799 = vunpack.c.h.b16 %v599
      %v1800 = vunpack.c.l.b16 %v600
      %v1801 = vunpack.c.h.b16 %v600
      %v1802 = vunpack.c.l.b16 %v601
      %v1803 = vunpack.c.h.b16 %v601
      %v1804 = vunpack.c.l.b16 %v602
      %v1805 = vunpack.c.h.b16 %v602
      %v1806 = vunpack.c.l.b16 %v603
      %v1807 = vunpack.c.h.b16 %v603
      %v1808 = vunpack.c.l.b16 %v604
      %v1809 = vunpack.c.h.b16 %v604
      %v1810 = vunpack.c.l.b16 %v605
      %v1811 = vunpack.c.h.b16 %v605
      %v1812 = vunpack.c.l.b16 %v606
      %v1813 = vunpack.c.h.b16 %v606
      %v1814 = vunpack.c.l.b16 %v607
      %v1815 = vunpack.c.h.b16 %v607
      %v1816 = vunpack.c.l.b16 %v608
      %v1817 = vunpack.c.h.b16 %v608
      %v1818 = vunpack.c.l.b16 %v609
      %v1819 = vunpack.c.h.b16 %v609
      %v1820 = vunpack.c.l.b16 %v610
      %v1821 = vunpack.c.h.b16 %v610
      %v1822 = vunpack.c.l.b16 %v611
      %v1823 = vunpack.c.h.b16 %v611
      %v1824 = vunpack.c.l.b16 %v612
      %v1825 = vunpack.c.h.b16 %v612
      %v1826 = vunpack.c.l.b16 %v613
      %v1827 = vunpack.c.h.b16 %v613
      %v1828 = vunpack.c.l.b16 %v614
      %v1829 = vunpack.c.h.b16 %v614
      %v1830 = vunpack.c.l.b16 %v615
      %v1831 = vunpack.c.h.b16 %v615
      %v1832 = vunpack.c.l.b16 %v616
      %v1833 = vunpack.c.h.b16 %v616
      %v1834 = vunpack.c.l.b16 %v617
      %v1835 = vunpack.c.h.b16 %v617
      %v1836 = vunpack.c.l.b16 %v618
      %v1837 = vunpack.c.h.b16 %v618
      %v1838 = vunpack.c.l.b16 %v619
      %v1839 = vunpack.c.h.b16 %v619
      %v1840 = vunpack.c.l.b16 %v620
      %v1841 = vunpack.c.h.b16 %v620
      %v1842 = vunpack.c.l.b16 %v621
      %v1843 = vunpack.c.h.b16 %v621
      %v1844 = vunpack.c.l.b16 %v622
      %v1845 = vunpack.c.h.b16 %v622
      %v1846 = vunpack.c.l.b16 %v623
      %v1847 = vunpack.c.h.b16 %v623
      %v1848 = vunpack.c.l.b16 %v624
      %v1849 = vunpack.c.h.b16 %v624
      %v1850 = vunpack.c.l.b16 %v625
      %v1851 = vunpack.c.h.b16 %v625
      %v1852 = vunpack.c.l.b16 %v626
      %v1853 = vunpack.c.h.b16 %v626
      %v1854 = vunpack.c.l.b16 %v627
      %v1855 = vunpack.c.h.b16 %v627
      %v1856 = vunpack.c.l.b16 %v628
      %v1857 = vunpack.c.h.b16 %v628
      %v1858 = vunpack.c.l.b16 %v629
      %v1859 = vunpack.c.h.b16 %v629
      %v1860 = vunpack.c.l.b16 %v630
      %v1861 = vunpack.c.h.b16 %v630
      %v1862 = vunpack.c.l.b16 %v631
      %v1863 = vunpack.c.h.b16 %v631
      %v1864 = vunpack.c.l.b16 %v632
      %v1865 = vunpack.c.h.b16 %v632
      %v1866 = vunpack.c.l.b16 %v633
      %v1867 = vunpack.c.h.b16 %v633
      %v1868 = vunpack.c.l.b16 %v634
      %v1869 = vunpack.c.h.b16 %v634
      %v1870 = vunpack.c.l.b16 %v635
      %v1871 = vunpack.c.h.b16 %v635
      %v1872 = vunpack.c.l.b16 %v636
      %v1873 = vunpack.c.h.b16 %v636
      %v1874 = vunpack.c.l.b16 %v637
      %v1875 = vunpack.c.h.b16 %v637
      %v1876 = vunpack.c.l.b16 %v638
      %v1877 = vunpack.c.h.b16 %v638
      %v1878 = vunpack.c.l.b16 %v639
      %v1879 = vunpack.c.h.b16 %v639
      %v1880 = vunpack.c.l.b16 %v640
      %v1881 = vunpack.c.h.b16 %v640
      %v1882 = vunpack.c.l.b16 %v641
      %v1883 = vunpack.c.h.b16 %v641
      %v1884 = vunpack.c.l.b16 %v642
      %v1885 = vunpack.c.h.b16 %v642
      %v1886 = vunpack.c.l.b16 %v643
      %v1887 = vunpack.c.h.b16 %v643
      %v1888 = vunpack.c.l.b16 %v644
      %v1889 = vunpack.c.h.b16 %v644
      %v1890 = vpack.c.b16 %v1224, %v1218
      %v1891 = vpack.c.b16 %v1225, %v1219
      %v1892 = vpack.c.b16 %v1226, %v1220
      %v1893 = vpack.c.b16 %v1227, %v1221
      %v1894 = vpack.c.b16 %v1228, %v1222
      %v1895 = vpack.c.b16 %v1229, %v1223
      %v1896 = vpack.c.b16 %v1236, %v1230
      %v1897 = vpack.c.b16 %v1237, %v1231
      %v1898 = vpack.c.b16 %v1238, %v1232
      %v1899 = vpack.c.b16 %v1239, %v1233
      %v1900 = vpack.c.b16 %v1240, %v1234
      %v1901 = vpack.c.b16 %v1241, %v1235
      %v1902 = vpack.c.b16 %v1248, %v1242
      %v1903 = vpack.c.b16 %v1249, %v1243
      %v1904 = vpack.c.b16 %v1250, %v1244
      %v1905 = vpack.c.b16 %v1251, %v1245
      %v1906 = vpack.c.b16 %v1252, %v1246
      %v1907 = vpack.c.b16 %v1253, %v1247
      %v1908 = vpack.c.b16 %v1260, %v1254
      %v1909 = vpack.c.b16 %v1261, %v1255
      %v1910 = vpack.c.b16 %v1262, %v1256
      %v1911 = vpack.c.b16 %v1263, %v1257
      %v1912 = vpack.c.b16 %v1264, %v1258
      %v1913 = vpack.c.b16 %v1265, %v1259
      %v1914 = vpack.c.b16 %v1272, %v1266
      %v1915 = vpack.c.b16 %v1273, %v1267
      %v1916 = vpack.c.b16 %v1274, %v1268
      %v1917 = vpack.c.b16 %v1275, %v1269
      %v1918 = vpack.c.b16 %v1276, %v1270
      %v1919 = vpack.c.b16 %v1277, %v1271
      %v1920 = vpack.c.b16 %v1284, %v1278
      %v1921 = vpack.c.b16 %v1285, %v1279
      %v1922 = vpack.c.b16 %v1286, %v1280
      %v1923 = vpack.c.b16 %v1287, %v1281
      %v1924 = vpack.c.b16 %v1288, %v1282
      %v1925 = vpack.c.b16 %v1289, %v1283
      %v1926 = vpack.c.b16 %v1296, %v1290
      %v1927 = vpack.c.b16 %v1297, %v1291
      %v1928 = vpack.c.b16 %v1298, %v1292
      %v1929 = vpack.c.b16 %v1299, %v1293
      %v1930 = vpack.c.b16 %v1300, %v1294
      %v1931 = vpack.c.b16 %v1301, %v1295
      %v1932 = vpack.c.b16 %v1308, %v1302
      %v1933 = vpack.c.b16 %v1309, %v1303
      %v1934 = vpack.c.b16 %v1310, %v1304
      %v1935 = vpack.c.b16 %v1311, %v1305
      %v1936 = vpack.c.b16 %v1312, %v1306
      %v1937 = vpack.c.b16 %v1313, %v1307
      %v1938 = vpack.c.b16 %v1320, %v1314
      %v1939 = vpack.c.b16 %v1321, %v1315
      %v1940 = vpack.c.b16 %v1322, %v1316
      %v1941 = vpack.c.b16 %v1323, %v1317
      %v1942 = vpack.c.b16 %v1324, %v1318
      %v1943 = vpack.c.b16 %v1325, %v1319
      %v1944 = vpack.c.b16 %v1332, %v1326
      %v1945 = vpack.c.b16 %v1333, %v1327
      %v1946 = vpack.c.b16 %v1334, %v1328
      %v1947 = vpack.c.b16 %v1335, %v1329
      %v1948 = vpack.c.b16 %v1336, %v1330
      %v1949 = vpack.c.b16 %v1337, %v1331
      %v1950 = vpack.c.b16 %v1344, %v1338
      %v1951 = vpack.c.b16 %v1345, %v1339
      %v1952 = vpack.c.b16 %v1346, %v1340
      %v1953 = vpack.c.b16 %v1347, %v1341
      %v1954 = vpack.c.b16 %v1348, %v1342
      %v1955 = vpack.c.b16 %v1349, %v1343
      %v1956 = vpack.c.b16 %v1356, %v1350
      %v1957 = vpack.c.b16 %v1357, %v1351
      %v1958 = vpack.c.b16 %v1358, %v1352
      %v1959 = vpack.c.b16 %v1359, %v1353
      %v1960 = vpack.c.b16 %v1360, %v1354
      %v1961 = vpack.c.b16 %v1361, %v1355
      %v1962 = vpack.c.b16 %v1368, %v1362
      %v1963 = vpack.c.b16 %v1369, %v1363
      %v1964 = vpack.c.b16 %v1370, %v1364
      %v1965 = vpack.c.b16 %v1371, %v1365
      %v1966 = vpack.c.b16 %v1372, %v1366
      %v1967 = vpack.c.b16 %v1373, %v1367
      %v1968 = vpack.c.b16 %v1380, %v1374
      %v1969 = vpack.c.b16 %v1381, %v1375
      %v1970 = vpack.c.b16 %v1382, %v1376
      %v1971 = vpack.c.b16 %v1383, %v1377
      %v1972 = vpack.c.b16 %v1384, %v1378
      %v1973 = vpack.c.b16 %v1385, %v1379
      %v1974 = vpack.c.b16 %v1392, %v1386
      %v1975 = vpack.c.b16 %v1393, %v1387
      %v1976 = vpack.c.b16 %v1394, %v1388
      %v1977 = vpack.c.b16 %v1395, %v1389
      %v1978 = vpack.c.b16 %v1396, %v1390
      %v1979 = vpack.c.b16 %v1397, %v1391
      %v1980 = vpack.c.b16 %v1404, %v1398
      %v1981 = vpack.c.b16 %v1405, %v1399
      %v1982 = vpack.c.b16 %v1406, %v1400
      %v1983 = vpack.c.b16 %v1407, %v1401
      %v1984 = vpack.c.b16 %v1408, %v1402
      %v1985 = vpack.c.b16 %v1409, %v1403
      %v1986 = vpack.c.b16 %v1416, %v1410
      %v1987 = vpack.c.b16 %v1417, %v1411
      %v1988 = vpack.c.b16 %v1418, %v1412
      %v1989 = vpack.c.b16 %v1419, %v1413
      %v1990 = vpack.c.b16 %v1420, %v1414
      %v1991 = vpack.c.b16 %v1421, %v1415
      %v1992 = vpack.c.b16 %v1428, %v1422
      %v1993 = vpack.c.b16 %v1429, %v1423
      %v1994 = vpack.c.b16 %v1430, %v1424
      %v1995 = vpack.c.b16 %v1431, %v1425
      %v1996 = vpack.c.b16 %v1432, %v1426
      %v1997 = vpack.c.b16 %v1433, %v1427
      %v1998 = vpack.c.b16 %v1440, %v1434
      %v1999 = vpack.c.b16 %v1441, %v1435
      %v2000 = vpack.c.b16 %v1442, %v1436
      %v2001 = vpack.c.b16 %v1443, %v1437
      %v2002 = vpack.c.b16 %v1444, %v1438
      %v2003 = vpack.c.b16 %v1445, %v1439
      %v2004 = vpack.c.b16 %v1452, %v1446
      %v2005 = vpack.c.b16 %v1453, %v1447
      %v2006 = vpack.c.b16 %v1454, %v1448
      %v2007 = vpack.c.b16 %v1455, %v1449
      %v2008 = vpack.c.b16 %v1456, %v1450
      %v2009 = vpack.c.b16 %v1457, %v1451
      %v2010 = vpack.c.b16 %v1464, %v1458
      %v2011 = vpack.c.b16 %v1465, %v1459
      %v2012 = vpack.c.b16 %v1466, %v1460
      %v2013 = vpack.c.b16 %v1467, %v1461
      %v2014 = vpack.c.b16 %v1468, %v1462
      %v2015 = vpack.c.b16 %v1469, %v1463
      %v2016 = vpack.c.b16 %v1476, %v1470
      %v2017 = vpack.c.b16 %v1477, %v1471
      %v2018 = vpack.c.b16 %v1478, %v1472
      %v2019 = vpack.c.b16 %v1479, %v1473
      %v2020 = vpack.c.b16 %v1480, %v1474
      %v2021 = vpack.c.b16 %v1481, %v1475
      %v2022 = vpack.c.b16 %v1488, %v1482
      %v2023 = vpack.c.b16 %v1489, %v1483
      %v2024 = vpack.c.b16 %v1490, %v1484
      %v2025 = vpack.c.b16 %v1491, %v1485
      %v2026 = vpack.c.b16 %v1492, %v1486
      %v2027 = vpack.c.b16 %v1493, %v1487
      %v2028 = vpack.c.b16 %v1500, %v1494
      %v2029 = vpack.c.b16 %v1501, %v1495
      %v2030 = vpack.c.b16 %v1502, %v1496
      %v2031 = vpack.c.b16 %v1503, %v1497
      %v2032 = vpack.c.b16 %v1504, %v1498
      %v2033 = vpack.c.b16 %v1505, %v1499
      %v2034 = vpack.c.b16 %v1512, %v1506
      %v2035 = vpack.c.b16 %v1513, %v1507
      %v2036 = vpack.c.b16 %v1514, %v1508
      %v2037 = vpack.c.b16 %v1515, %v1509
      %v2038 = vpack.c.b16 %v1516, %v1510
      %v2039 = vpack.c.b16 %v1517, %v1511
      %v2040 = vpack.c.b16 %v1524, %v1518
      %v2041 = vpack.c.b16 %v1525, %v1519
      %v2042 = vpack.c.b16 %v1526, %v1520
      %v2043 = vpack.c.b16 %v1527, %v1521
      %v2044 = vpack.c.b16 %v1528, %v1522
      %v2045 = vpack.c.b16 %v1529, %v1523
      %v2046 = vpack.c.b16 %v1536, %v1530
      %v2047 = vpack.c.b16 %v1537, %v1531
      %v2048 = vpack.c.b16 %v1538, %v1532
      %v2049 = vpack.c.b16 %v1539, %v1533
      %v2050 = vpack.c.b16 %v1540, %v1534
      %v2051 = vpack.c.b16 %v1541, %v1535
      %v2052 = vpack.c.b16 %v1548, %v1542
      %v2053 = vpack.c.b16 %v1549, %v1543
      %v2054 = vpack.c.b16 %v1550, %v1544
      %v2055 = vpack.c.b16 %v1551, %v1545
      %v2056 = vpack.c.b16 %v1552, %v1546
      %v2057 = vpack.c.b16 %v1553, %v1547
      %v2058 = vpack.c.b16 %v1560, %v1554
      %v2059 = vpack.c.b16 %v1561, %v1555
      %v2060 = vpack.c.b16 %v1562, %v1556
      %v2061 = vpack.c.b16 %v1563, %v1557
      %v2062 = vpack.c.b16 %v1564, %v1558
      %v2063 = vpack.c.b16 %v1565, %v1559
      %v2064 = vpack.c.b16 %v1572, %v1566
      %v2065 = vpack.c.b16 %v1573, %v1567
      %v2066 = vpack.c.b16 %v1574, %v1568
      %v2067 = vpack.c.b16 %v1575, %v1569
      %v2068 = vpack.c.b16 %v1576, %v1570
      %v2069 = vpack.c.b16 %v1577, %v1571
      %v2070 = vpack.c.b16 %v1584, %v1578
      %v2071 = vpack.c.b16 %v1585, %v1579
      %v2072 = vpack.c.b16 %v1586, %v1580
      %v2073 = vpack.c.b16 %v1587, %v1581
      %v2074 = vpack.c.b16 %v1588, %v1582
      %v2075 = vpack.c.b16 %v1589, %v1583
      %v2076 = vpack.c.b16 %v1596, %v1590
      %v2077 = vpack.c.b16 %v1597, %v1591
      %v2078 = vpack.c.b16 %v1598, %v1592
      %v2079 = vpack.c.b16 %v1599, %v1593
      %v2080 = vpack.c.b16 %v1600, %v1594
      %v2081 = vpack.c.b16 %v1601, %v1595
      %v2082 = vpack.c.b16 %v1608, %v1602
      %v2083 = vpack.c.b16 %v1609, %v1603
      %v2084 = vpack.c.b16 %v1610, %v1604
      %v2085 = vpack.c.b16 %v1611, %v1605
      %v2086 = vpack.c.b16 %v1612, %v1606
      %v2087 = vpack.c.b16 %v1613, %v1607
      %v2088 = vpack.c.b16 %v1620, %v1614
      %v2089 = vpack.c.b16 %v1621, %v1615
      %v2090 = vpack.c.b16 %v1622, %v1616
      %v2091 = vpack.c.b16 %v1623, %v1617
      %v2092 = vpack.c.b16 %v1624, %v1618
      %v2093 = vpack.c.b16 %v1625, %v1619
      %v2094 = vpack.c.b16 %v1632, %v1626
      %v2095 = vpack.c.b16 %v1633, %v1627
      %v2096 = vpack.c.b16 %v1634, %v1628
      %v2097 = vpack.c.b16 %v1635, %v1629
      %v2098 = vpack.c.b16 %v1636, %v1630
      %v2099 = vpack.c.b16 %v1637, %v1631
      %v2100 = vpack.c.b16 %v1644, %v1638
      %v2101 = vpack.c.b16 %v1645, %v1639
      %v2102 = vpack.c.b16 %v1646, %v1640
      %v2103 = vpack.c.b16 %v1647, %v1641
      %v2104 = vpack.c.b16 %v1648, %v1642
      %v2105 = vpack.c.b16 %v1649, %v1643
      %v2106 = vpack.c.b16 %v1656, %v1650
      %v2107 = vpack.c.b16 %v1657, %v1651
      %v2108 = vpack.c.b16 %v1658, %v1652
      %v2109 = vpack.c.b16 %v1659, %v1653
      %v2110 = vpack.c.b16 %v1660, %v1654
      %v2111 = vpack.c.b16 %v1661, %v1655
      %v2112 = vpack.c.b16 %v1668, %v1662
      %v2113 = vpack.c.b16 %v1669, %v1663
      %v2114 = vpack.c.b16 %v1670, %v1664
      %v2115 = vpack.c.b16 %v1671, %v1665
      %v2116 = vpack.c.b16 %v1672, %v1666
      %v2117 = vpack.c.b16 %v1673, %v1667
      %v2118 = vpack.c.b16 %v1680, %v1674
      %v2119 = vpack.c.b16 %v1681, %v1675
      %v2120 = vpack.c.b16 %v1682, %v1676
      %v2121 = vpack.c.b16 %v1683, %v1677
      %v2122 = vpack.c.b16 %v1684, %v1678
      %v2123 = vpack.c.b16 %v1685, %v1679
      %v2124 = vpack.c.b16 %v1692, %v1686
      %v2125 = vpack.c.b16 %v1693, %v1687
      %v2126 = vpack.c.b16 %v1694, %v1688
      %v2127 = vpack.c.b16 %v1695, %v1689
      %v2128 = vpack.c.b16 %v1696, %v1690
      %v2129 = vpack.c.b16 %v1697, %v1691
      %v2130 = vpack.c.b16 %v1704, %v1698
      %v2131 = vpack.c.b16 %v1705, %v1699
      %v2132 = vpack.c.b16 %v1706, %v1700
      %v2133 = vpack.c.b16 %v1707, %v1701
      %v2134 = vpack.c.b16 %v1708, %v1702
      %v2135 = vpack.c.b16 %v1709, %v1703
      %v2136 = vpack.c.b16 %v1716, %v1710
      %v2137 = vpack.c.b16 %v1717, %v1711
      %v2138 = vpack.c.b16 %v1718, %v1712
      %v2139 = vpack.c.b16 %v1719, %v1713
      %v2140 = vpack.c.b16 %v1720, %v1714
      %v2141 = vpack.c.b16 %v1721, %v1715
      %v2142 = vpack.c.b16 %v1728, %v1722
      %v2143 = vpack.c.b16 %v1729, %v1723
      %v2144 = vpack.c.b16 %v1730, %v1724
      %v2145 = vpack.c.b16 %v1731, %v1725
      %v2146 = vpack.c.b16 %v1732, %v1726
      %v2147 = vpack.c.b16 %v1733, %v1727
      %v2148 = vpack.c.b16 %v1740, %v1734
      %v2149 = vpack.c.b16 %v1741, %v1735
      %v2150 = vpack.c.b16 %v1742, %v1736
      %v2151 = vpack.c.b16 %v1743, %v1737
      %v2152 = vpack.c.b16 %v1744, %v1738
      %v2153 = vpack.c.b16 %v1745, %v1739
      %v2154 = vpack.c.b16 %v1752, %v1746
      %v2155 = vpack.c.b16 %v1753, %v1747
      %v2156 = vpack.c.b16 %v1754, %v1748
      %v2157 = vpack.c.b16 %v1755, %v1749
      %v2158 = vpack.c.b16 %v1756, %v1750
      %v2159 = vpack.c.b16 %v1757, %v1751
      %v2160 = vpack.c.b16 %v1764, %v1758
      %v2161 = vpack.c.b16 %v1765, %v1759
      %v2162 = vpack.c.b16 %v1766, %v1760
      %v2163 = vpack.c.b16 %v1767, %v1761
      %v2164 = vpack.c.b16 %v1768, %v1762
      %v2165 = vpack.c.b16 %v1769, %v1763
      %v2166 = vpack.c.b16 %v1776, %v1770
      %v2167 = vpack.c.b16 %v1777, %v1771
      %v2168 = vpack.c.b16 %v1778, %v1772
      %v2169 = vpack.c.b16 %v1779, %v1773
      %v2170 = vpack.c.b16 %v1780, %v1774
      %v2171 = vpack.c.b16 %v1781, %v1775
      %v2172 = vpack.c.b16 %v1788, %v1782
      %v2173 = vpack.c.b16 %v1789, %v1783
      %v2174 = vpack.c.b16 %v1790, %v1784
      %v2175 = vpack.c.b16 %v1791, %v1785
      %v2176 = vpack.c.b16 %v1792, %v1786
      %v2177 = vpack.c.b16 %v1793, %v1787
      %v2178 = vpack.c.b16 %v1800, %v1794
      %v2179 = vpack.c.b16 %v1801, %v1795
      %v2180 = vpack.c.b16 %v1802, %v1796
      %v2181 = vpack.c.b16 %v1803, %v1797
      %v2182 = vpack.c.b16 %v1804, %v1798
      %v2183 = vpack.c.b16 %v1805, %v1799
      %v2184 = vpack.c.b16 %v1812, %v1806
      %v2185 = vpack.c.b16 %v1813, %v1807
      %v2186 = vpack.c.b16 %v1814, %v1808
      %v2187 = vpack.c.b16 %v1815, %v1809
      %v2188 = vpack.c.b16 %v1816, %v1810
      %v2189 = vpack.c.b16 %v1817, %v1811
      %v2190 = vpack.c.b16 %v1824, %v1818
      %v2191 = vpack.c.b16 %v1825, %v1819
      %v2192 = vpack.c.b16 %v1826, %v1820
      %v2193 = vpack.c.b16 %v1827, %v1821
      %v2194 = vpack.c.b16 %v1828, %v1822
      %v2195 = vpack.c.b16 %v1829, %v1823
      %v2196 = vpack.c.b16 %v1836, %v1830
      %v2197 = vpack.c.b16 %v1837, %v1831
      %v2198 = vpack.c.b16 %v1838, %v1832
      %v2199 = vpack.c.b16 %v1839, %v1833
      %v2200 = vpack.c.b16 %v1840, %v1834
      %v2201 = vpack.c.b16 %v1841, %v1835
      %v2202 = vpack.c.b16 %v1848, %v1842
      %v2203 = vpack.c.b16 %v1849, %v1843
      %v2204 = vpack.c.b16 %v1850, %v1844
      %v2205 = vpack.c.b16 %v1851, %v1845
      %v2206 = vpack.c.b16 %v1852, %v1846
      %v2207 = vpack.c.b16 %v1853, %v1847
      %v2208 = vpack.c.b16 %v1860, %v1854
      %v2209 = vpack.c.b16 %v1861, %v1855
      %v2210 = vpack.c.b16 %v1862, %v1856
      %v2211 = vpack.c.b16 %v1863, %v1857
      %v2212 = vpack.c.b16 %v1864, %v1858
      %v2213 = vpack.c.b16 %v1865, %v1859
      %v2214 = vpack.c.b16 %v1872, %v1866
      %v2215 = vpack.c.b16 %v1873, %v1867
      %v2216 = vpack.c.b16 %v1874, %v1868
      %v2217 = vpack.c.b16 %v1875, %v1869
      %v2218 = vpack.c.b16 %v1876, %v1870
      %v2219 = vpack.c.b16 %v1877, %v1871
      %v2220 = vpack.c.b16 %v1884, %v1878
      %v2221 = vpack.c.b16 %v1885, %v1879
      %v2222 = vpack.c.b16 %v1886, %v1880
      %v2223 = vpack.c.b16 %v1887, %v1881
      %v2224 = vpack.c.b16 %v1888, %v1882
      %v2225 = vpack.c.b16 %v1889, %v1883
      %2562 = vmatprep.subr.bf16.mxu0 %v1933
      %2563 = vmatpush1.bf16.msra.mxu0 %v1932
      %2564 = vmatprep.subr.bf16.mxu0 %v1927
      %2565 = vmatpush1.bf16.msra.mxu0 %v1926
      %2566 = vmatprep.subr.bf16.mxu0 %v1921
      %2567 = vmatpush1.bf16.msra.mxu0 %v1920
      %2568 = vmatprep.subr.bf16.mxu0 %v1915
      %2569 = vmatpush1.bf16.msra.mxu0 %v1914
      %2570 = vmatprep.subr.bf16.mxu0 %v1909
      %2571 = vmatpush1.bf16.msra.mxu0 %v1908
      %2572 = vmatprep.subr.bf16.mxu0 %v1903
      %2573 = vmatpush1.bf16.msra.mxu0 %v1902
      %2574 = vmatprep.subr.bf16.mxu0 %v1897
      %2575 = vmatpush1.bf16.msra.mxu0 %v1896
      %2576 = vmatprep.subr.bf16.mxu0 %v1891
      %2577 = vmatpush1.bf16.msra.mxu0 %v1890
      %2578 = vmatprep.subr.bf16.mxu0 %v1981
      %2579 = vmatpush2.bf16.msra.mxu0 %v1980
      %2580 = vmatprep.subr.bf16.mxu0 %v1975
      %2581 = vmatpush2.bf16.msra.mxu0 %v1974
      %2582 = vmatprep.subr.bf16.mxu0 %v1969
      %2583 = vmatpush2.bf16.msra.mxu0 %v1968
      %2584 = vmatprep.subr.bf16.mxu0 %v1963
      %2585 = vmatpush2.bf16.msra.mxu0 %v1962
      %2586 = vmatprep.subr.bf16.mxu0 %v1957
      %2587 = vmatpush2.bf16.msra.mxu0 %v1956
      %2588 = vmatprep.subr.bf16.mxu0 %v1951
      %2589 = vmatpush2.bf16.msra.mxu0 %v1950
      %2590 = vmatprep.subr.bf16.mxu0 %v1945
      %2591 = vmatpush2.bf16.msra.mxu0 %v1944
      %2592 = vmatprep.subr.bf16.mxu0 %v1939
      %2593 = vmatpush2.bf16.msra.mxu0 %v1938
      %2594 = vmatprep.mubr.bf16.mxu0 %v799
      %2595 = vmatmul.mubr.bf16.gmra.mxu0 %v798
      %v2596 = vpop.f32.mrf.mxu0
      %v2597 = vadd.f32 %v650, %v2596
      %v2598 = vpop.f32.mrf.mxu0
      %v2599 = vadd.f32 %v654, %v2598
      %v2600 = vpop.f32.mrf.mxu0
      %v2601 = vadd.f32 %v650, %v2600
      %v2602 = vpop.f32.mrf.mxu0
      %v2603 = vadd.f32 %v654, %v2602
      %2604 = vmatprep.mubr.bf16.mxu0 %v806
      %2605 = vmatmul.mubr.bf16.gmra.mxu0 %v805
      %v2606 = vpop.f32.mrf.mxu0
      %v2607 = vadd.f32 %v650, %v2606
      %v2608 = vpop.f32.mrf.mxu0
      %v2609 = vadd.f32 %v654, %v2608
      %v2610 = vpop.f32.mrf.mxu0
      %v2611 = vadd.f32 %v650, %v2610
      %v2612 = vpop.f32.mrf.mxu0
      %v2613 = vadd.f32 %v654, %v2612
      %2614 = vmatprep.mubr.bf16.mxu0 %v813
      %2615 = vmatmul.mubr.bf16.gmra.mxu0 %v812
      %v2616 = vpop.f32.mrf.mxu0
      %v2617 = vadd.f32 %v650, %v2616
      %v2618 = vpop.f32.mrf.mxu0
      %v2619 = vadd.f32 %v654, %v2618
      %v2620 = vpop.f32.mrf.mxu0
      %v2621 = vadd.f32 %v650, %v2620
      %v2622 = vpop.f32.mrf.mxu0
      %v2623 = vadd.f32 %v654, %v2622
      %2624 = vmatprep.mubr.bf16.mxu0 %v820
      %2625 = vmatmul.mubr.bf16.gmra.mxu0 %v819
      %v2626 = vpop.f32.mrf.mxu0
      %v2627 = vadd.f32 %v650, %v2626
      %v2628 = vpop.f32.mrf.mxu0
      %v2629 = vadd.f32 %v654, %v2628
      %v2630 = vpop.f32.mrf.mxu0
      %v2631 = vadd.f32 %v650, %v2630
      %v2632 = vpop.f32.mrf.mxu0
      %v2633 = vadd.f32 %v654, %v2632
      %2634 = vmatprep.mubr.bf16.mxu0 %v827
      %2635 = vmatmul.mubr.bf16.gmra.mxu0 %v826
      %v2636 = vpop.f32.mrf.mxu0
      %v2637 = vadd.f32 %v650, %v2636
      %v2638 = vpop.f32.mrf.mxu0
      %v2639 = vadd.f32 %v654, %v2638
      %v2640 = vpop.f32.mrf.mxu0
      %v2641 = vadd.f32 %v650, %v2640
      %v2642 = vpop.f32.mrf.mxu0
      %v2643 = vadd.f32 %v654, %v2642
      %2644 = vmatprep.mubr.bf16.mxu0 %v834
      %2645 = vmatmul.mubr.bf16.gmra.mxu0 %v833
      %v2646 = vpop.f32.mrf.mxu0
      %v2647 = vadd.f32 %v650, %v2646
      %v2648 = vpop.f32.mrf.mxu0
      %v2649 = vadd.f32 %v654, %v2648
      %v2650 = vpop.f32.mrf.mxu0
      %v2651 = vpop.f32.mrf.mxu0
      %2652 = vdwg.mxu0
      %2653 = vmatprep.subr.bf16.mxu0 %v2029
      %2654 = vmatpush1.bf16.msra.mxu0 %v2028
      %2655 = vmatprep.subr.bf16.mxu0 %v2023
      %2656 = vmatpush1.bf16.msra.mxu0 %v2022
      %2657 = vmatprep.subr.bf16.mxu0 %v2017
      %2658 = vmatpush1.bf16.msra.mxu0 %v2016
      %2659 = vmatprep.subr.bf16.mxu0 %v2011
      %2660 = vmatpush1.bf16.msra.mxu0 %v2010
      %2661 = vmatprep.subr.bf16.mxu0 %v2005
      %2662 = vmatpush1.bf16.msra.mxu0 %v2004
      %2663 = vmatprep.subr.bf16.mxu0 %v1999
      %2664 = vmatpush1.bf16.msra.mxu0 %v1998
      %2665 = vmatprep.subr.bf16.mxu0 %v1993
      %2666 = vmatpush1.bf16.msra.mxu0 %v1992
      %2667 = vmatprep.subr.bf16.mxu0 %v1987
      %2668 = vmatpush1.bf16.msra.mxu0 %v1986
      %2669 = vmatprep.subr.bf16.mxu0 %v2077
      %2670 = vmatpush2.bf16.msra.mxu0 %v2076
      %2671 = vmatprep.subr.bf16.mxu0 %v2071
      %2672 = vmatpush2.bf16.msra.mxu0 %v2070
      %2673 = vmatprep.subr.bf16.mxu0 %v2065
      %2674 = vmatpush2.bf16.msra.mxu0 %v2064
      %2675 = vmatprep.subr.bf16.mxu0 %v2059
      %2676 = vmatpush2.bf16.msra.mxu0 %v2058
      %2677 = vmatprep.subr.bf16.mxu0 %v2053
      %2678 = vmatpush2.bf16.msra.mxu0 %v2052
      %2679 = vmatprep.subr.bf16.mxu0 %v2047
      %2680 = vmatpush2.bf16.msra.mxu0 %v2046
      %2681 = vmatprep.subr.bf16.mxu0 %v2041
      %2682 = vmatpush2.bf16.msra.mxu0 %v2040
      %2683 = vmatprep.subr.bf16.mxu0 %v2035
      %2684 = vmatpush2.bf16.msra.mxu0 %v2034
      %2685 = vmatprep.mubr.bf16.mxu0 %v801
      %2686 = vmatmul.mubr.bf16.gmra.mxu0 %v800
      %v2687 = vpop.f32.mrf.mxu0
      %v2688 = vadd.f32 %v2597, %v2687
      %v2689 = vpop.f32.mrf.mxu0
      %v2690 = vadd.f32 %v2599, %v2689
      %v2691 = vpop.f32.mrf.mxu0
      %v2692 = vadd.f32 %v2601, %v2691
      %v2693 = vpop.f32.mrf.mxu0
      %v2694 = vadd.f32 %v2603, %v2693
      %2695 = vmatprep.mubr.bf16.mxu0 %v808
      %2696 = vmatmul.mubr.bf16.gmra.mxu0 %v807
      %v2697 = vpop.f32.mrf.mxu0
      %v2698 = vadd.f32 %v2607, %v2697
      %v2699 = vpop.f32.mrf.mxu0
      %v2700 = vadd.f32 %v2609, %v2699
      %v2701 = vpop.f32.mrf.mxu0
      %v2702 = vadd.f32 %v2611, %v2701
      %v2703 = vpop.f32.mrf.mxu0
      %v2704 = vadd.f32 %v2613, %v2703
      %2705 = vmatprep.mubr.bf16.mxu0 %v815
      %2706 = vmatmul.mubr.bf16.gmra.mxu0 %v814
      %v2707 = vpop.f32.mrf.mxu0
      %v2708 = vadd.f32 %v2617, %v2707
      %v2709 = vpop.f32.mrf.mxu0
      %v2710 = vadd.f32 %v2619, %v2709
      %v2711 = vpop.f32.mrf.mxu0
      %v2712 = vadd.f32 %v2621, %v2711
      %v2713 = vpop.f32.mrf.mxu0
      %v2714 = vadd.f32 %v2623, %v2713
      %2715 = vmatprep.mubr.bf16.mxu0 %v822
      %2716 = vmatmul.mubr.bf16.gmra.mxu0 %v821
      %v2717 = vpop.f32.mrf.mxu0
      %v2718 = vadd.f32 %v2627, %v2717
      %v2719 = vpop.f32.mrf.mxu0
      %v2720 = vadd.f32 %v2629, %v2719
      %v2721 = vpop.f32.mrf.mxu0
      %v2722 = vadd.f32 %v2631, %v2721
      %v2723 = vpop.f32.mrf.mxu0
      %v2724 = vadd.f32 %v2633, %v2723
      %2725 = vmatprep.mubr.bf16.mxu0 %v829
      %2726 = vmatmul.mubr.bf16.gmra.mxu0 %v828
      %v2727 = vpop.f32.mrf.mxu0
      %v2728 = vadd.f32 %v2637, %v2727
      %v2729 = vpop.f32.mrf.mxu0
      %v2730 = vadd.f32 %v2639, %v2729
      %v2731 = vpop.f32.mrf.mxu0
      %v2732 = vadd.f32 %v2641, %v2731
      %v2733 = vpop.f32.mrf.mxu0
      %v2734 = vadd.f32 %v2643, %v2733
      %2735 = vmatprep.mubr.bf16.mxu0 %v836
      %2736 = vmatmul.mubr.bf16.gmra.mxu0 %v835
      %v2737 = vpop.f32.mrf.mxu0
      %v2738 = vadd.f32 %v2647, %v2737
      %v2739 = vpop.f32.mrf.mxu0
      %v2740 = vadd.f32 %v2649, %v2739
      %v2741 = vpop.f32.mrf.mxu0
      %v2742 = vpop.f32.mrf.mxu0
      %2743 = vdwg.mxu0
      %2744 = vmatprep.subr.bf16.mxu0 %v2125
      %2745 = vmatpush1.bf16.msra.mxu0 %v2124
      %2746 = vmatprep.subr.bf16.mxu0 %v2119
      %2747 = vmatpush1.bf16.msra.mxu0 %v2118
      %2748 = vmatprep.subr.bf16.mxu0 %v2113
      %2749 = vmatpush1.bf16.msra.mxu0 %v2112
      %2750 = vmatprep.subr.bf16.mxu0 %v2107
      %2751 = vmatpush1.bf16.msra.mxu0 %v2106
      %2752 = vmatprep.subr.bf16.mxu0 %v2101
      %2753 = vmatpush1.bf16.msra.mxu0 %v2100
      %2754 = vmatprep.subr.bf16.mxu0 %v2095
      %2755 = vmatpush1.bf16.msra.mxu0 %v2094
      %2756 = vmatprep.subr.bf16.mxu0 %v2089
      %2757 = vmatpush1.bf16.msra.mxu0 %v2088
      %2758 = vmatprep.subr.bf16.mxu0 %v2083
      %2759 = vmatpush1.bf16.msra.mxu0 %v2082
      %2760 = vmatprep.subr.bf16.mxu0 %v2173
      %2761 = vmatpush2.bf16.msra.mxu0 %v2172
      %2762 = vmatprep.subr.bf16.mxu0 %v2167
      %2763 = vmatpush2.bf16.msra.mxu0 %v2166
      %2764 = vmatprep.subr.bf16.mxu0 %v2161
      %2765 = vmatpush2.bf16.msra.mxu0 %v2160
      %2766 = vmatprep.subr.bf16.mxu0 %v2155
      %2767 = vmatpush2.bf16.msra.mxu0 %v2154
      %2768 = vmatprep.subr.bf16.mxu0 %v2149
      %2769 = vmatpush2.bf16.msra.mxu0 %v2148
      %2770 = vmatprep.subr.bf16.mxu0 %v2143
      %2771 = vmatpush2.bf16.msra.mxu0 %v2142
      %2772 = vmatprep.subr.bf16.mxu0 %v2137
      %2773 = vmatpush2.bf16.msra.mxu0 %v2136
      %2774 = vmatprep.subr.bf16.mxu0 %v2131
      %2775 = vmatpush2.bf16.msra.mxu0 %v2130
      %2776 = vmatprep.mubr.bf16.mxu0 %v803
      %2777 = vmatmul.mubr.bf16.gmra.mxu0 %v802
      %v2778 = vpop.f32.mrf.mxu0
      %v2779 = vadd.f32 %v2688, %v2778
      %v2780 = vpop.f32.mrf.mxu0
      %v2781 = vadd.f32 %v2690, %v2780
      %v2782 = vpop.f32.mrf.mxu0
      %v2783 = vadd.f32 %v2692, %v2782
      %v2784 = vpop.f32.mrf.mxu0
      %v2785 = vadd.f32 %v2694, %v2784
      %2786 = vmatprep.mubr.bf16.mxu0 %v810
      %2787 = vmatmul.mubr.bf16.gmra.mxu0 %v809
      %v2788 = vpop.f32.mrf.mxu0
      %v2789 = vadd.f32 %v2698, %v2788
      %v2790 = vpop.f32.mrf.mxu0
      %v2791 = vadd.f32 %v2700, %v2790
      %v2792 = vpop.f32.mrf.mxu0
      %v2793 = vadd.f32 %v2702, %v2792
      %v2794 = vpop.f32.mrf.mxu0
      %v2795 = vadd.f32 %v2704, %v2794
      %2796 = vmatprep.mubr.bf16.mxu0 %v817
      %2797 = vmatmul.mubr.bf16.gmra.mxu0 %v816
      %v2798 = vpop.f32.mrf.mxu0
      %v2799 = vadd.f32 %v2708, %v2798
      %v2800 = vpop.f32.mrf.mxu0
      %v2801 = vadd.f32 %v2710, %v2800
      %v2802 = vpop.f32.mrf.mxu0
      %v2803 = vadd.f32 %v2712, %v2802
      %v2804 = vpop.f32.mrf.mxu0
      %v2805 = vadd.f32 %v2714, %v2804
      %2806 = vmatprep.mubr.bf16.mxu0 %v824
      %2807 = vmatmul.mubr.bf16.gmra.mxu0 %v823
      %v2808 = vpop.f32.mrf.mxu0
      %v2809 = vadd.f32 %v2718, %v2808
      %v2810 = vpop.f32.mrf.mxu0
      %v2811 = vadd.f32 %v2720, %v2810
      %v2812 = vpop.f32.mrf.mxu0
      %v2813 = vadd.f32 %v2722, %v2812
      %v2814 = vpop.f32.mrf.mxu0
      %v2815 = vadd.f32 %v2724, %v2814
      %2816 = vmatprep.mubr.bf16.mxu0 %v831
      %2817 = vmatmul.mubr.bf16.gmra.mxu0 %v830
      %v2818 = vpop.f32.mrf.mxu0
      %v2819 = vadd.f32 %v2728, %v2818
      %v2820 = vpop.f32.mrf.mxu0
      %v2821 = vadd.f32 %v2730, %v2820
      %v2822 = vpop.f32.mrf.mxu0
      %v2823 = vadd.f32 %v2732, %v2822
      %v2824 = vpop.f32.mrf.mxu0
      %v2825 = vadd.f32 %v2734, %v2824
      %2826 = vmatprep.mubr.bf16.mxu0 %v838
      %2827 = vmatmul.mubr.bf16.gmra.mxu0 %v837
      %v2828 = vpop.f32.mrf.mxu0
      %v2829 = vadd.f32 %v2738, %v2828
      %v2830 = vpop.f32.mrf.mxu0
      %v2831 = vadd.f32 %v2740, %v2830
      %v2832 = vpop.f32.mrf.mxu0
      %v2833 = vpop.f32.mrf.mxu0
      %2834 = vdwg.mxu0
      %2835 = vmatprep.subr.bf16.mxu0 %v2221
      %2836 = vmatpush1.bf16.msra.mxu0 %v2220
      %2837 = vmatprep.subr.bf16.mxu0 %v2215
      %2838 = vmatpush1.bf16.msra.mxu0 %v2214
      %2839 = vmatprep.subr.bf16.mxu0 %v2209
      %2840 = vmatpush1.bf16.msra.mxu0 %v2208
      %2841 = vmatprep.subr.bf16.mxu0 %v2203
      %2842 = vmatpush1.bf16.msra.mxu0 %v2202
      %2843 = vmatprep.subr.bf16.mxu0 %v2197
      %2844 = vmatpush1.bf16.msra.mxu0 %v2196
      %2845 = vmatprep.subr.bf16.mxu0 %v2191
      %2846 = vmatpush1.bf16.msra.mxu0 %v2190
      %2847 = vmatprep.subr.bf16.mxu0 %v2185
      %2848 = vmatpush1.bf16.msra.mxu0 %v2184
      %2849 = vmatprep.subr.bf16.mxu0 %v2179
      %2850 = vmatpush1.bf16.msra.mxu0 %v2178
      %2851 = vmatprep.subr.bf16.mxu0 0
      %2852 = vmatpush2.bf16.msra.mxu0 0
      %2853 = vmatprep.subr.bf16.mxu0 0
      %2854 = vmatpush2.bf16.msra.mxu0 0
      %2855 = vmatprep.subr.bf16.mxu0 0
      %2856 = vmatpush2.bf16.msra.mxu0 0
      %2857 = vmatprep.subr.bf16.mxu0 0
      %2858 = vmatpush2.bf16.msra.mxu0 0
      %2859 = vmatprep.subr.bf16.mxu0 0
      %2860 = vmatpush2.bf16.msra.mxu0 0
      %2861 = vmatprep.subr.bf16.mxu0 0
      %2862 = vmatpush2.bf16.msra.mxu0 0
      %2863 = vmatprep.subr.bf16.mxu0 0
      %2864 = vmatpush2.bf16.msra.mxu0 0
      %2865 = vmatprep.subr.bf16.mxu0 0
      %2866 = vmatpush2.bf16.msra.mxu0 0
      %2867 = vmatprep.mubr.bf16.mxu0 0
      %2868 = vmatmul.mubr.bf16.gmra.mxu0 %v804
      %v2869 = vpop.f32.mrf.mxu0
      %v2870 = vadd.f32 %v2779, %v2869
      %v2871 = vpop.f32.mrf.mxu0
      %v2872 = vadd.f32 %v2781, %v2871
      %v2873 = vpop.f32.mrf.mxu0
      %v2874 = vadd.f32 %v2783, %v2873
      %v2875 = vpop.f32.mrf.mxu0
      %v2876 = vadd.f32 %v2785, %v2875
      %2877 = vmatprep.mubr.bf16.mxu0 0
      %2878 = vmatmul.mubr.bf16.gmra.mxu0 %v811
      %v2879 = vpop.f32.mrf.mxu0
      %v2880 = vadd.f32 %v2789, %v2879
      %v2881 = vpop.f32.mrf.mxu0
      %v2882 = vadd.f32 %v2791, %v2881
      %v2883 = vpop.f32.mrf.mxu0
      %v2884 = vadd.f32 %v2793, %v2883
      %v2885 = vpop.f32.mrf.mxu0
      %v2886 = vadd.f32 %v2795, %v2885
      %2887 = vmatprep.mubr.bf16.mxu0 0
      %2888 = vmatmul.mubr.bf16.gmra.mxu0 %v818
      %v2889 = vpop.f32.mrf.mxu0
      %v2890 = vadd.f32 %v2799, %v2889
      %v2891 = vpop.f32.mrf.mxu0
      %v2892 = vadd.f32 %v2801, %v2891
      %v2893 = vpop.f32.mrf.mxu0
      %v2894 = vadd.f32 %v2803, %v2893
      %v2895 = vpop.f32.mrf.mxu0
      %v2896 = vadd.f32 %v2805, %v2895
      %2897 = vmatprep.mubr.bf16.mxu0 0
      %2898 = vmatmul.mubr.bf16.gmra.mxu0 %v825
      %v2899 = vpop.f32.mrf.mxu0
      %v2900 = vadd.f32 %v2809, %v2899
      %v2901 = vpop.f32.mrf.mxu0
      %v2902 = vadd.f32 %v2811, %v2901
      %v2903 = vpop.f32.mrf.mxu0
      %v2904 = vadd.f32 %v2813, %v2903
      %v2905 = vpop.f32.mrf.mxu0
      %v2906 = vadd.f32 %v2815, %v2905
      %2907 = vmatprep.mubr.bf16.mxu0 0
      %2908 = vmatmul.mubr.bf16.gmra.mxu0 %v832
      %v2909 = vpop.f32.mrf.mxu0
      %v2910 = vadd.f32 %v2819, %v2909
      %v2911 = vpop.f32.mrf.mxu0
      %v2912 = vadd.f32 %v2821, %v2911
      %v2913 = vpop.f32.mrf.mxu0
      %v2914 = vadd.f32 %v2823, %v2913
      %v2915 = vpop.f32.mrf.mxu0
      %v2916 = vadd.f32 %v2825, %v2915
      %2917 = vmatprep.mubr.bf16.mxu0 0
      %2918 = vmatmul.mubr.bf16.gmra.mxu0 %v839
      %v2919 = vpop.f32.mrf.mxu0
      %v2920 = vadd.f32 %v2829, %v2919
      %v2921 = vpop.f32.mrf.mxu0
      %v2922 = vadd.f32 %v2831, %v2921
      %v2923 = vpop.f32.mrf.mxu0
      %v2924 = vpop.f32.mrf.mxu0
      %2925 = vdwg.mxu0
      %2926 = vmatprep.subr.bf16.mxu0 %v1935
      %2927 = vmatpush1.bf16.msra.mxu0 %v1934
      %2928 = vmatprep.subr.bf16.mxu0 %v1929
      %2929 = vmatpush1.bf16.msra.mxu0 %v1928
      %2930 = vmatprep.subr.bf16.mxu0 %v1923
      %2931 = vmatpush1.bf16.msra.mxu0 %v1922
      %2932 = vmatprep.subr.bf16.mxu0 %v1917
      %2933 = vmatpush1.bf16.msra.mxu0 %v1916
      %2934 = vmatprep.subr.bf16.mxu0 %v1911
      %2935 = vmatpush1.bf16.msra.mxu0 %v1910
      %2936 = vmatprep.subr.bf16.mxu0 %v1905
      %2937 = vmatpush1.bf16.msra.mxu0 %v1904
      %2938 = vmatprep.subr.bf16.mxu0 %v1899
      %2939 = vmatpush1.bf16.msra.mxu0 %v1898
      %2940 = vmatprep.subr.bf16.mxu0 %v1893
      %2941 = vmatpush1.bf16.msra.mxu0 %v1892
      %2942 = vmatprep.subr.bf16.mxu0 %v1983
      %2943 = vmatpush2.bf16.msra.mxu0 %v1982
      %2944 = vmatprep.subr.bf16.mxu0 %v1977
      %2945 = vmatpush2.bf16.msra.mxu0 %v1976
      %2946 = vmatprep.subr.bf16.mxu0 %v1971
      %2947 = vmatpush2.bf16.msra.mxu0 %v1970
      %2948 = vmatprep.subr.bf16.mxu0 %v1965
      %2949 = vmatpush2.bf16.msra.mxu0 %v1964
      %2950 = vmatprep.subr.bf16.mxu0 %v1959
      %2951 = vmatpush2.bf16.msra.mxu0 %v1958
      %2952 = vmatprep.subr.bf16.mxu0 %v1953
      %2953 = vmatpush2.bf16.msra.mxu0 %v1952
      %2954 = vmatprep.subr.bf16.mxu0 %v1947
      %2955 = vmatpush2.bf16.msra.mxu0 %v1946
      %2956 = vmatprep.subr.bf16.mxu0 %v1941
      %2957 = vmatpush2.bf16.msra.mxu0 %v1940
      %2958 = vmatprep.mubr.bf16.mxu0 %v799
      %2959 = vmatmul.mubr.bf16.gmra.mxu0 %v798
      %v2960 = vpop.f32.mrf.mxu0
      %v2961 = vadd.f32 %v658, %v2960
      %v2962 = vpop.f32.mrf.mxu0
      %v2963 = vadd.f32 %v662, %v2962
      %v2964 = vpop.f32.mrf.mxu0
      %v2965 = vadd.f32 %v658, %v2964
      %v2966 = vpop.f32.mrf.mxu0
      %v2967 = vadd.f32 %v662, %v2966
      %2968 = vmatprep.mubr.bf16.mxu0 %v806
      %2969 = vmatmul.mubr.bf16.gmra.mxu0 %v805
      %v2970 = vpop.f32.mrf.mxu0
      %v2971 = vadd.f32 %v658, %v2970
      %v2972 = vpop.f32.mrf.mxu0
      %v2973 = vadd.f32 %v662, %v2972
      %v2974 = vpop.f32.mrf.mxu0
      %v2975 = vadd.f32 %v658, %v2974
      %v2976 = vpop.f32.mrf.mxu0
      %v2977 = vadd.f32 %v662, %v2976
      %2978 = vmatprep.mubr.bf16.mxu0 %v813
      %2979 = vmatmul.mubr.bf16.gmra.mxu0 %v812
      %v2980 = vpop.f32.mrf.mxu0
      %v2981 = vadd.f32 %v658, %v2980
      %v2982 = vpop.f32.mrf.mxu0
      %v2983 = vadd.f32 %v662, %v2982
      %v2984 = vpop.f32.mrf.mxu0
      %v2985 = vadd.f32 %v658, %v2984
      %v2986 = vpop.f32.mrf.mxu0
      %v2987 = vadd.f32 %v662, %v2986
      %2988 = vmatprep.mubr.bf16.mxu0 %v820
      %2989 = vmatmul.mubr.bf16.gmra.mxu0 %v819
      %v2990 = vpop.f32.mrf.mxu0
      %v2991 = vadd.f32 %v658, %v2990
      %v2992 = vpop.f32.mrf.mxu0
      %v2993 = vadd.f32 %v662, %v2992
      %v2994 = vpop.f32.mrf.mxu0
      %v2995 = vadd.f32 %v658, %v2994
      %v2996 = vpop.f32.mrf.mxu0
      %v2997 = vadd.f32 %v662, %v2996
      %2998 = vmatprep.mubr.bf16.mxu0 %v827
      %2999 = vmatmul.mubr.bf16.gmra.mxu0 %v826
      %v3000 = vpop.f32.mrf.mxu0
      %v3001 = vadd.f32 %v658, %v3000
      %v3002 = vpop.f32.mrf.mxu0
      %v3003 = vadd.f32 %v662, %v3002
      %v3004 = vpop.f32.mrf.mxu0
      %v3005 = vadd.f32 %v658, %v3004
      %v3006 = vpop.f32.mrf.mxu0
      %v3007 = vadd.f32 %v662, %v3006
      %3008 = vmatprep.mubr.bf16.mxu0 %v834
      %3009 = vmatmul.mubr.bf16.gmra.mxu0 %v833
      %v3010 = vpop.f32.mrf.mxu0
      %v3011 = vadd.f32 %v658, %v3010
      %v3012 = vpop.f32.mrf.mxu0
      %v3013 = vadd.f32 %v662, %v3012
      %v3014 = vpop.f32.mrf.mxu0
      %v3015 = vpop.f32.mrf.mxu0
      %3016 = vdwg.mxu0
      %3017 = vmatprep.subr.bf16.mxu0 %v2031
      %3018 = vmatpush1.bf16.msra.mxu0 %v2030
      %3019 = vmatprep.subr.bf16.mxu0 %v2025
      %3020 = vmatpush1.bf16.msra.mxu0 %v2024
      %3021 = vmatprep.subr.bf16.mxu0 %v2019
      %3022 = vmatpush1.bf16.msra.mxu0 %v2018
      %3023 = vmatprep.subr.bf16.mxu0 %v2013
      %3024 = vmatpush1.bf16.msra.mxu0 %v2012
      %3025 = vmatprep.subr.bf16.mxu0 %v2007
      %3026 = vmatpush1.bf16.msra.mxu0 %v2006
      %3027 = vmatprep.subr.bf16.mxu0 %v2001
      %3028 = vmatpush1.bf16.msra.mxu0 %v2000
      %3029 = vmatprep.subr.bf16.mxu0 %v1995
      %3030 = vmatpush1.bf16.msra.mxu0 %v1994
      %3031 = vmatprep.subr.bf16.mxu0 %v1989
      %3032 = vmatpush1.bf16.msra.mxu0 %v1988
      %3033 = vmatprep.subr.bf16.mxu0 %v2079
      %3034 = vmatpush2.bf16.msra.mxu0 %v2078
      %3035 = vmatprep.subr.bf16.mxu0 %v2073
      %3036 = vmatpush2.bf16.msra.mxu0 %v2072
      %3037 = vmatprep.subr.bf16.mxu0 %v2067
      %3038 = vmatpush2.bf16.msra.mxu0 %v2066
      %3039 = vmatprep.subr.bf16.mxu0 %v2061
      %3040 = vmatpush2.bf16.msra.mxu0 %v2060
      %3041 = vmatprep.subr.bf16.mxu0 %v2055
      %3042 = vmatpush2.bf16.msra.mxu0 %v2054
      %3043 = vmatprep.subr.bf16.mxu0 %v2049
      %3044 = vmatpush2.bf16.msra.mxu0 %v2048
      %3045 = vmatprep.subr.bf16.mxu0 %v2043
      %3046 = vmatpush2.bf16.msra.mxu0 %v2042
      %3047 = vmatprep.subr.bf16.mxu0 %v2037
      %3048 = vmatpush2.bf16.msra.mxu0 %v2036
      %3049 = vmatprep.mubr.bf16.mxu0 %v801
      %3050 = vmatmul.mubr.bf16.gmra.mxu0 %v800
      %v3051 = vpop.f32.mrf.mxu0
      %v3052 = vadd.f32 %v2961, %v3051
      %v3053 = vpop.f32.mrf.mxu0
      %v3054 = vadd.f32 %v2963, %v3053
      %v3055 = vpop.f32.mrf.mxu0
      %v3056 = vadd.f32 %v2965, %v3055
      %v3057 = vpop.f32.mrf.mxu0
      %v3058 = vadd.f32 %v2967, %v3057
      %3059 = vmatprep.mubr.bf16.mxu0 %v808
      %3060 = vmatmul.mubr.bf16.gmra.mxu0 %v807
      %v3061 = vpop.f32.mrf.mxu0
      %v3062 = vadd.f32 %v2971, %v3061
      %v3063 = vpop.f32.mrf.mxu0
      %v3064 = vadd.f32 %v2973, %v3063
      %v3065 = vpop.f32.mrf.mxu0
      %v3066 = vadd.f32 %v2975, %v3065
      %v3067 = vpop.f32.mrf.mxu0
      %v3068 = vadd.f32 %v2977, %v3067
      %3069 = vmatprep.mubr.bf16.mxu0 %v815
      %3070 = vmatmul.mubr.bf16.gmra.mxu0 %v814
      %v3071 = vpop.f32.mrf.mxu0
      %v3072 = vadd.f32 %v2981, %v3071
      %v3073 = vpop.f32.mrf.mxu0
      %v3074 = vadd.f32 %v2983, %v3073
      %v3075 = vpop.f32.mrf.mxu0
      %v3076 = vadd.f32 %v2985, %v3075
      %v3077 = vpop.f32.mrf.mxu0
      %v3078 = vadd.f32 %v2987, %v3077
      %3079 = vmatprep.mubr.bf16.mxu0 %v822
      %3080 = vmatmul.mubr.bf16.gmra.mxu0 %v821
      %v3081 = vpop.f32.mrf.mxu0
      %v3082 = vadd.f32 %v2991, %v3081
      %v3083 = vpop.f32.mrf.mxu0
      %v3084 = vadd.f32 %v2993, %v3083
      %v3085 = vpop.f32.mrf.mxu0
      %v3086 = vadd.f32 %v2995, %v3085
      %v3087 = vpop.f32.mrf.mxu0
      %v3088 = vadd.f32 %v2997, %v3087
      %3089 = vmatprep.mubr.bf16.mxu0 %v829
      %3090 = vmatmul.mubr.bf16.gmra.mxu0 %v828
      %v3091 = vpop.f32.mrf.mxu0
      %v3092 = vadd.f32 %v3001, %v3091
      %v3093 = vpop.f32.mrf.mxu0
      %v3094 = vadd.f32 %v3003, %v3093
      %v3095 = vpop.f32.mrf.mxu0
      %v3096 = vadd.f32 %v3005, %v3095
      %v3097 = vpop.f32.mrf.mxu0
      %v3098 = vadd.f32 %v3007, %v3097
      %3099 = vmatprep.mubr.bf16.mxu0 %v836
      %3100 = vmatmul.mubr.bf16.gmra.mxu0 %v835
      %v3101 = vpop.f32.mrf.mxu0
      %v3102 = vadd.f32 %v3011, %v3101
      %v3103 = vpop.f32.mrf.mxu0
      %v3104 = vadd.f32 %v3013, %v3103
      %v3105 = vpop.f32.mrf.mxu0
      %v3106 = vpop.f32.mrf.mxu0
      %3107 = vdwg.mxu0
      %3108 = vmatprep.subr.bf16.mxu0 %v2127
      %3109 = vmatpush1.bf16.msra.mxu0 %v2126
      %3110 = vmatprep.subr.bf16.mxu0 %v2121
      %3111 = vmatpush1.bf16.msra.mxu0 %v2120
      %3112 = vmatprep.subr.bf16.mxu0 %v2115
      %3113 = vmatpush1.bf16.msra.mxu0 %v2114
      %3114 = vmatprep.subr.bf16.mxu0 %v2109
      %3115 = vmatpush1.bf16.msra.mxu0 %v2108
      %3116 = vmatprep.subr.bf16.mxu0 %v2103
      %3117 = vmatpush1.bf16.msra.mxu0 %v2102
      %3118 = vmatprep.subr.bf16.mxu0 %v2097
      %3119 = vmatpush1.bf16.msra.mxu0 %v2096
      %3120 = vmatprep.subr.bf16.mxu0 %v2091
      %3121 = vmatpush1.bf16.msra.mxu0 %v2090
      %3122 = vmatprep.subr.bf16.mxu0 %v2085
      %3123 = vmatpush1.bf16.msra.mxu0 %v2084
      %3124 = vmatprep.subr.bf16.mxu0 %v2175
      %3125 = vmatpush2.bf16.msra.mxu0 %v2174
      %3126 = vmatprep.subr.bf16.mxu0 %v2169
      %3127 = vmatpush2.bf16.msra.mxu0 %v2168
      %3128 = vmatprep.subr.bf16.mxu0 %v2163
      %3129 = vmatpush2.bf16.msra.mxu0 %v2162
      %3130 = vmatprep.subr.bf16.mxu0 %v2157
      %3131 = vmatpush2.bf16.msra.mxu0 %v2156
      %3132 = vmatprep.subr.bf16.mxu0 %v2151
      %3133 = vmatpush2.bf16.msra.mxu0 %v2150
      %3134 = vmatprep.subr.bf16.mxu0 %v2145
      %3135 = vmatpush2.bf16.msra.mxu0 %v2144
      %3136 = vmatprep.subr.bf16.mxu0 %v2139
      %3137 = vmatpush2.bf16.msra.mxu0 %v2138
      %3138 = vmatprep.subr.bf16.mxu0 %v2133
      %3139 = vmatpush2.bf16.msra.mxu0 %v2132
      %3140 = vmatprep.mubr.bf16.mxu0 %v803
      %3141 = vmatmul.mubr.bf16.gmra.mxu0 %v802
      %v3142 = vpop.f32.mrf.mxu0
      %v3143 = vadd.f32 %v3052, %v3142
      %v3144 = vpop.f32.mrf.mxu0
      %v3145 = vadd.f32 %v3054, %v3144
      %v3146 = vpop.f32.mrf.mxu0
      %v3147 = vadd.f32 %v3056, %v3146
      %v3148 = vpop.f32.mrf.mxu0
      %v3149 = vadd.f32 %v3058, %v3148
      %3150 = vmatprep.mubr.bf16.mxu0 %v810
      %3151 = vmatmul.mubr.bf16.gmra.mxu0 %v809
      %v3152 = vpop.f32.mrf.mxu0
      %v3153 = vadd.f32 %v3062, %v3152
      %v3154 = vpop.f32.mrf.mxu0
      %v3155 = vadd.f32 %v3064, %v3154
      %v3156 = vpop.f32.mrf.mxu0
      %v3157 = vadd.f32 %v3066, %v3156
      %v3158 = vpop.f32.mrf.mxu0
      %v3159 = vadd.f32 %v3068, %v3158
      %3160 = vmatprep.mubr.bf16.mxu0 %v817
      %3161 = vmatmul.mubr.bf16.gmra.mxu0 %v816
      %v3162 = vpop.f32.mrf.mxu0
      %v3163 = vadd.f32 %v3072, %v3162
      %v3164 = vpop.f32.mrf.mxu0
      %v3165 = vadd.f32 %v3074, %v3164
      %v3166 = vpop.f32.mrf.mxu0
      %v3167 = vadd.f32 %v3076, %v3166
      %v3168 = vpop.f32.mrf.mxu0
      %v3169 = vadd.f32 %v3078, %v3168
      %3170 = vmatprep.mubr.bf16.mxu0 %v824
      %3171 = vmatmul.mubr.bf16.gmra.mxu0 %v823
      %v3172 = vpop.f32.mrf.mxu0
      %v3173 = vadd.f32 %v3082, %v3172
      %v3174 = vpop.f32.mrf.mxu0
      %v3175 = vadd.f32 %v3084, %v3174
      %v3176 = vpop.f32.mrf.mxu0
      %v3177 = vadd.f32 %v3086, %v3176
      %v3178 = vpop.f32.mrf.mxu0
      %v3179 = vadd.f32 %v3088, %v3178
      %3180 = vmatprep.mubr.bf16.mxu0 %v831
      %3181 = vmatmul.mubr.bf16.gmra.mxu0 %v830
      %v3182 = vpop.f32.mrf.mxu0
      %v3183 = vadd.f32 %v3092, %v3182
      %v3184 = vpop.f32.mrf.mxu0
      %v3185 = vadd.f32 %v3094, %v3184
      %v3186 = vpop.f32.mrf.mxu0
      %v3187 = vadd.f32 %v3096, %v3186
      %v3188 = vpop.f32.mrf.mxu0
      %v3189 = vadd.f32 %v3098, %v3188
      %3190 = vmatprep.mubr.bf16.mxu0 %v838
      %3191 = vmatmul.mubr.bf16.gmra.mxu0 %v837
      %v3192 = vpop.f32.mrf.mxu0
      %v3193 = vadd.f32 %v3102, %v3192
      %v3194 = vpop.f32.mrf.mxu0
      %v3195 = vadd.f32 %v3104, %v3194
      %v3196 = vpop.f32.mrf.mxu0
      %v3197 = vpop.f32.mrf.mxu0
      %3198 = vdwg.mxu0
      %3199 = vmatprep.subr.bf16.mxu0 %v2223
      %3200 = vmatpush1.bf16.msra.mxu0 %v2222
      %3201 = vmatprep.subr.bf16.mxu0 %v2217
      %3202 = vmatpush1.bf16.msra.mxu0 %v2216
      %3203 = vmatprep.subr.bf16.mxu0 %v2211
      %3204 = vmatpush1.bf16.msra.mxu0 %v2210
      %3205 = vmatprep.subr.bf16.mxu0 %v2205
      %3206 = vmatpush1.bf16.msra.mxu0 %v2204
      %3207 = vmatprep.subr.bf16.mxu0 %v2199
      %3208 = vmatpush1.bf16.msra.mxu0 %v2198
      %3209 = vmatprep.subr.bf16.mxu0 %v2193
      %3210 = vmatpush1.bf16.msra.mxu0 %v2192
      %3211 = vmatprep.subr.bf16.mxu0 %v2187
      %3212 = vmatpush1.bf16.msra.mxu0 %v2186
      %3213 = vmatprep.subr.bf16.mxu0 %v2181
      %3214 = vmatpush1.bf16.msra.mxu0 %v2180
      %3215 = vmatprep.subr.bf16.mxu0 0
      %3216 = vmatpush2.bf16.msra.mxu0 0
      %3217 = vmatprep.subr.bf16.mxu0 0
      %3218 = vmatpush2.bf16.msra.mxu0 0
      %3219 = vmatprep.subr.bf16.mxu0 0
      %3220 = vmatpush2.bf16.msra.mxu0 0
      %3221 = vmatprep.subr.bf16.mxu0 0
      %3222 = vmatpush2.bf16.msra.mxu0 0
      %3223 = vmatprep.subr.bf16.mxu0 0
      %3224 = vmatpush2.bf16.msra.mxu0 0
      %3225 = vmatprep.subr.bf16.mxu0 0
      %3226 = vmatpush2.bf16.msra.mxu0 0
      %3227 = vmatprep.subr.bf16.mxu0 0
      %3228 = vmatpush2.bf16.msra.mxu0 0
      %3229 = vmatprep.subr.bf16.mxu0 0
      %3230 = vmatpush2.bf16.msra.mxu0 0
      %3231 = vmatprep.mubr.bf16.mxu0 0
      %3232 = vmatmul.mubr.bf16.gmra.mxu0 %v804
      %v3233 = vpop.f32.mrf.mxu0
      %v3234 = vadd.f32 %v3143, %v3233
      %v3235 = vpop.f32.mrf.mxu0
      %v3236 = vadd.f32 %v3145, %v3235
      %v3237 = vpop.f32.mrf.mxu0
      %v3238 = vadd.f32 %v3147, %v3237
      %v3239 = vpop.f32.mrf.mxu0
      %v3240 = vadd.f32 %v3149, %v3239
      %3241 = vmatprep.mubr.bf16.mxu0 0
      %3242 = vmatmul.mubr.bf16.gmra.mxu0 %v811
      %v3243 = vpop.f32.mrf.mxu0
      %v3244 = vadd.f32 %v3153, %v3243
      %v3245 = vpop.f32.mrf.mxu0
      %v3246 = vadd.f32 %v3155, %v3245
      %v3247 = vpop.f32.mrf.mxu0
      %v3248 = vadd.f32 %v3157, %v3247
      %v3249 = vpop.f32.mrf.mxu0
      %v3250 = vadd.f32 %v3159, %v3249
      %3251 = vmatprep.mubr.bf16.mxu0 0
      %3252 = vmatmul.mubr.bf16.gmra.mxu0 %v818
      %v3253 = vpop.f32.mrf.mxu0
      %v3254 = vadd.f32 %v3163, %v3253
      %v3255 = vpop.f32.mrf.mxu0
      %v3256 = vadd.f32 %v3165, %v3255
      %v3257 = vpop.f32.mrf.mxu0
      %v3258 = vadd.f32 %v3167, %v3257
      %v3259 = vpop.f32.mrf.mxu0
      %v3260 = vadd.f32 %v3169, %v3259
      %3261 = vmatprep.mubr.bf16.mxu0 0
      %3262 = vmatmul.mubr.bf16.gmra.mxu0 %v825
      %v3263 = vpop.f32.mrf.mxu0
      %v3264 = vadd.f32 %v3173, %v3263
      %v3265 = vpop.f32.mrf.mxu0
      %v3266 = vadd.f32 %v3175, %v3265
      %v3267 = vpop.f32.mrf.mxu0
      %v3268 = vadd.f32 %v3177, %v3267
      %v3269 = vpop.f32.mrf.mxu0
      %v3270 = vadd.f32 %v3179, %v3269
      %3271 = vmatprep.mubr.bf16.mxu0 0
      %3272 = vmatmul.mubr.bf16.gmra.mxu0 %v832
      %v3273 = vpop.f32.mrf.mxu0
      %v3274 = vadd.f32 %v3183, %v3273
      %v3275 = vpop.f32.mrf.mxu0
      %v3276 = vadd.f32 %v3185, %v3275
      %v3277 = vpop.f32.mrf.mxu0
      %v3278 = vadd.f32 %v3187, %v3277
      %v3279 = vpop.f32.mrf.mxu0
      %v3280 = vadd.f32 %v3189, %v3279
      %3281 = vmatprep.mubr.bf16.mxu0 0
      %3282 = vmatmul.mubr.bf16.gmra.mxu0 %v839
      %v3283 = vpop.f32.mrf.mxu0
      %v3284 = vadd.f32 %v3193, %v3283
      %v3285 = vpop.f32.mrf.mxu0
      %v3286 = vadd.f32 %v3195, %v3285
      %v3287 = vpop.f32.mrf.mxu0
      %v3288 = vpop.f32.mrf.mxu0
      %3289 = vdwg.mxu0
      %3290 = vmatprep.subr.bf16.mxu0 %v1937
      %3291 = vmatpush1.bf16.msra.mxu0 %v1936
      %3292 = vmatprep.subr.bf16.mxu0 %v1931
      %3293 = vmatpush1.bf16.msra.mxu0 %v1930
      %3294 = vmatprep.subr.bf16.mxu0 %v1925
      %3295 = vmatpush1.bf16.msra.mxu0 %v1924
      %3296 = vmatprep.subr.bf16.mxu0 %v1919
      %3297 = vmatpush1.bf16.msra.mxu0 %v1918
      %3298 = vmatprep.subr.bf16.mxu0 %v1913
      %3299 = vmatpush1.bf16.msra.mxu0 %v1912
      %3300 = vmatprep.subr.bf16.mxu0 %v1907
      %3301 = vmatpush1.bf16.msra.mxu0 %v1906
      %3302 = vmatprep.subr.bf16.mxu0 %v1901
      %3303 = vmatpush1.bf16.msra.mxu0 %v1900
      %3304 = vmatprep.subr.bf16.mxu0 %v1895
      %3305 = vmatpush1.bf16.msra.mxu0 %v1894
      %3306 = vmatprep.subr.bf16.mxu0 %v1985
      %3307 = vmatpush2.bf16.msra.mxu0 %v1984
      %3308 = vmatprep.subr.bf16.mxu0 %v1979
      %3309 = vmatpush2.bf16.msra.mxu0 %v1978
      %3310 = vmatprep.subr.bf16.mxu0 %v1973
      %3311 = vmatpush2.bf16.msra.mxu0 %v1972
      %3312 = vmatprep.subr.bf16.mxu0 %v1967
      %3313 = vmatpush2.bf16.msra.mxu0 %v1966
      %3314 = vmatprep.subr.bf16.mxu0 %v1961
      %3315 = vmatpush2.bf16.msra.mxu0 %v1960
      %3316 = vmatprep.subr.bf16.mxu0 %v1955
      %3317 = vmatpush2.bf16.msra.mxu0 %v1954
      %3318 = vmatprep.subr.bf16.mxu0 %v1949
      %3319 = vmatpush2.bf16.msra.mxu0 %v1948
      %3320 = vmatprep.subr.bf16.mxu0 %v1943
      %3321 = vmatpush2.bf16.msra.mxu0 %v1942
      %3322 = vmatprep.mubr.bf16.mxu0 %v799
      %3323 = vmatmul.mubr.bf16.gmra.mxu0 %v798
      %v3324 = vpop.f32.mrf.mxu0
      %v3325 = vadd.f32 %v666, %v3324
      %v3326 = vpop.f32.mrf.mxu0
      %v3327 = vadd.f32 %v670, %v3326
      %v3328 = vpop.f32.mrf.mxu0
      %v3329 = vadd.f32 %v666, %v3328
      %v3330 = vpop.f32.mrf.mxu0
      %v3331 = vadd.f32 %v670, %v3330
      %3332 = vmatprep.mubr.bf16.mxu0 %v806
      %3333 = vmatmul.mubr.bf16.gmra.mxu0 %v805
      %v3334 = vpop.f32.mrf.mxu0
      %v3335 = vadd.f32 %v666, %v3334
      %v3336 = vpop.f32.mrf.mxu0
      %v3337 = vadd.f32 %v670, %v3336
      %v3338 = vpop.f32.mrf.mxu0
      %v3339 = vadd.f32 %v666, %v3338
      %v3340 = vpop.f32.mrf.mxu0
      %v3341 = vadd.f32 %v670, %v3340
      %3342 = vmatprep.mubr.bf16.mxu0 %v813
      %3343 = vmatmul.mubr.bf16.gmra.mxu0 %v812
      %v3344 = vpop.f32.mrf.mxu0
      %v3345 = vadd.f32 %v666, %v3344
      %v3346 = vpop.f32.mrf.mxu0
      %v3347 = vadd.f32 %v670, %v3346
      %v3348 = vpop.f32.mrf.mxu0
      %v3349 = vadd.f32 %v666, %v3348
      %v3350 = vpop.f32.mrf.mxu0
      %v3351 = vadd.f32 %v670, %v3350
      %3352 = vmatprep.mubr.bf16.mxu0 %v820
      %3353 = vmatmul.mubr.bf16.gmra.mxu0 %v819
      %v3354 = vpop.f32.mrf.mxu0
      %v3355 = vadd.f32 %v666, %v3354
      %v3356 = vpop.f32.mrf.mxu0
      %v3357 = vadd.f32 %v670, %v3356
      %v3358 = vpop.f32.mrf.mxu0
      %v3359 = vadd.f32 %v666, %v3358
      %v3360 = vpop.f32.mrf.mxu0
      %v3361 = vadd.f32 %v670, %v3360
      %3362 = vmatprep.mubr.bf16.mxu0 %v827
      %3363 = vmatmul.mubr.bf16.gmra.mxu0 %v826
      %v3364 = vpop.f32.mrf.mxu0
      %v3365 = vadd.f32 %v666, %v3364
      %v3366 = vpop.f32.mrf.mxu0
      %v3367 = vadd.f32 %v670, %v3366
      %v3368 = vpop.f32.mrf.mxu0
      %v3369 = vadd.f32 %v666, %v3368
      %v3370 = vpop.f32.mrf.mxu0
      %v3371 = vadd.f32 %v670, %v3370
      %3372 = vmatprep.mubr.bf16.mxu0 %v834
      %3373 = vmatmul.mubr.bf16.gmra.mxu0 %v833
      %v3374 = vpop.f32.mrf.mxu0
      %v3375 = vadd.f32 %v666, %v3374
      %v3376 = vpop.f32.mrf.mxu0
      %v3377 = vadd.f32 %v670, %v3376
      %v3378 = vpop.f32.mrf.mxu0
      %v3379 = vpop.f32.mrf.mxu0
      %3380 = vdwg.mxu0
      %3381 = vmatprep.subr.bf16.mxu0 %v2033
      %3382 = vmatpush1.bf16.msra.mxu0 %v2032
      %3383 = vmatprep.subr.bf16.mxu0 %v2027
      %3384 = vmatpush1.bf16.msra.mxu0 %v2026
      %3385 = vmatprep.subr.bf16.mxu0 %v2021
      %3386 = vmatpush1.bf16.msra.mxu0 %v2020
      %3387 = vmatprep.subr.bf16.mxu0 %v2015
      %3388 = vmatpush1.bf16.msra.mxu0 %v2014
      %3389 = vmatprep.subr.bf16.mxu0 %v2009
      %3390 = vmatpush1.bf16.msra.mxu0 %v2008
      %3391 = vmatprep.subr.bf16.mxu0 %v2003
      %3392 = vmatpush1.bf16.msra.mxu0 %v2002
      %3393 = vmatprep.subr.bf16.mxu0 %v1997
      %3394 = vmatpush1.bf16.msra.mxu0 %v1996
      %3395 = vmatprep.subr.bf16.mxu0 %v1991
      %3396 = vmatpush1.bf16.msra.mxu0 %v1990
      %3397 = vmatprep.subr.bf16.mxu0 %v2081
      %3398 = vmatpush2.bf16.msra.mxu0 %v2080
      %3399 = vmatprep.subr.bf16.mxu0 %v2075
      %3400 = vmatpush2.bf16.msra.mxu0 %v2074
      %3401 = vmatprep.subr.bf16.mxu0 %v2069
      %3402 = vmatpush2.bf16.msra.mxu0 %v2068
      %3403 = vmatprep.subr.bf16.mxu0 %v2063
      %3404 = vmatpush2.bf16.msra.mxu0 %v2062
      %3405 = vmatprep.subr.bf16.mxu0 %v2057
      %3406 = vmatpush2.bf16.msra.mxu0 %v2056
      %3407 = vmatprep.subr.bf16.mxu0 %v2051
      %3408 = vmatpush2.bf16.msra.mxu0 %v2050
      %3409 = vmatprep.subr.bf16.mxu0 %v2045
      %3410 = vmatpush2.bf16.msra.mxu0 %v2044
      %3411 = vmatprep.subr.bf16.mxu0 %v2039
      %3412 = vmatpush2.bf16.msra.mxu0 %v2038
      %3413 = vmatprep.mubr.bf16.mxu0 %v801
      %3414 = vmatmul.mubr.bf16.gmra.mxu0 %v800
      %v3415 = vpop.f32.mrf.mxu0
      %v3416 = vadd.f32 %v3325, %v3415
      %v3417 = vpop.f32.mrf.mxu0
      %v3418 = vadd.f32 %v3327, %v3417
      %v3419 = vpop.f32.mrf.mxu0
      %v3420 = vadd.f32 %v3329, %v3419
      %v3421 = vpop.f32.mrf.mxu0
      %v3422 = vadd.f32 %v3331, %v3421
      %3423 = vmatprep.mubr.bf16.mxu0 %v808
      %3424 = vmatmul.mubr.bf16.gmra.mxu0 %v807
      %v3425 = vpop.f32.mrf.mxu0
      %v3426 = vadd.f32 %v3335, %v3425
      %v3427 = vpop.f32.mrf.mxu0
      %v3428 = vadd.f32 %v3337, %v3427
      %v3429 = vpop.f32.mrf.mxu0
      %v3430 = vadd.f32 %v3339, %v3429
      %v3431 = vpop.f32.mrf.mxu0
      %v3432 = vadd.f32 %v3341, %v3431
      %3433 = vmatprep.mubr.bf16.mxu0 %v815
      %3434 = vmatmul.mubr.bf16.gmra.mxu0 %v814
      %v3435 = vpop.f32.mrf.mxu0
      %v3436 = vadd.f32 %v3345, %v3435
      %v3437 = vpop.f32.mrf.mxu0
      %v3438 = vadd.f32 %v3347, %v3437
      %v3439 = vpop.f32.mrf.mxu0
      %v3440 = vadd.f32 %v3349, %v3439
      %v3441 = vpop.f32.mrf.mxu0
      %v3442 = vadd.f32 %v3351, %v3441
      %3443 = vmatprep.mubr.bf16.mxu0 %v822
      %3444 = vmatmul.mubr.bf16.gmra.mxu0 %v821
      %v3445 = vpop.f32.mrf.mxu0
      %v3446 = vadd.f32 %v3355, %v3445
      %v3447 = vpop.f32.mrf.mxu0
      %v3448 = vadd.f32 %v3357, %v3447
      %v3449 = vpop.f32.mrf.mxu0
      %v3450 = vadd.f32 %v3359, %v3449
      %v3451 = vpop.f32.mrf.mxu0
      %v3452 = vadd.f32 %v3361, %v3451
      %3453 = vmatprep.mubr.bf16.mxu0 %v829
      %3454 = vmatmul.mubr.bf16.gmra.mxu0 %v828
      %v3455 = vpop.f32.mrf.mxu0
      %v3456 = vadd.f32 %v3365, %v3455
      %v3457 = vpop.f32.mrf.mxu0
      %v3458 = vadd.f32 %v3367, %v3457
      %v3459 = vpop.f32.mrf.mxu0
      %v3460 = vadd.f32 %v3369, %v3459
      %v3461 = vpop.f32.mrf.mxu0
      %v3462 = vadd.f32 %v3371, %v3461
      %3463 = vmatprep.mubr.bf16.mxu0 %v836
      %3464 = vmatmul.mubr.bf16.gmra.mxu0 %v835
      %v3465 = vpop.f32.mrf.mxu0
      %v3466 = vadd.f32 %v3375, %v3465
      %v3467 = vpop.f32.mrf.mxu0
      %v3468 = vadd.f32 %v3377, %v3467
      %v3469 = vpop.f32.mrf.mxu0
      %v3470 = vpop.f32.mrf.mxu0
      %3471 = vdwg.mxu0
      %3472 = vmatprep.subr.bf16.mxu0 %v2129
      %3473 = vmatpush1.bf16.msra.mxu0 %v2128
      %3474 = vmatprep.subr.bf16.mxu0 %v2123
      %3475 = vmatpush1.bf16.msra.mxu0 %v2122
      %3476 = vmatprep.subr.bf16.mxu0 %v2117
      %3477 = vmatpush1.bf16.msra.mxu0 %v2116
      %3478 = vmatprep.subr.bf16.mxu0 %v2111
      %3479 = vmatpush1.bf16.msra.mxu0 %v2110
      %3480 = vmatprep.subr.bf16.mxu0 %v2105
      %3481 = vmatpush1.bf16.msra.mxu0 %v2104
      %3482 = vmatprep.subr.bf16.mxu0 %v2099
      %3483 = vmatpush1.bf16.msra.mxu0 %v2098
      %3484 = vmatprep.subr.bf16.mxu0 %v2093
      %3485 = vmatpush1.bf16.msra.mxu0 %v2092
      %3486 = vmatprep.subr.bf16.mxu0 %v2087
      %3487 = vmatpush1.bf16.msra.mxu0 %v2086
      %3488 = vmatprep.subr.bf16.mxu0 %v2177
      %3489 = vmatpush2.bf16.msra.mxu0 %v2176
      %3490 = vmatprep.subr.bf16.mxu0 %v2171
      %3491 = vmatpush2.bf16.msra.mxu0 %v2170
      %3492 = vmatprep.subr.bf16.mxu0 %v2165
      %3493 = vmatpush2.bf16.msra.mxu0 %v2164
      %3494 = vmatprep.subr.bf16.mxu0 %v2159
      %3495 = vmatpush2.bf16.msra.mxu0 %v2158
      %3496 = vmatprep.subr.bf16.mxu0 %v2153
      %3497 = vmatpush2.bf16.msra.mxu0 %v2152
      %3498 = vmatprep.subr.bf16.mxu0 %v2147
      %3499 = vmatpush2.bf16.msra.mxu0 %v2146
      %3500 = vmatprep.subr.bf16.mxu0 %v2141
      %3501 = vmatpush2.bf16.msra.mxu0 %v2140
      %3502 = vmatprep.subr.bf16.mxu0 %v2135
      %3503 = vmatpush2.bf16.msra.mxu0 %v2134
      %3504 = vmatprep.mubr.bf16.mxu0 %v803
      %3505 = vmatmul.mubr.bf16.gmra.mxu0 %v802
      %v3506 = vpop.f32.mrf.mxu0
      %v3507 = vadd.f32 %v3416, %v3506
      %v3508 = vpop.f32.mrf.mxu0
      %v3509 = vadd.f32 %v3418, %v3508
      %v3510 = vpop.f32.mrf.mxu0
      %v3511 = vadd.f32 %v3420, %v3510
      %v3512 = vpop.f32.mrf.mxu0
      %v3513 = vadd.f32 %v3422, %v3512
      %3514 = vmatprep.mubr.bf16.mxu0 %v810
      %3515 = vmatmul.mubr.bf16.gmra.mxu0 %v809
      %v3516 = vpop.f32.mrf.mxu0
      %v3517 = vadd.f32 %v3426, %v3516
      %v3518 = vpop.f32.mrf.mxu0
      %v3519 = vadd.f32 %v3428, %v3518
      %v3520 = vpop.f32.mrf.mxu0
      %v3521 = vadd.f32 %v3430, %v3520
      %v3522 = vpop.f32.mrf.mxu0
      %v3523 = vadd.f32 %v3432, %v3522
      %3524 = vmatprep.mubr.bf16.mxu0 %v817
      %3525 = vmatmul.mubr.bf16.gmra.mxu0 %v816
      %v3526 = vpop.f32.mrf.mxu0
      %v3527 = vadd.f32 %v3436, %v3526
      %v3528 = vpop.f32.mrf.mxu0
      %v3529 = vadd.f32 %v3438, %v3528
      %v3530 = vpop.f32.mrf.mxu0
      %v3531 = vadd.f32 %v3440, %v3530
      %v3532 = vpop.f32.mrf.mxu0
      %v3533 = vadd.f32 %v3442, %v3532
      %3534 = vmatprep.mubr.bf16.mxu0 %v824
      %3535 = vmatmul.mubr.bf16.gmra.mxu0 %v823
      %v3536 = vpop.f32.mrf.mxu0
      %v3537 = vadd.f32 %v3446, %v3536
      %v3538 = vpop.f32.mrf.mxu0
      %v3539 = vadd.f32 %v3448, %v3538
      %v3540 = vpop.f32.mrf.mxu0
      %v3541 = vadd.f32 %v3450, %v3540
      %v3542 = vpop.f32.mrf.mxu0
      %v3543 = vadd.f32 %v3452, %v3542
      %3544 = vmatprep.mubr.bf16.mxu0 %v831
      %3545 = vmatmul.mubr.bf16.gmra.mxu0 %v830
      %v3546 = vpop.f32.mrf.mxu0
      %v3547 = vadd.f32 %v3456, %v3546
      %v3548 = vpop.f32.mrf.mxu0
      %v3549 = vadd.f32 %v3458, %v3548
      %v3550 = vpop.f32.mrf.mxu0
      %v3551 = vadd.f32 %v3460, %v3550
      %v3552 = vpop.f32.mrf.mxu0
      %v3553 = vadd.f32 %v3462, %v3552
      %3554 = vmatprep.mubr.bf16.mxu0 %v838
      %3555 = vmatmul.mubr.bf16.gmra.mxu0 %v837
      %v3556 = vpop.f32.mrf.mxu0
      %v3557 = vadd.f32 %v3466, %v3556
      %v3558 = vpop.f32.mrf.mxu0
      %v3559 = vadd.f32 %v3468, %v3558
      %v3560 = vpop.f32.mrf.mxu0
      %v3561 = vpop.f32.mrf.mxu0
      %3562 = vdwg.mxu0
      %3563 = vmatprep.subr.bf16.mxu0 %v2225
      %3564 = vmatpush1.bf16.msra.mxu0 %v2224
      %3565 = vmatprep.subr.bf16.mxu0 %v2219
      %3566 = vmatpush1.bf16.msra.mxu0 %v2218
      %3567 = vmatprep.subr.bf16.mxu0 %v2213
      %3568 = vmatpush1.bf16.msra.mxu0 %v2212
      %3569 = vmatprep.subr.bf16.mxu0 %v2207
      %3570 = vmatpush1.bf16.msra.mxu0 %v2206
      %3571 = vmatprep.subr.bf16.mxu0 %v2201
      %3572 = vmatpush1.bf16.msra.mxu0 %v2200
      %3573 = vmatprep.subr.bf16.mxu0 %v2195
      %3574 = vmatpush1.bf16.msra.mxu0 %v2194
      %3575 = vmatprep.subr.bf16.mxu0 %v2189
      %3576 = vmatpush1.bf16.msra.mxu0 %v2188
      %3577 = vmatprep.subr.bf16.mxu0 %v2183
      %3578 = vmatpush1.bf16.msra.mxu0 %v2182
      %3579 = vmatprep.subr.bf16.mxu0 0
      %3580 = vmatpush2.bf16.msra.mxu0 0
      %3581 = vmatprep.subr.bf16.mxu0 0
      %3582 = vmatpush2.bf16.msra.mxu0 0
      %3583 = vmatprep.subr.bf16.mxu0 0
      %3584 = vmatpush2.bf16.msra.mxu0 0
      %3585 = vmatprep.subr.bf16.mxu0 0
      %3586 = vmatpush2.bf16.msra.mxu0 0
      %3587 = vmatprep.subr.bf16.mxu0 0
      %3588 = vmatpush2.bf16.msra.mxu0 0
      %3589 = vmatprep.subr.bf16.mxu0 0
      %3590 = vmatpush2.bf16.msra.mxu0 0
      %3591 = vmatprep.subr.bf16.mxu0 0
      %3592 = vmatpush2.bf16.msra.mxu0 0
      %3593 = vmatprep.subr.bf16.mxu0 0
      %3594 = vmatpush2.bf16.msra.mxu0 0
      %3595 = vmatprep.mubr.bf16.mxu0 0
      %3596 = vmatmul.mubr.bf16.gmra.mxu0 %v804
      %v3597 = vpop.f32.mrf.mxu0
      %v3598 = vadd.f32 %v3507, %v3597
      %v3599 = vpop.f32.mrf.mxu0
      %v3600 = vadd.f32 %v3509, %v3599
      %v3601 = vpop.f32.mrf.mxu0
      %v3602 = vadd.f32 %v3511, %v3601
      %v3603 = vpop.f32.mrf.mxu0
      %v3604 = vadd.f32 %v3513, %v3603
      %3605 = vmatprep.mubr.bf16.mxu0 0
      %3606 = vmatmul.mubr.bf16.gmra.mxu0 %v811
      %v3607 = vpop.f32.mrf.mxu0
      %v3608 = vadd.f32 %v3517, %v3607
      %v3609 = vpop.f32.mrf.mxu0
      %v3610 = vadd.f32 %v3519, %v3609
      %v3611 = vpop.f32.mrf.mxu0
      %v3612 = vadd.f32 %v3521, %v3611
      %v3613 = vpop.f32.mrf.mxu0
      %v3614 = vadd.f32 %v3523, %v3613
      %3615 = vmatprep.mubr.bf16.mxu0 0
      %3616 = vmatmul.mubr.bf16.gmra.mxu0 %v818
      %v3617 = vpop.f32.mrf.mxu0
      %v3618 = vadd.f32 %v3527, %v3617
      %v3619 = vpop.f32.mrf.mxu0
      %v3620 = vadd.f32 %v3529, %v3619
      %v3621 = vpop.f32.mrf.mxu0
      %v3622 = vadd.f32 %v3531, %v3621
      %v3623 = vpop.f32.mrf.mxu0
      %v3624 = vadd.f32 %v3533, %v3623
      %3625 = vmatprep.mubr.bf16.mxu0 0
      %3626 = vmatmul.mubr.bf16.gmra.mxu0 %v825
      %v3627 = vpop.f32.mrf.mxu0
      %v3628 = vadd.f32 %v3537, %v3627
      %v3629 = vpop.f32.mrf.mxu0
      %v3630 = vadd.f32 %v3539, %v3629
      %v3631 = vpop.f32.mrf.mxu0
      %v3632 = vadd.f32 %v3541, %v3631
      %v3633 = vpop.f32.mrf.mxu0
      %v3634 = vadd.f32 %v3543, %v3633
      %3635 = vmatprep.mubr.bf16.mxu0 0
      %3636 = vmatmul.mubr.bf16.gmra.mxu0 %v832
      %v3637 = vpop.f32.mrf.mxu0
      %v3638 = vadd.f32 %v3547, %v3637
      %v3639 = vpop.f32.mrf.mxu0
      %v3640 = vadd.f32 %v3549, %v3639
      %v3641 = vpop.f32.mrf.mxu0
      %v3642 = vadd.f32 %v3551, %v3641
      %v3643 = vpop.f32.mrf.mxu0
      %v3644 = vadd.f32 %v3553, %v3643
      %3645 = vmatprep.mubr.bf16.mxu0 0
      %3646 = vmatmul.mubr.bf16.gmra.mxu0 %v839
      %v3647 = vpop.f32.mrf.mxu0
      %v3648 = vadd.f32 %v3557, %v3647
      %v3649 = vpop.f32.mrf.mxu0
      %v3650 = vadd.f32 %v3559, %v3649
      %v3651 = vpop.f32.mrf.mxu0
      %v3652 = vpop.f32.mrf.mxu0
      %3653 = vdwg.mxu0
      %v3654 = vmax.f32 %v2870, 0.0
      %v3655 = vmax.f32 %v2872, 0.0
      %v3656 = vmax.f32 %v3234, 0.0
      %v3657 = vmax.f32 %v3236, 0.0
      %v3658 = vmax.f32 %v3598, 0.0
      %v3659 = vmax.f32 %v3600, 0.0
      %v3660 = vmax.f32 %v2874, 0.0
      %v3661 = vmax.f32 %v2876, 0.0
      %v3662 = vmax.f32 %v3238, 0.0
      %v3663 = vmax.f32 %v3240, 0.0
      %v3664 = vmax.f32 %v3602, 0.0
      %v3665 = vmax.f32 %v3604, 0.0
      %v3666 = vmax.f32 %v2880, 0.0
      %v3667 = vmax.f32 %v2882, 0.0
      %v3668 = vmax.f32 %v3244, 0.0
      %v3669 = vmax.f32 %v3246, 0.0
      %v3670 = vmax.f32 %v3608, 0.0
      %v3671 = vmax.f32 %v3610, 0.0
      %v3672 = vmax.f32 %v2884, 0.0
      %v3673 = vmax.f32 %v2886, 0.0
      %v3674 = vmax.f32 %v3248, 0.0
      %v3675 = vmax.f32 %v3250, 0.0
      %v3676 = vmax.f32 %v3612, 0.0
      %v3677 = vmax.f32 %v3614, 0.0
      %v3678 = vmax.f32 %v2890, 0.0
      %v3679 = vmax.f32 %v2892, 0.0
      %v3680 = vmax.f32 %v3254, 0.0
      %v3681 = vmax.f32 %v3256, 0.0
      %v3682 = vmax.f32 %v3618, 0.0
      %v3683 = vmax.f32 %v3620, 0.0
      %v3684 = vmax.f32 %v2894, 0.0
      %v3685 = vmax.f32 %v2896, 0.0
      %v3686 = vmax.f32 %v3258, 0.0
      %v3687 = vmax.f32 %v3260, 0.0
      %v3688 = vmax.f32 %v3622, 0.0
      %v3689 = vmax.f32 %v3624, 0.0
      %v3690 = vmax.f32 %v2900, 0.0
      %v3691 = vmax.f32 %v2902, 0.0
      %v3692 = vmax.f32 %v3264, 0.0
      %v3693 = vmax.f32 %v3266, 0.0
      %v3694 = vmax.f32 %v3628, 0.0
      %v3695 = vmax.f32 %v3630, 0.0
      %v3696 = vmax.f32 %v2904, 0.0
      %v3697 = vmax.f32 %v2906, 0.0
      %v3698 = vmax.f32 %v3268, 0.0
      %v3699 = vmax.f32 %v3270, 0.0
      %v3700 = vmax.f32 %v3632, 0.0
      %v3701 = vmax.f32 %v3634, 0.0
      %v3702 = vmax.f32 %v2910, 0.0
      %v3703 = vmax.f32 %v2912, 0.0
      %v3704 = vmax.f32 %v3274, 0.0
      %v3705 = vmax.f32 %v3276, 0.0
      %v3706 = vmax.f32 %v3638, 0.0
      %v3707 = vmax.f32 %v3640, 0.0
      %v3708 = vmax.f32 %v2914, 0.0
      %v3709 = vmax.f32 %v2916, 0.0
      %v3710 = vmax.f32 %v3278, 0.0
      %v3711 = vmax.f32 %v3280, 0.0
      %v3712 = vmax.f32 %v3642, 0.0
      %v3713 = vmax.f32 %v3644, 0.0
      %v3714 = vmax.f32 %v2920, 0.0
      %v3715 = vmax.f32 %v2922, 0.0
      %v3716 = vmax.f32 %v3284, 0.0
      %v3717 = vmax.f32 %v3286, 0.0
      %v3718 = vmax.f32 %v3648, 0.0
      %v3719 = vmax.f32 %v3650, 0.0
      %v3720 = vpack.c.bf16 %v3660, %v3654
      %v3721 = vpack.c.bf16 %v3661, %v3655
      %v3722 = vpack.c.bf16 %v3672, %v3666
      %v3723 = vpack.c.bf16 %v3673, %v3667
      %v3724 = vpack.c.bf16 %v3684, %v3678
      %v3725 = vpack.c.bf16 %v3685, %v3679
      %v3726 = vpack.c.bf16 %v3696, %v3690
      %v3727 = vpack.c.bf16 %v3697, %v3691
      %v3728 = vpack.c.bf16 %v3708, %v3702
      %v3729 = vpack.c.bf16 %v3709, %v3703
      %v3730 = vpack.c.bf16 %v3714, %v3714
      %v3731 = vpack.c.bf16 %v3715, %v3715
      %v3744 = vunpack.c.l.b16 %v3720
      %v3745 = vunpack.c.l.b16 %v3721
      %v3746 = vunpack.c.h.b16 %v3720
      %v3747 = vunpack.c.h.b16 %v3721
      %v3748 = vunpack.c.l.b16 %v3722
      %v3749 = vunpack.c.l.b16 %v3723
      %v3750 = vunpack.c.h.b16 %v3722
      %v3751 = vunpack.c.h.b16 %v3723
      %v3752 = vunpack.c.l.b16 %v3724
      %v3753 = vunpack.c.l.b16 %v3725
      %v3754 = vunpack.c.h.b16 %v3724
      %v3755 = vunpack.c.h.b16 %v3725
      %v3756 = vunpack.c.l.b16 %v3726
      %v3757 = vunpack.c.l.b16 %v3727
      %v3758 = vunpack.c.h.b16 %v3726
      %v3759 = vunpack.c.h.b16 %v3727
      %v3760 = vunpack.c.l.b16 %v3728
      %v3761 = vunpack.c.l.b16 %v3729
      %v3762 = vunpack.c.h.b16 %v3728
      %v3763 = vunpack.c.h.b16 %v3729
      %v3764 = vunpack.c.l.b16 %v3730
      %v3765 = vunpack.c.l.b16 %v3731
      %v3766 = vpack.c.b16 %v3745, %v3744
      %v3767 = vpack.c.b16 %v3747, %v3746
      %v3768 = vpack.c.b16 %v3749, %v3748
      %v3769 = vpack.c.b16 %v3751, %v3750
      %v3770 = vpack.c.b16 %v3753, %v3752
      %v3771 = vpack.c.b16 %v3755, %v3754
      %v3772 = vpack.c.b16 %v3757, %v3756
      %v3773 = vpack.c.b16 %v3759, %v3758
      %v3774 = vpack.c.b16 %v3761, %v3760
      %v3775 = vpack.c.b16 %v3763, %v3762
      %v3776 = vpack.c.b16 %v3765, %v3764
      %3788 = vst [vmem:[%s248] sm:$0xff] %v3766
      %3789 = vst [vmem:[%s248 + $0x8] sm:$0xff] %v3767
      %3790 = vst [vmem:[%s248 + $0x10] sm:$0xff] %v3768
      %3791 = vst [vmem:[%s248 + $0x18] sm:$0xff] %v3769
      %3792 = vst [vmem:[%s248 + $0x20] sm:$0xff] %v3770
      %3793 = vst [vmem:[%s248 + $0x28] sm:$0xff] %v3771
      %3794 = vst [vmem:[%s248 + $0x30] sm:$0xff] %v3772
      %3795 = vst [vmem:[%s248 + $0x38] sm:$0xff] %v3773
      %3796 = vst [vmem:[%s248 + $0x40] sm:$0xff] %v3774
      %3797 = vst [vmem:[%s248 + $0x48] sm:$0xff] %v3775
      %3798 = vst [vmem:[%s248 + $0x50] sm:$0xff] %v3776
      %v3799 = vpack.c.bf16 %v3662, %v3656
      %v3800 = vpack.c.bf16 %v3663, %v3657
      %v3801 = vpack.c.bf16 %v3674, %v3668
      %v3802 = vpack.c.bf16 %v3675, %v3669
      %v3803 = vpack.c.bf16 %v3686, %v3680
      %v3804 = vpack.c.bf16 %v3687, %v3681
      %v3805 = vpack.c.bf16 %v3698, %v3692
      %v3806 = vpack.c.bf16 %v3699, %v3693
      %v3807 = vpack.c.bf16 %v3710, %v3704
      %v3808 = vpack.c.bf16 %v3711, %v3705
      %v3809 = vpack.c.bf16 %v3716, %v3716
      %v3810 = vpack.c.bf16 %v3717, %v3717
      %v3823 = vunpack.c.l.b16 %v3799
      %v3824 = vunpack.c.l.b16 %v3800
      %v3825 = vunpack.c.h.b16 %v3799
      %v3826 = vunpack.c.h.b16 %v3800
      %v3827 = vunpack.c.l.b16 %v3801
      %v3828 = vunpack.c.l.b16 %v3802
      %v3829 = vunpack.c.h.b16 %v3801
      %v3830 = vunpack.c.h.b16 %v3802
      %v3831 = vunpack.c.l.b16 %v3803
      %v3832 = vunpack.c.l.b16 %v3804
      %v3833 = vunpack.c.h.b16 %v3803
      %v3834 = vunpack.c.h.b16 %v3804
      %v3835 = vunpack.c.l.b16 %v3805
      %v3836 = vunpack.c.l.b16 %v3806
      %v3837 = vunpack.c.h.b16 %v3805
      %v3838 = vunpack.c.h.b16 %v3806
      %v3839 = vunpack.c.l.b16 %v3807
      %v3840 = vunpack.c.l.b16 %v3808
      %v3841 = vunpack.c.h.b16 %v3807
      %v3842 = vunpack.c.h.b16 %v3808
      %v3843 = vunpack.c.l.b16 %v3809
      %v3844 = vunpack.c.l.b16 %v3810
      %v3845 = vpack.c.b16 %v3824, %v3823
      %v3846 = vpack.c.b16 %v3826, %v3825
      %v3847 = vpack.c.b16 %v3828, %v3827
      %v3848 = vpack.c.b16 %v3830, %v3829
      %v3849 = vpack.c.b16 %v3832, %v3831
      %v3850 = vpack.c.b16 %v3834, %v3833
      %v3851 = vpack.c.b16 %v3836, %v3835
      %v3852 = vpack.c.b16 %v3838, %v3837
      %v3853 = vpack.c.b16 %v3840, %v3839
      %v3854 = vpack.c.b16 %v3842, %v3841
      %v3855 = vpack.c.b16 %v3844, %v3843
      %3867 = vst [vmem:[%s255] sm:$0xff] %v3845
      %3868 = vst [vmem:[%s255 + $0x8] sm:$0xff] %v3846
      %3869 = vst [vmem:[%s255 + $0x10] sm:$0xff] %v3847
      %3870 = vst [vmem:[%s255 + $0x18] sm:$0xff] %v3848
      %3871 = vst [vmem:[%s255 + $0x20] sm:$0xff] %v3849
      %3872 = vst [vmem:[%s255 + $0x28] sm:$0xff] %v3850
      %3873 = vst [vmem:[%s255 + $0x30] sm:$0xff] %v3851
      %3874 = vst [vmem:[%s255 + $0x38] sm:$0xff] %v3852
      %3875 = vst [vmem:[%s255 + $0x40] sm:$0xff] %v3853
      %3876 = vst [vmem:[%s255 + $0x48] sm:$0xff] %v3854
      %3877 = vst [vmem:[%s255 + $0x50] sm:$0xff] %v3855
      %v3878 = vpack.c.bf16 %v3664, %v3658
      %v3879 = vpack.c.bf16 %v3665, %v3659
      %v3880 = vpack.c.bf16 %v3676, %v3670
      %v3881 = vpack.c.bf16 %v3677, %v3671
      %v3882 = vpack.c.bf16 %v3688, %v3682
      %v3883 = vpack.c.bf16 %v3689, %v3683
      %v3884 = vpack.c.bf16 %v3700, %v3694
      %v3885 = vpack.c.bf16 %v3701, %v3695
      %v3886 = vpack.c.bf16 %v3712, %v3706
      %v3887 = vpack.c.bf16 %v3713, %v3707
      %v3888 = vpack.c.bf16 %v3718, %v3718
      %v3889 = vpack.c.bf16 %v3719, %v3719
      %v3902 = vunpack.c.l.b16 %v3878
      %v3903 = vunpack.c.l.b16 %v3879
      %v3904 = vunpack.c.h.b16 %v3878
      %v3905 = vunpack.c.h.b16 %v3879
      %v3906 = vunpack.c.l.b16 %v3880
      %v3907 = vunpack.c.l.b16 %v3881
      %v3908 = vunpack.c.h.b16 %v3880
      %v3909 = vunpack.c.h.b16 %v3881
      %v3910 = vunpack.c.l.b16 %v3882
      %v3911 = vunpack.c.l.b16 %v3883
      %v3912 = vunpack.c.h.b16 %v3882
      %v3913 = vunpack.c.h.b16 %v3883
      %v3914 = vunpack.c.l.b16 %v3884
      %v3915 = vunpack.c.l.b16 %v3885
      %v3916 = vunpack.c.h.b16 %v3884
      %v3917 = vunpack.c.h.b16 %v3885
      %v3918 = vunpack.c.l.b16 %v3886
      %v3919 = vunpack.c.l.b16 %v3887
      %v3920 = vunpack.c.h.b16 %v3886
      %v3921 = vunpack.c.h.b16 %v3887
      %v3922 = vunpack.c.l.b16 %v3888
      %v3923 = vunpack.c.l.b16 %v3889
      %v3924 = vpack.c.b16 %v3903, %v3902
      %v3925 = vpack.c.b16 %v3905, %v3904
      %v3926 = vpack.c.b16 %v3907, %v3906
      %v3927 = vpack.c.b16 %v3909, %v3908
      %v3928 = vpack.c.b16 %v3911, %v3910
      %v3929 = vpack.c.b16 %v3913, %v3912
      %v3930 = vpack.c.b16 %v3915, %v3914
      %v3931 = vpack.c.b16 %v3917, %v3916
      %v3932 = vpack.c.b16 %v3919, %v3918
      %v3933 = vpack.c.b16 %v3921, %v3920
      %v3934 = vpack.c.b16 %v3923, %v3922
      %3946 = vst [vmem:[%s262] sm:$0xff] %v3924
      %3947 = vst [vmem:[%s262 + $0x8] sm:$0xff] %v3925
      %3948 = vst [vmem:[%s262 + $0x10] sm:$0xff] %v3926
      %3949 = vst [vmem:[%s262 + $0x18] sm:$0xff] %v3927
      %3950 = vst [vmem:[%s262 + $0x20] sm:$0xff] %v3928
      %3951 = vst [vmem:[%s262 + $0x28] sm:$0xff] %v3929
      %3952 = vst [vmem:[%s262 + $0x30] sm:$0xff] %v3930
      %3953 = vst [vmem:[%s262 + $0x38] sm:$0xff] %v3931
      %3954 = vst [vmem:[%s262 + $0x40] sm:$0xff] %v3932
      %3955 = vst [vmem:[%s262 + $0x48] sm:$0xff] %v3933
      %3956 = vst [vmem:[%s262 + $0x50] sm:$0xff] %v3934
      %s3957 = smul.u32 11, %s17
      %p3958 = scmp.lt.s32.totalorder %s3957, 21
      %s3959 = scalar_select %p3958, %s3957, 21
      %s3960 = smul.addr %s3959, 2
      %s3961 = smul.addr %s3960, 4
      %s3962 = scalar_lea.vmem %s3, %s3961
      %s3963 = smul.u32 11, %s17
      %p3964 = scmp.lt.s32.totalorder %s3963, 21
      %s3965 = scalar_select %p3964, %s3963, 21
      %s3966 = smul.addr %s3965, 2
      %s3967 = smul.addr %s3966, 4
      %s3968 = scalar_lea.vmem %s4, %s3967
      %s3969 = smul.u32 11, %s17
      %p3970 = scmp.lt.s32.totalorder %s3969, 21
      %s3971 = scalar_select %p3970, %s3969, 21
      %s3972 = smul.addr %s3971, 2
      %s3973 = smul.addr %s3972, 4
      %s3974 = scalar_lea.vmem %s5, %s3973
      // Predicated region
      $region33: #{mixed_7a_forward.4} parent=31 // pred_check
        %p3975 = pneg %p103
      $region34: #{mixed_7a_forward.4} parent=31 // pred_check_branch
        %3977 = sbr.rel (%p3975) target = $region36
      $region35: #{mixed_7a_forward.4} parent=31 // pred_region
        %s3978 = smul.u32 11, %s17
      $region36: #{mixed_7a_forward.4} parent=31 // pred_fallthru
        _
      // Predicated region
      $region37: #{mixed_7a_forward.4} parent=31 // pred_check
        %p3979 = pneg %p129
      $region38: #{mixed_7a_forward.4} parent=31 // pred_check_branch
        %3981 = sbr.rel (%p3979) target = $region40
      $region39: #{mixed_7a_forward.4} parent=31 // pred_region
        %s3982 = smul.u32 11, %s17
      $region40: #{mixed_7a_forward.4} parent=31 // pred_fallthru
        _
      // Predicated region
      $region41: #{mixed_7a_forward.4} parent=31 // pred_check
        %p3983 = pneg %p155
      $region42: #{mixed_7a_forward.4} parent=31 // pred_check_branch
        %3985 = sbr.rel (%p3983) target = $region44
      $region43: #{mixed_7a_forward.4} parent=31 // pred_region
        %s3986 = smul.u32 11, %s17
      $region44: #{mixed_7a_forward.4} parent=31 // pred_fallthru
        _
    $region32: #{mixed_7a_forward.4} parent=5 // pred_fallthru
      _
    %p3987 = scmp.le.s32.totalorder 2, %s12
    // Predicated region
    $region45: #{mixed_7a_forward.4} parent=5 // pred_check
      %p3988 = pneg %p3987
    $region46: #{mixed_7a_forward.4} parent=5 // pred_check_branch
      %3990 = sbr.rel (%p3988) target = $region48
    $region47: #{mixed_7a_forward.4} parent=5 // pred_region
      %s3991 = ssub.s32 %s12, 2
      // Predicated region
      $region49: #{mixed_7a_forward.4} parent=47 // pred_check
        %p3992 = pneg %p109
      $region50: #{mixed_7a_forward.4} parent=47 // pred_check_branch
        %3994 = sbr.rel (%p3992) target = $region52
      $region51: #{mixed_7a_forward.4} parent=47 // pred_region
        %s3995 = smul.u32 11, %s18
        %p3996 = scmp.lt.s32.totalorder %s3995, 21
        %s3997 = scalar_select %p3996, %s3995, 21
        %s3998 = smul.addr %s3997, 2
        %s3999 = smul.addr %s3998, 4
        %s4000 = scalar_lea.vmem %s3, %s3999
      $region52: #{mixed_7a_forward.4} parent=47 // pred_fallthru
        _
      // Predicated region
      $region53: #{mixed_7a_forward.4} parent=47 // pred_check
        %p4001 = pneg %p135
      $region54: #{mixed_7a_forward.4} parent=47 // pred_check_branch
        %4003 = sbr.rel (%p4001) target = $region56
      $region55: #{mixed_7a_forward.4} parent=47 // pred_region
        %s4004 = smul.u32 11, %s18
        %p4005 = scmp.lt.s32.totalorder %s4004, 21
        %s4006 = scalar_select %p4005, %s4004, 21
        %s4007 = smul.addr %s4006, 2
        %s4008 = smul.addr %s4007, 4
        %s4009 = scalar_lea.vmem %s4, %s4008
      $region56: #{mixed_7a_forward.4} parent=47 // pred_fallthru
        _
      // Predicated region
      $region57: #{mixed_7a_forward.4} parent=47 // pred_check
        %p4010 = pneg %p161
      $region58: #{mixed_7a_forward.4} parent=47 // pred_check_branch
        %4012 = sbr.rel (%p4010) target = $region60
      $region59: #{mixed_7a_forward.4} parent=47 // pred_region
        %s4013 = smul.u32 11, %s18
        %p4014 = scmp.lt.s32.totalorder %s4013, 21
        %s4015 = scalar_select %p4014, %s4013, 21
        %s4016 = smul.addr %s4015, 2
        %s4017 = smul.addr %s4016, 4
        %s4018 = scalar_lea.vmem %s5, %s4017
      $region60: #{mixed_7a_forward.4} parent=47 // pred_fallthru
        _
    $region48: #{mixed_7a_forward.4} parent=5 // pred_fallthru
      _
  $region6: #{mixed_7a_forward.4} parent=0 // loop_footer
    %s16 = sadd.s32 1, %s12
  $region7: #{mixed_7a_forward.4} parent=0 // loop_footer_branch
    %11 = sbr.rel target = $region3
  $region8: #{mixed_7a_forward.4} parent=0 // loop_exit
    _

// kernel: mixed_7a_forward.5
$region0: #{mixed_7a_forward.5}
  #allocation0 [shape = 'u32[]', space=smem, size = 0x4, offset = 0x4, fixed_abs, tag = 'smem constant byte address 0x4 - core index']
  #allocation1 [shape = 'u32[144,128]{1,0:T(1,128)}', space=vmem, size = 0x12000, scoped, tag = 'internal scratch']
  %s0 = inlined_call_operand.vmem [shape: bf16[32,2304], index: 0, kind: input, shape index: {}]
  %s1 = inlined_call_operand.vmem [shape: bf16[2304,384], index: 1, kind: input, shape index: {}]
  %s2 = inlined_call_operand.vmem [shape: f32[1,384], index: 2, kind: input, shape index: {}]
  %s3 = inlined_call_operand.vmem [shape: f32[32,384], index: 3, kind: output, shape index: {}]
  %s4 = sld [smem:[#allocation0]]
  $region22: #{mixed_7a_forward.5} parent=0
    _
  %s6 = ssub.s32 1, %s4
  %s7 = scalar_select 0, %s6, %s4
  // Predicated region
  $region2: #{mixed_7a_forward.5} parent=0 // pred_check
    _
  $region3: #{mixed_7a_forward.5} parent=0 // pred_check_branch
    %9 = sbr.rel (0) target = $region5
  $region4: #{mixed_7a_forward.5} parent=0 // pred_region
    _
  $region5: #{mixed_7a_forward.5} parent=0 // pred_fallthru
    _
  // Predicated region
  $region6: #{mixed_7a_forward.5} parent=0 // pred_check
    _
  $region7: #{mixed_7a_forward.5} parent=0 // pred_check_branch
    %11 = sbr.rel (0) target = $region9
  $region8: #{mixed_7a_forward.5} parent=0 // pred_region
    _
  $region9: #{mixed_7a_forward.5} parent=0 // pred_fallthru
    _
  // Predicated region
  $region10: #{mixed_7a_forward.5} parent=0 // pred_check
    _
  $region11: #{mixed_7a_forward.5} parent=0 // pred_check_branch
    %13 = sbr.rel (0) target = $region13
  $region12: #{mixed_7a_forward.5} parent=0 // pred_region
    _
  $region13: #{mixed_7a_forward.5} parent=0 // pred_fallthru
    _
  %v15 = vld [vmem:[%s0] sm:$0xff]
  %v16 = vld [vmem:[%s0 + $0x8] sm:$0xff]
  %v17 = vld [vmem:[%s0 + $0x10] sm:$0xff]
  %v18 = vld [vmem:[%s0 + $0x18] sm:$0xff]
  %v19 = vld [vmem:[%s0 + $0x20] sm:$0xff]
  %v20 = vld [vmem:[%s0 + $0x28] sm:$0xff]
  %v21 = vld [vmem:[%s0 + $0x30] sm:$0xff]
  %v22 = vld [vmem:[%s0 + $0x38] sm:$0xff]
  %v23 = vld [vmem:[%s0 + $0x40] sm:$0xff]
  %v24 = vld [vmem:[%s0 + $0x48] sm:$0xff]
  %v25 = vld [vmem:[%s0 + $0x50] sm:$0xff]
  %v26 = vld [vmem:[%s0 + $0x58] sm:$0xff]
  %v27 = vld [vmem:[%s0 + $0x60] sm:$0xff]
  %v28 = vld [vmem:[%s0 + $0x68] sm:$0xff]
  %v29 = vld [vmem:[%s0 + $0x70] sm:$0xff]
  %v30 = vld [vmem:[%s0 + $0x78] sm:$0xff]
  %v31 = vld [vmem:[%s0 + $0x80] sm:$0xff]
  %v32 = vld [vmem:[%s0 + $0x88] sm:$0xff]
  %v33 = vld [vmem:[%s0 + $0x90] sm:$0xff]
  %v34 = vld [vmem:[%s0 + $0x98] sm:$0xff]
  %v35 = vld [vmem:[%s0 + $0xa0] sm:$0xff]
  %v36 = vld [vmem:[%s0 + $0xa8] sm:$0xff]
  %v37 = vld [vmem:[%s0 + $0xb0] sm:$0xff]
  %v38 = vld [vmem:[%s0 + $0xb8] sm:$0xff]
  %v39 = vld [vmem:[%s0 + $0xc0] sm:$0xff]
  %v40 = vld [vmem:[%s0 + $0xc8] sm:$0xff]
  %v41 = vld [vmem:[%s0 + $0xd0] sm:$0xff]
  %v42 = vld [vmem:[%s0 + $0xd8] sm:$0xff]
  %v43 = vld [vmem:[%s0 + $0xe0] sm:$0xff]
  %v44 = vld [vmem:[%s0 + $0xe8] sm:$0xff]
  %v45 = vld [vmem:[%s0 + $0xf0] sm:$0xff]
  %v46 = vld [vmem:[%s0 + $0xf8] sm:$0xff]
  %v47 = vld [vmem:[%s0 + $0x100] sm:$0xff]
  %v48 = vld [vmem:[%s0 + $0x108] sm:$0xff]
  %v49 = vld [vmem:[%s0 + $0x110] sm:$0xff]
  %v50 = vld [vmem:[%s0 + $0x118] sm:$0xff]
  %v51 = vld [vmem:[%s1] sm:$0xff]
  %v52 = vld [vmem:[%s1 + $0x8] sm:$0xf]
  %v53 = vld [vmem:[%s1 + $0xc] sm:$0xff]
  %v54 = vld [vmem:[%s1 + $0x14] sm:$0xf]
  %v55 = vld [vmem:[%s1 + $0x18] sm:$0xff]
  %v56 = vld [vmem:[%s1 + $0x20] sm:$0xf]
  %v57 = vld [vmem:[%s1 + $0x24] sm:$0xff]
  %v58 = vld [vmem:[%s1 + $0x2c] sm:$0xf]
  %v59 = vld [vmem:[%s1 + $0x30] sm:$0xff]
  %v60 = vld [vmem:[%s1 + $0x38] sm:$0xf]
  %v61 = vld [vmem:[%s1 + $0x3c] sm:$0xff]
  %v62 = vld [vmem:[%s1 + $0x44] sm:$0xf]
  %v63 = vld [vmem:[%s1 + $0x48] sm:$0xff]
  %v64 = vld [vmem:[%s1 + $0x50] sm:$0xf]
  %v65 = vld [vmem:[%s1 + $0x54] sm:$0xff]
  %v66 = vld [vmem:[%s1 + $0x5c] sm:$0xf]
  %v67 = vld [vmem:[%s1 + $0x60] sm:$0xff]
  %v68 = vld [vmem:[%s1 + $0x68] sm:$0xf]
  %v69 = vld [vmem:[%s1 + $0x6c] sm:$0xff]
  %v70 = vld [vmem:[%s1 + $0x74] sm:$0xf]
  %v71 = vld [vmem:[%s1 + $0x78] sm:$0xff]
  %v72 = vld [vmem:[%s1 + $0x80] sm:$0xf]
  %v73 = vld [vmem:[%s1 + $0x84] sm:$0xff]
  %v74 = vld [vmem:[%s1 + $0x8c] sm:$0xf]
  %v75 = vld [vmem:[%s1 + $0x90] sm:$0xff]
  %v76 = vld [vmem:[%s1 + $0x98] sm:$0xf]
  %v77 = vld [vmem:[%s1 + $0x9c] sm:$0xff]
  %v78 = vld [vmem:[%s1 + $0xa4] sm:$0xf]
  %v79 = vld [vmem:[%s1 + $0xa8] sm:$0xff]
  %v80 = vld [vmem:[%s1 + $0xb0] sm:$0xf]
  %v81 = vld [vmem:[%s1 + $0xb4] sm:$0xff]
  %v82 = vld [vmem:[%s1 + $0xbc] sm:$0xf]
  %v83 = vld [vmem:[%s1 + $0xc0] sm:$0xff]
  %v84 = vld [vmem:[%s1 + $0xc8] sm:$0xf]
  %v85 = vld [vmem:[%s1 + $0xcc] sm:$0xff]
  %v86 = vld [vmem:[%s1 + $0xd4] sm:$0xf]
  %v87 = vld [vmem:[%s1 + $0xd8] sm:$0xff]
  %v88 = vld [vmem:[%s1 + $0xe0] sm:$0xf]
  %v89 = vld [vmem:[%s1 + $0xe4] sm:$0xff]
  %v90 = vld [vmem:[%s1 + $0xec] sm:$0xf]
  %v91 = vld [vmem:[%s1 + $0xf0] sm:$0xff]
  %v92 = vld [vmem:[%s1 + $0xf8] sm:$0xf]
  %v93 = vld [vmem:[%s1 + $0xfc] sm:$0xff]
  %v94 = vld [vmem:[%s1 + $0x104] sm:$0xf]
  %v95 = vld [vmem:[%s1 + $0x108] sm:$0xff]
  %v96 = vld [vmem:[%s1 + $0x110] sm:$0xf]
  %v97 = vld [vmem:[%s1 + $0x114] sm:$0xff]
  %v98 = vld [vmem:[%s1 + $0x11c] sm:$0xf]
  %v99 = vld [vmem:[%s1 + $0x120] sm:$0xff]
  %v100 = vld [vmem:[%s1 + $0x128] sm:$0xf]
  %v101 = vld [vmem:[%s1 + $0x12c] sm:$0xff]
  %v102 = vld [vmem:[%s1 + $0x134] sm:$0xf]
  %v103 = vld [vmem:[%s1 + $0x138] sm:$0xff]
  %v104 = vld [vmem:[%s1 + $0x140] sm:$0xf]
  %v105 = vld [vmem:[%s1 + $0x144] sm:$0xff]
  %v106 = vld [vmem:[%s1 + $0x14c] sm:$0xf]
  %v107 = vld [vmem:[%s1 + $0x150] sm:$0xff]
  %v108 = vld [vmem:[%s1 + $0x158] sm:$0xf]
  %v109 = vld [vmem:[%s1 + $0x15c] sm:$0xff]
  %v110 = vld [vmem:[%s1 + $0x164] sm:$0xf]
  %v111 = vld [vmem:[%s1 + $0x168] sm:$0xff]
  %v112 = vld [vmem:[%s1 + $0x170] sm:$0xf]
  %v113 = vld [vmem:[%s1 + $0x174] sm:$0xff]
  %v114 = vld [vmem:[%s1 + $0x17c] sm:$0xf]
  %v115 = vld [vmem:[%s1 + $0x180] sm:$0xff]
  %v116 = vld [vmem:[%s1 + $0x188] sm:$0xf]
  %v117 = vld [vmem:[%s1 + $0x18c] sm:$0xff]
  %v118 = vld [vmem:[%s1 + $0x194] sm:$0xf]
  %v119 = vld [vmem:[%s1 + $0x198] sm:$0xff]
  %v120 = vld [vmem:[%s1 + $0x1a0] sm:$0xf]
  %v121 = vld [vmem:[%s1 + $0x1a4] sm:$0xff]
  %v122 = vld [vmem:[%s1 + $0x1ac] sm:$0xf]
  %v123 = vld [vmem:[%s1 + $0x1b0] sm:$0xff]
  %v124 = vld [vmem:[%s1 + $0x1b8] sm:$0xf]
  %v125 = vld [vmem:[%s1 + $0x1bc] sm:$0xff]
  %v126 = vld [vmem:[%s1 + $0x1c4] sm:$0xf]
  %v127 = vld [vmem:[%s1 + $0x1c8] sm:$0xff]
  %v128 = vld [vmem:[%s1 + $0x1d0] sm:$0xf]
  %v129 = vld [vmem:[%s1 + $0x1d4] sm:$0xff]
  %v130 = vld [vmem:[%s1 + $0x1dc] sm:$0xf]
  %v131 = vld [vmem:[%s1 + $0x1e0] sm:$0xff]
  %v132 = vld [vmem:[%s1 + $0x1e8] sm:$0xf]
  %v133 = vld [vmem:[%s1 + $0x1ec] sm:$0xff]
  %v134 = vld [vmem:[%s1 + $0x1f4] sm:$0xf]
  %v135 = vld [vmem:[%s1 + $0x1f8] sm:$0xff]
  %v136 = vld [vmem:[%s1 + $0x200] sm:$0xf]
  %v137 = vld [vmem:[%s1 + $0x204] sm:$0xff]
  %v138 = vld [vmem:[%s1 + $0x20c] sm:$0xf]
  %v139 = vld [vmem:[%s1 + $0x210] sm:$0xff]
  %v140 = vld [vmem:[%s1 + $0x218] sm:$0xf]
  %v141 = vld [vmem:[%s1 + $0x21c] sm:$0xff]
  %v142 = vld [vmem:[%s1 + $0x224] sm:$0xf]
  %v143 = vld [vmem:[%s1 + $0x228] sm:$0xff]
  %v144 = vld [vmem:[%s1 + $0x230] sm:$0xf]
  %v145 = vld [vmem:[%s1 + $0x234] sm:$0xff]
  %v146 = vld [vmem:[%s1 + $0x23c] sm:$0xf]
  %v147 = vld [vmem:[%s1 + $0x240] sm:$0xff]
  %v148 = vld [vmem:[%s1 + $0x248] sm:$0xf]
  %v149 = vld [vmem:[%s1 + $0x24c] sm:$0xff]
  %v150 = vld [vmem:[%s1 + $0x254] sm:$0xf]
  %v151 = vld [vmem:[%s1 + $0x258] sm:$0xff]
  %v152 = vld [vmem:[%s1 + $0x260] sm:$0xf]
  %v153 = vld [vmem:[%s1 + $0x264] sm:$0xff]
  %v154 = vld [vmem:[%s1 + $0x26c] sm:$0xf]
  %v155 = vld [vmem:[%s1 + $0x270] sm:$0xff]
  %v156 = vld [vmem:[%s1 + $0x278] sm:$0xf]
  %v157 = vld [vmem:[%s1 + $0x27c] sm:$0xff]
  %v158 = vld [vmem:[%s1 + $0x284] sm:$0xf]
  %v159 = vld [vmem:[%s1 + $0x288] sm:$0xff]
  %v160 = vld [vmem:[%s1 + $0x290] sm:$0xf]
  %v161 = vld [vmem:[%s1 + $0x294] sm:$0xff]
  %v162 = vld [vmem:[%s1 + $0x29c] sm:$0xf]
  %v163 = vld [vmem:[%s1 + $0x2a0] sm:$0xff]
  %v164 = vld [vmem:[%s1 + $0x2a8] sm:$0xf]
  %v165 = vld [vmem:[%s1 + $0x2ac] sm:$0xff]
  %v166 = vld [vmem:[%s1 + $0x2b4] sm:$0xf]
  %v167 = vld [vmem:[%s1 + $0x2b8] sm:$0xff]
  %v168 = vld [vmem:[%s1 + $0x2c0] sm:$0xf]
  %v169 = vld [vmem:[%s1 + $0x2c4] sm:$0xff]
  %v170 = vld [vmem:[%s1 + $0x2cc] sm:$0xf]
  %v171 = vld [vmem:[%s1 + $0x2d0] sm:$0xff]
  %v172 = vld [vmem:[%s1 + $0x2d8] sm:$0xf]
  %v173 = vld [vmem:[%s1 + $0x2dc] sm:$0xff]
  %v174 = vld [vmem:[%s1 + $0x2e4] sm:$0xf]
  %v175 = vld [vmem:[%s1 + $0x2e8] sm:$0xff]
  %v176 = vld [vmem:[%s1 + $0x2f0] sm:$0xf]
  %v177 = vld [vmem:[%s1 + $0x2f4] sm:$0xff]
  %v178 = vld [vmem:[%s1 + $0x2fc] sm:$0xf]
  %v179 = vld [vmem:[%s1 + $0x300] sm:$0xff]
  %v180 = vld [vmem:[%s1 + $0x308] sm:$0xf]
  %v181 = vld [vmem:[%s1 + $0x30c] sm:$0xff]
  %v182 = vld [vmem:[%s1 + $0x314] sm:$0xf]
  %v183 = vld [vmem:[%s1 + $0x318] sm:$0xff]
  %v184 = vld [vmem:[%s1 + $0x320] sm:$0xf]
  %v185 = vld [vmem:[%s1 + $0x324] sm:$0xff]
  %v186 = vld [vmem:[%s1 + $0x32c] sm:$0xf]
  %v187 = vld [vmem:[%s1 + $0x330] sm:$0xff]
  %v188 = vld [vmem:[%s1 + $0x338] sm:$0xf]
  %v189 = vld [vmem:[%s1 + $0x33c] sm:$0xff]
  %v190 = vld [vmem:[%s1 + $0x344] sm:$0xf]
  %v191 = vld [vmem:[%s1 + $0x348] sm:$0xff]
  %v192 = vld [vmem:[%s1 + $0x350] sm:$0xf]
  %v193 = vld [vmem:[%s1 + $0x354] sm:$0xff]
  %v194 = vld [vmem:[%s1 + $0x35c] sm:$0xf]
  %v195 = vld [vmem:[%s1 + $0x360] sm:$0xff]
  %v196 = vld [vmem:[%s1 + $0x368] sm:$0xf]
  %v197 = vld [vmem:[%s1 + $0x36c] sm:$0xff]
  %v198 = vld [vmem:[%s1 + $0x374] sm:$0xf]
  %v199 = vld [vmem:[%s1 + $0x378] sm:$0xff]
  %v200 = vld [vmem:[%s1 + $0x380] sm:$0xf]
  %v201 = vld [vmem:[%s1 + $0x384] sm:$0xff]
  %v202 = vld [vmem:[%s1 + $0x38c] sm:$0xf]
  %v203 = vld [vmem:[%s1 + $0x390] sm:$0xff]
  %v204 = vld [vmem:[%s1 + $0x398] sm:$0xf]
  %v205 = vld [vmem:[%s1 + $0x39c] sm:$0xff]
  %v206 = vld [vmem:[%s1 + $0x3a4] sm:$0xf]
  %v207 = vld [vmem:[%s1 + $0x3a8] sm:$0xff]
  %v208 = vld [vmem:[%s1 + $0x3b0] sm:$0xf]
  %v209 = vld [vmem:[%s1 + $0x3b4] sm:$0xff]
  %v210 = vld [vmem:[%s1 + $0x3bc] sm:$0xf]
  %v211 = vld [vmem:[%s1 + $0x3c0] sm:$0xff]
  %v212 = vld [vmem:[%s1 + $0x3c8] sm:$0xf]
  %v213 = vld [vmem:[%s1 + $0x3cc] sm:$0xff]
  %v214 = vld [vmem:[%s1 + $0x3d4] sm:$0xf]
  %v215 = vld [vmem:[%s1 + $0x3d8] sm:$0xff]
  %v216 = vld [vmem:[%s1 + $0x3e0] sm:$0xf]
  %v217 = vld [vmem:[%s1 + $0x3e4] sm:$0xff]
  %v218 = vld [vmem:[%s1 + $0x3ec] sm:$0xf]
  %v219 = vld [vmem:[%s1 + $0x3f0] sm:$0xff]
  %v220 = vld [vmem:[%s1 + $0x3f8] sm:$0xf]
  %v221 = vld [vmem:[%s1 + $0x3fc] sm:$0xff]
  %v222 = vld [vmem:[%s1 + $0x404] sm:$0xf]
  %v223 = vld [vmem:[%s1 + $0x408] sm:$0xff]
  %v224 = vld [vmem:[%s1 + $0x410] sm:$0xf]
  %v225 = vld [vmem:[%s1 + $0x414] sm:$0xff]
  %v226 = vld [vmem:[%s1 + $0x41c] sm:$0xf]
  %v227 = vld [vmem:[%s1 + $0x420] sm:$0xff]
  %v228 = vld [vmem:[%s1 + $0x428] sm:$0xf]
  %v229 = vld [vmem:[%s1 + $0x42c] sm:$0xff]
  %v230 = vld [vmem:[%s1 + $0x434] sm:$0xf]
  %v231 = vld [vmem:[%s1 + $0x438] sm:$0xff]
  %v232 = vld [vmem:[%s1 + $0x440] sm:$0xf]
  %v233 = vld [vmem:[%s1 + $0x444] sm:$0xff]
  %v234 = vld [vmem:[%s1 + $0x44c] sm:$0xf]
  %v235 = vld [vmem:[%s1 + $0x450] sm:$0xff]
  %v236 = vld [vmem:[%s1 + $0x458] sm:$0xf]
  %v237 = vld [vmem:[%s1 + $0x45c] sm:$0xff]
  %v238 = vld [vmem:[%s1 + $0x464] sm:$0xf]
  %v239 = vld [vmem:[%s1 + $0x468] sm:$0xff]
  %v240 = vld [vmem:[%s1 + $0x470] sm:$0xf]
  %v241 = vld [vmem:[%s1 + $0x474] sm:$0xff]
  %v242 = vld [vmem:[%s1 + $0x47c] sm:$0xf]
  %v243 = vld [vmem:[%s1 + $0x480] sm:$0xff]
  %v244 = vld [vmem:[%s1 + $0x488] sm:$0xf]
  %v245 = vld [vmem:[%s1 + $0x48c] sm:$0xff]
  %v246 = vld [vmem:[%s1 + $0x494] sm:$0xf]
  %v247 = vld [vmem:[%s1 + $0x498] sm:$0xff]
  %v248 = vld [vmem:[%s1 + $0x4a0] sm:$0xf]
  %v249 = vld [vmem:[%s1 + $0x4a4] sm:$0xff]
  %v250 = vld [vmem:[%s1 + $0x4ac] sm:$0xf]
  %v251 = vld [vmem:[%s1 + $0x4b0] sm:$0xff]
  %v252 = vld [vmem:[%s1 + $0x4b8] sm:$0xf]
  %v253 = vld [vmem:[%s1 + $0x4bc] sm:$0xff]
  %v254 = vld [vmem:[%s1 + $0x4c4] sm:$0xf]
  %v255 = vld [vmem:[%s1 + $0x4c8] sm:$0xff]
  %v256 = vld [vmem:[%s1 + $0x4d0] sm:$0xf]
  %v257 = vld [vmem:[%s1 + $0x4d4] sm:$0xff]
  %v258 = vld [vmem:[%s1 + $0x4dc] sm:$0xf]
  %v259 = vld [vmem:[%s1 + $0x4e0] sm:$0xff]
  %v260 = vld [vmem:[%s1 + $0x4e8] sm:$0xf]
  %v261 = vld [vmem:[%s1 + $0x4ec] sm:$0xff]
  %v262 = vld [vmem:[%s1 + $0x4f4] sm:$0xf]
  %v263 = vld [vmem:[%s1 + $0x4f8] sm:$0xff]
  %v264 = vld [vmem:[%s1 + $0x500] sm:$0xf]
  %v265 = vld [vmem:[%s1 + $0x504] sm:$0xff]
  %v266 = vld [vmem:[%s1 + $0x50c] sm:$0xf]
  %v267 = vld [vmem:[%s1 + $0x510] sm:$0xff]
  %v268 = vld [vmem:[%s1 + $0x518] sm:$0xf]
  %v269 = vld [vmem:[%s1 + $0x51c] sm:$0xff]
  %v270 = vld [vmem:[%s1 + $0x524] sm:$0xf]
  %v271 = vld [vmem:[%s1 + $0x528] sm:$0xff]
  %v272 = vld [vmem:[%s1 + $0x530] sm:$0xf]
  %v273 = vld [vmem:[%s1 + $0x534] sm:$0xff]
  %v274 = vld [vmem:[%s1 + $0x53c] sm:$0xf]
  %v275 = vld [vmem:[%s1 + $0x540] sm:$0xff]
  %v276 = vld [vmem:[%s1 + $0x548] sm:$0xf]
  %v277 = vld [vmem:[%s1 + $0x54c] sm:$0xff]
  %v278 = vld [vmem:[%s1 + $0x554] sm:$0xf]
  %v279 = vld [vmem:[%s1 + $0x558] sm:$0xff]
  %v280 = vld [vmem:[%s1 + $0x560] sm:$0xf]
  %v281 = vld [vmem:[%s1 + $0x564] sm:$0xff]
  %v282 = vld [vmem:[%s1 + $0x56c] sm:$0xf]
  %v283 = vld [vmem:[%s1 + $0x570] sm:$0xff]
  %v284 = vld [vmem:[%s1 + $0x578] sm:$0xf]
  %v285 = vld [vmem:[%s1 + $0x57c] sm:$0xff]
  %v286 = vld [vmem:[%s1 + $0x584] sm:$0xf]
  %v287 = vld [vmem:[%s1 + $0x588] sm:$0xff]
  %v288 = vld [vmem:[%s1 + $0x590] sm:$0xf]
  %v289 = vld [vmem:[%s1 + $0x594] sm:$0xff]
  %v290 = vld [vmem:[%s1 + $0x59c] sm:$0xf]
  %v291 = vld [vmem:[%s1 + $0x5a0] sm:$0xff]
  %v292 = vld [vmem:[%s1 + $0x5a8] sm:$0xf]
  %v293 = vld [vmem:[%s1 + $0x5ac] sm:$0xff]
  %v294 = vld [vmem:[%s1 + $0x5b4] sm:$0xf]
  %v295 = vld [vmem:[%s1 + $0x5b8] sm:$0xff]
  %v296 = vld [vmem:[%s1 + $0x5c0] sm:$0xf]
  %v297 = vld [vmem:[%s1 + $0x5c4] sm:$0xff]
  %v298 = vld [vmem:[%s1 + $0x5cc] sm:$0xf]
  %v299 = vld [vmem:[%s1 + $0x5d0] sm:$0xff]
  %v300 = vld [vmem:[%s1 + $0x5d8] sm:$0xf]
  %v301 = vld [vmem:[%s1 + $0x5dc] sm:$0xff]
  %v302 = vld [vmem:[%s1 + $0x5e4] sm:$0xf]
  %v303 = vld [vmem:[%s1 + $0x5e8] sm:$0xff]
  %v304 = vld [vmem:[%s1 + $0x5f0] sm:$0xf]
  %v305 = vld [vmem:[%s1 + $0x5f4] sm:$0xff]
  %v306 = vld [vmem:[%s1 + $0x5fc] sm:$0xf]
  %v307 = vld [vmem:[%s1 + $0x600] sm:$0xff]
  %v308 = vld [vmem:[%s1 + $0x608] sm:$0xf]
  %v309 = vld [vmem:[%s1 + $0x60c] sm:$0xff]
  %v310 = vld [vmem:[%s1 + $0x614] sm:$0xf]
  %v311 = vld [vmem:[%s1 + $0x618] sm:$0xff]
  %v312 = vld [vmem:[%s1 + $0x620] sm:$0xf]
  %v313 = vld [vmem:[%s1 + $0x624] sm:$0xff]
  %v314 = vld [vmem:[%s1 + $0x62c] sm:$0xf]
  %v315 = vld [vmem:[%s1 + $0x630] sm:$0xff]
  %v316 = vld [vmem:[%s1 + $0x638] sm:$0xf]
  %v317 = vld [vmem:[%s1 + $0x63c] sm:$0xff]
  %v318 = vld [vmem:[%s1 + $0x644] sm:$0xf]
  %v319 = vld [vmem:[%s1 + $0x648] sm:$0xff]
  %v320 = vld [vmem:[%s1 + $0x650] sm:$0xf]
  %v321 = vld [vmem:[%s1 + $0x654] sm:$0xff]
  %v322 = vld [vmem:[%s1 + $0x65c] sm:$0xf]
  %v323 = vld [vmem:[%s1 + $0x660] sm:$0xff]
  %v324 = vld [vmem:[%s1 + $0x668] sm:$0xf]
  %v325 = vld [vmem:[%s1 + $0x66c] sm:$0xff]
  %v326 = vld [vmem:[%s1 + $0x674] sm:$0xf]
  %v327 = vld [vmem:[%s1 + $0x678] sm:$0xff]
  %v328 = vld [vmem:[%s1 + $0x680] sm:$0xf]
  %v329 = vld [vmem:[%s1 + $0x684] sm:$0xff]
  %v330 = vld [vmem:[%s1 + $0x68c] sm:$0xf]
  %v331 = vld [vmem:[%s1 + $0x690] sm:$0xff]
  %v332 = vld [vmem:[%s1 + $0x698] sm:$0xf]
  %v333 = vld [vmem:[%s1 + $0x69c] sm:$0xff]
  %v334 = vld [vmem:[%s1 + $0x6a4] sm:$0xf]
  %v335 = vld [vmem:[%s1 + $0x6a8] sm:$0xff]
  %v336 = vld [vmem:[%s1 + $0x6b0] sm:$0xf]
  %v337 = vld [vmem:[%s1 + $0x6b4] sm:$0xff]
  %v338 = vld [vmem:[%s1 + $0x6bc] sm:$0xf]
  %v339 = vld [vmem:[%s1 + $0x6c0] sm:$0xff]
  %v340 = vld [vmem:[%s1 + $0x6c8] sm:$0xf]
  %v341 = vld [vmem:[%s1 + $0x6cc] sm:$0xff]
  %v342 = vld [vmem:[%s1 + $0x6d4] sm:$0xf]
  %v343 = vld [vmem:[%s1 + $0x6d8] sm:$0xff]
  %v344 = vld [vmem:[%s1 + $0x6e0] sm:$0xf]
  %v345 = vld [vmem:[%s1 + $0x6e4] sm:$0xff]
  %v346 = vld [vmem:[%s1 + $0x6ec] sm:$0xf]
  %v347 = vld [vmem:[%s1 + $0x6f0] sm:$0xff]
  %v348 = vld [vmem:[%s1 + $0x6f8] sm:$0xf]
  %v349 = vld [vmem:[%s1 + $0x6fc] sm:$0xff]
  %v350 = vld [vmem:[%s1 + $0x704] sm:$0xf]
  %v351 = vld [vmem:[%s1 + $0x708] sm:$0xff]
  %v352 = vld [vmem:[%s1 + $0x710] sm:$0xf]
  %v353 = vld [vmem:[%s1 + $0x714] sm:$0xff]
  %v354 = vld [vmem:[%s1 + $0x71c] sm:$0xf]
  %v355 = vld [vmem:[%s1 + $0x720] sm:$0xff]
  %v356 = vld [vmem:[%s1 + $0x728] sm:$0xf]
  %v357 = vld [vmem:[%s1 + $0x72c] sm:$0xff]
  %v358 = vld [vmem:[%s1 + $0x734] sm:$0xf]
  %v359 = vld [vmem:[%s1 + $0x738] sm:$0xff]
  %v360 = vld [vmem:[%s1 + $0x740] sm:$0xf]
  %v361 = vld [vmem:[%s1 + $0x744] sm:$0xff]
  %v362 = vld [vmem:[%s1 + $0x74c] sm:$0xf]
  %v363 = vld [vmem:[%s1 + $0x750] sm:$0xff]
  %v364 = vld [vmem:[%s1 + $0x758] sm:$0xf]
  %v365 = vld [vmem:[%s1 + $0x75c] sm:$0xff]
  %v366 = vld [vmem:[%s1 + $0x764] sm:$0xf]
  %v367 = vld [vmem:[%s1 + $0x768] sm:$0xff]
  %v368 = vld [vmem:[%s1 + $0x770] sm:$0xf]
  %v369 = vld [vmem:[%s1 + $0x774] sm:$0xff]
  %v370 = vld [vmem:[%s1 + $0x77c] sm:$0xf]
  %v371 = vld [vmem:[%s1 + $0x780] sm:$0xff]
  %v372 = vld [vmem:[%s1 + $0x788] sm:$0xf]
  %v373 = vld [vmem:[%s1 + $0x78c] sm:$0xff]
  %v374 = vld [vmem:[%s1 + $0x794] sm:$0xf]
  %v375 = vld [vmem:[%s1 + $0x798] sm:$0xff]
  %v376 = vld [vmem:[%s1 + $0x7a0] sm:$0xf]
  %v377 = vld [vmem:[%s1 + $0x7a4] sm:$0xff]
  %v378 = vld [vmem:[%s1 + $0x7ac] sm:$0xf]
  %v379 = vld [vmem:[%s1 + $0x7b0] sm:$0xff]
  %v380 = vld [vmem:[%s1 + $0x7b8] sm:$0xf]
  %v381 = vld [vmem:[%s1 + $0x7bc] sm:$0xff]
  %v382 = vld [vmem:[%s1 + $0x7c4] sm:$0xf]
  %v383 = vld [vmem:[%s1 + $0x7c8] sm:$0xff]
  %v384 = vld [vmem:[%s1 + $0x7d0] sm:$0xf]
  %v385 = vld [vmem:[%s1 + $0x7d4] sm:$0xff]
  %v386 = vld [vmem:[%s1 + $0x7dc] sm:$0xf]
  %v387 = vld [vmem:[%s1 + $0x7e0] sm:$0xff]
  %v388 = vld [vmem:[%s1 + $0x7e8] sm:$0xf]
  %v389 = vld [vmem:[%s1 + $0x7ec] sm:$0xff]
  %v390 = vld [vmem:[%s1 + $0x7f4] sm:$0xf]
  %v391 = vld [vmem:[%s1 + $0x7f8] sm:$0xff]
  %v392 = vld [vmem:[%s1 + $0x800] sm:$0xf]
  %v393 = vld [vmem:[%s1 + $0x804] sm:$0xff]
  %v394 = vld [vmem:[%s1 + $0x80c] sm:$0xf]
  %v395 = vld [vmem:[%s1 + $0x810] sm:$0xff]
  %v396 = vld [vmem:[%s1 + $0x818] sm:$0xf]
  %v397 = vld [vmem:[%s1 + $0x81c] sm:$0xff]
  %v398 = vld [vmem:[%s1 + $0x824] sm:$0xf]
  %v399 = vld [vmem:[%s1 + $0x828] sm:$0xff]
  %v400 = vld [vmem:[%s1 + $0x830] sm:$0xf]
  %v401 = vld [vmem:[%s1 + $0x834] sm:$0xff]
  %v402 = vld [vmem:[%s1 + $0x83c] sm:$0xf]
  %v403 = vld [vmem:[%s1 + $0x840] sm:$0xff]
  %v404 = vld [vmem:[%s1 + $0x848] sm:$0xf]
  %v405 = vld [vmem:[%s1 + $0x84c] sm:$0xff]
  %v406 = vld [vmem:[%s1 + $0x854] sm:$0xf]
  %v407 = vld [vmem:[%s1 + $0x858] sm:$0xff]
  %v408 = vld [vmem:[%s1 + $0x860] sm:$0xf]
  %v409 = vld [vmem:[%s1 + $0x864] sm:$0xff]
  %v410 = vld [vmem:[%s1 + $0x86c] sm:$0xf]
  %v411 = vld [vmem:[%s1 + $0x870] sm:$0xff]
  %v412 = vld [vmem:[%s1 + $0x878] sm:$0xf]
  %v413 = vld [vmem:[%s1 + $0x87c] sm:$0xff]
  %v414 = vld [vmem:[%s1 + $0x884] sm:$0xf]
  %v415 = vld [vmem:[%s1 + $0x888] sm:$0xff]
  %v416 = vld [vmem:[%s1 + $0x890] sm:$0xf]
  %v417 = vld [vmem:[%s1 + $0x894] sm:$0xff]
  %v418 = vld [vmem:[%s1 + $0x89c] sm:$0xf]
  %v419 = vld [vmem:[%s1 + $0x8a0] sm:$0xff]
  %v420 = vld [vmem:[%s1 + $0x8a8] sm:$0xf]
  %v421 = vld [vmem:[%s1 + $0x8ac] sm:$0xff]
  %v422 = vld [vmem:[%s1 + $0x8b4] sm:$0xf]
  %v423 = vld [vmem:[%s1 + $0x8b8] sm:$0xff]
  %v424 = vld [vmem:[%s1 + $0x8c0] sm:$0xf]
  %v425 = vld [vmem:[%s1 + $0x8c4] sm:$0xff]
  %v426 = vld [vmem:[%s1 + $0x8cc] sm:$0xf]
  %v427 = vld [vmem:[%s1 + $0x8d0] sm:$0xff]
  %v428 = vld [vmem:[%s1 + $0x8d8] sm:$0xf]
  %v429 = vld [vmem:[%s1 + $0x8dc] sm:$0xff]
  %v430 = vld [vmem:[%s1 + $0x8e4] sm:$0xf]
  %v431 = vld [vmem:[%s1 + $0x8e8] sm:$0xff]
  %v432 = vld [vmem:[%s1 + $0x8f0] sm:$0xf]
  %v433 = vld [vmem:[%s1 + $0x8f4] sm:$0xff]
  %v434 = vld [vmem:[%s1 + $0x8fc] sm:$0xf]
  %v435 = vld [vmem:[%s1 + $0x900] sm:$0xff]
  %v436 = vld [vmem:[%s1 + $0x908] sm:$0xf]
  %v437 = vld [vmem:[%s1 + $0x90c] sm:$0xff]
  %v438 = vld [vmem:[%s1 + $0x914] sm:$0xf]
  %v439 = vld [vmem:[%s1 + $0x918] sm:$0xff]
  %v440 = vld [vmem:[%s1 + $0x920] sm:$0xf]
  %v441 = vld [vmem:[%s1 + $0x924] sm:$0xff]
  %v442 = vld [vmem:[%s1 + $0x92c] sm:$0xf]
  %v443 = vld [vmem:[%s1 + $0x930] sm:$0xff]
  %v444 = vld [vmem:[%s1 + $0x938] sm:$0xf]
  %v445 = vld [vmem:[%s1 + $0x93c] sm:$0xff]
  %v446 = vld [vmem:[%s1 + $0x944] sm:$0xf]
  %v447 = vld [vmem:[%s1 + $0x948] sm:$0xff]
  %v448 = vld [vmem:[%s1 + $0x950] sm:$0xf]
  %v449 = vld [vmem:[%s1 + $0x954] sm:$0xff]
  %v450 = vld [vmem:[%s1 + $0x95c] sm:$0xf]
  %v451 = vld [vmem:[%s1 + $0x960] sm:$0xff]
  %v452 = vld [vmem:[%s1 + $0x968] sm:$0xf]
  %v453 = vld [vmem:[%s1 + $0x96c] sm:$0xff]
  %v454 = vld [vmem:[%s1 + $0x974] sm:$0xf]
  %v455 = vld [vmem:[%s1 + $0x978] sm:$0xff]
  %v456 = vld [vmem:[%s1 + $0x980] sm:$0xf]
  %v457 = vld [vmem:[%s1 + $0x984] sm:$0xff]
  %v458 = vld [vmem:[%s1 + $0x98c] sm:$0xf]
  %v459 = vld [vmem:[%s1 + $0x990] sm:$0xff]
  %v460 = vld [vmem:[%s1 + $0x998] sm:$0xf]
  %v461 = vld [vmem:[%s1 + $0x99c] sm:$0xff]
  %v462 = vld [vmem:[%s1 + $0x9a4] sm:$0xf]
  %v463 = vld [vmem:[%s1 + $0x9a8] sm:$0xff]
  %v464 = vld [vmem:[%s1 + $0x9b0] sm:$0xf]
  %v465 = vld [vmem:[%s1 + $0x9b4] sm:$0xff]
  %v466 = vld [vmem:[%s1 + $0x9bc] sm:$0xf]
  %v467 = vld [vmem:[%s1 + $0x9c0] sm:$0xff]
  %v468 = vld [vmem:[%s1 + $0x9c8] sm:$0xf]
  %v469 = vld [vmem:[%s1 + $0x9cc] sm:$0xff]
  %v470 = vld [vmem:[%s1 + $0x9d4] sm:$0xf]
  %v471 = vld [vmem:[%s1 + $0x9d8] sm:$0xff]
  %v472 = vld [vmem:[%s1 + $0x9e0] sm:$0xf]
  %v473 = vld [vmem:[%s1 + $0x9e4] sm:$0xff]
  %v474 = vld [vmem:[%s1 + $0x9ec] sm:$0xf]
  %v475 = vld [vmem:[%s1 + $0x9f0] sm:$0xff]
  %v476 = vld [vmem:[%s1 + $0x9f8] sm:$0xf]
  %v477 = vld [vmem:[%s1 + $0x9fc] sm:$0xff]
  %v478 = vld [vmem:[%s1 + $0xa04] sm:$0xf]
  %v479 = vld [vmem:[%s1 + $0xa08] sm:$0xff]
  %v480 = vld [vmem:[%s1 + $0xa10] sm:$0xf]
  %v481 = vld [vmem:[%s1 + $0xa14] sm:$0xff]
  %v482 = vld [vmem:[%s1 + $0xa1c] sm:$0xf]
  %v483 = vld [vmem:[%s1 + $0xa20] sm:$0xff]
  %v484 = vld [vmem:[%s1 + $0xa28] sm:$0xf]
  %v485 = vld [vmem:[%s1 + $0xa2c] sm:$0xff]
  %v486 = vld [vmem:[%s1 + $0xa34] sm:$0xf]
  %v487 = vld [vmem:[%s1 + $0xa38] sm:$0xff]
  %v488 = vld [vmem:[%s1 + $0xa40] sm:$0xf]
  %v489 = vld [vmem:[%s1 + $0xa44] sm:$0xff]
  %v490 = vld [vmem:[%s1 + $0xa4c] sm:$0xf]
  %v491 = vld [vmem:[%s1 + $0xa50] sm:$0xff]
  %v492 = vld [vmem:[%s1 + $0xa58] sm:$0xf]
  %v493 = vld [vmem:[%s1 + $0xa5c] sm:$0xff]
  %v494 = vld [vmem:[%s1 + $0xa64] sm:$0xf]
  %v495 = vld [vmem:[%s1 + $0xa68] sm:$0xff]
  %v496 = vld [vmem:[%s1 + $0xa70] sm:$0xf]
  %v497 = vld [vmem:[%s1 + $0xa74] sm:$0xff]
  %v498 = vld [vmem:[%s1 + $0xa7c] sm:$0xf]
  %v499 = vld [vmem:[%s1 + $0xa80] sm:$0xff]
  %v500 = vld [vmem:[%s1 + $0xa88] sm:$0xf]
  %v501 = vld [vmem:[%s1 + $0xa8c] sm:$0xff]
  %v502 = vld [vmem:[%s1 + $0xa94] sm:$0xf]
  %v503 = vld [vmem:[%s1 + $0xa98] sm:$0xff]
  %v504 = vld [vmem:[%s1 + $0xaa0] sm:$0xf]
  %v505 = vld [vmem:[%s1 + $0xaa4] sm:$0xff]
  %v506 = vld [vmem:[%s1 + $0xaac] sm:$0xf]
  %v507 = vld [vmem:[%s1 + $0xab0] sm:$0xff]
  %v508 = vld [vmem:[%s1 + $0xab8] sm:$0xf]
  %v509 = vld [vmem:[%s1 + $0xabc] sm:$0xff]
  %v510 = vld [vmem:[%s1 + $0xac4] sm:$0xf]
  %v511 = vld [vmem:[%s1 + $0xac8] sm:$0xff]
  %v512 = vld [vmem:[%s1 + $0xad0] sm:$0xf]
  %v513 = vld [vmem:[%s1 + $0xad4] sm:$0xff]
  %v514 = vld [vmem:[%s1 + $0xadc] sm:$0xf]
  %v515 = vld [vmem:[%s1 + $0xae0] sm:$0xff]
  %v516 = vld [vmem:[%s1 + $0xae8] sm:$0xf]
  %v517 = vld [vmem:[%s1 + $0xaec] sm:$0xff]
  %v518 = vld [vmem:[%s1 + $0xaf4] sm:$0xf]
  %v519 = vld [vmem:[%s1 + $0xaf8] sm:$0xff]
  %v520 = vld [vmem:[%s1 + $0xb00] sm:$0xf]
  %v521 = vld [vmem:[%s1 + $0xb04] sm:$0xff]
  %v522 = vld [vmem:[%s1 + $0xb0c] sm:$0xf]
  %v523 = vld [vmem:[%s1 + $0xb10] sm:$0xff]
  %v524 = vld [vmem:[%s1 + $0xb18] sm:$0xf]
  %v525 = vld [vmem:[%s1 + $0xb1c] sm:$0xff]
  %v526 = vld [vmem:[%s1 + $0xb24] sm:$0xf]
  %v527 = vld [vmem:[%s1 + $0xb28] sm:$0xff]
  %v528 = vld [vmem:[%s1 + $0xb30] sm:$0xf]
  %v529 = vld [vmem:[%s1 + $0xb34] sm:$0xff]
  %v530 = vld [vmem:[%s1 + $0xb3c] sm:$0xf]
  %v531 = vld [vmem:[%s1 + $0xb40] sm:$0xff]
  %v532 = vld [vmem:[%s1 + $0xb48] sm:$0xf]
  %v533 = vld [vmem:[%s1 + $0xb4c] sm:$0xff]
  %v534 = vld [vmem:[%s1 + $0xb54] sm:$0xf]
  %v535 = vld [vmem:[%s1 + $0xb58] sm:$0xff]
  %v536 = vld [vmem:[%s1 + $0xb60] sm:$0xf]
  %v537 = vld [vmem:[%s1 + $0xb64] sm:$0xff]
  %v538 = vld [vmem:[%s1 + $0xb6c] sm:$0xf]
  %v539 = vld [vmem:[%s1 + $0xb70] sm:$0xff]
  %v540 = vld [vmem:[%s1 + $0xb78] sm:$0xf]
  %v541 = vld [vmem:[%s1 + $0xb7c] sm:$0xff]
  %v542 = vld [vmem:[%s1 + $0xb84] sm:$0xf]
  %v543 = vld [vmem:[%s1 + $0xb88] sm:$0xff]
  %v544 = vld [vmem:[%s1 + $0xb90] sm:$0xf]
  %v545 = vld [vmem:[%s1 + $0xb94] sm:$0xff]
  %v546 = vld [vmem:[%s1 + $0xb9c] sm:$0xf]
  %v547 = vld [vmem:[%s1 + $0xba0] sm:$0xff]
  %v548 = vld [vmem:[%s1 + $0xba8] sm:$0xf]
  %v549 = vld [vmem:[%s1 + $0xbac] sm:$0xff]
  %v550 = vld [vmem:[%s1 + $0xbb4] sm:$0xf]
  %v551 = vld [vmem:[%s1 + $0xbb8] sm:$0xff]
  %v552 = vld [vmem:[%s1 + $0xbc0] sm:$0xf]
  %v553 = vld [vmem:[%s1 + $0xbc4] sm:$0xff]
  %v554 = vld [vmem:[%s1 + $0xbcc] sm:$0xf]
  %v555 = vld [vmem:[%s1 + $0xbd0] sm:$0xff]
  %v556 = vld [vmem:[%s1 + $0xbd8] sm:$0xf]
  %v557 = vld [vmem:[%s1 + $0xbdc] sm:$0xff]
  %v558 = vld [vmem:[%s1 + $0xbe4] sm:$0xf]
  %v559 = vld [vmem:[%s1 + $0xbe8] sm:$0xff]
  %v560 = vld [vmem:[%s1 + $0xbf0] sm:$0xf]
  %v561 = vld [vmem:[%s1 + $0xbf4] sm:$0xff]
  %v562 = vld [vmem:[%s1 + $0xbfc] sm:$0xf]
  %v563 = vld [vmem:[%s1 + $0xc00] sm:$0xff]
  %v564 = vld [vmem:[%s1 + $0xc08] sm:$0xf]
  %v565 = vld [vmem:[%s1 + $0xc0c] sm:$0xff]
  %v566 = vld [vmem:[%s1 + $0xc14] sm:$0xf]
  %v567 = vld [vmem:[%s1 + $0xc18] sm:$0xff]
  %v568 = vld [vmem:[%s1 + $0xc20] sm:$0xf]
  %v569 = vld [vmem:[%s1 + $0xc24] sm:$0xff]
  %v570 = vld [vmem:[%s1 + $0xc2c] sm:$0xf]
  %v571 = vld [vmem:[%s1 + $0xc30] sm:$0xff]
  %v572 = vld [vmem:[%s1 + $0xc38] sm:$0xf]
  %v573 = vld [vmem:[%s1 + $0xc3c] sm:$0xff]
  %v574 = vld [vmem:[%s1 + $0xc44] sm:$0xf]
  %v575 = vld [vmem:[%s1 + $0xc48] sm:$0xff]
  %v576 = vld [vmem:[%s1 + $0xc50] sm:$0xf]
  %v577 = vld [vmem:[%s1 + $0xc54] sm:$0xff]
  %v578 = vld [vmem:[%s1 + $0xc5c] sm:$0xf]
  %v579 = vld [vmem:[%s1 + $0xc60] sm:$0xff]
  %v580 = vld [vmem:[%s1 + $0xc68] sm:$0xf]
  %v581 = vld [vmem:[%s1 + $0xc6c] sm:$0xff]
  %v582 = vld [vmem:[%s1 + $0xc74] sm:$0xf]
  %v583 = vld [vmem:[%s1 + $0xc78] sm:$0xff]
  %v584 = vld [vmem:[%s1 + $0xc80] sm:$0xf]
  %v585 = vld [vmem:[%s1 + $0xc84] sm:$0xff]
  %v586 = vld [vmem:[%s1 + $0xc8c] sm:$0xf]
  %v587 = vld [vmem:[%s1 + $0xc90] sm:$0xff]
  %v588 = vld [vmem:[%s1 + $0xc98] sm:$0xf]
  %v589 = vld [vmem:[%s1 + $0xc9c] sm:$0xff]
  %v590 = vld [vmem:[%s1 + $0xca4] sm:$0xf]
  %v591 = vld [vmem:[%s1 + $0xca8] sm:$0xff]
  %v592 = vld [vmem:[%s1 + $0xcb0] sm:$0xf]
  %v593 = vld [vmem:[%s1 + $0xcb4] sm:$0xff]
  %v594 = vld [vmem:[%s1 + $0xcbc] sm:$0xf]
  %v595 = vld [vmem:[%s1 + $0xcc0] sm:$0xff]
  %v596 = vld [vmem:[%s1 + $0xcc8] sm:$0xf]
  %v597 = vld [vmem:[%s1 + $0xccc] sm:$0xff]
  %v598 = vld [vmem:[%s1 + $0xcd4] sm:$0xf]
  %v599 = vld [vmem:[%s1 + $0xcd8] sm:$0xff]
  %v600 = vld [vmem:[%s1 + $0xce0] sm:$0xf]
  %v601 = vld [vmem:[%s1 + $0xce4] sm:$0xff]
  %v602 = vld [vmem:[%s1 + $0xcec] sm:$0xf]
  %v603 = vld [vmem:[%s1 + $0xcf0] sm:$0xff]
  %v604 = vld [vmem:[%s1 + $0xcf8] sm:$0xf]
  %v605 = vld [vmem:[%s1 + $0xcfc] sm:$0xff]
  %v606 = vld [vmem:[%s1 + $0xd04] sm:$0xf]
  %v607 = vld [vmem:[%s1 + $0xd08] sm:$0xff]
  %v608 = vld [vmem:[%s1 + $0xd10] sm:$0xf]
  %v609 = vld [vmem:[%s1 + $0xd14] sm:$0xff]
  %v610 = vld [vmem:[%s1 + $0xd1c] sm:$0xf]
  %v611 = vld [vmem:[%s1 + $0xd20] sm:$0xff]
  %v612 = vld [vmem:[%s1 + $0xd28] sm:$0xf]
  %v613 = vld [vmem:[%s1 + $0xd2c] sm:$0xff]
  %v614 = vld [vmem:[%s1 + $0xd34] sm:$0xf]
  %v615 = vld [vmem:[%s1 + $0xd38] sm:$0xff]
  %v616 = vld [vmem:[%s1 + $0xd40] sm:$0xf]
  %v617 = vld [vmem:[%s1 + $0xd44] sm:$0xff]
  %v618 = vld [vmem:[%s1 + $0xd4c] sm:$0xf]
  %v619 = vld [vmem:[%s1 + $0xd50] sm:$0xff]
  %v620 = vld [vmem:[%s1 + $0xd58] sm:$0xf]
  %v621 = vld [vmem:[%s1 + $0xd5c] sm:$0xff]
  %v622 = vld [vmem:[%s1 + $0xd64] sm:$0xf]
  %v623 = vld [vmem:[%s1 + $0xd68] sm:$0xff]
  %v624 = vld [vmem:[%s1 + $0xd70] sm:$0xf]
  %v625 = vld [vmem:[%s1 + $0xd74] sm:$0xff]
  %v626 = vld [vmem:[%s1 + $0xd7c] sm:$0xf]
  %v627 = vld [vmem:[%s2] sm:$0x7]
  %v629 = vlaneseq
  %v630 = vshrl.u32 %v629, 7
  %v631 = vsub.s32 0, %v630
  %v632 = vrot.slane %v627, %v631
  %v633 = vlaneseq
  %v634 = vshrl.u32 %v633, 7
  %v635 = vsub.s32 1, %v634
  %v636 = vrot.slane %v627, %v635
  %v637 = vlaneseq
  %v638 = vshrl.u32 %v637, 7
  %v639 = vsub.s32 2, %v638
  %v640 = vrot.slane %v627, %v639
  %v680 = vunpack.c.l.b16 %v15
  %v681 = vunpack.c.h.b16 %v15
  %v682 = vunpack.c.l.b16 %v16
  %v683 = vunpack.c.h.b16 %v16
  %v684 = vunpack.c.l.b16 %v17
  %v685 = vunpack.c.h.b16 %v17
  %v686 = vunpack.c.l.b16 %v18
  %v687 = vunpack.c.h.b16 %v18
  %v688 = vunpack.c.l.b16 %v19
  %v689 = vunpack.c.h.b16 %v19
  %v690 = vunpack.c.l.b16 %v20
  %v691 = vunpack.c.h.b16 %v20
  %v692 = vunpack.c.l.b16 %v21
  %v693 = vunpack.c.h.b16 %v21
  %v694 = vunpack.c.l.b16 %v22
  %v695 = vunpack.c.h.b16 %v22
  %v696 = vunpack.c.l.b16 %v23
  %v697 = vunpack.c.h.b16 %v23
  %v698 = vunpack.c.l.b16 %v24
  %v699 = vunpack.c.h.b16 %v24
  %v700 = vunpack.c.l.b16 %v25
  %v701 = vunpack.c.h.b16 %v25
  %v702 = vunpack.c.l.b16 %v26
  %v703 = vunpack.c.h.b16 %v26
  %v704 = vunpack.c.l.b16 %v27
  %v705 = vunpack.c.h.b16 %v27
  %v706 = vunpack.c.l.b16 %v28
  %v707 = vunpack.c.h.b16 %v28
  %v708 = vunpack.c.l.b16 %v29
  %v709 = vunpack.c.h.b16 %v29
  %v710 = vunpack.c.l.b16 %v30
  %v711 = vunpack.c.h.b16 %v30
  %v712 = vunpack.c.l.b16 %v31
  %v713 = vunpack.c.h.b16 %v31
  %v714 = vunpack.c.l.b16 %v32
  %v715 = vunpack.c.h.b16 %v32
  %v716 = vunpack.c.l.b16 %v33
  %v717 = vunpack.c.h.b16 %v33
  %v718 = vunpack.c.l.b16 %v34
  %v719 = vunpack.c.h.b16 %v34
  %v720 = vunpack.c.l.b16 %v35
  %v721 = vunpack.c.h.b16 %v35
  %v722 = vunpack.c.l.b16 %v36
  %v723 = vunpack.c.h.b16 %v36
  %v724 = vunpack.c.l.b16 %v37
  %v725 = vunpack.c.h.b16 %v37
  %v726 = vunpack.c.l.b16 %v38
  %v727 = vunpack.c.h.b16 %v38
  %v728 = vunpack.c.l.b16 %v39
  %v729 = vunpack.c.h.b16 %v39
  %v730 = vunpack.c.l.b16 %v40
  %v731 = vunpack.c.h.b16 %v40
  %v732 = vunpack.c.l.b16 %v41
  %v733 = vunpack.c.h.b16 %v41
  %v734 = vunpack.c.l.b16 %v42
  %v735 = vunpack.c.h.b16 %v42
  %v736 = vunpack.c.l.b16 %v43
  %v737 = vunpack.c.h.b16 %v43
  %v738 = vunpack.c.l.b16 %v44
  %v739 = vunpack.c.h.b16 %v44
  %v740 = vunpack.c.l.b16 %v45
  %v741 = vunpack.c.h.b16 %v45
  %v742 = vunpack.c.l.b16 %v46
  %v743 = vunpack.c.h.b16 %v46
  %v744 = vunpack.c.l.b16 %v47
  %v745 = vunpack.c.h.b16 %v47
  %v746 = vunpack.c.l.b16 %v48
  %v747 = vunpack.c.h.b16 %v48
  %v748 = vunpack.c.l.b16 %v49
  %v749 = vunpack.c.h.b16 %v49
  %v750 = vunpack.c.l.b16 %v50
  %v751 = vunpack.c.h.b16 %v50
  %v752 = vpack.c.b16 %v698, %v680
  %v753 = vpack.c.b16 %v699, %v681
  %v754 = vpack.c.b16 %v700, %v682
  %v755 = vpack.c.b16 %v701, %v683
  %v756 = vpack.c.b16 %v702, %v684
  %v757 = vpack.c.b16 %v703, %v685
  %v758 = vpack.c.b16 %v704, %v686
  %v759 = vpack.c.b16 %v705, %v687
  %v760 = vpack.c.b16 %v706, %v688
  %v761 = vpack.c.b16 %v707, %v689
  %v762 = vpack.c.b16 %v708, %v690
  %v763 = vpack.c.b16 %v709, %v691
  %v764 = vpack.c.b16 %v710, %v692
  %v765 = vpack.c.b16 %v711, %v693
  %v766 = vpack.c.b16 %v712, %v694
  %v767 = vpack.c.b16 %v713, %v695
  %v768 = vpack.c.b16 %v714, %v696
  %v769 = vpack.c.b16 %v715, %v697
  %v770 = vpack.c.b16 %v734, %v716
  %v771 = vpack.c.b16 %v735, %v717
  %v772 = vpack.c.b16 %v736, %v718
  %v773 = vpack.c.b16 %v737, %v719
  %v774 = vpack.c.b16 %v738, %v720
  %v775 = vpack.c.b16 %v739, %v721
  %v776 = vpack.c.b16 %v740, %v722
  %v777 = vpack.c.b16 %v741, %v723
  %v778 = vpack.c.b16 %v742, %v724
  %v779 = vpack.c.b16 %v743, %v725
  %v780 = vpack.c.b16 %v744, %v726
  %v781 = vpack.c.b16 %v745, %v727
  %v782 = vpack.c.b16 %v746, %v728
  %v783 = vpack.c.b16 %v747, %v729
  %v784 = vpack.c.b16 %v748, %v730
  %v785 = vpack.c.b16 %v749, %v731
  %v786 = vpack.c.b16 %v750, %v732
  %v787 = vpack.c.b16 %v751, %v733
  %v1400 = vunpack.c.l.b16 %v51
  %v1401 = vunpack.c.h.b16 %v51
  %v1402 = vunpack.c.l.b16 %v52
  %v1403 = vunpack.c.l.b16 %v53
  %v1404 = vunpack.c.h.b16 %v53
  %v1405 = vunpack.c.l.b16 %v54
  %v1406 = vunpack.c.l.b16 %v55
  %v1407 = vunpack.c.h.b16 %v55
  %v1408 = vunpack.c.l.b16 %v56
  %v1409 = vunpack.c.l.b16 %v57
  %v1410 = vunpack.c.h.b16 %v57
  %v1411 = vunpack.c.l.b16 %v58
  %v1412 = vunpack.c.l.b16 %v59
  %v1413 = vunpack.c.h.b16 %v59
  %v1414 = vunpack.c.l.b16 %v60
  %v1415 = vunpack.c.l.b16 %v61
  %v1416 = vunpack.c.h.b16 %v61
  %v1417 = vunpack.c.l.b16 %v62
  %v1418 = vunpack.c.l.b16 %v63
  %v1419 = vunpack.c.h.b16 %v63
  %v1420 = vunpack.c.l.b16 %v64
  %v1421 = vunpack.c.l.b16 %v65
  %v1422 = vunpack.c.h.b16 %v65
  %v1423 = vunpack.c.l.b16 %v66
  %v1424 = vunpack.c.l.b16 %v67
  %v1425 = vunpack.c.h.b16 %v67
  %v1426 = vunpack.c.l.b16 %v68
  %v1427 = vunpack.c.l.b16 %v69
  %v1428 = vunpack.c.h.b16 %v69
  %v1429 = vunpack.c.l.b16 %v70
  %v1430 = vunpack.c.l.b16 %v71
  %v1431 = vunpack.c.h.b16 %v71
  %v1432 = vunpack.c.l.b16 %v72
  %v1433 = vunpack.c.l.b16 %v73
  %v1434 = vunpack.c.h.b16 %v73
  %v1435 = vunpack.c.l.b16 %v74
  %v1436 = vunpack.c.l.b16 %v75
  %v1437 = vunpack.c.h.b16 %v75
  %v1438 = vunpack.c.l.b16 %v76
  %v1439 = vunpack.c.l.b16 %v77
  %v1440 = vunpack.c.h.b16 %v77
  %v1441 = vunpack.c.l.b16 %v78
  %v1442 = vunpack.c.l.b16 %v79
  %v1443 = vunpack.c.h.b16 %v79
  %v1444 = vunpack.c.l.b16 %v80
  %v1445 = vunpack.c.l.b16 %v81
  %v1446 = vunpack.c.h.b16 %v81
  %v1447 = vunpack.c.l.b16 %v82
  %v1448 = vunpack.c.l.b16 %v83
  %v1449 = vunpack.c.h.b16 %v83
  %v1450 = vunpack.c.l.b16 %v84
  %v1451 = vunpack.c.l.b16 %v85
  %v1452 = vunpack.c.h.b16 %v85
  %v1453 = vunpack.c.l.b16 %v86
  %v1454 = vunpack.c.l.b16 %v87
  %v1455 = vunpack.c.h.b16 %v87
  %v1456 = vunpack.c.l.b16 %v88
  %v1457 = vunpack.c.l.b16 %v89
  %v1458 = vunpack.c.h.b16 %v89
  %v1459 = vunpack.c.l.b16 %v90
  %v1460 = vunpack.c.l.b16 %v91
  %v1461 = vunpack.c.h.b16 %v91
  %v1462 = vunpack.c.l.b16 %v92
  %v1463 = vunpack.c.l.b16 %v93
  %v1464 = vunpack.c.h.b16 %v93
  %v1465 = vunpack.c.l.b16 %v94
  %v1466 = vunpack.c.l.b16 %v95
  %v1467 = vunpack.c.h.b16 %v95
  %v1468 = vunpack.c.l.b16 %v96
  %v1469 = vunpack.c.l.b16 %v97
  %v1470 = vunpack.c.h.b16 %v97
  %v1471 = vunpack.c.l.b16 %v98
  %v1472 = vunpack.c.l.b16 %v99
  %v1473 = vunpack.c.h.b16 %v99
  %v1474 = vunpack.c.l.b16 %v100
  %v1475 = vunpack.c.l.b16 %v101
  %v1476 = vunpack.c.h.b16 %v101
  %v1477 = vunpack.c.l.b16 %v102
  %v1478 = vunpack.c.l.b16 %v103
  %v1479 = vunpack.c.h.b16 %v103
  %v1480 = vunpack.c.l.b16 %v104
  %v1481 = vunpack.c.l.b16 %v105
  %v1482 = vunpack.c.h.b16 %v105
  %v1483 = vunpack.c.l.b16 %v106
  %v1484 = vunpack.c.l.b16 %v107
  %v1485 = vunpack.c.h.b16 %v107
  %v1486 = vunpack.c.l.b16 %v108
  %v1487 = vunpack.c.l.b16 %v109
  %v1488 = vunpack.c.h.b16 %v109
  %v1489 = vunpack.c.l.b16 %v110
  %v1490 = vunpack.c.l.b16 %v111
  %v1491 = vunpack.c.h.b16 %v111
  %v1492 = vunpack.c.l.b16 %v112
  %v1493 = vunpack.c.l.b16 %v113
  %v1494 = vunpack.c.h.b16 %v113
  %v1495 = vunpack.c.l.b16 %v114
  %v1496 = vunpack.c.l.b16 %v115
  %v1497 = vunpack.c.h.b16 %v115
  %v1498 = vunpack.c.l.b16 %v116
  %v1499 = vunpack.c.l.b16 %v117
  %v1500 = vunpack.c.h.b16 %v117
  %v1501 = vunpack.c.l.b16 %v118
  %v1502 = vunpack.c.l.b16 %v119
  %v1503 = vunpack.c.h.b16 %v119
  %v1504 = vunpack.c.l.b16 %v120
  %v1505 = vunpack.c.l.b16 %v121
  %v1506 = vunpack.c.h.b16 %v121
  %v1507 = vunpack.c.l.b16 %v122
  %v1508 = vunpack.c.l.b16 %v123
  %v1509 = vunpack.c.h.b16 %v123
  %v1510 = vunpack.c.l.b16 %v124
  %v1511 = vunpack.c.l.b16 %v125
  %v1512 = vunpack.c.h.b16 %v125
  %v1513 = vunpack.c.l.b16 %v126
  %v1514 = vunpack.c.l.b16 %v127
  %v1515 = vunpack.c.h.b16 %v127
  %v1516 = vunpack.c.l.b16 %v128
  %v1517 = vunpack.c.l.b16 %v129
  %v1518 = vunpack.c.h.b16 %v129
  %v1519 = vunpack.c.l.b16 %v130
  %v1520 = vunpack.c.l.b16 %v131
  %v1521 = vunpack.c.h.b16 %v131
  %v1522 = vunpack.c.l.b16 %v132
  %v1523 = vunpack.c.l.b16 %v133
  %v1524 = vunpack.c.h.b16 %v133
  %v1525 = vunpack.c.l.b16 %v134
  %v1526 = vunpack.c.l.b16 %v135
  %v1527 = vunpack.c.h.b16 %v135
  %v1528 = vunpack.c.l.b16 %v136
  %v1529 = vunpack.c.l.b16 %v137
  %v1530 = vunpack.c.h.b16 %v137
  %v1531 = vunpack.c.l.b16 %v138
  %v1532 = vunpack.c.l.b16 %v139
  %v1533 = vunpack.c.h.b16 %v139
  %v1534 = vunpack.c.l.b16 %v140
  %v1535 = vunpack.c.l.b16 %v141
  %v1536 = vunpack.c.h.b16 %v141
  %v1537 = vunpack.c.l.b16 %v142
  %v1538 = vunpack.c.l.b16 %v143
  %v1539 = vunpack.c.h.b16 %v143
  %v1540 = vunpack.c.l.b16 %v144
  %v1541 = vunpack.c.l.b16 %v145
  %v1542 = vunpack.c.h.b16 %v145
  %v1543 = vunpack.c.l.b16 %v146
  %v1544 = vunpack.c.l.b16 %v147
  %v1545 = vunpack.c.h.b16 %v147
  %v1546 = vunpack.c.l.b16 %v148
  %v1547 = vunpack.c.l.b16 %v149
  %v1548 = vunpack.c.h.b16 %v149
  %v1549 = vunpack.c.l.b16 %v150
  %v1550 = vunpack.c.l.b16 %v151
  %v1551 = vunpack.c.h.b16 %v151
  %v1552 = vunpack.c.l.b16 %v152
  %v1553 = vunpack.c.l.b16 %v153
  %v1554 = vunpack.c.h.b16 %v153
  %v1555 = vunpack.c.l.b16 %v154
  %v1556 = vunpack.c.l.b16 %v155
  %v1557 = vunpack.c.h.b16 %v155
  %v1558 = vunpack.c.l.b16 %v156
  %v1559 = vunpack.c.l.b16 %v157
  %v1560 = vunpack.c.h.b16 %v157
  %v1561 = vunpack.c.l.b16 %v158
  %v1562 = vunpack.c.l.b16 %v159
  %v1563 = vunpack.c.h.b16 %v159
  %v1564 = vunpack.c.l.b16 %v160
  %v1565 = vunpack.c.l.b16 %v161
  %v1566 = vunpack.c.h.b16 %v161
  %v1567 = vunpack.c.l.b16 %v162
  %v1568 = vunpack.c.l.b16 %v163
  %v1569 = vunpack.c.h.b16 %v163
  %v1570 = vunpack.c.l.b16 %v164
  %v1571 = vunpack.c.l.b16 %v165
  %v1572 = vunpack.c.h.b16 %v165
  %v1573 = vunpack.c.l.b16 %v166
  %v1574 = vunpack.c.l.b16 %v167
  %v1575 = vunpack.c.h.b16 %v167
  %v1576 = vunpack.c.l.b16 %v168
  %v1577 = vunpack.c.l.b16 %v169
  %v1578 = vunpack.c.h.b16 %v169
  %v1579 = vunpack.c.l.b16 %v170
  %v1580 = vunpack.c.l.b16 %v171
  %v1581 = vunpack.c.h.b16 %v171
  %v1582 = vunpack.c.l.b16 %v172
  %v1583 = vunpack.c.l.b16 %v173
  %v1584 = vunpack.c.h.b16 %v173
  %v1585 = vunpack.c.l.b16 %v174
  %v1586 = vunpack.c.l.b16 %v175
  %v1587 = vunpack.c.h.b16 %v175
  %v1588 = vunpack.c.l.b16 %v176
  %v1589 = vunpack.c.l.b16 %v177
  %v1590 = vunpack.c.h.b16 %v177
  %v1591 = vunpack.c.l.b16 %v178
  %v1592 = vunpack.c.l.b16 %v179
  %v1593 = vunpack.c.h.b16 %v179
  %v1594 = vunpack.c.l.b16 %v180
  %v1595 = vunpack.c.l.b16 %v181
  %v1596 = vunpack.c.h.b16 %v181
  %v1597 = vunpack.c.l.b16 %v182
  %v1598 = vunpack.c.l.b16 %v183
  %v1599 = vunpack.c.h.b16 %v183
  %v1600 = vunpack.c.l.b16 %v184
  %v1601 = vunpack.c.l.b16 %v185
  %v1602 = vunpack.c.h.b16 %v185
  %v1603 = vunpack.c.l.b16 %v186
  %v1604 = vunpack.c.l.b16 %v187
  %v1605 = vunpack.c.h.b16 %v187
  %v1606 = vunpack.c.l.b16 %v188
  %v1607 = vunpack.c.l.b16 %v189
  %v1608 = vunpack.c.h.b16 %v189
  %v1609 = vunpack.c.l.b16 %v190
  %v1610 = vunpack.c.l.b16 %v191
  %v1611 = vunpack.c.h.b16 %v191
  %v1612 = vunpack.c.l.b16 %v192
  %v1613 = vunpack.c.l.b16 %v193
  %v1614 = vunpack.c.h.b16 %v193
  %v1615 = vunpack.c.l.b16 %v194
  %v1616 = vunpack.c.l.b16 %v195
  %v1617 = vunpack.c.h.b16 %v195
  %v1618 = vunpack.c.l.b16 %v196
  %v1619 = vunpack.c.l.b16 %v197
  %v1620 = vunpack.c.h.b16 %v197
  %v1621 = vunpack.c.l.b16 %v198
  %v1622 = vunpack.c.l.b16 %v199
  %v1623 = vunpack.c.h.b16 %v199
  %v1624 = vunpack.c.l.b16 %v200
  %v1625 = vunpack.c.l.b16 %v201
  %v1626 = vunpack.c.h.b16 %v201
  %v1627 = vunpack.c.l.b16 %v202
  %v1628 = vunpack.c.l.b16 %v203
  %v1629 = vunpack.c.h.b16 %v203
  %v1630 = vunpack.c.l.b16 %v204
  %v1631 = vunpack.c.l.b16 %v205
  %v1632 = vunpack.c.h.b16 %v205
  %v1633 = vunpack.c.l.b16 %v206
  %v1634 = vunpack.c.l.b16 %v207
  %v1635 = vunpack.c.h.b16 %v207
  %v1636 = vunpack.c.l.b16 %v208
  %v1637 = vunpack.c.l.b16 %v209
  %v1638 = vunpack.c.h.b16 %v209
  %v1639 = vunpack.c.l.b16 %v210
  %v1640 = vunpack.c.l.b16 %v211
  %v1641 = vunpack.c.h.b16 %v211
  %v1642 = vunpack.c.l.b16 %v212
  %v1643 = vunpack.c.l.b16 %v213
  %v1644 = vunpack.c.h.b16 %v213
  %v1645 = vunpack.c.l.b16 %v214
  %v1646 = vunpack.c.l.b16 %v215
  %v1647 = vunpack.c.h.b16 %v215
  %v1648 = vunpack.c.l.b16 %v216
  %v1649 = vunpack.c.l.b16 %v217
  %v1650 = vunpack.c.h.b16 %v217
  %v1651 = vunpack.c.l.b16 %v218
  %v1652 = vunpack.c.l.b16 %v219
  %v1653 = vunpack.c.h.b16 %v219
  %v1654 = vunpack.c.l.b16 %v220
  %v1655 = vunpack.c.l.b16 %v221
  %v1656 = vunpack.c.h.b16 %v221
  %v1657 = vunpack.c.l.b16 %v222
  %v1658 = vunpack.c.l.b16 %v223
  %v1659 = vunpack.c.h.b16 %v223
  %v1660 = vunpack.c.l.b16 %v224
  %v1661 = vunpack.c.l.b16 %v225
  %v1662 = vunpack.c.h.b16 %v225
  %v1663 = vunpack.c.l.b16 %v226
  %v1664 = vunpack.c.l.b16 %v227
  %v1665 = vunpack.c.h.b16 %v227
  %v1666 = vunpack.c.l.b16 %v228
  %v1667 = vunpack.c.l.b16 %v229
  %v1668 = vunpack.c.h.b16 %v229
  %v1669 = vunpack.c.l.b16 %v230
  %v1670 = vunpack.c.l.b16 %v231
  %v1671 = vunpack.c.h.b16 %v231
  %v1672 = vunpack.c.l.b16 %v232
  %v1673 = vunpack.c.l.b16 %v233
  %v1674 = vunpack.c.h.b16 %v233
  %v1675 = vunpack.c.l.b16 %v234
  %v1676 = vunpack.c.l.b16 %v235
  %v1677 = vunpack.c.h.b16 %v235
  %v1678 = vunpack.c.l.b16 %v236
  %v1679 = vunpack.c.l.b16 %v237
  %v1680 = vunpack.c.h.b16 %v237
  %v1681 = vunpack.c.l.b16 %v238
  %v1682 = vunpack.c.l.b16 %v239
  %v1683 = vunpack.c.h.b16 %v239
  %v1684 = vunpack.c.l.b16 %v240
  %v1685 = vunpack.c.l.b16 %v241
  %v1686 = vunpack.c.h.b16 %v241
  %v1687 = vunpack.c.l.b16 %v242
  %v1688 = vunpack.c.l.b16 %v243
  %v1689 = vunpack.c.h.b16 %v243
  %v1690 = vunpack.c.l.b16 %v244
  %v1691 = vunpack.c.l.b16 %v245
  %v1692 = vunpack.c.h.b16 %v245
  %v1693 = vunpack.c.l.b16 %v246
  %v1694 = vunpack.c.l.b16 %v247
  %v1695 = vunpack.c.h.b16 %v247
  %v1696 = vunpack.c.l.b16 %v248
  %v1697 = vunpack.c.l.b16 %v249
  %v1698 = vunpack.c.h.b16 %v249
  %v1699 = vunpack.c.l.b16 %v250
  %v1700 = vunpack.c.l.b16 %v251
  %v1701 = vunpack.c.h.b16 %v251
  %v1702 = vunpack.c.l.b16 %v252
  %v1703 = vunpack.c.l.b16 %v253
  %v1704 = vunpack.c.h.b16 %v253
  %v1705 = vunpack.c.l.b16 %v254
  %v1706 = vunpack.c.l.b16 %v255
  %v1707 = vunpack.c.h.b16 %v255
  %v1708 = vunpack.c.l.b16 %v256
  %v1709 = vunpack.c.l.b16 %v257
  %v1710 = vunpack.c.h.b16 %v257
  %v1711 = vunpack.c.l.b16 %v258
  %v1712 = vunpack.c.l.b16 %v259
  %v1713 = vunpack.c.h.b16 %v259
  %v1714 = vunpack.c.l.b16 %v260
  %v1715 = vunpack.c.l.b16 %v261
  %v1716 = vunpack.c.h.b16 %v261
  %v1717 = vunpack.c.l.b16 %v262
  %v1718 = vunpack.c.l.b16 %v263
  %v1719 = vunpack.c.h.b16 %v263
  %v1720 = vunpack.c.l.b16 %v264
  %v1721 = vunpack.c.l.b16 %v265
  %v1722 = vunpack.c.h.b16 %v265
  %v1723 = vunpack.c.l.b16 %v266
  %v1724 = vunpack.c.l.b16 %v267
  %v1725 = vunpack.c.h.b16 %v267
  %v1726 = vunpack.c.l.b16 %v268
  %v1727 = vunpack.c.l.b16 %v269
  %v1728 = vunpack.c.h.b16 %v269
  %v1729 = vunpack.c.l.b16 %v270
  %v1730 = vunpack.c.l.b16 %v271
  %v1731 = vunpack.c.h.b16 %v271
  %v1732 = vunpack.c.l.b16 %v272
  %v1733 = vunpack.c.l.b16 %v273
  %v1734 = vunpack.c.h.b16 %v273
  %v1735 = vunpack.c.l.b16 %v274
  %v1736 = vunpack.c.l.b16 %v275
  %v1737 = vunpack.c.h.b16 %v275
  %v1738 = vunpack.c.l.b16 %v276
  %v1739 = vunpack.c.l.b16 %v277
  %v1740 = vunpack.c.h.b16 %v277
  %v1741 = vunpack.c.l.b16 %v278
  %v1742 = vunpack.c.l.b16 %v279
  %v1743 = vunpack.c.h.b16 %v279
  %v1744 = vunpack.c.l.b16 %v280
  %v1745 = vunpack.c.l.b16 %v281
  %v1746 = vunpack.c.h.b16 %v281
  %v1747 = vunpack.c.l.b16 %v282
  %v1748 = vunpack.c.l.b16 %v283
  %v1749 = vunpack.c.h.b16 %v283
  %v1750 = vunpack.c.l.b16 %v284
  %v1751 = vunpack.c.l.b16 %v285
  %v1752 = vunpack.c.h.b16 %v285
  %v1753 = vunpack.c.l.b16 %v286
  %v1754 = vunpack.c.l.b16 %v287
  %v1755 = vunpack.c.h.b16 %v287
  %v1756 = vunpack.c.l.b16 %v288
  %v1757 = vunpack.c.l.b16 %v289
  %v1758 = vunpack.c.h.b16 %v289
  %v1759 = vunpack.c.l.b16 %v290
  %v1760 = vunpack.c.l.b16 %v291
  %v1761 = vunpack.c.h.b16 %v291
  %v1762 = vunpack.c.l.b16 %v292
  %v1763 = vunpack.c.l.b16 %v293
  %v1764 = vunpack.c.h.b16 %v293
  %v1765 = vunpack.c.l.b16 %v294
  %v1766 = vunpack.c.l.b16 %v295
  %v1767 = vunpack.c.h.b16 %v295
  %v1768 = vunpack.c.l.b16 %v296
  %v1769 = vunpack.c.l.b16 %v297
  %v1770 = vunpack.c.h.b16 %v297
  %v1771 = vunpack.c.l.b16 %v298
  %v1772 = vunpack.c.l.b16 %v299
  %v1773 = vunpack.c.h.b16 %v299
  %v1774 = vunpack.c.l.b16 %v300
  %v1775 = vunpack.c.l.b16 %v301
  %v1776 = vunpack.c.h.b16 %v301
  %v1777 = vunpack.c.l.b16 %v302
  %v1778 = vunpack.c.l.b16 %v303
  %v1779 = vunpack.c.h.b16 %v303
  %v1780 = vunpack.c.l.b16 %v304
  %v1781 = vunpack.c.l.b16 %v305
  %v1782 = vunpack.c.h.b16 %v305
  %v1783 = vunpack.c.l.b16 %v306
  %v1784 = vunpack.c.l.b16 %v307
  %v1785 = vunpack.c.h.b16 %v307
  %v1786 = vunpack.c.l.b16 %v308
  %v1787 = vunpack.c.l.b16 %v309
  %v1788 = vunpack.c.h.b16 %v309
  %v1789 = vunpack.c.l.b16 %v310
  %v1790 = vunpack.c.l.b16 %v311
  %v1791 = vunpack.c.h.b16 %v311
  %v1792 = vunpack.c.l.b16 %v312
  %v1793 = vunpack.c.l.b16 %v313
  %v1794 = vunpack.c.h.b16 %v313
  %v1795 = vunpack.c.l.b16 %v314
  %v1796 = vunpack.c.l.b16 %v315
  %v1797 = vunpack.c.h.b16 %v315
  %v1798 = vunpack.c.l.b16 %v316
  %v1799 = vunpack.c.l.b16 %v317
  %v1800 = vunpack.c.h.b16 %v317
  %v1801 = vunpack.c.l.b16 %v318
  %v1802 = vunpack.c.l.b16 %v319
  %v1803 = vunpack.c.h.b16 %v319
  %v1804 = vunpack.c.l.b16 %v320
  %v1805 = vunpack.c.l.b16 %v321
  %v1806 = vunpack.c.h.b16 %v321
  %v1807 = vunpack.c.l.b16 %v322
  %v1808 = vunpack.c.l.b16 %v323
  %v1809 = vunpack.c.h.b16 %v323
  %v1810 = vunpack.c.l.b16 %v324
  %v1811 = vunpack.c.l.b16 %v325
  %v1812 = vunpack.c.h.b16 %v325
  %v1813 = vunpack.c.l.b16 %v326
  %v1814 = vunpack.c.l.b16 %v327
  %v1815 = vunpack.c.h.b16 %v327
  %v1816 = vunpack.c.l.b16 %v328
  %v1817 = vunpack.c.l.b16 %v329
  %v1818 = vunpack.c.h.b16 %v329
  %v1819 = vunpack.c.l.b16 %v330
  %v1820 = vunpack.c.l.b16 %v331
  %v1821 = vunpack.c.h.b16 %v331
  %v1822 = vunpack.c.l.b16 %v332
  %v1823 = vunpack.c.l.b16 %v333
  %v1824 = vunpack.c.h.b16 %v333
  %v1825 = vunpack.c.l.b16 %v334
  %v1826 = vunpack.c.l.b16 %v335
  %v1827 = vunpack.c.h.b16 %v335
  %v1828 = vunpack.c.l.b16 %v336
  %v1829 = vunpack.c.l.b16 %v337
  %v1830 = vunpack.c.h.b16 %v337
  %v1831 = vunpack.c.l.b16 %v338
  %v1832 = vunpack.c.l.b16 %v339
  %v1833 = vunpack.c.h.b16 %v339
  %v1834 = vunpack.c.l.b16 %v340
  %v1835 = vunpack.c.l.b16 %v341
  %v1836 = vunpack.c.h.b16 %v341
  %v1837 = vunpack.c.l.b16 %v342
  %v1838 = vunpack.c.l.b16 %v343
  %v1839 = vunpack.c.h.b16 %v343
  %v1840 = vunpack.c.l.b16 %v344
  %v1841 = vunpack.c.l.b16 %v345
  %v1842 = vunpack.c.h.b16 %v345
  %v1843 = vunpack.c.l.b16 %v346
  %v1844 = vunpack.c.l.b16 %v347
  %v1845 = vunpack.c.h.b16 %v347
  %v1846 = vunpack.c.l.b16 %v348
  %v1847 = vunpack.c.l.b16 %v349
  %v1848 = vunpack.c.h.b16 %v349
  %v1849 = vunpack.c.l.b16 %v350
  %v1850 = vunpack.c.l.b16 %v351
  %v1851 = vunpack.c.h.b16 %v351
  %v1852 = vunpack.c.l.b16 %v352
  %v1853 = vunpack.c.l.b16 %v353
  %v1854 = vunpack.c.h.b16 %v353
  %v1855 = vunpack.c.l.b16 %v354
  %v1856 = vunpack.c.l.b16 %v355
  %v1857 = vunpack.c.h.b16 %v355
  %v1858 = vunpack.c.l.b16 %v356
  %v1859 = vunpack.c.l.b16 %v357
  %v1860 = vunpack.c.h.b16 %v357
  %v1861 = vunpack.c.l.b16 %v358
  %v1862 = vunpack.c.l.b16 %v359
  %v1863 = vunpack.c.h.b16 %v359
  %v1864 = vunpack.c.l.b16 %v360
  %v1865 = vunpack.c.l.b16 %v361
  %v1866 = vunpack.c.h.b16 %v361
  %v1867 = vunpack.c.l.b16 %v362
  %v1868 = vunpack.c.l.b16 %v363
  %v1869 = vunpack.c.h.b16 %v363
  %v1870 = vunpack.c.l.b16 %v364
  %v1871 = vunpack.c.l.b16 %v365
  %v1872 = vunpack.c.h.b16 %v365
  %v1873 = vunpack.c.l.b16 %v366
  %v1874 = vunpack.c.l.b16 %v367
  %v1875 = vunpack.c.h.b16 %v367
  %v1876 = vunpack.c.l.b16 %v368
  %v1877 = vunpack.c.l.b16 %v369
  %v1878 = vunpack.c.h.b16 %v369
  %v1879 = vunpack.c.l.b16 %v370
  %v1880 = vunpack.c.l.b16 %v371
  %v1881 = vunpack.c.h.b16 %v371
  %v1882 = vunpack.c.l.b16 %v372
  %v1883 = vunpack.c.l.b16 %v373
  %v1884 = vunpack.c.h.b16 %v373
  %v1885 = vunpack.c.l.b16 %v374
  %v1886 = vunpack.c.l.b16 %v375
  %v1887 = vunpack.c.h.b16 %v375
  %v1888 = vunpack.c.l.b16 %v376
  %v1889 = vunpack.c.l.b16 %v377
  %v1890 = vunpack.c.h.b16 %v377
  %v1891 = vunpack.c.l.b16 %v378
  %v1892 = vunpack.c.l.b16 %v379
  %v1893 = vunpack.c.h.b16 %v379
  %v1894 = vunpack.c.l.b16 %v380
  %v1895 = vunpack.c.l.b16 %v381
  %v1896 = vunpack.c.h.b16 %v381
  %v1897 = vunpack.c.l.b16 %v382
  %v1898 = vunpack.c.l.b16 %v383
  %v1899 = vunpack.c.h.b16 %v383
  %v1900 = vunpack.c.l.b16 %v384
  %v1901 = vunpack.c.l.b16 %v385
  %v1902 = vunpack.c.h.b16 %v385
  %v1903 = vunpack.c.l.b16 %v386
  %v1904 = vunpack.c.l.b16 %v387
  %v1905 = vunpack.c.h.b16 %v387
  %v1906 = vunpack.c.l.b16 %v388
  %v1907 = vunpack.c.l.b16 %v389
  %v1908 = vunpack.c.h.b16 %v389
  %v1909 = vunpack.c.l.b16 %v390
  %v1910 = vunpack.c.l.b16 %v391
  %v1911 = vunpack.c.h.b16 %v391
  %v1912 = vunpack.c.l.b16 %v392
  %v1913 = vunpack.c.l.b16 %v393
  %v1914 = vunpack.c.h.b16 %v393
  %v1915 = vunpack.c.l.b16 %v394
  %v1916 = vunpack.c.l.b16 %v395
  %v1917 = vunpack.c.h.b16 %v395
  %v1918 = vunpack.c.l.b16 %v396
  %v1919 = vunpack.c.l.b16 %v397
  %v1920 = vunpack.c.h.b16 %v397
  %v1921 = vunpack.c.l.b16 %v398
  %v1922 = vunpack.c.l.b16 %v399
  %v1923 = vunpack.c.h.b16 %v399
  %v1924 = vunpack.c.l.b16 %v400
  %v1925 = vunpack.c.l.b16 %v401
  %v1926 = vunpack.c.h.b16 %v401
  %v1927 = vunpack.c.l.b16 %v402
  %v1928 = vunpack.c.l.b16 %v403
  %v1929 = vunpack.c.h.b16 %v403
  %v1930 = vunpack.c.l.b16 %v404
  %v1931 = vunpack.c.l.b16 %v405
  %v1932 = vunpack.c.h.b16 %v405
  %v1933 = vunpack.c.l.b16 %v406
  %v1934 = vunpack.c.l.b16 %v407
  %v1935 = vunpack.c.h.b16 %v407
  %v1936 = vunpack.c.l.b16 %v408
  %v1937 = vunpack.c.l.b16 %v409
  %v1938 = vunpack.c.h.b16 %v409
  %v1939 = vunpack.c.l.b16 %v410
  %v1940 = vunpack.c.l.b16 %v411
  %v1941 = vunpack.c.h.b16 %v411
  %v1942 = vunpack.c.l.b16 %v412
  %v1943 = vunpack.c.l.b16 %v413
  %v1944 = vunpack.c.h.b16 %v413
  %v1945 = vunpack.c.l.b16 %v414
  %v1946 = vunpack.c.l.b16 %v415
  %v1947 = vunpack.c.h.b16 %v415
  %v1948 = vunpack.c.l.b16 %v416
  %v1949 = vunpack.c.l.b16 %v417
  %v1950 = vunpack.c.h.b16 %v417
  %v1951 = vunpack.c.l.b16 %v418
  %v1952 = vunpack.c.l.b16 %v419
  %v1953 = vunpack.c.h.b16 %v419
  %v1954 = vunpack.c.l.b16 %v420
  %v1955 = vunpack.c.l.b16 %v421
  %v1956 = vunpack.c.h.b16 %v421
  %v1957 = vunpack.c.l.b16 %v422
  %v1958 = vunpack.c.l.b16 %v423
  %v1959 = vunpack.c.h.b16 %v423
  %v1960 = vunpack.c.l.b16 %v424
  %v1961 = vunpack.c.l.b16 %v425
  %v1962 = vunpack.c.h.b16 %v425
  %v1963 = vunpack.c.l.b16 %v426
  %v1964 = vunpack.c.l.b16 %v427
  %v1965 = vunpack.c.h.b16 %v427
  %v1966 = vunpack.c.l.b16 %v428
  %v1967 = vunpack.c.l.b16 %v429
  %v1968 = vunpack.c.h.b16 %v429
  %v1969 = vunpack.c.l.b16 %v430
  %v1970 = vunpack.c.l.b16 %v431
  %v1971 = vunpack.c.h.b16 %v431
  %v1972 = vunpack.c.l.b16 %v432
  %v1973 = vunpack.c.l.b16 %v433
  %v1974 = vunpack.c.h.b16 %v433
  %v1975 = vunpack.c.l.b16 %v434
  %v1976 = vunpack.c.l.b16 %v435
  %v1977 = vunpack.c.h.b16 %v435
  %v1978 = vunpack.c.l.b16 %v436
  %v1979 = vunpack.c.l.b16 %v437
  %v1980 = vunpack.c.h.b16 %v437
  %v1981 = vunpack.c.l.b16 %v438
  %v1982 = vunpack.c.l.b16 %v439
  %v1983 = vunpack.c.h.b16 %v439
  %v1984 = vunpack.c.l.b16 %v440
  %v1985 = vunpack.c.l.b16 %v441
  %v1986 = vunpack.c.h.b16 %v441
  %v1987 = vunpack.c.l.b16 %v442
  %v1988 = vunpack.c.l.b16 %v443
  %v1989 = vunpack.c.h.b16 %v443
  %v1990 = vunpack.c.l.b16 %v444
  %v1991 = vunpack.c.l.b16 %v445
  %v1992 = vunpack.c.h.b16 %v445
  %v1993 = vunpack.c.l.b16 %v446
  %v1994 = vunpack.c.l.b16 %v447
  %v1995 = vunpack.c.h.b16 %v447
  %v1996 = vunpack.c.l.b16 %v448
  %v1997 = vunpack.c.l.b16 %v449
  %v1998 = vunpack.c.h.b16 %v449
  %v1999 = vunpack.c.l.b16 %v450
  %v2000 = vunpack.c.l.b16 %v451
  %v2001 = vunpack.c.h.b16 %v451
  %v2002 = vunpack.c.l.b16 %v452
  %v2003 = vunpack.c.l.b16 %v453
  %v2004 = vunpack.c.h.b16 %v453
  %v2005 = vunpack.c.l.b16 %v454
  %v2006 = vunpack.c.l.b16 %v455
  %v2007 = vunpack.c.h.b16 %v455
  %v2008 = vunpack.c.l.b16 %v456
  %v2009 = vunpack.c.l.b16 %v457
  %v2010 = vunpack.c.h.b16 %v457
  %v2011 = vunpack.c.l.b16 %v458
  %v2012 = vunpack.c.l.b16 %v459
  %v2013 = vunpack.c.h.b16 %v459
  %v2014 = vunpack.c.l.b16 %v460
  %v2015 = vunpack.c.l.b16 %v461
  %v2016 = vunpack.c.h.b16 %v461
  %v2017 = vunpack.c.l.b16 %v462
  %v2018 = vunpack.c.l.b16 %v463
  %v2019 = vunpack.c.h.b16 %v463
  %v2020 = vunpack.c.l.b16 %v464
  %v2021 = vunpack.c.l.b16 %v465
  %v2022 = vunpack.c.h.b16 %v465
  %v2023 = vunpack.c.l.b16 %v466
  %v2024 = vunpack.c.l.b16 %v467
  %v2025 = vunpack.c.h.b16 %v467
  %v2026 = vunpack.c.l.b16 %v468
  %v2027 = vunpack.c.l.b16 %v469
  %v2028 = vunpack.c.h.b16 %v469
  %v2029 = vunpack.c.l.b16 %v470
  %v2030 = vunpack.c.l.b16 %v471
  %v2031 = vunpack.c.h.b16 %v471
  %v2032 = vunpack.c.l.b16 %v472
  %v2033 = vunpack.c.l.b16 %v473
  %v2034 = vunpack.c.h.b16 %v473
  %v2035 = vunpack.c.l.b16 %v474
  %v2036 = vunpack.c.l.b16 %v475
  %v2037 = vunpack.c.h.b16 %v475
  %v2038 = vunpack.c.l.b16 %v476
  %v2039 = vunpack.c.l.b16 %v477
  %v2040 = vunpack.c.h.b16 %v477
  %v2041 = vunpack.c.l.b16 %v478
  %v2042 = vunpack.c.l.b16 %v479
  %v2043 = vunpack.c.h.b16 %v479
  %v2044 = vunpack.c.l.b16 %v480
  %v2045 = vunpack.c.l.b16 %v481
  %v2046 = vunpack.c.h.b16 %v481
  %v2047 = vunpack.c.l.b16 %v482
  %v2048 = vunpack.c.l.b16 %v483
  %v2049 = vunpack.c.h.b16 %v483
  %v2050 = vunpack.c.l.b16 %v484
  %v2051 = vunpack.c.l.b16 %v485
  %v2052 = vunpack.c.h.b16 %v485
  %v2053 = vunpack.c.l.b16 %v486
  %v2054 = vunpack.c.l.b16 %v487
  %v2055 = vunpack.c.h.b16 %v487
  %v2056 = vunpack.c.l.b16 %v488
  %v2057 = vunpack.c.l.b16 %v489
  %v2058 = vunpack.c.h.b16 %v489
  %v2059 = vunpack.c.l.b16 %v490
  %v2060 = vunpack.c.l.b16 %v491
  %v2061 = vunpack.c.h.b16 %v491
  %v2062 = vunpack.c.l.b16 %v492
  %v2063 = vunpack.c.l.b16 %v493
  %v2064 = vunpack.c.h.b16 %v493
  %v2065 = vunpack.c.l.b16 %v494
  %v2066 = vunpack.c.l.b16 %v495
  %v2067 = vunpack.c.h.b16 %v495
  %v2068 = vunpack.c.l.b16 %v496
  %v2069 = vunpack.c.l.b16 %v497
  %v2070 = vunpack.c.h.b16 %v497
  %v2071 = vunpack.c.l.b16 %v498
  %v2072 = vunpack.c.l.b16 %v499
  %v2073 = vunpack.c.h.b16 %v499
  %v2074 = vunpack.c.l.b16 %v500
  %v2075 = vunpack.c.l.b16 %v501
  %v2076 = vunpack.c.h.b16 %v501
  %v2077 = vunpack.c.l.b16 %v502
  %v2078 = vunpack.c.l.b16 %v503
  %v2079 = vunpack.c.h.b16 %v503
  %v2080 = vunpack.c.l.b16 %v504
  %v2081 = vunpack.c.l.b16 %v505
  %v2082 = vunpack.c.h.b16 %v505
  %v2083 = vunpack.c.l.b16 %v506
  %v2084 = vunpack.c.l.b16 %v507
  %v2085 = vunpack.c.h.b16 %v507
  %v2086 = vunpack.c.l.b16 %v508
  %v2087 = vunpack.c.l.b16 %v509
  %v2088 = vunpack.c.h.b16 %v509
  %v2089 = vunpack.c.l.b16 %v510
  %v2090 = vunpack.c.l.b16 %v511
  %v2091 = vunpack.c.h.b16 %v511
  %v2092 = vunpack.c.l.b16 %v512
  %v2093 = vunpack.c.l.b16 %v513
  %v2094 = vunpack.c.h.b16 %v513
  %v2095 = vunpack.c.l.b16 %v514
  %v2096 = vunpack.c.l.b16 %v515
  %v2097 = vunpack.c.h.b16 %v515
  %v2098 = vunpack.c.l.b16 %v516
  %v2099 = vunpack.c.l.b16 %v517
  %v2100 = vunpack.c.h.b16 %v517
  %v2101 = vunpack.c.l.b16 %v518
  %v2102 = vunpack.c.l.b16 %v519
  %v2103 = vunpack.c.h.b16 %v519
  %v2104 = vunpack.c.l.b16 %v520
  %v2105 = vunpack.c.l.b16 %v521
  %v2106 = vunpack.c.h.b16 %v521
  %v2107 = vunpack.c.l.b16 %v522
  %v2108 = vunpack.c.l.b16 %v523
  %v2109 = vunpack.c.h.b16 %v523
  %v2110 = vunpack.c.l.b16 %v524
  %v2111 = vunpack.c.l.b16 %v525
  %v2112 = vunpack.c.h.b16 %v525
  %v2113 = vunpack.c.l.b16 %v526
  %v2114 = vunpack.c.l.b16 %v527
  %v2115 = vunpack.c.h.b16 %v527
  %v2116 = vunpack.c.l.b16 %v528
  %v2117 = vunpack.c.l.b16 %v529
  %v2118 = vunpack.c.h.b16 %v529
  %v2119 = vunpack.c.l.b16 %v530
  %v2120 = vunpack.c.l.b16 %v531
  %v2121 = vunpack.c.h.b16 %v531
  %v2122 = vunpack.c.l.b16 %v532
  %v2123 = vunpack.c.l.b16 %v533
  %v2124 = vunpack.c.h.b16 %v533
  %v2125 = vunpack.c.l.b16 %v534
  %v2126 = vunpack.c.l.b16 %v535
  %v2127 = vunpack.c.h.b16 %v535
  %v2128 = vunpack.c.l.b16 %v536
  %v2129 = vunpack.c.l.b16 %v537
  %v2130 = vunpack.c.h.b16 %v537
  %v2131 = vunpack.c.l.b16 %v538
  %v2132 = vunpack.c.l.b16 %v539
  %v2133 = vunpack.c.h.b16 %v539
  %v2134 = vunpack.c.l.b16 %v540
  %v2135 = vunpack.c.l.b16 %v541
  %v2136 = vunpack.c.h.b16 %v541
  %v2137 = vunpack.c.l.b16 %v542
  %v2138 = vunpack.c.l.b16 %v543
  %v2139 = vunpack.c.h.b16 %v543
  %v2140 = vunpack.c.l.b16 %v544
  %v2141 = vunpack.c.l.b16 %v545
  %v2142 = vunpack.c.h.b16 %v545
  %v2143 = vunpack.c.l.b16 %v546
  %v2144 = vunpack.c.l.b16 %v547
  %v2145 = vunpack.c.h.b16 %v547
  %v2146 = vunpack.c.l.b16 %v548
  %v2147 = vunpack.c.l.b16 %v549
  %v2148 = vunpack.c.h.b16 %v549
  %v2149 = vunpack.c.l.b16 %v550
  %v2150 = vunpack.c.l.b16 %v551
  %v2151 = vunpack.c.h.b16 %v551
  %v2152 = vunpack.c.l.b16 %v552
  %v2153 = vunpack.c.l.b16 %v553
  %v2154 = vunpack.c.h.b16 %v553
  %v2155 = vunpack.c.l.b16 %v554
  %v2156 = vunpack.c.l.b16 %v555
  %v2157 = vunpack.c.h.b16 %v555
  %v2158 = vunpack.c.l.b16 %v556
  %v2159 = vunpack.c.l.b16 %v557
  %v2160 = vunpack.c.h.b16 %v557
  %v2161 = vunpack.c.l.b16 %v558
  %v2162 = vunpack.c.l.b16 %v559
  %v2163 = vunpack.c.h.b16 %v559
  %v2164 = vunpack.c.l.b16 %v560
  %v2165 = vunpack.c.l.b16 %v561
  %v2166 = vunpack.c.h.b16 %v561
  %v2167 = vunpack.c.l.b16 %v562
  %v2168 = vunpack.c.l.b16 %v563
  %v2169 = vunpack.c.h.b16 %v563
  %v2170 = vunpack.c.l.b16 %v564
  %v2171 = vunpack.c.l.b16 %v565
  %v2172 = vunpack.c.h.b16 %v565
  %v2173 = vunpack.c.l.b16 %v566
  %v2174 = vunpack.c.l.b16 %v567
  %v2175 = vunpack.c.h.b16 %v567
  %v2176 = vunpack.c.l.b16 %v568
  %v2177 = vunpack.c.l.b16 %v569
  %v2178 = vunpack.c.h.b16 %v569
  %v2179 = vunpack.c.l.b16 %v570
  %v2180 = vunpack.c.l.b16 %v571
  %v2181 = vunpack.c.h.b16 %v571
  %v2182 = vunpack.c.l.b16 %v572
  %v2183 = vunpack.c.l.b16 %v573
  %v2184 = vunpack.c.h.b16 %v573
  %v2185 = vunpack.c.l.b16 %v574
  %v2186 = vunpack.c.l.b16 %v575
  %v2187 = vunpack.c.h.b16 %v575
  %v2188 = vunpack.c.l.b16 %v576
  %v2189 = vunpack.c.l.b16 %v577
  %v2190 = vunpack.c.h.b16 %v577
  %v2191 = vunpack.c.l.b16 %v578
  %v2192 = vunpack.c.l.b16 %v579
  %v2193 = vunpack.c.h.b16 %v579
  %v2194 = vunpack.c.l.b16 %v580
  %v2195 = vunpack.c.l.b16 %v581
  %v2196 = vunpack.c.h.b16 %v581
  %v2197 = vunpack.c.l.b16 %v582
  %v2198 = vunpack.c.l.b16 %v583
  %v2199 = vunpack.c.h.b16 %v583
  %v2200 = vunpack.c.l.b16 %v584
  %v2201 = vunpack.c.l.b16 %v585
  %v2202 = vunpack.c.h.b16 %v585
  %v2203 = vunpack.c.l.b16 %v586
  %v2204 = vunpack.c.l.b16 %v587
  %v2205 = vunpack.c.h.b16 %v587
  %v2206 = vunpack.c.l.b16 %v588
  %v2207 = vunpack.c.l.b16 %v589
  %v2208 = vunpack.c.h.b16 %v589
  %v2209 = vunpack.c.l.b16 %v590
  %v2210 = vunpack.c.l.b16 %v591
  %v2211 = vunpack.c.h.b16 %v591
  %v2212 = vunpack.c.l.b16 %v592
  %v2213 = vunpack.c.l.b16 %v593
  %v2214 = vunpack.c.h.b16 %v593
  %v2215 = vunpack.c.l.b16 %v594
  %v2216 = vunpack.c.l.b16 %v595
  %v2217 = vunpack.c.h.b16 %v595
  %v2218 = vunpack.c.l.b16 %v596
  %v2219 = vunpack.c.l.b16 %v597
  %v2220 = vunpack.c.h.b16 %v597
  %v2221 = vunpack.c.l.b16 %v598
  %v2222 = vunpack.c.l.b16 %v599
  %v2223 = vunpack.c.h.b16 %v599
  %v2224 = vunpack.c.l.b16 %v600
  %v2225 = vunpack.c.l.b16 %v601
  %v2226 = vunpack.c.h.b16 %v601
  %v2227 = vunpack.c.l.b16 %v602
  %v2228 = vunpack.c.l.b16 %v603
  %v2229 = vunpack.c.h.b16 %v603
  %v2230 = vunpack.c.l.b16 %v604
  %v2231 = vunpack.c.l.b16 %v605
  %v2232 = vunpack.c.h.b16 %v605
  %v2233 = vunpack.c.l.b16 %v606
  %v2234 = vunpack.c.l.b16 %v607
  %v2235 = vunpack.c.h.b16 %v607
  %v2236 = vunpack.c.l.b16 %v608
  %v2237 = vunpack.c.l.b16 %v609
  %v2238 = vunpack.c.h.b16 %v609
  %v2239 = vunpack.c.l.b16 %v610
  %v2240 = vunpack.c.l.b16 %v611
  %v2241 = vunpack.c.h.b16 %v611
  %v2242 = vunpack.c.l.b16 %v612
  %v2243 = vunpack.c.l.b16 %v613
  %v2244 = vunpack.c.h.b16 %v613
  %v2245 = vunpack.c.l.b16 %v614
  %v2246 = vunpack.c.l.b16 %v615
  %v2247 = vunpack.c.h.b16 %v615
  %v2248 = vunpack.c.l.b16 %v616
  %v2249 = vunpack.c.l.b16 %v617
  %v2250 = vunpack.c.h.b16 %v617
  %v2251 = vunpack.c.l.b16 %v618
  %v2252 = vunpack.c.l.b16 %v619
  %v2253 = vunpack.c.h.b16 %v619
  %v2254 = vunpack.c.l.b16 %v620
  %v2255 = vunpack.c.l.b16 %v621
  %v2256 = vunpack.c.h.b16 %v621
  %v2257 = vunpack.c.l.b16 %v622
  %v2258 = vunpack.c.l.b16 %v623
  %v2259 = vunpack.c.h.b16 %v623
  %v2260 = vunpack.c.l.b16 %v624
  %v2261 = vunpack.c.l.b16 %v625
  %v2262 = vunpack.c.h.b16 %v625
  %v2263 = vunpack.c.l.b16 %v626
  %v2264 = vpack.c.b16 %v1403, %v1400
  %v2265 = vpack.c.b16 %v1404, %v1401
  %v2266 = vpack.c.b16 %v1405, %v1402
  %v2267 = vpack.c.b16 %v1409, %v1406
  %v2268 = vpack.c.b16 %v1410, %v1407
  %v2269 = vpack.c.b16 %v1411, %v1408
  %v2270 = vpack.c.b16 %v1415, %v1412
  %v2271 = vpack.c.b16 %v1416, %v1413
  %v2272 = vpack.c.b16 %v1417, %v1414
  %v2273 = vpack.c.b16 %v1421, %v1418
  %v2274 = vpack.c.b16 %v1422, %v1419
  %v2275 = vpack.c.b16 %v1423, %v1420
  %v2276 = vpack.c.b16 %v1427, %v1424
  %v2277 = vpack.c.b16 %v1428, %v1425
  %v2278 = vpack.c.b16 %v1429, %v1426
  %v2279 = vpack.c.b16 %v1433, %v1430
  %v2280 = vpack.c.b16 %v1434, %v1431
  %v2281 = vpack.c.b16 %v1435, %v1432
  %v2282 = vpack.c.b16 %v1439, %v1436
  %v2283 = vpack.c.b16 %v1440, %v1437
  %v2284 = vpack.c.b16 %v1441, %v1438
  %v2285 = vpack.c.b16 %v1445, %v1442
  %v2286 = vpack.c.b16 %v1446, %v1443
  %v2287 = vpack.c.b16 %v1447, %v1444
  %v2288 = vpack.c.b16 %v1451, %v1448
  %v2289 = vpack.c.b16 %v1452, %v1449
  %v2290 = vpack.c.b16 %v1453, %v1450
  %v2291 = vpack.c.b16 %v1457, %v1454
  %v2292 = vpack.c.b16 %v1458, %v1455
  %v2293 = vpack.c.b16 %v1459, %v1456
  %v2294 = vpack.c.b16 %v1463, %v1460
  %v2295 = vpack.c.b16 %v1464, %v1461
  %v2296 = vpack.c.b16 %v1465, %v1462
  %v2297 = vpack.c.b16 %v1469, %v1466
  %v2298 = vpack.c.b16 %v1470, %v1467
  %v2299 = vpack.c.b16 %v1471, %v1468
  %v2300 = vpack.c.b16 %v1475, %v1472
  %v2301 = vpack.c.b16 %v1476, %v1473
  %v2302 = vpack.c.b16 %v1477, %v1474
  %v2303 = vpack.c.b16 %v1481, %v1478
  %v2304 = vpack.c.b16 %v1482, %v1479
  %v2305 = vpack.c.b16 %v1483, %v1480
  %v2306 = vpack.c.b16 %v1487, %v1484
  %v2307 = vpack.c.b16 %v1488, %v1485
  %v2308 = vpack.c.b16 %v1489, %v1486
  %v2309 = vpack.c.b16 %v1493, %v1490
  %v2310 = vpack.c.b16 %v1494, %v1491
  %v2311 = vpack.c.b16 %v1495, %v1492
  %v2312 = vpack.c.b16 %v1499, %v1496
  %v2313 = vpack.c.b16 %v1500, %v1497
  %v2314 = vpack.c.b16 %v1501, %v1498
  %v2315 = vpack.c.b16 %v1505, %v1502
  %v2316 = vpack.c.b16 %v1506, %v1503
  %v2317 = vpack.c.b16 %v1507, %v1504
  %v2318 = vpack.c.b16 %v1511, %v1508
  %v2319 = vpack.c.b16 %v1512, %v1509
  %v2320 = vpack.c.b16 %v1513, %v1510
  %v2321 = vpack.c.b16 %v1517, %v1514
  %v2322 = vpack.c.b16 %v1518, %v1515
  %v2323 = vpack.c.b16 %v1519, %v1516
  %v2324 = vpack.c.b16 %v1523, %v1520
  %v2325 = vpack.c.b16 %v1524, %v1521
  %v2326 = vpack.c.b16 %v1525, %v1522
  %v2327 = vpack.c.b16 %v1529, %v1526
  %v2328 = vpack.c.b16 %v1530, %v1527
  %v2329 = vpack.c.b16 %v1531, %v1528
  %v2330 = vpack.c.b16 %v1535, %v1532
  %v2331 = vpack.c.b16 %v1536, %v1533
  %v2332 = vpack.c.b16 %v1537, %v1534
  %v2333 = vpack.c.b16 %v1541, %v1538
  %v2334 = vpack.c.b16 %v1542, %v1539
  %v2335 = vpack.c.b16 %v1543, %v1540
  %v2336 = vpack.c.b16 %v1547, %v1544
  %v2337 = vpack.c.b16 %v1548, %v1545
  %v2338 = vpack.c.b16 %v1549, %v1546
  %v2339 = vpack.c.b16 %v1553, %v1550
  %v2340 = vpack.c.b16 %v1554, %v1551
  %v2341 = vpack.c.b16 %v1555, %v1552
  %v2342 = vpack.c.b16 %v1559, %v1556
  %v2343 = vpack.c.b16 %v1560, %v1557
  %v2344 = vpack.c.b16 %v1561, %v1558
  %v2345 = vpack.c.b16 %v1565, %v1562
  %v2346 = vpack.c.b16 %v1566, %v1563
  %v2347 = vpack.c.b16 %v1567, %v1564
  %v2348 = vpack.c.b16 %v1571, %v1568
  %v2349 = vpack.c.b16 %v1572, %v1569
  %v2350 = vpack.c.b16 %v1573, %v1570
  %v2351 = vpack.c.b16 %v1577, %v1574
  %v2352 = vpack.c.b16 %v1578, %v1575
  %v2353 = vpack.c.b16 %v1579, %v1576
  %v2354 = vpack.c.b16 %v1583, %v1580
  %v2355 = vpack.c.b16 %v1584, %v1581
  %v2356 = vpack.c.b16 %v1585, %v1582
  %v2357 = vpack.c.b16 %v1589, %v1586
  %v2358 = vpack.c.b16 %v1590, %v1587
  %v2359 = vpack.c.b16 %v1591, %v1588
  %v2360 = vpack.c.b16 %v1595, %v1592
  %v2361 = vpack.c.b16 %v1596, %v1593
  %v2362 = vpack.c.b16 %v1597, %v1594
  %v2363 = vpack.c.b16 %v1601, %v1598
  %v2364 = vpack.c.b16 %v1602, %v1599
  %v2365 = vpack.c.b16 %v1603, %v1600
  %v2366 = vpack.c.b16 %v1607, %v1604
  %v2367 = vpack.c.b16 %v1608, %v1605
  %v2368 = vpack.c.b16 %v1609, %v1606
  %v2369 = vpack.c.b16 %v1613, %v1610
  %v2370 = vpack.c.b16 %v1614, %v1611
  %v2371 = vpack.c.b16 %v1615, %v1612
  %v2372 = vpack.c.b16 %v1619, %v1616
  %v2373 = vpack.c.b16 %v1620, %v1617
  %v2374 = vpack.c.b16 %v1621, %v1618
  %v2375 = vpack.c.b16 %v1625, %v1622
  %v2376 = vpack.c.b16 %v1626, %v1623
  %v2377 = vpack.c.b16 %v1627, %v1624
  %v2378 = vpack.c.b16 %v1631, %v1628
  %v2379 = vpack.c.b16 %v1632, %v1629
  %v2380 = vpack.c.b16 %v1633, %v1630
  %v2381 = vpack.c.b16 %v1637, %v1634
  %v2382 = vpack.c.b16 %v1638, %v1635
  %v2383 = vpack.c.b16 %v1639, %v1636
  %v2384 = vpack.c.b16 %v1643, %v1640
  %v2385 = vpack.c.b16 %v1644, %v1641
  %v2386 = vpack.c.b16 %v1645, %v1642
  %v2387 = vpack.c.b16 %v1649, %v1646
  %v2388 = vpack.c.b16 %v1650, %v1647
  %v2389 = vpack.c.b16 %v1651, %v1648
  %v2390 = vpack.c.b16 %v1655, %v1652
  %v2391 = vpack.c.b16 %v1656, %v1653
  %v2392 = vpack.c.b16 %v1657, %v1654
  %v2393 = vpack.c.b16 %v1661, %v1658
  %v2394 = vpack.c.b16 %v1662, %v1659
  %v2395 = vpack.c.b16 %v1663, %v1660
  %v2396 = vpack.c.b16 %v1667, %v1664
  %v2397 = vpack.c.b16 %v1668, %v1665
  %v2398 = vpack.c.b16 %v1669, %v1666
  %v2399 = vpack.c.b16 %v1673, %v1670
  %v2400 = vpack.c.b16 %v1674, %v1671
  %v2401 = vpack.c.b16 %v1675, %v1672
  %v2402 = vpack.c.b16 %v1679, %v1676
  %v2403 = vpack.c.b16 %v1680, %v1677
  %v2404 = vpack.c.b16 %v1681, %v1678
  %v2405 = vpack.c.b16 %v1685, %v1682
  %v2406 = vpack.c.b16 %v1686, %v1683
  %v2407 = vpack.c.b16 %v1687, %v1684
  %v2408 = vpack.c.b16 %v1691, %v1688
  %v2409 = vpack.c.b16 %v1692, %v1689
  %v2410 = vpack.c.b16 %v1693, %v1690
  %v2411 = vpack.c.b16 %v1697, %v1694
  %v2412 = vpack.c.b16 %v1698, %v1695
  %v2413 = vpack.c.b16 %v1699, %v1696
  %v2414 = vpack.c.b16 %v1703, %v1700
  %v2415 = vpack.c.b16 %v1704, %v1701
  %v2416 = vpack.c.b16 %v1705, %v1702
  %v2417 = vpack.c.b16 %v1709, %v1706
  %v2418 = vpack.c.b16 %v1710, %v1707
  %v2419 = vpack.c.b16 %v1711, %v1708
  %v2420 = vpack.c.b16 %v1715, %v1712
  %v2421 = vpack.c.b16 %v1716, %v1713
  %v2422 = vpack.c.b16 %v1717, %v1714
  %v2423 = vpack.c.b16 %v1721, %v1718
  %v2424 = vpack.c.b16 %v1722, %v1719
  %v2425 = vpack.c.b16 %v1723, %v1720
  %v2426 = vpack.c.b16 %v1727, %v1724
  %v2427 = vpack.c.b16 %v1728, %v1725
  %v2428 = vpack.c.b16 %v1729, %v1726
  %v2429 = vpack.c.b16 %v1733, %v1730
  %v2430 = vpack.c.b16 %v1734, %v1731
  %v2431 = vpack.c.b16 %v1735, %v1732
  %v2432 = vpack.c.b16 %v1739, %v1736
  %v2433 = vpack.c.b16 %v1740, %v1737
  %v2434 = vpack.c.b16 %v1741, %v1738
  %v2435 = vpack.c.b16 %v1745, %v1742
  %v2436 = vpack.c.b16 %v1746, %v1743
  %v2437 = vpack.c.b16 %v1747, %v1744
  %v2438 = vpack.c.b16 %v1751, %v1748
  %v2439 = vpack.c.b16 %v1752, %v1749
  %v2440 = vpack.c.b16 %v1753, %v1750
  %v2441 = vpack.c.b16 %v1757, %v1754
  %v2442 = vpack.c.b16 %v1758, %v1755
  %v2443 = vpack.c.b16 %v1759, %v1756
  %v2444 = vpack.c.b16 %v1763, %v1760
  %v2445 = vpack.c.b16 %v1764, %v1761
  %v2446 = vpack.c.b16 %v1765, %v1762
  %v2447 = vpack.c.b16 %v1769, %v1766
  %v2448 = vpack.c.b16 %v1770, %v1767
  %v2449 = vpack.c.b16 %v1771, %v1768
  %v2450 = vpack.c.b16 %v1775, %v1772
  %v2451 = vpack.c.b16 %v1776, %v1773
  %v2452 = vpack.c.b16 %v1777, %v1774
  %v2453 = vpack.c.b16 %v1781, %v1778
  %v2454 = vpack.c.b16 %v1782, %v1779
  %v2455 = vpack.c.b16 %v1783, %v1780
  %v2456 = vpack.c.b16 %v1787, %v1784
  %v2457 = vpack.c.b16 %v1788, %v1785
  %v2458 = vpack.c.b16 %v1789, %v1786
  %v2459 = vpack.c.b16 %v1793, %v1790
  %v2460 = vpack.c.b16 %v1794, %v1791
  %v2461 = vpack.c.b16 %v1795, %v1792
  %v2462 = vpack.c.b16 %v1799, %v1796
  %v2463 = vpack.c.b16 %v1800, %v1797
  %v2464 = vpack.c.b16 %v1801, %v1798
  %v2465 = vpack.c.b16 %v1805, %v1802
  %v2466 = vpack.c.b16 %v1806, %v1803
  %v2467 = vpack.c.b16 %v1807, %v1804
  %v2468 = vpack.c.b16 %v1811, %v1808
  %v2469 = vpack.c.b16 %v1812, %v1809
  %v2470 = vpack.c.b16 %v1813, %v1810
  %v2471 = vpack.c.b16 %v1817, %v1814
  %v2472 = vpack.c.b16 %v1818, %v1815
  %v2473 = vpack.c.b16 %v1819, %v1816
  %v2474 = vpack.c.b16 %v1823, %v1820
  %v2475 = vpack.c.b16 %v1824, %v1821
  %v2476 = vpack.c.b16 %v1825, %v1822
  %v2477 = vpack.c.b16 %v1829, %v1826
  %v2478 = vpack.c.b16 %v1830, %v1827
  %v2479 = vpack.c.b16 %v1831, %v1828
  %v2480 = vpack.c.b16 %v1835, %v1832
  %v2481 = vpack.c.b16 %v1836, %v1833
  %v2482 = vpack.c.b16 %v1837, %v1834
  %v2483 = vpack.c.b16 %v1841, %v1838
  %v2484 = vpack.c.b16 %v1842, %v1839
  %v2485 = vpack.c.b16 %v1843, %v1840
  %v2486 = vpack.c.b16 %v1847, %v1844
  %v2487 = vpack.c.b16 %v1848, %v1845
  %v2488 = vpack.c.b16 %v1849, %v1846
  %v2489 = vpack.c.b16 %v1853, %v1850
  %v2490 = vpack.c.b16 %v1854, %v1851
  %v2491 = vpack.c.b16 %v1855, %v1852
  %v2492 = vpack.c.b16 %v1859, %v1856
  %v2493 = vpack.c.b16 %v1860, %v1857
  %v2494 = vpack.c.b16 %v1861, %v1858
  %v2495 = vpack.c.b16 %v1865, %v1862
  %v2496 = vpack.c.b16 %v1866, %v1863
  %v2497 = vpack.c.b16 %v1867, %v1864
  %v2498 = vpack.c.b16 %v1871, %v1868
  %v2499 = vpack.c.b16 %v1872, %v1869
  %v2500 = vpack.c.b16 %v1873, %v1870
  %v2501 = vpack.c.b16 %v1877, %v1874
  %v2502 = vpack.c.b16 %v1878, %v1875
  %v2503 = vpack.c.b16 %v1879, %v1876
  %v2504 = vpack.c.b16 %v1883, %v1880
  %v2505 = vpack.c.b16 %v1884, %v1881
  %v2506 = vpack.c.b16 %v1885, %v1882
  %v2507 = vpack.c.b16 %v1889, %v1886
  %v2508 = vpack.c.b16 %v1890, %v1887
  %v2509 = vpack.c.b16 %v1891, %v1888
  %v2510 = vpack.c.b16 %v1895, %v1892
  %v2511 = vpack.c.b16 %v1896, %v1893
  %v2512 = vpack.c.b16 %v1897, %v1894
  %v2513 = vpack.c.b16 %v1901, %v1898
  %v2514 = vpack.c.b16 %v1902, %v1899
  %v2515 = vpack.c.b16 %v1903, %v1900
  %v2516 = vpack.c.b16 %v1907, %v1904
  %v2517 = vpack.c.b16 %v1908, %v1905
  %v2518 = vpack.c.b16 %v1909, %v1906
  %v2519 = vpack.c.b16 %v1913, %v1910
  %v2520 = vpack.c.b16 %v1914, %v1911
  %v2521 = vpack.c.b16 %v1915, %v1912
  %v2522 = vpack.c.b16 %v1919, %v1916
  %v2523 = vpack.c.b16 %v1920, %v1917
  %v2524 = vpack.c.b16 %v1921, %v1918
  %v2525 = vpack.c.b16 %v1925, %v1922
  %v2526 = vpack.c.b16 %v1926, %v1923
  %v2527 = vpack.c.b16 %v1927, %v1924
  %v2528 = vpack.c.b16 %v1931, %v1928
  %v2529 = vpack.c.b16 %v1932, %v1929
  %v2530 = vpack.c.b16 %v1933, %v1930
  %v2531 = vpack.c.b16 %v1937, %v1934
  %v2532 = vpack.c.b16 %v1938, %v1935
  %v2533 = vpack.c.b16 %v1939, %v1936
  %v2534 = vpack.c.b16 %v1943, %v1940
  %v2535 = vpack.c.b16 %v1944, %v1941
  %v2536 = vpack.c.b16 %v1945, %v1942
  %v2537 = vpack.c.b16 %v1949, %v1946
  %v2538 = vpack.c.b16 %v1950, %v1947
  %v2539 = vpack.c.b16 %v1951, %v1948
  %v2540 = vpack.c.b16 %v1955, %v1952
  %v2541 = vpack.c.b16 %v1956, %v1953
  %v2542 = vpack.c.b16 %v1957, %v1954
  %v2543 = vpack.c.b16 %v1961, %v1958
  %v2544 = vpack.c.b16 %v1962, %v1959
  %v2545 = vpack.c.b16 %v1963, %v1960
  %v2546 = vpack.c.b16 %v1967, %v1964
  %v2547 = vpack.c.b16 %v1968, %v1965
  %v2548 = vpack.c.b16 %v1969, %v1966
  %v2549 = vpack.c.b16 %v1973, %v1970
  %v2550 = vpack.c.b16 %v1974, %v1971
  %v2551 = vpack.c.b16 %v1975, %v1972
  %v2552 = vpack.c.b16 %v1979, %v1976
  %v2553 = vpack.c.b16 %v1980, %v1977
  %v2554 = vpack.c.b16 %v1981, %v1978
  %v2555 = vpack.c.b16 %v1985, %v1982
  %v2556 = vpack.c.b16 %v1986, %v1983
  %v2557 = vpack.c.b16 %v1987, %v1984
  %v2558 = vpack.c.b16 %v1991, %v1988
  %v2559 = vpack.c.b16 %v1992, %v1989
  %v2560 = vpack.c.b16 %v1993, %v1990
  %v2561 = vpack.c.b16 %v1997, %v1994
  %v2562 = vpack.c.b16 %v1998, %v1995
  %v2563 = vpack.c.b16 %v1999, %v1996
  %v2564 = vpack.c.b16 %v2003, %v2000
  %v2565 = vpack.c.b16 %v2004, %v2001
  %v2566 = vpack.c.b16 %v2005, %v2002
  %v2567 = vpack.c.b16 %v2009, %v2006
  %v2568 = vpack.c.b16 %v2010, %v2007
  %v2569 = vpack.c.b16 %v2011, %v2008
  %v2570 = vpack.c.b16 %v2015, %v2012
  %v2571 = vpack.c.b16 %v2016, %v2013
  %v2572 = vpack.c.b16 %v2017, %v2014
  %v2573 = vpack.c.b16 %v2021, %v2018
  %v2574 = vpack.c.b16 %v2022, %v2019
  %v2575 = vpack.c.b16 %v2023, %v2020
  %v2576 = vpack.c.b16 %v2027, %v2024
  %v2577 = vpack.c.b16 %v2028, %v2025
  %v2578 = vpack.c.b16 %v2029, %v2026
  %v2579 = vpack.c.b16 %v2033, %v2030
  %v2580 = vpack.c.b16 %v2034, %v2031
  %v2581 = vpack.c.b16 %v2035, %v2032
  %v2582 = vpack.c.b16 %v2039, %v2036
  %v2583 = vpack.c.b16 %v2040, %v2037
  %v2584 = vpack.c.b16 %v2041, %v2038
  %v2585 = vpack.c.b16 %v2045, %v2042
  %v2586 = vpack.c.b16 %v2046, %v2043
  %v2587 = vpack.c.b16 %v2047, %v2044
  %v2588 = vpack.c.b16 %v2051, %v2048
  %v2589 = vpack.c.b16 %v2052, %v2049
  %v2590 = vpack.c.b16 %v2053, %v2050
  %v2591 = vpack.c.b16 %v2057, %v2054
  %v2592 = vpack.c.b16 %v2058, %v2055
  %v2593 = vpack.c.b16 %v2059, %v2056
  %v2594 = vpack.c.b16 %v2063, %v2060
  %v2595 = vpack.c.b16 %v2064, %v2061
  %v2596 = vpack.c.b16 %v2065, %v2062
  %v2597 = vpack.c.b16 %v2069, %v2066
  %v2598 = vpack.c.b16 %v2070, %v2067
  %v2599 = vpack.c.b16 %v2071, %v2068
  %v2600 = vpack.c.b16 %v2075, %v2072
  %v2601 = vpack.c.b16 %v2076, %v2073
  %v2602 = vpack.c.b16 %v2077, %v2074
  %v2603 = vpack.c.b16 %v2081, %v2078
  %v2604 = vpack.c.b16 %v2082, %v2079
  %v2605 = vpack.c.b16 %v2083, %v2080
  %v2606 = vpack.c.b16 %v2087, %v2084
  %v2607 = vpack.c.b16 %v2088, %v2085
  %v2608 = vpack.c.b16 %v2089, %v2086
  %v2609 = vpack.c.b16 %v2093, %v2090
  %v2610 = vpack.c.b16 %v2094, %v2091
  %v2611 = vpack.c.b16 %v2095, %v2092
  %v2612 = vpack.c.b16 %v2099, %v2096
  %v2613 = vpack.c.b16 %v2100, %v2097
  %v2614 = vpack.c.b16 %v2101, %v2098
  %v2615 = vpack.c.b16 %v2105, %v2102
  %v2616 = vpack.c.b16 %v2106, %v2103
  %v2617 = vpack.c.b16 %v2107, %v2104
  %v2618 = vpack.c.b16 %v2111, %v2108
  %v2619 = vpack.c.b16 %v2112, %v2109
  %v2620 = vpack.c.b16 %v2113, %v2110
  %v2621 = vpack.c.b16 %v2117, %v2114
  %v2622 = vpack.c.b16 %v2118, %v2115
  %v2623 = vpack.c.b16 %v2119, %v2116
  %v2624 = vpack.c.b16 %v2123, %v2120
  %v2625 = vpack.c.b16 %v2124, %v2121
  %v2626 = vpack.c.b16 %v2125, %v2122
  %v2627 = vpack.c.b16 %v2129, %v2126
  %v2628 = vpack.c.b16 %v2130, %v2127
  %v2629 = vpack.c.b16 %v2131, %v2128
  %v2630 = vpack.c.b16 %v2135, %v2132
  %v2631 = vpack.c.b16 %v2136, %v2133
  %v2632 = vpack.c.b16 %v2137, %v2134
  %v2633 = vpack.c.b16 %v2141, %v2138
  %v2634 = vpack.c.b16 %v2142, %v2139
  %v2635 = vpack.c.b16 %v2143, %v2140
  %v2636 = vpack.c.b16 %v2147, %v2144
  %v2637 = vpack.c.b16 %v2148, %v2145
  %v2638 = vpack.c.b16 %v2149, %v2146
  %v2639 = vpack.c.b16 %v2153, %v2150
  %v2640 = vpack.c.b16 %v2154, %v2151
  %v2641 = vpack.c.b16 %v2155, %v2152
  %v2642 = vpack.c.b16 %v2159, %v2156
  %v2643 = vpack.c.b16 %v2160, %v2157
  %v2644 = vpack.c.b16 %v2161, %v2158
  %v2645 = vpack.c.b16 %v2165, %v2162
  %v2646 = vpack.c.b16 %v2166, %v2163
  %v2647 = vpack.c.b16 %v2167, %v2164
  %v2648 = vpack.c.b16 %v2171, %v2168
  %v2649 = vpack.c.b16 %v2172, %v2169
  %v2650 = vpack.c.b16 %v2173, %v2170
  %v2651 = vpack.c.b16 %v2177, %v2174
  %v2652 = vpack.c.b16 %v2178, %v2175
  %v2653 = vpack.c.b16 %v2179, %v2176
  %v2654 = vpack.c.b16 %v2183, %v2180
  %v2655 = vpack.c.b16 %v2184, %v2181
  %v2656 = vpack.c.b16 %v2185, %v2182
  %v2657 = vpack.c.b16 %v2189, %v2186
  %v2658 = vpack.c.b16 %v2190, %v2187
  %v2659 = vpack.c.b16 %v2191, %v2188
  %v2660 = vpack.c.b16 %v2195, %v2192
  %v2661 = vpack.c.b16 %v2196, %v2193
  %v2662 = vpack.c.b16 %v2197, %v2194
  %v2663 = vpack.c.b16 %v2201, %v2198
  %v2664 = vpack.c.b16 %v2202, %v2199
  %v2665 = vpack.c.b16 %v2203, %v2200
  %v2666 = vpack.c.b16 %v2207, %v2204
  %v2667 = vpack.c.b16 %v2208, %v2205
  %v2668 = vpack.c.b16 %v2209, %v2206
  %v2669 = vpack.c.b16 %v2213, %v2210
  %v2670 = vpack.c.b16 %v2214, %v2211
  %v2671 = vpack.c.b16 %v2215, %v2212
  %v2672 = vpack.c.b16 %v2219, %v2216
  %v2673 = vpack.c.b16 %v2220, %v2217
  %v2674 = vpack.c.b16 %v2221, %v2218
  %v2675 = vpack.c.b16 %v2225, %v2222
  %v2676 = vpack.c.b16 %v2226, %v2223
  %v2677 = vpack.c.b16 %v2227, %v2224
  %v2678 = vpack.c.b16 %v2231, %v2228
  %v2679 = vpack.c.b16 %v2232, %v2229
  %v2680 = vpack.c.b16 %v2233, %v2230
  %v2681 = vpack.c.b16 %v2237, %v2234
  %v2682 = vpack.c.b16 %v2238, %v2235
  %v2683 = vpack.c.b16 %v2239, %v2236
  %v2684 = vpack.c.b16 %v2243, %v2240
  %v2685 = vpack.c.b16 %v2244, %v2241
  %v2686 = vpack.c.b16 %v2245, %v2242
  %v2687 = vpack.c.b16 %v2249, %v2246
  %v2688 = vpack.c.b16 %v2250, %v2247
  %v2689 = vpack.c.b16 %v2251, %v2248
  %v2690 = vpack.c.b16 %v2255, %v2252
  %v2691 = vpack.c.b16 %v2256, %v2253
  %v2692 = vpack.c.b16 %v2257, %v2254
  %v2693 = vpack.c.b16 %v2261, %v2258
  %v2694 = vpack.c.b16 %v2262, %v2259
  %v2695 = vpack.c.b16 %v2263, %v2260
  %3128 = vmatprep.subr.bf16.mxu0 %v2286
  %3129 = vmatpush1.bf16.msra.mxu0 %v2285
  %3130 = vmatprep.subr.bf16.mxu0 %v2283
  %3131 = vmatpush1.bf16.msra.mxu0 %v2282
  %3132 = vmatprep.subr.bf16.mxu0 %v2280
  %3133 = vmatpush1.bf16.msra.mxu0 %v2279
  %3134 = vmatprep.subr.bf16.mxu0 %v2277
  %3135 = vmatpush1.bf16.msra.mxu0 %v2276
  %3136 = vmatprep.subr.bf16.mxu0 %v2274
  %3137 = vmatpush1.bf16.msra.mxu0 %v2273
  %3138 = vmatprep.subr.bf16.mxu0 %v2271
  %3139 = vmatpush1.bf16.msra.mxu0 %v2270
  %3140 = vmatprep.subr.bf16.mxu0 %v2268
  %3141 = vmatpush1.bf16.msra.mxu0 %v2267
  %3142 = vmatprep.subr.bf16.mxu0 %v2265
  %3143 = vmatpush1.bf16.msra.mxu0 %v2264
  %3144 = vmatprep.subr.bf16.mxu0 %v2310
  %3145 = vmatpush2.bf16.msra.mxu0 %v2309
  %3146 = vmatprep.subr.bf16.mxu0 %v2307
  %3147 = vmatpush2.bf16.msra.mxu0 %v2306
  %3148 = vmatprep.subr.bf16.mxu0 %v2304
  %3149 = vmatpush2.bf16.msra.mxu0 %v2303
  %3150 = vmatprep.subr.bf16.mxu0 %v2301
  %3151 = vmatpush2.bf16.msra.mxu0 %v2300
  %3152 = vmatprep.subr.bf16.mxu0 %v2298
  %3153 = vmatpush2.bf16.msra.mxu0 %v2297
  %3154 = vmatprep.subr.bf16.mxu0 %v2295
  %3155 = vmatpush2.bf16.msra.mxu0 %v2294
  %3156 = vmatprep.subr.bf16.mxu0 %v2292
  %3157 = vmatpush2.bf16.msra.mxu0 %v2291
  %3158 = vmatprep.subr.bf16.mxu0 %v2289
  %3159 = vmatpush2.bf16.msra.mxu0 %v2288
  %3160 = vmatprep.mubr.bf16.mxu0 %v753
  %3161 = vmatmul.mubr.bf16.gmra.mxu0 %v752
  %v3162 = vpop.f32.mrf.mxu0
  %v3163 = vadd.f32 %v632, %v3162
  %v3164 = vpop.f32.mrf.mxu0
  %v3165 = vadd.f32 %v636, %v3164
  %v3166 = vpop.f32.mrf.mxu0
  %v3167 = vadd.f32 %v632, %v3166
  %v3168 = vpop.f32.mrf.mxu0
  %v3169 = vadd.f32 %v636, %v3168
  %3170 = vmatprep.mubr.bf16.mxu0 %v771
  %3171 = vmatmul.mubr.bf16.gmra.mxu0 %v770
  %v3172 = vpop.f32.mrf.mxu0
  %v3173 = vadd.f32 %v632, %v3172
  %v3174 = vpop.f32.mrf.mxu0
  %v3175 = vadd.f32 %v636, %v3174
  %v3176 = vpop.f32.mrf.mxu0
  %v3177 = vadd.f32 %v632, %v3176
  %v3178 = vpop.f32.mrf.mxu0
  %v3179 = vadd.f32 %v636, %v3178
  %3180 = vdwg.mxu0
  %3181 = vmatprep.subr.bf16.mxu0 %v2334
  %3182 = vmatpush1.bf16.msra.mxu0 %v2333
  %3183 = vmatprep.subr.bf16.mxu0 %v2331
  %3184 = vmatpush1.bf16.msra.mxu0 %v2330
  %3185 = vmatprep.subr.bf16.mxu0 %v2328
  %3186 = vmatpush1.bf16.msra.mxu0 %v2327
  %3187 = vmatprep.subr.bf16.mxu0 %v2325
  %3188 = vmatpush1.bf16.msra.mxu0 %v2324
  %3189 = vmatprep.subr.bf16.mxu0 %v2322
  %3190 = vmatpush1.bf16.msra.mxu0 %v2321
  %3191 = vmatprep.subr.bf16.mxu0 %v2319
  %3192 = vmatpush1.bf16.msra.mxu0 %v2318
  %3193 = vmatprep.subr.bf16.mxu0 %v2316
  %3194 = vmatpush1.bf16.msra.mxu0 %v2315
  %3195 = vmatprep.subr.bf16.mxu0 %v2313
  %3196 = vmatpush1.bf16.msra.mxu0 %v2312
  %3197 = vmatprep.subr.bf16.mxu0 %v2358
  %3198 = vmatpush2.bf16.msra.mxu0 %v2357
  %3199 = vmatprep.subr.bf16.mxu0 %v2355
  %3200 = vmatpush2.bf16.msra.mxu0 %v2354
  %3201 = vmatprep.subr.bf16.mxu0 %v2352
  %3202 = vmatpush2.bf16.msra.mxu0 %v2351
  %3203 = vmatprep.subr.bf16.mxu0 %v2349
  %3204 = vmatpush2.bf16.msra.mxu0 %v2348
  %3205 = vmatprep.subr.bf16.mxu0 %v2346
  %3206 = vmatpush2.bf16.msra.mxu0 %v2345
  %3207 = vmatprep.subr.bf16.mxu0 %v2343
  %3208 = vmatpush2.bf16.msra.mxu0 %v2342
  %3209 = vmatprep.subr.bf16.mxu0 %v2340
  %3210 = vmatpush2.bf16.msra.mxu0 %v2339
  %3211 = vmatprep.subr.bf16.mxu0 %v2337
  %3212 = vmatpush2.bf16.msra.mxu0 %v2336
  %3213 = vmatprep.mubr.bf16.mxu0 %v755
  %3214 = vmatmul.mubr.bf16.gmra.mxu0 %v754
  %v3215 = vpop.f32.mrf.mxu0
  %v3216 = vadd.f32 %v3163, %v3215
  %v3217 = vpop.f32.mrf.mxu0
  %v3218 = vadd.f32 %v3165, %v3217
  %v3219 = vpop.f32.mrf.mxu0
  %v3220 = vadd.f32 %v3167, %v3219
  %v3221 = vpop.f32.mrf.mxu0
  %v3222 = vadd.f32 %v3169, %v3221
  %3223 = vmatprep.mubr.bf16.mxu0 %v773
  %3224 = vmatmul.mubr.bf16.gmra.mxu0 %v772
  %v3225 = vpop.f32.mrf.mxu0
  %v3226 = vadd.f32 %v3173, %v3225
  %v3227 = vpop.f32.mrf.mxu0
  %v3228 = vadd.f32 %v3175, %v3227
  %v3229 = vpop.f32.mrf.mxu0
  %v3230 = vadd.f32 %v3177, %v3229
  %v3231 = vpop.f32.mrf.mxu0
  %v3232 = vadd.f32 %v3179, %v3231
  %3233 = vdwg.mxu0
  %3234 = vmatprep.subr.bf16.mxu0 %v2382
  %3235 = vmatpush1.bf16.msra.mxu0 %v2381
  %3236 = vmatprep.subr.bf16.mxu0 %v2379
  %3237 = vmatpush1.bf16.msra.mxu0 %v2378
  %3238 = vmatprep.subr.bf16.mxu0 %v2376
  %3239 = vmatpush1.bf16.msra.mxu0 %v2375
  %3240 = vmatprep.subr.bf16.mxu0 %v2373
  %3241 = vmatpush1.bf16.msra.mxu0 %v2372
  %3242 = vmatprep.subr.bf16.mxu0 %v2370
  %3243 = vmatpush1.bf16.msra.mxu0 %v2369
  %3244 = vmatprep.subr.bf16.mxu0 %v2367
  %3245 = vmatpush1.bf16.msra.mxu0 %v2366
  %3246 = vmatprep.subr.bf16.mxu0 %v2364
  %3247 = vmatpush1.bf16.msra.mxu0 %v2363
  %3248 = vmatprep.subr.bf16.mxu0 %v2361
  %3249 = vmatpush1.bf16.msra.mxu0 %v2360
  %3250 = vmatprep.subr.bf16.mxu0 %v2406
  %3251 = vmatpush2.bf16.msra.mxu0 %v2405
  %3252 = vmatprep.subr.bf16.mxu0 %v2403
  %3253 = vmatpush2.bf16.msra.mxu0 %v2402
  %3254 = vmatprep.subr.bf16.mxu0 %v2400
  %3255 = vmatpush2.bf16.msra.mxu0 %v2399
  %3256 = vmatprep.subr.bf16.mxu0 %v2397
  %3257 = vmatpush2.bf16.msra.mxu0 %v2396
  %3258 = vmatprep.subr.bf16.mxu0 %v2394
  %3259 = vmatpush2.bf16.msra.mxu0 %v2393
  %3260 = vmatprep.subr.bf16.mxu0 %v2391
  %3261 = vmatpush2.bf16.msra.mxu0 %v2390
  %3262 = vmatprep.subr.bf16.mxu0 %v2388
  %3263 = vmatpush2.bf16.msra.mxu0 %v2387
  %3264 = vmatprep.subr.bf16.mxu0 %v2385
  %3265 = vmatpush2.bf16.msra.mxu0 %v2384
  %3266 = vmatprep.mubr.bf16.mxu0 %v757
  %3267 = vmatmul.mubr.bf16.gmra.mxu0 %v756
  %v3268 = vpop.f32.mrf.mxu0
  %v3269 = vadd.f32 %v3216, %v3268
  %v3270 = vpop.f32.mrf.mxu0
  %v3271 = vadd.f32 %v3218, %v3270
  %v3272 = vpop.f32.mrf.mxu0
  %v3273 = vadd.f32 %v3220, %v3272
  %v3274 = vpop.f32.mrf.mxu0
  %v3275 = vadd.f32 %v3222, %v3274
  %3276 = vmatprep.mubr.bf16.mxu0 %v775
  %3277 = vmatmul.mubr.bf16.gmra.mxu0 %v774
  %v3278 = vpop.f32.mrf.mxu0
  %v3279 = vadd.f32 %v3226, %v3278
  %v3280 = vpop.f32.mrf.mxu0
  %v3281 = vadd.f32 %v3228, %v3280
  %v3282 = vpop.f32.mrf.mxu0
  %v3283 = vadd.f32 %v3230, %v3282
  %v3284 = vpop.f32.mrf.mxu0
  %v3285 = vadd.f32 %v3232, %v3284
  %3286 = vdwg.mxu0
  %3287 = vmatprep.subr.bf16.mxu0 %v2430
  %3288 = vmatpush1.bf16.msra.mxu0 %v2429
  %3289 = vmatprep.subr.bf16.mxu0 %v2427
  %3290 = vmatpush1.bf16.msra.mxu0 %v2426
  %3291 = vmatprep.subr.bf16.mxu0 %v2424
  %3292 = vmatpush1.bf16.msra.mxu0 %v2423
  %3293 = vmatprep.subr.bf16.mxu0 %v2421
  %3294 = vmatpush1.bf16.msra.mxu0 %v2420
  %3295 = vmatprep.subr.bf16.mxu0 %v2418
  %3296 = vmatpush1.bf16.msra.mxu0 %v2417
  %3297 = vmatprep.subr.bf16.mxu0 %v2415
  %3298 = vmatpush1.bf16.msra.mxu0 %v2414
  %3299 = vmatprep.subr.bf16.mxu0 %v2412
  %3300 = vmatpush1.bf16.msra.mxu0 %v2411
  %3301 = vmatprep.subr.bf16.mxu0 %v2409
  %3302 = vmatpush1.bf16.msra.mxu0 %v2408
  %3303 = vmatprep.subr.bf16.mxu0 %v2454
  %3304 = vmatpush2.bf16.msra.mxu0 %v2453
  %3305 = vmatprep.subr.bf16.mxu0 %v2451
  %3306 = vmatpush2.bf16.msra.mxu0 %v2450
  %3307 = vmatprep.subr.bf16.mxu0 %v2448
  %3308 = vmatpush2.bf16.msra.mxu0 %v2447
  %3309 = vmatprep.subr.bf16.mxu0 %v2445
  %3310 = vmatpush2.bf16.msra.mxu0 %v2444
  %3311 = vmatprep.subr.bf16.mxu0 %v2442
  %3312 = vmatpush2.bf16.msra.mxu0 %v2441
  %3313 = vmatprep.subr.bf16.mxu0 %v2439
  %3314 = vmatpush2.bf16.msra.mxu0 %v2438
  %3315 = vmatprep.subr.bf16.mxu0 %v2436
  %3316 = vmatpush2.bf16.msra.mxu0 %v2435
  %3317 = vmatprep.subr.bf16.mxu0 %v2433
  %3318 = vmatpush2.bf16.msra.mxu0 %v2432
  %3319 = vmatprep.mubr.bf16.mxu0 %v759
  %3320 = vmatmul.mubr.bf16.gmra.mxu0 %v758
  %v3321 = vpop.f32.mrf.mxu0
  %v3322 = vadd.f32 %v3269, %v3321
  %v3323 = vpop.f32.mrf.mxu0
  %v3324 = vadd.f32 %v3271, %v3323
  %v3325 = vpop.f32.mrf.mxu0
  %v3326 = vadd.f32 %v3273, %v3325
  %v3327 = vpop.f32.mrf.mxu0
  %v3328 = vadd.f32 %v3275, %v3327
  %3329 = vmatprep.mubr.bf16.mxu0 %v777
  %3330 = vmatmul.mubr.bf16.gmra.mxu0 %v776
  %v3331 = vpop.f32.mrf.mxu0
  %v3332 = vadd.f32 %v3279, %v3331
  %v3333 = vpop.f32.mrf.mxu0
  %v3334 = vadd.f32 %v3281, %v3333
  %v3335 = vpop.f32.mrf.mxu0
  %v3336 = vadd.f32 %v3283, %v3335
  %v3337 = vpop.f32.mrf.mxu0
  %v3338 = vadd.f32 %v3285, %v3337
  %3339 = vdwg.mxu0
  %3340 = vmatprep.subr.bf16.mxu0 %v2478
  %3341 = vmatpush1.bf16.msra.mxu0 %v2477
  %3342 = vmatprep.subr.bf16.mxu0 %v2475
  %3343 = vmatpush1.bf16.msra.mxu0 %v2474
  %3344 = vmatprep.subr.bf16.mxu0 %v2472
  %3345 = vmatpush1.bf16.msra.mxu0 %v2471
  %3346 = vmatprep.subr.bf16.mxu0 %v2469
  %3347 = vmatpush1.bf16.msra.mxu0 %v2468
  %3348 = vmatprep.subr.bf16.mxu0 %v2466
  %3349 = vmatpush1.bf16.msra.mxu0 %v2465
  %3350 = vmatprep.subr.bf16.mxu0 %v2463
  %3351 = vmatpush1.bf16.msra.mxu0 %v2462
  %3352 = vmatprep.subr.bf16.mxu0 %v2460
  %3353 = vmatpush1.bf16.msra.mxu0 %v2459
  %3354 = vmatprep.subr.bf16.mxu0 %v2457
  %3355 = vmatpush1.bf16.msra.mxu0 %v2456
  %3356 = vmatprep.subr.bf16.mxu0 %v2502
  %3357 = vmatpush2.bf16.msra.mxu0 %v2501
  %3358 = vmatprep.subr.bf16.mxu0 %v2499
  %3359 = vmatpush2.bf16.msra.mxu0 %v2498
  %3360 = vmatprep.subr.bf16.mxu0 %v2496
  %3361 = vmatpush2.bf16.msra.mxu0 %v2495
  %3362 = vmatprep.subr.bf16.mxu0 %v2493
  %3363 = vmatpush2.bf16.msra.mxu0 %v2492
  %3364 = vmatprep.subr.bf16.mxu0 %v2490
  %3365 = vmatpush2.bf16.msra.mxu0 %v2489
  %3366 = vmatprep.subr.bf16.mxu0 %v2487
  %3367 = vmatpush2.bf16.msra.mxu0 %v2486
  %3368 = vmatprep.subr.bf16.mxu0 %v2484
  %3369 = vmatpush2.bf16.msra.mxu0 %v2483
  %3370 = vmatprep.subr.bf16.mxu0 %v2481
  %3371 = vmatpush2.bf16.msra.mxu0 %v2480
  %3372 = vmatprep.mubr.bf16.mxu0 %v761
  %3373 = vmatmul.mubr.bf16.gmra.mxu0 %v760
  %v3374 = vpop.f32.mrf.mxu0
  %v3375 = vadd.f32 %v3322, %v3374
  %v3376 = vpop.f32.mrf.mxu0
  %v3377 = vadd.f32 %v3324, %v3376
  %v3378 = vpop.f32.mrf.mxu0
  %v3379 = vadd.f32 %v3326, %v3378
  %v3380 = vpop.f32.mrf.mxu0
  %v3381 = vadd.f32 %v3328, %v3380
  %3382 = vmatprep.mubr.bf16.mxu0 %v779
  %3383 = vmatmul.mubr.bf16.gmra.mxu0 %v778
  %v3384 = vpop.f32.mrf.mxu0
  %v3385 = vadd.f32 %v3332, %v3384
  %v3386 = vpop.f32.mrf.mxu0
  %v3387 = vadd.f32 %v3334, %v3386
  %v3388 = vpop.f32.mrf.mxu0
  %v3389 = vadd.f32 %v3336, %v3388
  %v3390 = vpop.f32.mrf.mxu0
  %v3391 = vadd.f32 %v3338, %v3390
  %3392 = vdwg.mxu0
  %3393 = vmatprep.subr.bf16.mxu0 %v2526
  %3394 = vmatpush1.bf16.msra.mxu0 %v2525
  %3395 = vmatprep.subr.bf16.mxu0 %v2523
  %3396 = vmatpush1.bf16.msra.mxu0 %v2522
  %3397 = vmatprep.subr.bf16.mxu0 %v2520
  %3398 = vmatpush1.bf16.msra.mxu0 %v2519
  %3399 = vmatprep.subr.bf16.mxu0 %v2517
  %3400 = vmatpush1.bf16.msra.mxu0 %v2516
  %3401 = vmatprep.subr.bf16.mxu0 %v2514
  %3402 = vmatpush1.bf16.msra.mxu0 %v2513
  %3403 = vmatprep.subr.bf16.mxu0 %v2511
  %3404 = vmatpush1.bf16.msra.mxu0 %v2510
  %3405 = vmatprep.subr.bf16.mxu0 %v2508
  %3406 = vmatpush1.bf16.msra.mxu0 %v2507
  %3407 = vmatprep.subr.bf16.mxu0 %v2505
  %3408 = vmatpush1.bf16.msra.mxu0 %v2504
  %3409 = vmatprep.subr.bf16.mxu0 %v2550
  %3410 = vmatpush2.bf16.msra.mxu0 %v2549
  %3411 = vmatprep.subr.bf16.mxu0 %v2547
  %3412 = vmatpush2.bf16.msra.mxu0 %v2546
  %3413 = vmatprep.subr.bf16.mxu0 %v2544
  %3414 = vmatpush2.bf16.msra.mxu0 %v2543
  %3415 = vmatprep.subr.bf16.mxu0 %v2541
  %3416 = vmatpush2.bf16.msra.mxu0 %v2540
  %3417 = vmatprep.subr.bf16.mxu0 %v2538
  %3418 = vmatpush2.bf16.msra.mxu0 %v2537
  %3419 = vmatprep.subr.bf16.mxu0 %v2535
  %3420 = vmatpush2.bf16.msra.mxu0 %v2534
  %3421 = vmatprep.subr.bf16.mxu0 %v2532
  %3422 = vmatpush2.bf16.msra.mxu0 %v2531
  %3423 = vmatprep.subr.bf16.mxu0 %v2529
  %3424 = vmatpush2.bf16.msra.mxu0 %v2528
  %3425 = vmatprep.mubr.bf16.mxu0 %v763
  %3426 = vmatmul.mubr.bf16.gmra.mxu0 %v762
  %v3427 = vpop.f32.mrf.mxu0
  %v3428 = vadd.f32 %v3375, %v3427
  %v3429 = vpop.f32.mrf.mxu0
  %v3430 = vadd.f32 %v3377, %v3429
  %v3431 = vpop.f32.mrf.mxu0
  %v3432 = vadd.f32 %v3379, %v3431
  %v3433 = vpop.f32.mrf.mxu0
  %v3434 = vadd.f32 %v3381, %v3433
  %3435 = vmatprep.mubr.bf16.mxu0 %v781
  %3436 = vmatmul.mubr.bf16.gmra.mxu0 %v780
  %v3437 = vpop.f32.mrf.mxu0
  %v3438 = vadd.f32 %v3385, %v3437
  %v3439 = vpop.f32.mrf.mxu0
  %v3440 = vadd.f32 %v3387, %v3439
  %v3441 = vpop.f32.mrf.mxu0
  %v3442 = vadd.f32 %v3389, %v3441
  %v3443 = vpop.f32.mrf.mxu0
  %v3444 = vadd.f32 %v3391, %v3443
  %3445 = vdwg.mxu0
  %3446 = vmatprep.subr.bf16.mxu0 %v2574
  %3447 = vmatpush1.bf16.msra.mxu0 %v2573
  %3448 = vmatprep.subr.bf16.mxu0 %v2571
  %3449 = vmatpush1.bf16.msra.mxu0 %v2570
  %3450 = vmatprep.subr.bf16.mxu0 %v2568
  %3451 = vmatpush1.bf16.msra.mxu0 %v2567
  %3452 = vmatprep.subr.bf16.mxu0 %v2565
  %3453 = vmatpush1.bf16.msra.mxu0 %v2564
  %3454 = vmatprep.subr.bf16.mxu0 %v2562
  %3455 = vmatpush1.bf16.msra.mxu0 %v2561
  %3456 = vmatprep.subr.bf16.mxu0 %v2559
  %3457 = vmatpush1.bf16.msra.mxu0 %v2558
  %3458 = vmatprep.subr.bf16.mxu0 %v2556
  %3459 = vmatpush1.bf16.msra.mxu0 %v2555
  %3460 = vmatprep.subr.bf16.mxu0 %v2553
  %3461 = vmatpush1.bf16.msra.mxu0 %v2552
  %3462 = vmatprep.subr.bf16.mxu0 %v2598
  %3463 = vmatpush2.bf16.msra.mxu0 %v2597
  %3464 = vmatprep.subr.bf16.mxu0 %v2595
  %3465 = vmatpush2.bf16.msra.mxu0 %v2594
  %3466 = vmatprep.subr.bf16.mxu0 %v2592
  %3467 = vmatpush2.bf16.msra.mxu0 %v2591
  %3468 = vmatprep.subr.bf16.mxu0 %v2589
  %3469 = vmatpush2.bf16.msra.mxu0 %v2588
  %3470 = vmatprep.subr.bf16.mxu0 %v2586
  %3471 = vmatpush2.bf16.msra.mxu0 %v2585
  %3472 = vmatprep.subr.bf16.mxu0 %v2583
  %3473 = vmatpush2.bf16.msra.mxu0 %v2582
  %3474 = vmatprep.subr.bf16.mxu0 %v2580
  %3475 = vmatpush2.bf16.msra.mxu0 %v2579
  %3476 = vmatprep.subr.bf16.mxu0 %v2577
  %3477 = vmatpush2.bf16.msra.mxu0 %v2576
  %3478 = vmatprep.mubr.bf16.mxu0 %v765
  %3479 = vmatmul.mubr.bf16.gmra.mxu0 %v764
  %v3480 = vpop.f32.mrf.mxu0
  %v3481 = vadd.f32 %v3428, %v3480
  %v3482 = vpop.f32.mrf.mxu0
  %v3483 = vadd.f32 %v3430, %v3482
  %v3484 = vpop.f32.mrf.mxu0
  %v3485 = vadd.f32 %v3432, %v3484
  %v3486 = vpop.f32.mrf.mxu0
  %v3487 = vadd.f32 %v3434, %v3486
  %3488 = vmatprep.mubr.bf16.mxu0 %v783
  %3489 = vmatmul.mubr.bf16.gmra.mxu0 %v782
  %v3490 = vpop.f32.mrf.mxu0
  %v3491 = vadd.f32 %v3438, %v3490
  %v3492 = vpop.f32.mrf.mxu0
  %v3493 = vadd.f32 %v3440, %v3492
  %v3494 = vpop.f32.mrf.mxu0
  %v3495 = vadd.f32 %v3442, %v3494
  %v3496 = vpop.f32.mrf.mxu0
  %v3497 = vadd.f32 %v3444, %v3496
  %3498 = vdwg.mxu0
  %3499 = vmatprep.subr.bf16.mxu0 %v2622
  %3500 = vmatpush1.bf16.msra.mxu0 %v2621
  %3501 = vmatprep.subr.bf16.mxu0 %v2619
  %3502 = vmatpush1.bf16.msra.mxu0 %v2618
  %3503 = vmatprep.subr.bf16.mxu0 %v2616
  %3504 = vmatpush1.bf16.msra.mxu0 %v2615
  %3505 = vmatprep.subr.bf16.mxu0 %v2613
  %3506 = vmatpush1.bf16.msra.mxu0 %v2612
  %3507 = vmatprep.subr.bf16.mxu0 %v2610
  %3508 = vmatpush1.bf16.msra.mxu0 %v2609
  %3509 = vmatprep.subr.bf16.mxu0 %v2607
  %3510 = vmatpush1.bf16.msra.mxu0 %v2606
  %3511 = vmatprep.subr.bf16.mxu0 %v2604
  %3512 = vmatpush1.bf16.msra.mxu0 %v2603
  %3513 = vmatprep.subr.bf16.mxu0 %v2601
  %3514 = vmatpush1.bf16.msra.mxu0 %v2600
  %3515 = vmatprep.subr.bf16.mxu0 %v2646
  %3516 = vmatpush2.bf16.msra.mxu0 %v2645
  %3517 = vmatprep.subr.bf16.mxu0 %v2643
  %3518 = vmatpush2.bf16.msra.mxu0 %v2642
  %3519 = vmatprep.subr.bf16.mxu0 %v2640
  %3520 = vmatpush2.bf16.msra.mxu0 %v2639
  %3521 = vmatprep.subr.bf16.mxu0 %v2637
  %3522 = vmatpush2.bf16.msra.mxu0 %v2636
  %3523 = vmatprep.subr.bf16.mxu0 %v2634
  %3524 = vmatpush2.bf16.msra.mxu0 %v2633
  %3525 = vmatprep.subr.bf16.mxu0 %v2631
  %3526 = vmatpush2.bf16.msra.mxu0 %v2630
  %3527 = vmatprep.subr.bf16.mxu0 %v2628
  %3528 = vmatpush2.bf16.msra.mxu0 %v2627
  %3529 = vmatprep.subr.bf16.mxu0 %v2625
  %3530 = vmatpush2.bf16.msra.mxu0 %v2624
  %3531 = vmatprep.mubr.bf16.mxu0 %v767
  %3532 = vmatmul.mubr.bf16.gmra.mxu0 %v766
  %v3533 = vpop.f32.mrf.mxu0
  %v3534 = vadd.f32 %v3481, %v3533
  %v3535 = vpop.f32.mrf.mxu0
  %v3536 = vadd.f32 %v3483, %v3535
  %v3537 = vpop.f32.mrf.mxu0
  %v3538 = vadd.f32 %v3485, %v3537
  %v3539 = vpop.f32.mrf.mxu0
  %v3540 = vadd.f32 %v3487, %v3539
  %3541 = vmatprep.mubr.bf16.mxu0 %v785
  %3542 = vmatmul.mubr.bf16.gmra.mxu0 %v784
  %v3543 = vpop.f32.mrf.mxu0
  %v3544 = vadd.f32 %v3491, %v3543
  %v3545 = vpop.f32.mrf.mxu0
  %v3546 = vadd.f32 %v3493, %v3545
  %v3547 = vpop.f32.mrf.mxu0
  %v3548 = vadd.f32 %v3495, %v3547
  %v3549 = vpop.f32.mrf.mxu0
  %v3550 = vadd.f32 %v3497, %v3549
  %3551 = vdwg.mxu0
  %3552 = vmatprep.subr.bf16.mxu0 %v2670
  %3553 = vmatpush1.bf16.msra.mxu0 %v2669
  %3554 = vmatprep.subr.bf16.mxu0 %v2667
  %3555 = vmatpush1.bf16.msra.mxu0 %v2666
  %3556 = vmatprep.subr.bf16.mxu0 %v2664
  %3557 = vmatpush1.bf16.msra.mxu0 %v2663
  %3558 = vmatprep.subr.bf16.mxu0 %v2661
  %3559 = vmatpush1.bf16.msra.mxu0 %v2660
  %3560 = vmatprep.subr.bf16.mxu0 %v2658
  %3561 = vmatpush1.bf16.msra.mxu0 %v2657
  %3562 = vmatprep.subr.bf16.mxu0 %v2655
  %3563 = vmatpush1.bf16.msra.mxu0 %v2654
  %3564 = vmatprep.subr.bf16.mxu0 %v2652
  %3565 = vmatpush1.bf16.msra.mxu0 %v2651
  %3566 = vmatprep.subr.bf16.mxu0 %v2649
  %3567 = vmatpush1.bf16.msra.mxu0 %v2648
  %3568 = vmatprep.subr.bf16.mxu0 %v2694
  %3569 = vmatpush2.bf16.msra.mxu0 %v2693
  %3570 = vmatprep.subr.bf16.mxu0 %v2691
  %3571 = vmatpush2.bf16.msra.mxu0 %v2690
  %3572 = vmatprep.subr.bf16.mxu0 %v2688
  %3573 = vmatpush2.bf16.msra.mxu0 %v2687
  %3574 = vmatprep.subr.bf16.mxu0 %v2685
  %3575 = vmatpush2.bf16.msra.mxu0 %v2684
  %3576 = vmatprep.subr.bf16.mxu0 %v2682
  %3577 = vmatpush2.bf16.msra.mxu0 %v2681
  %3578 = vmatprep.subr.bf16.mxu0 %v2679
  %3579 = vmatpush2.bf16.msra.mxu0 %v2678
  %3580 = vmatprep.subr.bf16.mxu0 %v2676
  %3581 = vmatpush2.bf16.msra.mxu0 %v2675
  %3582 = vmatprep.subr.bf16.mxu0 %v2673
  %3583 = vmatpush2.bf16.msra.mxu0 %v2672
  %3584 = vmatprep.mubr.bf16.mxu0 %v769
  %3585 = vmatmul.mubr.bf16.gmra.mxu0 %v768
  %v3586 = vpop.f32.mrf.mxu0
  %v3587 = vadd.f32 %v3534, %v3586
  %v3588 = vpop.f32.mrf.mxu0
  %v3589 = vadd.f32 %v3536, %v3588
  %v3590 = vpop.f32.mrf.mxu0
  %v3591 = vadd.f32 %v3538, %v3590
  %v3592 = vpop.f32.mrf.mxu0
  %v3593 = vadd.f32 %v3540, %v3592
  %3594 = vmatprep.mubr.bf16.mxu0 %v787
  %3595 = vmatmul.mubr.bf16.gmra.mxu0 %v786
  %v3596 = vpop.f32.mrf.mxu0
  %v3597 = vadd.f32 %v3544, %v3596
  %v3598 = vpop.f32.mrf.mxu0
  %v3599 = vadd.f32 %v3546, %v3598
  %v3600 = vpop.f32.mrf.mxu0
  %v3601 = vadd.f32 %v3548, %v3600
  %v3602 = vpop.f32.mrf.mxu0
  %v3603 = vadd.f32 %v3550, %v3602
  %3604 = vdwg.mxu0
  %3605 = vmatprep.subr.bf16.mxu0 0
  %3606 = vmatpush1.bf16.msra.mxu0 %v2287
  %3607 = vmatprep.subr.bf16.mxu0 0
  %3608 = vmatpush1.bf16.msra.mxu0 %v2284
  %3609 = vmatprep.subr.bf16.mxu0 0
  %3610 = vmatpush1.bf16.msra.mxu0 %v2281
  %3611 = vmatprep.subr.bf16.mxu0 0
  %3612 = vmatpush1.bf16.msra.mxu0 %v2278
  %3613 = vmatprep.subr.bf16.mxu0 0
  %3614 = vmatpush1.bf16.msra.mxu0 %v2275
  %3615 = vmatprep.subr.bf16.mxu0 0
  %3616 = vmatpush1.bf16.msra.mxu0 %v2272
  %3617 = vmatprep.subr.bf16.mxu0 0
  %3618 = vmatpush1.bf16.msra.mxu0 %v2269
  %3619 = vmatprep.subr.bf16.mxu0 0
  %3620 = vmatpush1.bf16.msra.mxu0 %v2266
  %3621 = vmatprep.subr.bf16.mxu0 0
  %3622 = vmatpush2.bf16.msra.mxu0 %v2311
  %3623 = vmatprep.subr.bf16.mxu0 0
  %3624 = vmatpush2.bf16.msra.mxu0 %v2308
  %3625 = vmatprep.subr.bf16.mxu0 0
  %3626 = vmatpush2.bf16.msra.mxu0 %v2305
  %3627 = vmatprep.subr.bf16.mxu0 0
  %3628 = vmatpush2.bf16.msra.mxu0 %v2302
  %3629 = vmatprep.subr.bf16.mxu0 0
  %3630 = vmatpush2.bf16.msra.mxu0 %v2299
  %3631 = vmatprep.subr.bf16.mxu0 0
  %3632 = vmatpush2.bf16.msra.mxu0 %v2296
  %3633 = vmatprep.subr.bf16.mxu0 0
  %3634 = vmatpush2.bf16.msra.mxu0 %v2293
  %3635 = vmatprep.subr.bf16.mxu0 0
  %3636 = vmatpush2.bf16.msra.mxu0 %v2290
  %3637 = vmatprep.mubr.bf16.mxu0 %v753
  %3638 = vmatmul.mubr.bf16.gmra.mxu0 %v752
  %v3639 = vpop.f32.mrf.mxu0
  %v3640 = vadd.f32 %v640, %v3639
  %v3641 = vpop.f32.mrf.mxu0
  %v3642 = vpop.f32.mrf.mxu0
  %v3643 = vadd.f32 %v640, %v3642
  %v3644 = vpop.f32.mrf.mxu0
  %3645 = vmatprep.mubr.bf16.mxu0 %v771
  %3646 = vmatmul.mubr.bf16.gmra.mxu0 %v770
  %v3647 = vpop.f32.mrf.mxu0
  %v3648 = vadd.f32 %v640, %v3647
  %v3649 = vpop.f32.mrf.mxu0
  %v3650 = vpop.f32.mrf.mxu0
  %v3651 = vadd.f32 %v640, %v3650
  %v3652 = vpop.f32.mrf.mxu0
  %3653 = vdwg.mxu0
  %3654 = vmatprep.subr.bf16.mxu0 0
  %3655 = vmatpush1.bf16.msra.mxu0 %v2335
  %3656 = vmatprep.subr.bf16.mxu0 0
  %3657 = vmatpush1.bf16.msra.mxu0 %v2332
  %3658 = vmatprep.subr.bf16.mxu0 0
  %3659 = vmatpush1.bf16.msra.mxu0 %v2329
  %3660 = vmatprep.subr.bf16.mxu0 0
  %3661 = vmatpush1.bf16.msra.mxu0 %v2326
  %3662 = vmatprep.subr.bf16.mxu0 0
  %3663 = vmatpush1.bf16.msra.mxu0 %v2323
  %3664 = vmatprep.subr.bf16.mxu0 0
  %3665 = vmatpush1.bf16.msra.mxu0 %v2320
  %3666 = vmatprep.subr.bf16.mxu0 0
  %3667 = vmatpush1.bf16.msra.mxu0 %v2317
  %3668 = vmatprep.subr.bf16.mxu0 0
  %3669 = vmatpush1.bf16.msra.mxu0 %v2314
  %3670 = vmatprep.subr.bf16.mxu0 0
  %3671 = vmatpush2.bf16.msra.mxu0 %v2359
  %3672 = vmatprep.subr.bf16.mxu0 0
  %3673 = vmatpush2.bf16.msra.mxu0 %v2356
  %3674 = vmatprep.subr.bf16.mxu0 0
  %3675 = vmatpush2.bf16.msra.mxu0 %v2353
  %3676 = vmatprep.subr.bf16.mxu0 0
  %3677 = vmatpush2.bf16.msra.mxu0 %v2350
  %3678 = vmatprep.subr.bf16.mxu0 0
  %3679 = vmatpush2.bf16.msra.mxu0 %v2347
  %3680 = vmatprep.subr.bf16.mxu0 0
  %3681 = vmatpush2.bf16.msra.mxu0 %v2344
  %3682 = vmatprep.subr.bf16.mxu0 0
  %3683 = vmatpush2.bf16.msra.mxu0 %v2341
  %3684 = vmatprep.subr.bf16.mxu0 0
  %3685 = vmatpush2.bf16.msra.mxu0 %v2338
  %3686 = vmatprep.mubr.bf16.mxu0 %v755
  %3687 = vmatmul.mubr.bf16.gmra.mxu0 %v754
  %v3688 = vpop.f32.mrf.mxu0
  %v3689 = vadd.f32 %v3640, %v3688
  %v3690 = vpop.f32.mrf.mxu0
  %v3691 = vpop.f32.mrf.mxu0
  %v3692 = vadd.f32 %v3643, %v3691
  %v3693 = vpop.f32.mrf.mxu0
  %3694 = vmatprep.mubr.bf16.mxu0 %v773
  %3695 = vmatmul.mubr.bf16.gmra.mxu0 %v772
  %v3696 = vpop.f32.mrf.mxu0
  %v3697 = vadd.f32 %v3648, %v3696
  %v3698 = vpop.f32.mrf.mxu0
  %v3699 = vpop.f32.mrf.mxu0
  %v3700 = vadd.f32 %v3651, %v3699
  %v3701 = vpop.f32.mrf.mxu0
  %3702 = vdwg.mxu0
  %3703 = vmatprep.subr.bf16.mxu0 0
  %3704 = vmatpush1.bf16.msra.mxu0 %v2383
  %3705 = vmatprep.subr.bf16.mxu0 0
  %3706 = vmatpush1.bf16.msra.mxu0 %v2380
  %3707 = vmatprep.subr.bf16.mxu0 0
  %3708 = vmatpush1.bf16.msra.mxu0 %v2377
  %3709 = vmatprep.subr.bf16.mxu0 0
  %3710 = vmatpush1.bf16.msra.mxu0 %v2374
  %3711 = vmatprep.subr.bf16.mxu0 0
  %3712 = vmatpush1.bf16.msra.mxu0 %v2371
  %3713 = vmatprep.subr.bf16.mxu0 0
  %3714 = vmatpush1.bf16.msra.mxu0 %v2368
  %3715 = vmatprep.subr.bf16.mxu0 0
  %3716 = vmatpush1.bf16.msra.mxu0 %v2365
  %3717 = vmatprep.subr.bf16.mxu0 0
  %3718 = vmatpush1.bf16.msra.mxu0 %v2362
  %3719 = vmatprep.subr.bf16.mxu0 0
  %3720 = vmatpush2.bf16.msra.mxu0 %v2407
  %3721 = vmatprep.subr.bf16.mxu0 0
  %3722 = vmatpush2.bf16.msra.mxu0 %v2404
  %3723 = vmatprep.subr.bf16.mxu0 0
  %3724 = vmatpush2.bf16.msra.mxu0 %v2401
  %3725 = vmatprep.subr.bf16.mxu0 0
  %3726 = vmatpush2.bf16.msra.mxu0 %v2398
  %3727 = vmatprep.subr.bf16.mxu0 0
  %3728 = vmatpush2.bf16.msra.mxu0 %v2395
  %3729 = vmatprep.subr.bf16.mxu0 0
  %3730 = vmatpush2.bf16.msra.mxu0 %v2392
  %3731 = vmatprep.subr.bf16.mxu0 0
  %3732 = vmatpush2.bf16.msra.mxu0 %v2389
  %3733 = vmatprep.subr.bf16.mxu0 0
  %3734 = vmatpush2.bf16.msra.mxu0 %v2386
  %3735 = vmatprep.mubr.bf16.mxu0 %v757
  %3736 = vmatmul.mubr.bf16.gmra.mxu0 %v756
  %v3737 = vpop.f32.mrf.mxu0
  %v3738 = vadd.f32 %v3689, %v3737
  %v3739 = vpop.f32.mrf.mxu0
  %v3740 = vpop.f32.mrf.mxu0
  %v3741 = vadd.f32 %v3692, %v3740
  %v3742 = vpop.f32.mrf.mxu0
  %3743 = vmatprep.mubr.bf16.mxu0 %v775
  %3744 = vmatmul.mubr.bf16.gmra.mxu0 %v774
  %v3745 = vpop.f32.mrf.mxu0
  %v3746 = vadd.f32 %v3697, %v3745
  %v3747 = vpop.f32.mrf.mxu0
  %v3748 = vpop.f32.mrf.mxu0
  %v3749 = vadd.f32 %v3700, %v3748
  %v3750 = vpop.f32.mrf.mxu0
  %3751 = vdwg.mxu0
  %3752 = vmatprep.subr.bf16.mxu0 0
  %3753 = vmatpush1.bf16.msra.mxu0 %v2431
  %3754 = vmatprep.subr.bf16.mxu0 0
  %3755 = vmatpush1.bf16.msra.mxu0 %v2428
  %3756 = vmatprep.subr.bf16.mxu0 0
  %3757 = vmatpush1.bf16.msra.mxu0 %v2425
  %3758 = vmatprep.subr.bf16.mxu0 0
  %3759 = vmatpush1.bf16.msra.mxu0 %v2422
  %3760 = vmatprep.subr.bf16.mxu0 0
  %3761 = vmatpush1.bf16.msra.mxu0 %v2419
  %3762 = vmatprep.subr.bf16.mxu0 0
  %3763 = vmatpush1.bf16.msra.mxu0 %v2416
  %3764 = vmatprep.subr.bf16.mxu0 0
  %3765 = vmatpush1.bf16.msra.mxu0 %v2413
  %3766 = vmatprep.subr.bf16.mxu0 0
  %3767 = vmatpush1.bf16.msra.mxu0 %v2410
  %3768 = vmatprep.subr.bf16.mxu0 0
  %3769 = vmatpush2.bf16.msra.mxu0 %v2455
  %3770 = vmatprep.subr.bf16.mxu0 0
  %3771 = vmatpush2.bf16.msra.mxu0 %v2452
  %3772 = vmatprep.subr.bf16.mxu0 0
  %3773 = vmatpush2.bf16.msra.mxu0 %v2449
  %3774 = vmatprep.subr.bf16.mxu0 0
  %3775 = vmatpush2.bf16.msra.mxu0 %v2446
  %3776 = vmatprep.subr.bf16.mxu0 0
  %3777 = vmatpush2.bf16.msra.mxu0 %v2443
  %3778 = vmatprep.subr.bf16.mxu0 0
  %3779 = vmatpush2.bf16.msra.mxu0 %v2440
  %3780 = vmatprep.subr.bf16.mxu0 0
  %3781 = vmatpush2.bf16.msra.mxu0 %v2437
  %3782 = vmatprep.subr.bf16.mxu0 0
  %3783 = vmatpush2.bf16.msra.mxu0 %v2434
  %3784 = vmatprep.mubr.bf16.mxu0 %v759
  %3785 = vmatmul.mubr.bf16.gmra.mxu0 %v758
  %v3786 = vpop.f32.mrf.mxu0
  %v3787 = vadd.f32 %v3738, %v3786
  %v3788 = vpop.f32.mrf.mxu0
  %v3789 = vpop.f32.mrf.mxu0
  %v3790 = vadd.f32 %v3741, %v3789
  %v3791 = vpop.f32.mrf.mxu0
  %3792 = vmatprep.mubr.bf16.mxu0 %v777
  %3793 = vmatmul.mubr.bf16.gmra.mxu0 %v776
  %v3794 = vpop.f32.mrf.mxu0
  %v3795 = vadd.f32 %v3746, %v3794
  %v3796 = vpop.f32.mrf.mxu0
  %v3797 = vpop.f32.mrf.mxu0
  %v3798 = vadd.f32 %v3749, %v3797
  %v3799 = vpop.f32.mrf.mxu0
  %3800 = vdwg.mxu0
  %3801 = vmatprep.subr.bf16.mxu0 0
  %3802 = vmatpush1.bf16.msra.mxu0 %v2479
  %3803 = vmatprep.subr.bf16.mxu0 0
  %3804 = vmatpush1.bf16.msra.mxu0 %v2476
  %3805 = vmatprep.subr.bf16.mxu0 0
  %3806 = vmatpush1.bf16.msra.mxu0 %v2473
  %3807 = vmatprep.subr.bf16.mxu0 0
  %3808 = vmatpush1.bf16.msra.mxu0 %v2470
  %3809 = vmatprep.subr.bf16.mxu0 0
  %3810 = vmatpush1.bf16.msra.mxu0 %v2467
  %3811 = vmatprep.subr.bf16.mxu0 0
  %3812 = vmatpush1.bf16.msra.mxu0 %v2464
  %3813 = vmatprep.subr.bf16.mxu0 0
  %3814 = vmatpush1.bf16.msra.mxu0 %v2461
  %3815 = vmatprep.subr.bf16.mxu0 0
  %3816 = vmatpush1.bf16.msra.mxu0 %v2458
  %3817 = vmatprep.subr.bf16.mxu0 0
  %3818 = vmatpush2.bf16.msra.mxu0 %v2503
  %3819 = vmatprep.subr.bf16.mxu0 0
  %3820 = vmatpush2.bf16.msra.mxu0 %v2500
  %3821 = vmatprep.subr.bf16.mxu0 0
  %3822 = vmatpush2.bf16.msra.mxu0 %v2497
  %3823 = vmatprep.subr.bf16.mxu0 0
  %3824 = vmatpush2.bf16.msra.mxu0 %v2494
  %3825 = vmatprep.subr.bf16.mxu0 0
  %3826 = vmatpush2.bf16.msra.mxu0 %v2491
  %3827 = vmatprep.subr.bf16.mxu0 0
  %3828 = vmatpush2.bf16.msra.mxu0 %v2488
  %3829 = vmatprep.subr.bf16.mxu0 0
  %3830 = vmatpush2.bf16.msra.mxu0 %v2485
  %3831 = vmatprep.subr.bf16.mxu0 0
  %3832 = vmatpush2.bf16.msra.mxu0 %v2482
  %3833 = vmatprep.mubr.bf16.mxu0 %v761
  %3834 = vmatmul.mubr.bf16.gmra.mxu0 %v760
  %v3835 = vpop.f32.mrf.mxu0
  %v3836 = vadd.f32 %v3787, %v3835
  %v3837 = vpop.f32.mrf.mxu0
  %v3838 = vpop.f32.mrf.mxu0
  %v3839 = vadd.f32 %v3790, %v3838
  %v3840 = vpop.f32.mrf.mxu0
  %3841 = vmatprep.mubr.bf16.mxu0 %v779
  %3842 = vmatmul.mubr.bf16.gmra.mxu0 %v778
  %v3843 = vpop.f32.mrf.mxu0
  %v3844 = vadd.f32 %v3795, %v3843
  %v3845 = vpop.f32.mrf.mxu0
  %v3846 = vpop.f32.mrf.mxu0
  %v3847 = vadd.f32 %v3798, %v3846
  %v3848 = vpop.f32.mrf.mxu0
  %3849 = vdwg.mxu0
  %3850 = vmatprep.subr.bf16.mxu0 0
  %3851 = vmatpush1.bf16.msra.mxu0 %v2527
  %3852 = vmatprep.subr.bf16.mxu0 0
  %3853 = vmatpush1.bf16.msra.mxu0 %v2524
  %3854 = vmatprep.subr.bf16.mxu0 0
  %3855 = vmatpush1.bf16.msra.mxu0 %v2521
  %3856 = vmatprep.subr.bf16.mxu0 0
  %3857 = vmatpush1.bf16.msra.mxu0 %v2518
  %3858 = vmatprep.subr.bf16.mxu0 0
  %3859 = vmatpush1.bf16.msra.mxu0 %v2515
  %3860 = vmatprep.subr.bf16.mxu0 0
  %3861 = vmatpush1.bf16.msra.mxu0 %v2512
  %3862 = vmatprep.subr.bf16.mxu0 0
  %3863 = vmatpush1.bf16.msra.mxu0 %v2509
  %3864 = vmatprep.subr.bf16.mxu0 0
  %3865 = vmatpush1.bf16.msra.mxu0 %v2506
  %3866 = vmatprep.subr.bf16.mxu0 0
  %3867 = vmatpush2.bf16.msra.mxu0 %v2551
  %3868 = vmatprep.subr.bf16.mxu0 0
  %3869 = vmatpush2.bf16.msra.mxu0 %v2548
  %3870 = vmatprep.subr.bf16.mxu0 0
  %3871 = vmatpush2.bf16.msra.mxu0 %v2545
  %3872 = vmatprep.subr.bf16.mxu0 0
  %3873 = vmatpush2.bf16.msra.mxu0 %v2542
  %3874 = vmatprep.subr.bf16.mxu0 0
  %3875 = vmatpush2.bf16.msra.mxu0 %v2539
  %3876 = vmatprep.subr.bf16.mxu0 0
  %3877 = vmatpush2.bf16.msra.mxu0 %v2536
  %3878 = vmatprep.subr.bf16.mxu0 0
  %3879 = vmatpush2.bf16.msra.mxu0 %v2533
  %3880 = vmatprep.subr.bf16.mxu0 0
  %3881 = vmatpush2.bf16.msra.mxu0 %v2530
  %3882 = vmatprep.mubr.bf16.mxu0 %v763
  %3883 = vmatmul.mubr.bf16.gmra.mxu0 %v762
  %v3884 = vpop.f32.mrf.mxu0
  %v3885 = vadd.f32 %v3836, %v3884
  %v3886 = vpop.f32.mrf.mxu0
  %v3887 = vpop.f32.mrf.mxu0
  %v3888 = vadd.f32 %v3839, %v3887
  %v3889 = vpop.f32.mrf.mxu0
  %3890 = vmatprep.mubr.bf16.mxu0 %v781
  %3891 = vmatmul.mubr.bf16.gmra.mxu0 %v780
  %v3892 = vpop.f32.mrf.mxu0
  %v3893 = vadd.f32 %v3844, %v3892
  %v3894 = vpop.f32.mrf.mxu0
  %v3895 = vpop.f32.mrf.mxu0
  %v3896 = vadd.f32 %v3847, %v3895
  %v3897 = vpop.f32.mrf.mxu0
  %3898 = vdwg.mxu0
  %3899 = vmatprep.subr.bf16.mxu0 0
  %3900 = vmatpush1.bf16.msra.mxu0 %v2575
  %3901 = vmatprep.subr.bf16.mxu0 0
  %3902 = vmatpush1.bf16.msra.mxu0 %v2572
  %3903 = vmatprep.subr.bf16.mxu0 0
  %3904 = vmatpush1.bf16.msra.mxu0 %v2569
  %3905 = vmatprep.subr.bf16.mxu0 0
  %3906 = vmatpush1.bf16.msra.mxu0 %v2566
  %3907 = vmatprep.subr.bf16.mxu0 0
  %3908 = vmatpush1.bf16.msra.mxu0 %v2563
  %3909 = vmatprep.subr.bf16.mxu0 0
  %3910 = vmatpush1.bf16.msra.mxu0 %v2560
  %3911 = vmatprep.subr.bf16.mxu0 0
  %3912 = vmatpush1.bf16.msra.mxu0 %v2557
  %3913 = vmatprep.subr.bf16.mxu0 0
  %3914 = vmatpush1.bf16.msra.mxu0 %v2554
  %3915 = vmatprep.subr.bf16.mxu0 0
  %3916 = vmatpush2.bf16.msra.mxu0 %v2599
  %3917 = vmatprep.subr.bf16.mxu0 0
  %3918 = vmatpush2.bf16.msra.mxu0 %v2596
  %3919 = vmatprep.subr.bf16.mxu0 0
  %3920 = vmatpush2.bf16.msra.mxu0 %v2593
  %3921 = vmatprep.subr.bf16.mxu0 0
  %3922 = vmatpush2.bf16.msra.mxu0 %v2590
  %3923 = vmatprep.subr.bf16.mxu0 0
  %3924 = vmatpush2.bf16.msra.mxu0 %v2587
  %3925 = vmatprep.subr.bf16.mxu0 0
  %3926 = vmatpush2.bf16.msra.mxu0 %v2584
  %3927 = vmatprep.subr.bf16.mxu0 0
  %3928 = vmatpush2.bf16.msra.mxu0 %v2581
  %3929 = vmatprep.subr.bf16.mxu0 0
  %3930 = vmatpush2.bf16.msra.mxu0 %v2578
  %3931 = vmatprep.mubr.bf16.mxu0 %v765
  %3932 = vmatmul.mubr.bf16.gmra.mxu0 %v764
  %v3933 = vpop.f32.mrf.mxu0
  %v3934 = vadd.f32 %v3885, %v3933
  %v3935 = vpop.f32.mrf.mxu0
  %v3936 = vpop.f32.mrf.mxu0
  %v3937 = vadd.f32 %v3888, %v3936
  %v3938 = vpop.f32.mrf.mxu0
  %3939 = vmatprep.mubr.bf16.mxu0 %v783
  %3940 = vmatmul.mubr.bf16.gmra.mxu0 %v782
  %v3941 = vpop.f32.mrf.mxu0
  %v3942 = vadd.f32 %v3893, %v3941
  %v3943 = vpop.f32.mrf.mxu0
  %v3944 = vpop.f32.mrf.mxu0
  %v3945 = vadd.f32 %v3896, %v3944
  %v3946 = vpop.f32.mrf.mxu0
  %3947 = vdwg.mxu0
  %3948 = vmatprep.subr.bf16.mxu0 0
  %3949 = vmatpush1.bf16.msra.mxu0 %v2623
  %3950 = vmatprep.subr.bf16.mxu0 0
  %3951 = vmatpush1.bf16.msra.mxu0 %v2620
  %3952 = vmatprep.subr.bf16.mxu0 0
  %3953 = vmatpush1.bf16.msra.mxu0 %v2617
  %3954 = vmatprep.subr.bf16.mxu0 0
  %3955 = vmatpush1.bf16.msra.mxu0 %v2614
  %3956 = vmatprep.subr.bf16.mxu0 0
  %3957 = vmatpush1.bf16.msra.mxu0 %v2611
  %3958 = vmatprep.subr.bf16.mxu0 0
  %3959 = vmatpush1.bf16.msra.mxu0 %v2608
  %3960 = vmatprep.subr.bf16.mxu0 0
  %3961 = vmatpush1.bf16.msra.mxu0 %v2605
  %3962 = vmatprep.subr.bf16.mxu0 0
  %3963 = vmatpush1.bf16.msra.mxu0 %v2602
  %3964 = vmatprep.subr.bf16.mxu0 0
  %3965 = vmatpush2.bf16.msra.mxu0 %v2647
  %3966 = vmatprep.subr.bf16.mxu0 0
  %3967 = vmatpush2.bf16.msra.mxu0 %v2644
  %3968 = vmatprep.subr.bf16.mxu0 0
  %3969 = vmatpush2.bf16.msra.mxu0 %v2641
  %3970 = vmatprep.subr.bf16.mxu0 0
  %3971 = vmatpush2.bf16.msra.mxu0 %v2638
  %3972 = vmatprep.subr.bf16.mxu0 0
  %3973 = vmatpush2.bf16.msra.mxu0 %v2635
  %3974 = vmatprep.subr.bf16.mxu0 0
  %3975 = vmatpush2.bf16.msra.mxu0 %v2632
  %3976 = vmatprep.subr.bf16.mxu0 0
  %3977 = vmatpush2.bf16.msra.mxu0 %v2629
  %3978 = vmatprep.subr.bf16.mxu0 0
  %3979 = vmatpush2.bf16.msra.mxu0 %v2626
  %3980 = vmatprep.mubr.bf16.mxu0 %v767
  %3981 = vmatmul.mubr.bf16.gmra.mxu0 %v766
  %v3982 = vpop.f32.mrf.mxu0
  %v3983 = vadd.f32 %v3934, %v3982
  %v3984 = vpop.f32.mrf.mxu0
  %v3985 = vpop.f32.mrf.mxu0
  %v3986 = vadd.f32 %v3937, %v3985
  %v3987 = vpop.f32.mrf.mxu0
  %3988 = vmatprep.mubr.bf16.mxu0 %v785
  %3989 = vmatmul.mubr.bf16.gmra.mxu0 %v784
  %v3990 = vpop.f32.mrf.mxu0
  %v3991 = vadd.f32 %v3942, %v3990
  %v3992 = vpop.f32.mrf.mxu0
  %v3993 = vpop.f32.mrf.mxu0
  %v3994 = vadd.f32 %v3945, %v3993
  %v3995 = vpop.f32.mrf.mxu0
  %3996 = vdwg.mxu0
  %3997 = vmatprep.subr.bf16.mxu0 0
  %3998 = vmatpush1.bf16.msra.mxu0 %v2671
  %3999 = vmatprep.subr.bf16.mxu0 0
  %4000 = vmatpush1.bf16.msra.mxu0 %v2668
  %4001 = vmatprep.subr.bf16.mxu0 0
  %4002 = vmatpush1.bf16.msra.mxu0 %v2665
  %4003 = vmatprep.subr.bf16.mxu0 0
  %4004 = vmatpush1.bf16.msra.mxu0 %v2662
  %4005 = vmatprep.subr.bf16.mxu0 0
  %4006 = vmatpush1.bf16.msra.mxu0 %v2659
  %4007 = vmatprep.subr.bf16.mxu0 0
  %4008 = vmatpush1.bf16.msra.mxu0 %v2656
  %4009 = vmatprep.subr.bf16.mxu0 0
  %4010 = vmatpush1.bf16.msra.mxu0 %v2653
  %4011 = vmatprep.subr.bf16.mxu0 0
  %4012 = vmatpush1.bf16.msra.mxu0 %v2650
  %4013 = vmatprep.subr.bf16.mxu0 0
  %4014 = vmatpush2.bf16.msra.mxu0 %v2695
  %4015 = vmatprep.subr.bf16.mxu0 0
  %4016 = vmatpush2.bf16.msra.mxu0 %v2692
  %4017 = vmatprep.subr.bf16.mxu0 0
  %4018 = vmatpush2.bf16.msra.mxu0 %v2689
  %4019 = vmatprep.subr.bf16.mxu0 0
  %4020 = vmatpush2.bf16.msra.mxu0 %v2686
  %4021 = vmatprep.subr.bf16.mxu0 0
  %4022 = vmatpush2.bf16.msra.mxu0 %v2683
  %4023 = vmatprep.subr.bf16.mxu0 0
  %4024 = vmatpush2.bf16.msra.mxu0 %v2680
  %4025 = vmatprep.subr.bf16.mxu0 0
  %4026 = vmatpush2.bf16.msra.mxu0 %v2677
  %4027 = vmatprep.subr.bf16.mxu0 0
  %4028 = vmatpush2.bf16.msra.mxu0 %v2674
  %4029 = vmatprep.mubr.bf16.mxu0 %v769
  %4030 = vmatmul.mubr.bf16.gmra.mxu0 %v768
  %v4031 = vpop.f32.mrf.mxu0
  %v4032 = vadd.f32 %v3983, %v4031
  %v4033 = vpop.f32.mrf.mxu0
  %v4034 = vpop.f32.mrf.mxu0
  %v4035 = vadd.f32 %v3986, %v4034
  %v4036 = vpop.f32.mrf.mxu0
  %4037 = vmatprep.mubr.bf16.mxu0 %v787
  %4038 = vmatmul.mubr.bf16.gmra.mxu0 %v786
  %v4039 = vpop.f32.mrf.mxu0
  %v4040 = vadd.f32 %v3991, %v4039
  %v4041 = vpop.f32.mrf.mxu0
  %v4042 = vpop.f32.mrf.mxu0
  %v4043 = vadd.f32 %v3994, %v4042
  %v4044 = vpop.f32.mrf.mxu0
  %4045 = vdwg.mxu0
  %v4046 = vmax.f32 %v3587, 0.0
  %v4047 = vmax.f32 %v3589, 0.0
  %v4048 = vmax.f32 %v4032, 0.0
  %v4049 = vmax.f32 %v3591, 0.0
  %v4050 = vmax.f32 %v3593, 0.0
  %v4051 = vmax.f32 %v4035, 0.0
  %v4052 = vmax.f32 %v3597, 0.0
  %v4053 = vmax.f32 %v3599, 0.0
  %v4054 = vmax.f32 %v4040, 0.0
  %v4055 = vmax.f32 %v3601, 0.0
  %v4056 = vmax.f32 %v3603, 0.0
  %v4057 = vmax.f32 %v4043, 0.0
  %4058 = vst [vmem:[%s3] sm:$0xff] %v4046
  %4059 = vst [vmem:[%s3 + $0x8] sm:$0xff] %v4047
  %4060 = vst [vmem:[%s3 + $0x10] sm:$0xff] %v4048
  %4061 = vst [vmem:[%s3 + $0x18] sm:$0xff] %v4049
  %4062 = vst [vmem:[%s3 + $0x20] sm:$0xff] %v4050
  %4063 = vst [vmem:[%s3 + $0x28] sm:$0xff] %v4051
  %4064 = vst [vmem:[%s3 + $0x30] sm:$0xff] %v4052
  %4065 = vst [vmem:[%s3 + $0x38] sm:$0xff] %v4053
  %4066 = vst [vmem:[%s3 + $0x40] sm:$0xff] %v4054
  %4067 = vst [vmem:[%s3 + $0x48] sm:$0xff] %v4055
  %4068 = vst [vmem:[%s3 + $0x50] sm:$0xff] %v4056
  %4069 = vst [vmem:[%s3 + $0x58] sm:$0xff] %v4057
  // Predicated region
  $region14: #{mixed_7a_forward.5} parent=0 // pred_check
    _
  $region15: #{mixed_7a_forward.5} parent=0 // pred_check_branch
    %4071 = sbr.rel (0) target = $region17
  $region16: #{mixed_7a_forward.5} parent=0 // pred_region
    _
  $region17: #{mixed_7a_forward.5} parent=0 // pred_fallthru
    _
  // Predicated region
  $region18: #{mixed_7a_forward.5} parent=0 // pred_check
    _
  $region19: #{mixed_7a_forward.5} parent=0 // pred_check_branch
    %4073 = sbr.rel (0) target = $region21
  $region20: #{mixed_7a_forward.5} parent=0 // pred_region
    _
  $region21: #{mixed_7a_forward.5} parent=0 // pred_fallthru
    _

// kernel: squeeze.2
$region0: #{squeeze.2}
  %s0 = inlined_call_operand.vmem [shape: f32[1,32,256], index: 0, kind: input, shape index: {}]
  %s1 = inlined_call_operand.vmem [shape: f32[2,4,4,256], index: 1, kind: output, shape index: {}]
  $region1: #{squeeze.2} parent=0
    #allocation0 [shape = 'u8[65536]{0}', space=vmem, size = 0x10000, scoped, tag = 'scoped mem for output reshape']
    %v2 = vld [vmem:[%s0] sm:$0xff]
    %3 = vst [vmem:[#allocation0] sm:$0xf] %v2
    %s4 = scalar_lea.vmem [#allocation0], 12
    %5 = vst [vmem:[%s4] sm:$0xf0] %v2
    %s6 = scalar_lea.vmem %s0, 8
    %v7 = vld [vmem:[%s6] sm:$0xff]
    %s8 = scalar_lea.vmem [#allocation0], 8
    %9 = vst [vmem:[%s8] sm:$0xf] %v7
    %s10 = scalar_lea.vmem [#allocation0], 20
    %11 = vst [vmem:[%s10] sm:$0xf0] %v7
    %s12 = scalar_lea.vmem %s0, 16
    %v13 = vld [vmem:[%s12] sm:$0xff]
    %s14 = scalar_lea.vmem [#allocation0], 32
    %15 = vst [vmem:[%s14] sm:$0xf] %v13
    %s16 = scalar_lea.vmem [#allocation0], 44
    %17 = vst [vmem:[%s16] sm:$0xf0] %v13
    %s18 = scalar_lea.vmem %s0, 24
    %v19 = vld [vmem:[%s18] sm:$0xff]
    %s20 = scalar_lea.vmem [#allocation0], 40
    %21 = vst [vmem:[%s20] sm:$0xf] %v19
    %s22 = scalar_lea.vmem [#allocation0], 52
    %23 = vst [vmem:[%s22] sm:$0xf0] %v19
    %s24 = scalar_lea.vmem %s0, 32
    %v25 = vld [vmem:[%s24] sm:$0xff]
    %s26 = scalar_lea.vmem [#allocation0], 64
    %27 = vst [vmem:[%s26] sm:$0xf] %v25
    %s28 = scalar_lea.vmem [#allocation0], 76
    %29 = vst [vmem:[%s28] sm:$0xf0] %v25
    %s30 = scalar_lea.vmem %s0, 40
    %v31 = vld [vmem:[%s30] sm:$0xff]
    %s32 = scalar_lea.vmem [#allocation0], 72
    %33 = vst [vmem:[%s32] sm:$0xf] %v31
    %s34 = scalar_lea.vmem [#allocation0], 84
    %35 = vst [vmem:[%s34] sm:$0xf0] %v31
    %s36 = scalar_lea.vmem %s0, 48
    %v37 = vld [vmem:[%s36] sm:$0xff]
    %s38 = scalar_lea.vmem [#allocation0], 96
    %39 = vst [vmem:[%s38] sm:$0xf] %v37
    %s40 = scalar_lea.vmem [#allocation0], 108
    %41 = vst [vmem:[%s40] sm:$0xf0] %v37
    %s42 = scalar_lea.vmem %s0, 56
    %v43 = vld [vmem:[%s42] sm:$0xff]
    %s44 = scalar_lea.vmem [#allocation0], 104
    %45 = vst [vmem:[%s44] sm:$0xf] %v43
    %s46 = scalar_lea.vmem [#allocation0], 116
    %47 = vst [vmem:[%s46] sm:$0xf0] %v43
    %s49 = sshll.u32 1, 4
    %s50 = ssub.s32 %s49, 1
    %v52 = vld [vmem:[#allocation0] sm:%s50]
    %s53 = sshll.u32 1, 4
    %s54 = ssub.s32 %s53, 1
    %55 = vst [vmem:[%s1] sm:%s54] %v52
    %s56 = scalar_lea.vmem [#allocation0], 8
    %v57 = vld [vmem:[%s56] sm:%s50]
    %s58 = sshll.u32 1, 4
    %s59 = ssub.s32 %s58, 1
    %s60 = scalar_lea.vmem %s1, 4
    %61 = vst [vmem:[%s60] sm:%s59] %v57
    %s62 = scalar_lea.vmem [#allocation0], 16
    %v63 = vld [vmem:[%s62] sm:%s50]
    %s64 = sshll.u32 1, 4
    %s65 = ssub.s32 %s64, 1
    %s66 = smul.addr 4, 2
    %s67 = scalar_lea.vmem %s1, %s66
    %68 = vst [vmem:[%s67] sm:%s65] %v63
    %s69 = scalar_lea.vmem [#allocation0], 24
    %v70 = vld [vmem:[%s69] sm:%s50]
    %s71 = sshll.u32 1, 4
    %s72 = ssub.s32 %s71, 1
    %s73 = smul.addr 4, 3
    %s74 = scalar_lea.vmem %s1, %s73
    %75 = vst [vmem:[%s74] sm:%s72] %v70
    %s76 = scalar_lea.vmem [#allocation0], 32
    %v77 = vld [vmem:[%s76] sm:%s50]
    %s78 = sshll.u32 1, 4
    %s79 = ssub.s32 %s78, 1
    %s80 = smul.addr 4, 4
    %s81 = scalar_lea.vmem %s1, %s80
    %82 = vst [vmem:[%s81] sm:%s79] %v77
    %s83 = scalar_lea.vmem [#allocation0], 40
    %v84 = vld [vmem:[%s83] sm:%s50]
    %s85 = sshll.u32 1, 4
    %s86 = ssub.s32 %s85, 1
    %s87 = smul.addr 4, 5
    %s88 = scalar_lea.vmem %s1, %s87
    %89 = vst [vmem:[%s88] sm:%s86] %v84
    %s90 = scalar_lea.vmem [#allocation0], 48
    %v91 = vld [vmem:[%s90] sm:%s50]
    %s92 = sshll.u32 1, 4
    %s93 = ssub.s32 %s92, 1
    %s94 = smul.addr 4, 6
    %s95 = scalar_lea.vmem %s1, %s94
    %96 = vst [vmem:[%s95] sm:%s93] %v91
    %s97 = scalar_lea.vmem [#allocation0], 56
    %v98 = vld [vmem:[%s97] sm:%s50]
    %s99 = sshll.u32 1, 4
    %s100 = ssub.s32 %s99, 1
    %s101 = smul.addr 4, 7
    %s102 = scalar_lea.vmem %s1, %s101
    %103 = vst [vmem:[%s102] sm:%s100] %v98
    %s104 = scalar_lea.vmem [#allocation0], 64
    %v105 = vld [vmem:[%s104] sm:%s50]
    %s106 = sshll.u32 1, 4
    %s107 = ssub.s32 %s106, 1
    %s108 = smul.addr 4, 8
    %s109 = scalar_lea.vmem %s1, %s108
    %110 = vst [vmem:[%s109] sm:%s107] %v105
    %s111 = scalar_lea.vmem [#allocation0], 72
    %v112 = vld [vmem:[%s111] sm:%s50]
    %s113 = sshll.u32 1, 4
    %s114 = ssub.s32 %s113, 1
    %s115 = smul.addr 4, 9
    %s116 = scalar_lea.vmem %s1, %s115
    %117 = vst [vmem:[%s116] sm:%s114] %v112
    %s118 = scalar_lea.vmem [#allocation0], 80
    %v119 = vld [vmem:[%s118] sm:%s50]
    %s120 = sshll.u32 1, 4
    %s121 = ssub.s32 %s120, 1
    %s122 = smul.addr 4, 10
    %s123 = scalar_lea.vmem %s1, %s122
    %124 = vst [vmem:[%s123] sm:%s121] %v119
    %s125 = scalar_lea.vmem [#allocation0], 88
    %v126 = vld [vmem:[%s125] sm:%s50]
    %s127 = sshll.u32 1, 4
    %s128 = ssub.s32 %s127, 1
    %s129 = smul.addr 4, 11
    %s130 = scalar_lea.vmem %s1, %s129
    %131 = vst [vmem:[%s130] sm:%s128] %v126
    %s132 = scalar_lea.vmem [#allocation0], 96
    %v133 = vld [vmem:[%s132] sm:%s50]
    %s134 = sshll.u32 1, 4
    %s135 = ssub.s32 %s134, 1
    %s136 = smul.addr 4, 12
    %s137 = scalar_lea.vmem %s1, %s136
    %138 = vst [vmem:[%s137] sm:%s135] %v133
    %s139 = scalar_lea.vmem [#allocation0], 104
    %v140 = vld [vmem:[%s139] sm:%s50]
    %s141 = sshll.u32 1, 4
    %s142 = ssub.s32 %s141, 1
    %s143 = smul.addr 4, 13
    %s144 = scalar_lea.vmem %s1, %s143
    %145 = vst [vmem:[%s144] sm:%s142] %v140
    %s146 = scalar_lea.vmem [#allocation0], 112
    %v147 = vld [vmem:[%s146] sm:%s50]
    %s148 = sshll.u32 1, 4
    %s149 = ssub.s32 %s148, 1
    %s150 = smul.addr 4, 14
    %s151 = scalar_lea.vmem %s1, %s150
    %152 = vst [vmem:[%s151] sm:%s149] %v147
    %s153 = scalar_lea.vmem [#allocation0], 120
    %v154 = vld [vmem:[%s153] sm:%s50]
    %s155 = sshll.u32 1, 4
    %s156 = ssub.s32 %s155, 1
    %s157 = smul.addr 4, 15
    %s158 = scalar_lea.vmem %s1, %s157
    %159 = vst [vmem:[%s158] sm:%s156] %v154

// kernel: mixed_7a_forward.6
$region0: #{mixed_7a_forward.6}
  #allocation0 [shape = 'u32[]', space=smem, size = 0x4, offset = 0x4, fixed_abs, tag = 'smem constant byte address 0x4 - core index']
  #allocation1 [shape = 'u32[144,128]{1,0:T(1,128)}', space=vmem, size = 0x12000, scoped, tag = 'internal scratch']
  %s0 = inlined_call_operand.vmem [shape: bf16[176,2304], index: 0, kind: input, shape index: {}]
  %s1 = inlined_call_operand.vmem [shape: bf16[2304,256], index: 1, kind: input, shape index: {}]
  %s2 = inlined_call_operand.vmem [shape: f32[1,256], index: 2, kind: input, shape index: {}]
  %s3 = inlined_call_operand.vmem [shape: bf16[176,256], index: 3, kind: output, shape index: {}]
  %s4 = sld [smem:[#allocation0]]
  $region45: #{mixed_7a_forward.6} parent=0
    _
  %s6 = ssub.s32 1, %s4
  %s7 = scalar_select 0, %s6, %s4
  loop: start=0, step=1, limit=4
  $region2: #{mixed_7a_forward.6} parent=0 // loop_pre_header
    _
  $region3: #{mixed_7a_forward.6} parent=0 // loop_header
    %s9 = sphi 0, %s13
    %p10 = scmp.ge.s32.totalorder %s9, 4
    %s19 = sphi 0, %s21
    %s22 = sphi 0, %s19
    %s23 = sphi 0, %s22
    %s39 = sphi 0, %s23
    %s43 = sphi 0, %s43
    %s45 = sphi 0, %s43
    %s46 = sphi 0, %s45
    %s60 = sphi 0, %s46
    %s64 = sphi 0, %s64
    %s66 = sphi 0, %s64
    %s67 = sphi 0, %s66
    %s81 = sphi 0, %s67
    %s87 = sphi 0, %s89
    %s90 = sphi 0, %s87
    %s91 = sphi 0, %s90
    %s107 = sphi 0, %s91
  $region4: #{mixed_7a_forward.6} parent=0 // loop_header_branch
    %12 = sbr.rel (%p10) target = $region8
  $region5: #{mixed_7a_forward.6} parent=0 // loop_body
    %s14 = ssub.s32 %s9, 1
    %s15 = ssub.s32 %s9, 2
    %s16 = sadd.s32 %s9, 1
    %s17 = ssub.s32 %s9, %s16
    %p18 = scmp.eq.s32.totalorder %s17, 0
    %s20 = sadd.s32 %s19, 1
    %s21 = scalar_select %p18, %s19, %s20
    %p24 = pneg %p18
    %p25 = scmp.eq.s32.totalorder %s9, 1
    %p26 = por %p24, %p25
    %p27 = scmp.ne.s32.totalorder %s19, %s22
    %p28 = scmp.eq.s32.totalorder %s9, 0
    %p29 = por %p27, %p28
    %p30 = scmp.ne.s32.totalorder %s19, %s22
    %p31 = scmp.eq.s32.totalorder %s14, 1
    %p32 = por %p30, %p31
    %p33 = scmp.ne.s32.totalorder %s22, %s23
    %p34 = scmp.eq.s32.totalorder %s14, 0
    %p35 = por %p33, %p34
    %p36 = scmp.ne.s32.totalorder %s22, %s23
    %p37 = scmp.eq.s32.totalorder %s15, 1
    %p38 = por %p36, %p37
    %p40 = scmp.ne.s32.totalorder %s23, %s39
    %p41 = scmp.eq.s32.totalorder %s15, 0
    %p42 = por %p40, %p41
    %s44 = sadd.s32 %s43, 1
    %p47 = scmp.eq.s32.totalorder %s9, 1
    %p48 = scmp.ne.s32.totalorder %s43, %s45
    %p49 = scmp.eq.s32.totalorder %s9, 0
    %p50 = por %p48, %p49
    %p51 = scmp.ne.s32.totalorder %s43, %s45
    %p52 = scmp.eq.s32.totalorder %s14, 1
    %p53 = por %p51, %p52
    %p54 = scmp.ne.s32.totalorder %s45, %s46
    %p55 = scmp.eq.s32.totalorder %s14, 0
    %p56 = por %p54, %p55
    %p57 = scmp.ne.s32.totalorder %s45, %s46
    %p58 = scmp.eq.s32.totalorder %s15, 1
    %p59 = por %p57, %p58
    %p61 = scmp.ne.s32.totalorder %s46, %s60
    %p62 = scmp.eq.s32.totalorder %s15, 0
    %p63 = por %p61, %p62
    %s65 = sadd.s32 %s64, 1
    %p68 = scmp.eq.s32.totalorder %s9, 1
    %p69 = scmp.ne.s32.totalorder %s64, %s66
    %p70 = scmp.eq.s32.totalorder %s9, 0
    %p71 = por %p69, %p70
    %p72 = scmp.ne.s32.totalorder %s64, %s66
    %p73 = scmp.eq.s32.totalorder %s14, 1
    %p74 = por %p72, %p73
    %p75 = scmp.ne.s32.totalorder %s66, %s67
    %p76 = scmp.eq.s32.totalorder %s14, 0
    %p77 = por %p75, %p76
    %p78 = scmp.ne.s32.totalorder %s66, %s67
    %p79 = scmp.eq.s32.totalorder %s15, 1
    %p80 = por %p78, %p79
    %p82 = scmp.ne.s32.totalorder %s67, %s81
    %p83 = scmp.eq.s32.totalorder %s15, 0
    %p84 = por %p82, %p83
    %s85 = ssub.s32 %s9, %s16
    %p86 = scmp.eq.s32.totalorder %s85, 0
    %s88 = sadd.s32 %s87, 1
    %s89 = scalar_select %p86, %s87, %s88
    %p92 = pneg %p86
    %p93 = scmp.eq.s32.totalorder %s9, 1
    %p94 = por %p92, %p93
    %p95 = scmp.ne.s32.totalorder %s87, %s90
    %p96 = scmp.eq.s32.totalorder %s9, 0
    %p97 = por %p95, %p96
    %p98 = scmp.ne.s32.totalorder %s87, %s90
    %p99 = scmp.eq.s32.totalorder %s14, 1
    %p100 = por %p98, %p99
    %p101 = scmp.ne.s32.totalorder %s90, %s91
    %p102 = scmp.eq.s32.totalorder %s14, 0
    %p103 = por %p101, %p102
    %p104 = scmp.ne.s32.totalorder %s90, %s91
    %p105 = scmp.eq.s32.totalorder %s15, 1
    %p106 = por %p104, %p105
    %p108 = scmp.ne.s32.totalorder %s91, %s107
    %p109 = scmp.eq.s32.totalorder %s15, 0
    %p110 = por %p108, %p109
    %p111 = scmp.le.s32.totalorder 1, %s9
    %p112 = scmp.lt.s32.totalorder %s9, 3
    %p113 = pnand %p111, %p112
    %p114 = pneg %p113
    // Predicated region
    $region9: #{mixed_7a_forward.6} parent=5 // pred_check
      _
    $region10: #{mixed_7a_forward.6} parent=5 // pred_check_branch
      %116 = sbr.rel (%p113) target = $region12
    $region11: #{mixed_7a_forward.6} parent=5 // pred_region
      %s117 = ssub.s32 %s9, 1
      // Predicated region
      $region13: #{mixed_7a_forward.6} parent=11 // pred_check
        %p118 = pneg %p56
      $region14: #{mixed_7a_forward.6} parent=11 // pred_check_branch
        %120 = sbr.rel (%p118) target = $region16
      $region15: #{mixed_7a_forward.6} parent=11 // pred_region
        _
      $region16: #{mixed_7a_forward.6} parent=11 // pred_fallthru
        _
      // Predicated region
      $region17: #{mixed_7a_forward.6} parent=11 // pred_check
        %p121 = pneg %p77
      $region18: #{mixed_7a_forward.6} parent=11 // pred_check_branch
        %123 = sbr.rel (%p121) target = $region20
      $region19: #{mixed_7a_forward.6} parent=11 // pred_region
        _
      $region20: #{mixed_7a_forward.6} parent=11 // pred_fallthru
        _
    $region12: #{mixed_7a_forward.6} parent=5 // pred_fallthru
      _
    %p124 = scmp.lt.s32.totalorder %s9, 2
    // Predicated region
    $region21: #{mixed_7a_forward.6} parent=5 // pred_check
      %p125 = pneg %p124
    $region22: #{mixed_7a_forward.6} parent=5 // pred_check_branch
      %127 = sbr.rel (%p125) target = $region24
    $region23: #{mixed_7a_forward.6} parent=5 // pred_region
      // Predicated region
      $region25: #{mixed_7a_forward.6} parent=23 // pred_check
        %p128 = pneg %p29
      $region26: #{mixed_7a_forward.6} parent=23 // pred_check_branch
        %130 = sbr.rel (%p128) target = $region28
      $region27: #{mixed_7a_forward.6} parent=23 // pred_region
        %s131 = smul.u32 11, %s9
        %p132 = scmp.lt.s32.totalorder %s131, 21
        %s133 = scalar_select %p132, %s131, 21
        %s134 = smul.addr %s133, 18
        %s135 = smul.addr %s134, 4
        %s136 = scalar_lea.vmem %s0, %s135
        %s137 = smul.u32 11, %s9
      $region28: #{mixed_7a_forward.6} parent=23 // pred_fallthru
        _
    $region24: #{mixed_7a_forward.6} parent=5 // pred_fallthru
      _
    %p138 = scmp.le.s32.totalorder 1, %s9
    %p139 = scmp.lt.s32.totalorder %s9, 3
    %p140 = pnand %p138, %p139
    %p141 = pneg %p140
    // Predicated region
    $region29: #{mixed_7a_forward.6} parent=5 // pred_check
      _
    $region30: #{mixed_7a_forward.6} parent=5 // pred_check_branch
      %143 = sbr.rel (%p140) target = $region32
    $region31: #{mixed_7a_forward.6} parent=5 // pred_region
      %s144 = ssub.s32 %s9, 1
      %s145 = smul.u32 11, %s14
      %p146 = scmp.lt.s32.totalorder %s145, 21
      %s147 = scalar_select %p146, %s145, 21
      %s148 = smul.addr %s147, 18
      %s149 = smul.addr %s148, 4
      %s150 = scalar_lea.vmem %s0, %s149
      %p151 = pneg %p35
      %p152 = pneg %p32
      %p153 = pneg %p56
      %p154 = pneg %p53
      %p155 = pneg %p77
      %p156 = pneg %p74
      %p157 = pneg %p103
      %p158 = pneg %p100
      %s159 = smul.u32 11, %s14
      %p160 = scmp.lt.s32.totalorder %s159, 21
      %s161 = scalar_select %p160, %s159, 21
      %s162 = smul.addr %s161, 2
      %s163 = smul.addr %s162, 4
      %s164 = scalar_lea.vmem %s3, %s163
      %s165 = smul.u32 11, %s14
      %p166 = scmp.lt.s32.totalorder %s165, 21
      %s167 = scalar_select %p166, %s165, 21
      %s168 = smul.addr %s167, 18
      %s169 = smul.addr %s168, 4
      %s170 = scalar_lea.vmem %s0, %s169
      %s171 = smul.u32 11, %s14
      %s172 = smul.u32 11, %s14
      %p173 = scmp.lt.s32.totalorder %s172, 21
      %s174 = scalar_select %p173, %s172, 21
      %s175 = smul.addr %s174, 2
      %s176 = smul.addr %s175, 4
      %s177 = scalar_lea.vmem %s3, %s176
      %s178 = smul.u32 11, %s14
      %v179 = vld [vmem:[%s170] sm:$0xff]
      %v180 = vld [vmem:[%s170 + $0x8] sm:$0xff]
      %v181 = vld [vmem:[%s170 + $0x10] sm:$0xff]
      %v182 = vld [vmem:[%s170 + $0x18] sm:$0xff]
      %v183 = vld [vmem:[%s170 + $0x20] sm:$0xff]
      %v184 = vld [vmem:[%s170 + $0x28] sm:$0xff]
      %v185 = vld [vmem:[%s170 + $0x30] sm:$0xff]
      %v186 = vld [vmem:[%s170 + $0x38] sm:$0xff]
      %v187 = vld [vmem:[%s170 + $0x40] sm:$0xff]
      %v188 = vld [vmem:[%s170 + $0x48] sm:$0xff]
      %v189 = vld [vmem:[%s170 + $0x50] sm:$0xff]
      %v190 = vld [vmem:[%s170 + $0x58] sm:$0xff]
      %v191 = vld [vmem:[%s170 + $0x60] sm:$0xff]
      %v192 = vld [vmem:[%s170 + $0x68] sm:$0xff]
      %v193 = vld [vmem:[%s170 + $0x70] sm:$0xff]
      %v194 = vld [vmem:[%s170 + $0x78] sm:$0xff]
      %v195 = vld [vmem:[%s170 + $0x80] sm:$0xff]
      %v196 = vld [vmem:[%s170 + $0x88] sm:$0xff]
      %v197 = vld [vmem:[%s170 + $0x90] sm:$0xff]
      %v198 = vld [vmem:[%s170 + $0x98] sm:$0xff]
      %v199 = vld [vmem:[%s170 + $0xa0] sm:$0xff]
      %v200 = vld [vmem:[%s170 + $0xa8] sm:$0xff]
      %v201 = vld [vmem:[%s170 + $0xb0] sm:$0xff]
      %v202 = vld [vmem:[%s170 + $0xb8] sm:$0xff]
      %v203 = vld [vmem:[%s170 + $0xc0] sm:$0xff]
      %v204 = vld [vmem:[%s170 + $0xc8] sm:$0xff]
      %v205 = vld [vmem:[%s170 + $0xd0] sm:$0xff]
      %v206 = vld [vmem:[%s170 + $0xd8] sm:$0xff]
      %v207 = vld [vmem:[%s170 + $0xe0] sm:$0xff]
      %v208 = vld [vmem:[%s170 + $0xe8] sm:$0xff]
      %v209 = vld [vmem:[%s170 + $0xf0] sm:$0xff]
      %v210 = vld [vmem:[%s170 + $0xf8] sm:$0xff]
      %v211 = vld [vmem:[%s170 + $0x100] sm:$0xff]
      %v212 = vld [vmem:[%s170 + $0x108] sm:$0xff]
      %v213 = vld [vmem:[%s170 + $0x110] sm:$0xff]
      %v214 = vld [vmem:[%s170 + $0x118] sm:$0xff]
      %v215 = vld [vmem:[%s170 + $0x120] sm:$0xff]
      %v216 = vld [vmem:[%s170 + $0x128] sm:$0xff]
      %v217 = vld [vmem:[%s170 + $0x130] sm:$0xff]
      %v218 = vld [vmem:[%s170 + $0x138] sm:$0xff]
      %v219 = vld [vmem:[%s170 + $0x140] sm:$0xff]
      %v220 = vld [vmem:[%s170 + $0x148] sm:$0xff]
      %v221 = vld [vmem:[%s170 + $0x150] sm:$0xff]
      %v222 = vld [vmem:[%s170 + $0x158] sm:$0xff]
      %v223 = vld [vmem:[%s170 + $0x160] sm:$0xff]
      %v224 = vld [vmem:[%s170 + $0x168] sm:$0xff]
      %v225 = vld [vmem:[%s170 + $0x170] sm:$0xff]
      %v226 = vld [vmem:[%s170 + $0x178] sm:$0xff]
      %v227 = vld [vmem:[%s170 + $0x180] sm:$0xff]
      %v228 = vld [vmem:[%s170 + $0x188] sm:$0xff]
      %v229 = vld [vmem:[%s170 + $0x190] sm:$0xff]
      %v230 = vld [vmem:[%s170 + $0x198] sm:$0xff]
      %v231 = vld [vmem:[%s170 + $0x1a0] sm:$0xff]
      %v232 = vld [vmem:[%s170 + $0x1a8] sm:$0xff]
      %v233 = vld [vmem:[%s170 + $0x1b0] sm:$0xff]
      %v234 = vld [vmem:[%s170 + $0x1b8] sm:$0xff]
      %v235 = vld [vmem:[%s170 + $0x1c0] sm:$0xff]
      %v236 = vld [vmem:[%s170 + $0x1c8] sm:$0xff]
      %v237 = vld [vmem:[%s170 + $0x1d0] sm:$0xff]
      %v238 = vld [vmem:[%s170 + $0x1d8] sm:$0xff]
      %v239 = vld [vmem:[%s170 + $0x1e0] sm:$0xff]
      %v240 = vld [vmem:[%s170 + $0x1e8] sm:$0xff]
      %v241 = vld [vmem:[%s170 + $0x1f0] sm:$0xff]
      %v242 = vld [vmem:[%s170 + $0x1f8] sm:$0xff]
      %v243 = vld [vmem:[%s170 + $0x200] sm:$0xff]
      %v244 = vld [vmem:[%s170 + $0x208] sm:$0xff]
      %v245 = vld [vmem:[%s170 + $0x210] sm:$0xff]
      %v246 = vld [vmem:[%s170 + $0x218] sm:$0xff]
      %v247 = vld [vmem:[%s170 + $0x220] sm:$0xff]
      %v248 = vld [vmem:[%s170 + $0x228] sm:$0xff]
      %v249 = vld [vmem:[%s170 + $0x230] sm:$0xff]
      %v250 = vld [vmem:[%s170 + $0x238] sm:$0xff]
      %v251 = vld [vmem:[%s170 + $0x240] sm:$0xff]
      %v252 = vld [vmem:[%s170 + $0x248] sm:$0xff]
      %v253 = vld [vmem:[%s170 + $0x250] sm:$0xff]
      %v254 = vld [vmem:[%s170 + $0x258] sm:$0xff]
      %v255 = vld [vmem:[%s170 + $0x260] sm:$0xff]
      %v256 = vld [vmem:[%s170 + $0x268] sm:$0xff]
      %v257 = vld [vmem:[%s170 + $0x270] sm:$0xff]
      %v258 = vld [vmem:[%s170 + $0x278] sm:$0xff]
      %v259 = vld [vmem:[%s170 + $0x280] sm:$0xff]
      %v260 = vld [vmem:[%s170 + $0x288] sm:$0xff]
      %v261 = vld [vmem:[%s170 + $0x290] sm:$0xff]
      %v262 = vld [vmem:[%s170 + $0x298] sm:$0xff]
      %v263 = vld [vmem:[%s170 + $0x2a0] sm:$0xff]
      %v264 = vld [vmem:[%s170 + $0x2a8] sm:$0xff]
      %v265 = vld [vmem:[%s170 + $0x2b0] sm:$0xff]
      %v266 = vld [vmem:[%s170 + $0x2b8] sm:$0xff]
      %v267 = vld [vmem:[%s170 + $0x2c0] sm:$0xff]
      %v268 = vld [vmem:[%s170 + $0x2c8] sm:$0xff]
      %v269 = vld [vmem:[%s170 + $0x2d0] sm:$0xff]
      %v270 = vld [vmem:[%s170 + $0x2d8] sm:$0xff]
      %v271 = vld [vmem:[%s170 + $0x2e0] sm:$0xff]
      %v272 = vld [vmem:[%s170 + $0x2e8] sm:$0xff]
      %v273 = vld [vmem:[%s170 + $0x2f0] sm:$0xff]
      %v274 = vld [vmem:[%s170 + $0x2f8] sm:$0xff]
      %v275 = vld [vmem:[%s170 + $0x300] sm:$0xff]
      %v276 = vld [vmem:[%s170 + $0x308] sm:$0xff]
      %v277 = vld [vmem:[%s170 + $0x310] sm:$0xff]
      %v278 = vld [vmem:[%s1] sm:$0xff]
      %v279 = vld [vmem:[%s1 + $0x8] sm:$0xff]
      %v280 = vld [vmem:[%s1 + $0x10] sm:$0xff]
      %v281 = vld [vmem:[%s1 + $0x18] sm:$0xff]
      %v282 = vld [vmem:[%s1 + $0x20] sm:$0xff]
      %v283 = vld [vmem:[%s1 + $0x28] sm:$0xff]
      %v284 = vld [vmem:[%s1 + $0x30] sm:$0xff]
      %v285 = vld [vmem:[%s1 + $0x38] sm:$0xff]
      %v286 = vld [vmem:[%s1 + $0x40] sm:$0xff]
      %v287 = vld [vmem:[%s1 + $0x48] sm:$0xff]
      %v288 = vld [vmem:[%s1 + $0x50] sm:$0xff]
      %v289 = vld [vmem:[%s1 + $0x58] sm:$0xff]
      %v290 = vld [vmem:[%s1 + $0x60] sm:$0xff]
      %v291 = vld [vmem:[%s1 + $0x68] sm:$0xff]
      %v292 = vld [vmem:[%s1 + $0x70] sm:$0xff]
      %v293 = vld [vmem:[%s1 + $0x78] sm:$0xff]
      %v294 = vld [vmem:[%s1 + $0x80] sm:$0xff]
      %v295 = vld [vmem:[%s1 + $0x88] sm:$0xff]
      %v296 = vld [vmem:[%s1 + $0x90] sm:$0xff]
      %v297 = vld [vmem:[%s1 + $0x98] sm:$0xff]
      %v298 = vld [vmem:[%s1 + $0xa0] sm:$0xff]
      %v299 = vld [vmem:[%s1 + $0xa8] sm:$0xff]
      %v300 = vld [vmem:[%s1 + $0xb0] sm:$0xff]
      %v301 = vld [vmem:[%s1 + $0xb8] sm:$0xff]
      %v302 = vld [vmem:[%s1 + $0xc0] sm:$0xff]
      %v303 = vld [vmem:[%s1 + $0xc8] sm:$0xff]
      %v304 = vld [vmem:[%s1 + $0xd0] sm:$0xff]
      %v305 = vld [vmem:[%s1 + $0xd8] sm:$0xff]
      %v306 = vld [vmem:[%s1 + $0xe0] sm:$0xff]
      %v307 = vld [vmem:[%s1 + $0xe8] sm:$0xff]
      %v308 = vld [vmem:[%s1 + $0xf0] sm:$0xff]
      %v309 = vld [vmem:[%s1 + $0xf8] sm:$0xff]
      %v310 = vld [vmem:[%s1 + $0x100] sm:$0xff]
      %v311 = vld [vmem:[%s1 + $0x108] sm:$0xff]
      %v312 = vld [vmem:[%s1 + $0x110] sm:$0xff]
      %v313 = vld [vmem:[%s1 + $0x118] sm:$0xff]
      %v314 = vld [vmem:[%s1 + $0x120] sm:$0xff]
      %v315 = vld [vmem:[%s1 + $0x128] sm:$0xff]
      %v316 = vld [vmem:[%s1 + $0x130] sm:$0xff]
      %v317 = vld [vmem:[%s1 + $0x138] sm:$0xff]
      %v318 = vld [vmem:[%s1 + $0x140] sm:$0xff]
      %v319 = vld [vmem:[%s1 + $0x148] sm:$0xff]
      %v320 = vld [vmem:[%s1 + $0x150] sm:$0xff]
      %v321 = vld [vmem:[%s1 + $0x158] sm:$0xff]
      %v322 = vld [vmem:[%s1 + $0x160] sm:$0xff]
      %v323 = vld [vmem:[%s1 + $0x168] sm:$0xff]
      %v324 = vld [vmem:[%s1 + $0x170] sm:$0xff]
      %v325 = vld [vmem:[%s1 + $0x178] sm:$0xff]
      %v326 = vld [vmem:[%s1 + $0x180] sm:$0xff]
      %v327 = vld [vmem:[%s1 + $0x188] sm:$0xff]
      %v328 = vld [vmem:[%s1 + $0x190] sm:$0xff]
      %v329 = vld [vmem:[%s1 + $0x198] sm:$0xff]
      %v330 = vld [vmem:[%s1 + $0x1a0] sm:$0xff]
      %v331 = vld [vmem:[%s1 + $0x1a8] sm:$0xff]
      %v332 = vld [vmem:[%s1 + $0x1b0] sm:$0xff]
      %v333 = vld [vmem:[%s1 + $0x1b8] sm:$0xff]
      %v334 = vld [vmem:[%s1 + $0x1c0] sm:$0xff]
      %v335 = vld [vmem:[%s1 + $0x1c8] sm:$0xff]
      %v336 = vld [vmem:[%s1 + $0x1d0] sm:$0xff]
      %v337 = vld [vmem:[%s1 + $0x1d8] sm:$0xff]
      %v338 = vld [vmem:[%s1 + $0x1e0] sm:$0xff]
      %v339 = vld [vmem:[%s1 + $0x1e8] sm:$0xff]
      %v340 = vld [vmem:[%s1 + $0x1f0] sm:$0xff]
      %v341 = vld [vmem:[%s1 + $0x1f8] sm:$0xff]
      %v342 = vld [vmem:[%s1 + $0x200] sm:$0xff]
      %v343 = vld [vmem:[%s1 + $0x208] sm:$0xff]
      %v344 = vld [vmem:[%s1 + $0x210] sm:$0xff]
      %v345 = vld [vmem:[%s1 + $0x218] sm:$0xff]
      %v346 = vld [vmem:[%s1 + $0x220] sm:$0xff]
      %v347 = vld [vmem:[%s1 + $0x228] sm:$0xff]
      %v348 = vld [vmem:[%s1 + $0x230] sm:$0xff]
      %v349 = vld [vmem:[%s1 + $0x238] sm:$0xff]
      %v350 = vld [vmem:[%s1 + $0x240] sm:$0xff]
      %v351 = vld [vmem:[%s1 + $0x248] sm:$0xff]
      %v352 = vld [vmem:[%s1 + $0x250] sm:$0xff]
      %v353 = vld [vmem:[%s1 + $0x258] sm:$0xff]
      %v354 = vld [vmem:[%s1 + $0x260] sm:$0xff]
      %v355 = vld [vmem:[%s1 + $0x268] sm:$0xff]
      %v356 = vld [vmem:[%s1 + $0x270] sm:$0xff]
      %v357 = vld [vmem:[%s1 + $0x278] sm:$0xff]
      %v358 = vld [vmem:[%s1 + $0x280] sm:$0xff]
      %v359 = vld [vmem:[%s1 + $0x288] sm:$0xff]
      %v360 = vld [vmem:[%s1 + $0x290] sm:$0xff]
      %v361 = vld [vmem:[%s1 + $0x298] sm:$0xff]
      %v362 = vld [vmem:[%s1 + $0x2a0] sm:$0xff]
      %v363 = vld [vmem:[%s1 + $0x2a8] sm:$0xff]
      %v364 = vld [vmem:[%s1 + $0x2b0] sm:$0xff]
      %v365 = vld [vmem:[%s1 + $0x2b8] sm:$0xff]
      %v366 = vld [vmem:[%s1 + $0x2c0] sm:$0xff]
      %v367 = vld [vmem:[%s1 + $0x2c8] sm:$0xff]
      %v368 = vld [vmem:[%s1 + $0x2d0] sm:$0xff]
      %v369 = vld [vmem:[%s1 + $0x2d8] sm:$0xff]
      %v370 = vld [vmem:[%s1 + $0x2e0] sm:$0xff]
      %v371 = vld [vmem:[%s1 + $0x2e8] sm:$0xff]
      %v372 = vld [vmem:[%s1 + $0x2f0] sm:$0xff]
      %v373 = vld [vmem:[%s1 + $0x2f8] sm:$0xff]
      %v374 = vld [vmem:[%s1 + $0x300] sm:$0xff]
      %v375 = vld [vmem:[%s1 + $0x308] sm:$0xff]
      %v376 = vld [vmem:[%s1 + $0x310] sm:$0xff]
      %v377 = vld [vmem:[%s1 + $0x318] sm:$0xff]
      %v378 = vld [vmem:[%s1 + $0x320] sm:$0xff]
      %v379 = vld [vmem:[%s1 + $0x328] sm:$0xff]
      %v380 = vld [vmem:[%s1 + $0x330] sm:$0xff]
      %v381 = vld [vmem:[%s1 + $0x338] sm:$0xff]
      %v382 = vld [vmem:[%s1 + $0x340] sm:$0xff]
      %v383 = vld [vmem:[%s1 + $0x348] sm:$0xff]
      %v384 = vld [vmem:[%s1 + $0x350] sm:$0xff]
      %v385 = vld [vmem:[%s1 + $0x358] sm:$0xff]
      %v386 = vld [vmem:[%s1 + $0x360] sm:$0xff]
      %v387 = vld [vmem:[%s1 + $0x368] sm:$0xff]
      %v388 = vld [vmem:[%s1 + $0x370] sm:$0xff]
      %v389 = vld [vmem:[%s1 + $0x378] sm:$0xff]
      %v390 = vld [vmem:[%s1 + $0x380] sm:$0xff]
      %v391 = vld [vmem:[%s1 + $0x388] sm:$0xff]
      %v392 = vld [vmem:[%s1 + $0x390] sm:$0xff]
      %v393 = vld [vmem:[%s1 + $0x398] sm:$0xff]
      %v394 = vld [vmem:[%s1 + $0x3a0] sm:$0xff]
      %v395 = vld [vmem:[%s1 + $0x3a8] sm:$0xff]
      %v396 = vld [vmem:[%s1 + $0x3b0] sm:$0xff]
      %v397 = vld [vmem:[%s1 + $0x3b8] sm:$0xff]
      %v398 = vld [vmem:[%s1 + $0x3c0] sm:$0xff]
      %v399 = vld [vmem:[%s1 + $0x3c8] sm:$0xff]
      %v400 = vld [vmem:[%s1 + $0x3d0] sm:$0xff]
      %v401 = vld [vmem:[%s1 + $0x3d8] sm:$0xff]
      %v402 = vld [vmem:[%s1 + $0x3e0] sm:$0xff]
      %v403 = vld [vmem:[%s1 + $0x3e8] sm:$0xff]
      %v404 = vld [vmem:[%s1 + $0x3f0] sm:$0xff]
      %v405 = vld [vmem:[%s1 + $0x3f8] sm:$0xff]
      %v406 = vld [vmem:[%s1 + $0x400] sm:$0xff]
      %v407 = vld [vmem:[%s1 + $0x408] sm:$0xff]
      %v408 = vld [vmem:[%s1 + $0x410] sm:$0xff]
      %v409 = vld [vmem:[%s1 + $0x418] sm:$0xff]
      %v410 = vld [vmem:[%s1 + $0x420] sm:$0xff]
      %v411 = vld [vmem:[%s1 + $0x428] sm:$0xff]
      %v412 = vld [vmem:[%s1 + $0x430] sm:$0xff]
      %v413 = vld [vmem:[%s1 + $0x438] sm:$0xff]
      %v414 = vld [vmem:[%s1 + $0x440] sm:$0xff]
      %v415 = vld [vmem:[%s1 + $0x448] sm:$0xff]
      %v416 = vld [vmem:[%s1 + $0x450] sm:$0xff]
      %v417 = vld [vmem:[%s1 + $0x458] sm:$0xff]
      %v418 = vld [vmem:[%s1 + $0x460] sm:$0xff]
      %v419 = vld [vmem:[%s1 + $0x468] sm:$0xff]
      %v420 = vld [vmem:[%s1 + $0x470] sm:$0xff]
      %v421 = vld [vmem:[%s1 + $0x478] sm:$0xff]
      %v422 = vld [vmem:[%s1 + $0x480] sm:$0xff]
      %v423 = vld [vmem:[%s1 + $0x488] sm:$0xff]
      %v424 = vld [vmem:[%s1 + $0x490] sm:$0xff]
      %v425 = vld [vmem:[%s1 + $0x498] sm:$0xff]
      %v426 = vld [vmem:[%s1 + $0x4a0] sm:$0xff]
      %v427 = vld [vmem:[%s1 + $0x4a8] sm:$0xff]
      %v428 = vld [vmem:[%s1 + $0x4b0] sm:$0xff]
      %v429 = vld [vmem:[%s1 + $0x4b8] sm:$0xff]
      %v430 = vld [vmem:[%s1 + $0x4c0] sm:$0xff]
      %v431 = vld [vmem:[%s1 + $0x4c8] sm:$0xff]
      %v432 = vld [vmem:[%s1 + $0x4d0] sm:$0xff]
      %v433 = vld [vmem:[%s1 + $0x4d8] sm:$0xff]
      %v434 = vld [vmem:[%s1 + $0x4e0] sm:$0xff]
      %v435 = vld [vmem:[%s1 + $0x4e8] sm:$0xff]
      %v436 = vld [vmem:[%s1 + $0x4f0] sm:$0xff]
      %v437 = vld [vmem:[%s1 + $0x4f8] sm:$0xff]
      %v438 = vld [vmem:[%s1 + $0x500] sm:$0xff]
      %v439 = vld [vmem:[%s1 + $0x508] sm:$0xff]
      %v440 = vld [vmem:[%s1 + $0x510] sm:$0xff]
      %v441 = vld [vmem:[%s1 + $0x518] sm:$0xff]
      %v442 = vld [vmem:[%s1 + $0x520] sm:$0xff]
      %v443 = vld [vmem:[%s1 + $0x528] sm:$0xff]
      %v444 = vld [vmem:[%s1 + $0x530] sm:$0xff]
      %v445 = vld [vmem:[%s1 + $0x538] sm:$0xff]
      %v446 = vld [vmem:[%s1 + $0x540] sm:$0xff]
      %v447 = vld [vmem:[%s1 + $0x548] sm:$0xff]
      %v448 = vld [vmem:[%s1 + $0x550] sm:$0xff]
      %v449 = vld [vmem:[%s1 + $0x558] sm:$0xff]
      %v450 = vld [vmem:[%s1 + $0x560] sm:$0xff]
      %v451 = vld [vmem:[%s1 + $0x568] sm:$0xff]
      %v452 = vld [vmem:[%s1 + $0x570] sm:$0xff]
      %v453 = vld [vmem:[%s1 + $0x578] sm:$0xff]
      %v454 = vld [vmem:[%s1 + $0x580] sm:$0xff]
      %v455 = vld [vmem:[%s1 + $0x588] sm:$0xff]
      %v456 = vld [vmem:[%s1 + $0x590] sm:$0xff]
      %v457 = vld [vmem:[%s1 + $0x598] sm:$0xff]
      %v458 = vld [vmem:[%s1 + $0x5a0] sm:$0xff]
      %v459 = vld [vmem:[%s1 + $0x5a8] sm:$0xff]
      %v460 = vld [vmem:[%s1 + $0x5b0] sm:$0xff]
      %v461 = vld [vmem:[%s1 + $0x5b8] sm:$0xff]
      %v462 = vld [vmem:[%s1 + $0x5c0] sm:$0xff]
      %v463 = vld [vmem:[%s1 + $0x5c8] sm:$0xff]
      %v464 = vld [vmem:[%s1 + $0x5d0] sm:$0xff]
      %v465 = vld [vmem:[%s1 + $0x5d8] sm:$0xff]
      %v466 = vld [vmem:[%s1 + $0x5e0] sm:$0xff]
      %v467 = vld [vmem:[%s1 + $0x5e8] sm:$0xff]
      %v468 = vld [vmem:[%s1 + $0x5f0] sm:$0xff]
      %v469 = vld [vmem:[%s1 + $0x5f8] sm:$0xff]
      %v470 = vld [vmem:[%s1 + $0x600] sm:$0xff]
      %v471 = vld [vmem:[%s1 + $0x608] sm:$0xff]
      %v472 = vld [vmem:[%s1 + $0x610] sm:$0xff]
      %v473 = vld [vmem:[%s1 + $0x618] sm:$0xff]
      %v474 = vld [vmem:[%s1 + $0x620] sm:$0xff]
      %v475 = vld [vmem:[%s1 + $0x628] sm:$0xff]
      %v476 = vld [vmem:[%s1 + $0x630] sm:$0xff]
      %v477 = vld [vmem:[%s1 + $0x638] sm:$0xff]
      %v478 = vld [vmem:[%s1 + $0x640] sm:$0xff]
      %v479 = vld [vmem:[%s1 + $0x648] sm:$0xff]
      %v480 = vld [vmem:[%s1 + $0x650] sm:$0xff]
      %v481 = vld [vmem:[%s1 + $0x658] sm:$0xff]
      %v482 = vld [vmem:[%s1 + $0x660] sm:$0xff]
      %v483 = vld [vmem:[%s1 + $0x668] sm:$0xff]
      %v484 = vld [vmem:[%s1 + $0x670] sm:$0xff]
      %v485 = vld [vmem:[%s1 + $0x678] sm:$0xff]
      %v486 = vld [vmem:[%s1 + $0x680] sm:$0xff]
      %v487 = vld [vmem:[%s1 + $0x688] sm:$0xff]
      %v488 = vld [vmem:[%s1 + $0x690] sm:$0xff]
      %v489 = vld [vmem:[%s1 + $0x698] sm:$0xff]
      %v490 = vld [vmem:[%s1 + $0x6a0] sm:$0xff]
      %v491 = vld [vmem:[%s1 + $0x6a8] sm:$0xff]
      %v492 = vld [vmem:[%s1 + $0x6b0] sm:$0xff]
      %v493 = vld [vmem:[%s1 + $0x6b8] sm:$0xff]
      %v494 = vld [vmem:[%s1 + $0x6c0] sm:$0xff]
      %v495 = vld [vmem:[%s1 + $0x6c8] sm:$0xff]
      %v496 = vld [vmem:[%s1 + $0x6d0] sm:$0xff]
      %v497 = vld [vmem:[%s1 + $0x6d8] sm:$0xff]
      %v498 = vld [vmem:[%s1 + $0x6e0] sm:$0xff]
      %v499 = vld [vmem:[%s1 + $0x6e8] sm:$0xff]
      %v500 = vld [vmem:[%s1 + $0x6f0] sm:$0xff]
      %v501 = vld [vmem:[%s1 + $0x6f8] sm:$0xff]
      %v502 = vld [vmem:[%s1 + $0x700] sm:$0xff]
      %v503 = vld [vmem:[%s1 + $0x708] sm:$0xff]
      %v504 = vld [vmem:[%s1 + $0x710] sm:$0xff]
      %v505 = vld [vmem:[%s1 + $0x718] sm:$0xff]
      %v506 = vld [vmem:[%s1 + $0x720] sm:$0xff]
      %v507 = vld [vmem:[%s1 + $0x728] sm:$0xff]
      %v508 = vld [vmem:[%s1 + $0x730] sm:$0xff]
      %v509 = vld [vmem:[%s1 + $0x738] sm:$0xff]
      %v510 = vld [vmem:[%s1 + $0x740] sm:$0xff]
      %v511 = vld [vmem:[%s1 + $0x748] sm:$0xff]
      %v512 = vld [vmem:[%s1 + $0x750] sm:$0xff]
      %v513 = vld [vmem:[%s1 + $0x758] sm:$0xff]
      %v514 = vld [vmem:[%s1 + $0x760] sm:$0xff]
      %v515 = vld [vmem:[%s1 + $0x768] sm:$0xff]
      %v516 = vld [vmem:[%s1 + $0x770] sm:$0xff]
      %v517 = vld [vmem:[%s1 + $0x778] sm:$0xff]
      %v518 = vld [vmem:[%s1 + $0x780] sm:$0xff]
      %v519 = vld [vmem:[%s1 + $0x788] sm:$0xff]
      %v520 = vld [vmem:[%s1 + $0x790] sm:$0xff]
      %v521 = vld [vmem:[%s1 + $0x798] sm:$0xff]
      %v522 = vld [vmem:[%s1 + $0x7a0] sm:$0xff]
      %v523 = vld [vmem:[%s1 + $0x7a8] sm:$0xff]
      %v524 = vld [vmem:[%s1 + $0x7b0] sm:$0xff]
      %v525 = vld [vmem:[%s1 + $0x7b8] sm:$0xff]
      %v526 = vld [vmem:[%s1 + $0x7c0] sm:$0xff]
      %v527 = vld [vmem:[%s1 + $0x7c8] sm:$0xff]
      %v528 = vld [vmem:[%s1 + $0x7d0] sm:$0xff]
      %v529 = vld [vmem:[%s1 + $0x7d8] sm:$0xff]
      %v530 = vld [vmem:[%s1 + $0x7e0] sm:$0xff]
      %v531 = vld [vmem:[%s1 + $0x7e8] sm:$0xff]
      %v532 = vld [vmem:[%s1 + $0x7f0] sm:$0xff]
      %v533 = vld [vmem:[%s1 + $0x7f8] sm:$0xff]
      %v534 = vld [vmem:[%s1 + $0x800] sm:$0xff]
      %v535 = vld [vmem:[%s1 + $0x808] sm:$0xff]
      %v536 = vld [vmem:[%s1 + $0x810] sm:$0xff]
      %v537 = vld [vmem:[%s1 + $0x818] sm:$0xff]
      %v538 = vld [vmem:[%s1 + $0x820] sm:$0xff]
      %v539 = vld [vmem:[%s1 + $0x828] sm:$0xff]
      %v540 = vld [vmem:[%s1 + $0x830] sm:$0xff]
      %v541 = vld [vmem:[%s1 + $0x838] sm:$0xff]
      %v542 = vld [vmem:[%s1 + $0x840] sm:$0xff]
      %v543 = vld [vmem:[%s1 + $0x848] sm:$0xff]
      %v544 = vld [vmem:[%s1 + $0x850] sm:$0xff]
      %v545 = vld [vmem:[%s1 + $0x858] sm:$0xff]
      %v546 = vld [vmem:[%s1 + $0x860] sm:$0xff]
      %v547 = vld [vmem:[%s1 + $0x868] sm:$0xff]
      %v548 = vld [vmem:[%s1 + $0x870] sm:$0xff]
      %v549 = vld [vmem:[%s1 + $0x878] sm:$0xff]
      %v550 = vld [vmem:[%s1 + $0x880] sm:$0xff]
      %v551 = vld [vmem:[%s1 + $0x888] sm:$0xff]
      %v552 = vld [vmem:[%s1 + $0x890] sm:$0xff]
      %v553 = vld [vmem:[%s1 + $0x898] sm:$0xff]
      %v554 = vld [vmem:[%s1 + $0x8a0] sm:$0xff]
      %v555 = vld [vmem:[%s1 + $0x8a8] sm:$0xff]
      %v556 = vld [vmem:[%s1 + $0x8b0] sm:$0xff]
      %v557 = vld [vmem:[%s1 + $0x8b8] sm:$0xff]
      %v558 = vld [vmem:[%s1 + $0x8c0] sm:$0xff]
      %v559 = vld [vmem:[%s1 + $0x8c8] sm:$0xff]
      %v560 = vld [vmem:[%s1 + $0x8d0] sm:$0xff]
      %v561 = vld [vmem:[%s1 + $0x8d8] sm:$0xff]
      %v562 = vld [vmem:[%s1 + $0x8e0] sm:$0xff]
      %v563 = vld [vmem:[%s1 + $0x8e8] sm:$0xff]
      %v564 = vld [vmem:[%s1 + $0x8f0] sm:$0xff]
      %v565 = vld [vmem:[%s1 + $0x8f8] sm:$0xff]
      %v566 = vld [vmem:[%s2] sm:$0x3]
      %v568 = vlaneseq
      %v569 = vshrl.u32 %v568, 7
      %v570 = vsub.s32 0, %v569
      %v571 = vrot.slane %v566, %v570
      %v572 = vlaneseq
      %v573 = vshrl.u32 %v572, 7
      %v574 = vsub.s32 1, %v573
      %v575 = vrot.slane %v566, %v574
      %v677 = vunpack.c.l.b16 %v179
      %v678 = vunpack.c.h.b16 %v179
      %v679 = vunpack.c.l.b16 %v180
      %v680 = vunpack.c.h.b16 %v180
      %v681 = vunpack.c.l.b16 %v181
      %v682 = vunpack.c.h.b16 %v181
      %v683 = vunpack.c.l.b16 %v182
      %v684 = vunpack.c.h.b16 %v182
      %v685 = vunpack.c.l.b16 %v183
      %v686 = vunpack.c.h.b16 %v183
      %v687 = vunpack.c.l.b16 %v184
      %v688 = vunpack.c.h.b16 %v184
      %v689 = vunpack.c.l.b16 %v185
      %v690 = vunpack.c.h.b16 %v185
      %v691 = vunpack.c.l.b16 %v186
      %v692 = vunpack.c.h.b16 %v186
      %v693 = vunpack.c.l.b16 %v187
      %v694 = vunpack.c.h.b16 %v187
      %v695 = vunpack.c.l.b16 %v188
      %v696 = vunpack.c.h.b16 %v188
      %v697 = vunpack.c.l.b16 %v189
      %v698 = vunpack.c.h.b16 %v189
      %v699 = vunpack.c.l.b16 %v190
      %v700 = vunpack.c.h.b16 %v190
      %v701 = vunpack.c.l.b16 %v191
      %v702 = vunpack.c.h.b16 %v191
      %v703 = vunpack.c.l.b16 %v192
      %v704 = vunpack.c.h.b16 %v192
      %v705 = vunpack.c.l.b16 %v193
      %v706 = vunpack.c.h.b16 %v193
      %v707 = vunpack.c.l.b16 %v194
      %v708 = vunpack.c.h.b16 %v194
      %v709 = vunpack.c.l.b16 %v195
      %v710 = vunpack.c.h.b16 %v195
      %v711 = vunpack.c.l.b16 %v196
      %v712 = vunpack.c.h.b16 %v196
      %v713 = vunpack.c.l.b16 %v197
      %v714 = vunpack.c.h.b16 %v197
      %v715 = vunpack.c.l.b16 %v198
      %v716 = vunpack.c.h.b16 %v198
      %v717 = vunpack.c.l.b16 %v199
      %v718 = vunpack.c.h.b16 %v199
      %v719 = vunpack.c.l.b16 %v200
      %v720 = vunpack.c.h.b16 %v200
      %v721 = vunpack.c.l.b16 %v201
      %v722 = vunpack.c.h.b16 %v201
      %v723 = vunpack.c.l.b16 %v202
      %v724 = vunpack.c.h.b16 %v202
      %v725 = vunpack.c.l.b16 %v203
      %v726 = vunpack.c.h.b16 %v203
      %v727 = vunpack.c.l.b16 %v204
      %v728 = vunpack.c.h.b16 %v204
      %v729 = vunpack.c.l.b16 %v205
      %v730 = vunpack.c.h.b16 %v205
      %v731 = vunpack.c.l.b16 %v206
      %v732 = vunpack.c.h.b16 %v206
      %v733 = vunpack.c.l.b16 %v207
      %v734 = vunpack.c.h.b16 %v207
      %v735 = vunpack.c.l.b16 %v208
      %v736 = vunpack.c.h.b16 %v208
      %v737 = vunpack.c.l.b16 %v209
      %v738 = vunpack.c.h.b16 %v209
      %v739 = vunpack.c.l.b16 %v210
      %v740 = vunpack.c.h.b16 %v210
      %v741 = vunpack.c.l.b16 %v211
      %v742 = vunpack.c.h.b16 %v211
      %v743 = vunpack.c.l.b16 %v212
      %v744 = vunpack.c.h.b16 %v212
      %v745 = vunpack.c.l.b16 %v213
      %v746 = vunpack.c.h.b16 %v213
      %v747 = vunpack.c.l.b16 %v214
      %v748 = vunpack.c.h.b16 %v214
      %v749 = vunpack.c.l.b16 %v215
      %v750 = vunpack.c.h.b16 %v215
      %v751 = vunpack.c.l.b16 %v216
      %v752 = vunpack.c.h.b16 %v216
      %v753 = vunpack.c.l.b16 %v217
      %v754 = vunpack.c.h.b16 %v217
      %v755 = vunpack.c.l.b16 %v218
      %v756 = vunpack.c.h.b16 %v218
      %v757 = vunpack.c.l.b16 %v219
      %v758 = vunpack.c.h.b16 %v219
      %v759 = vunpack.c.l.b16 %v220
      %v760 = vunpack.c.h.b16 %v220
      %v761 = vunpack.c.l.b16 %v221
      %v762 = vunpack.c.h.b16 %v221
      %v763 = vunpack.c.l.b16 %v222
      %v764 = vunpack.c.h.b16 %v222
      %v765 = vunpack.c.l.b16 %v223
      %v766 = vunpack.c.h.b16 %v223
      %v767 = vunpack.c.l.b16 %v224
      %v768 = vunpack.c.h.b16 %v224
      %v769 = vunpack.c.l.b16 %v225
      %v770 = vunpack.c.h.b16 %v225
      %v771 = vunpack.c.l.b16 %v226
      %v772 = vunpack.c.h.b16 %v226
      %v773 = vunpack.c.l.b16 %v227
      %v774 = vunpack.c.h.b16 %v227
      %v775 = vunpack.c.l.b16 %v228
      %v776 = vunpack.c.h.b16 %v228
      %v777 = vunpack.c.l.b16 %v229
      %v778 = vunpack.c.h.b16 %v229
      %v779 = vunpack.c.l.b16 %v230
      %v780 = vunpack.c.h.b16 %v230
      %v781 = vunpack.c.l.b16 %v231
      %v782 = vunpack.c.h.b16 %v231
      %v783 = vunpack.c.l.b16 %v232
      %v784 = vunpack.c.h.b16 %v232
      %v785 = vunpack.c.l.b16 %v233
      %v786 = vunpack.c.h.b16 %v233
      %v787 = vunpack.c.l.b16 %v234
      %v788 = vunpack.c.h.b16 %v234
      %v789 = vunpack.c.l.b16 %v235
      %v790 = vunpack.c.h.b16 %v235
      %v791 = vunpack.c.l.b16 %v236
      %v792 = vunpack.c.h.b16 %v236
      %v793 = vunpack.c.l.b16 %v237
      %v794 = vunpack.c.h.b16 %v237
      %v795 = vunpack.c.l.b16 %v238
      %v796 = vunpack.c.h.b16 %v238
      %v797 = vunpack.c.l.b16 %v239
      %v798 = vunpack.c.h.b16 %v239
      %v799 = vunpack.c.l.b16 %v240
      %v800 = vunpack.c.h.b16 %v240
      %v801 = vunpack.c.l.b16 %v241
      %v802 = vunpack.c.h.b16 %v241
      %v803 = vunpack.c.l.b16 %v242
      %v804 = vunpack.c.h.b16 %v242
      %v805 = vunpack.c.l.b16 %v243
      %v806 = vunpack.c.h.b16 %v243
      %v807 = vunpack.c.l.b16 %v244
      %v808 = vunpack.c.h.b16 %v244
      %v809 = vunpack.c.l.b16 %v245
      %v810 = vunpack.c.h.b16 %v245
      %v811 = vunpack.c.l.b16 %v246
      %v812 = vunpack.c.h.b16 %v246
      %v813 = vunpack.c.l.b16 %v247
      %v814 = vunpack.c.h.b16 %v247
      %v815 = vunpack.c.l.b16 %v248
      %v816 = vunpack.c.h.b16 %v248
      %v817 = vunpack.c.l.b16 %v249
      %v818 = vunpack.c.h.b16 %v249
      %v819 = vunpack.c.l.b16 %v250
      %v820 = vunpack.c.h.b16 %v250
      %v821 = vunpack.c.l.b16 %v251
      %v822 = vunpack.c.h.b16 %v251
      %v823 = vunpack.c.l.b16 %v252
      %v824 = vunpack.c.h.b16 %v252
      %v825 = vunpack.c.l.b16 %v253
      %v826 = vunpack.c.h.b16 %v253
      %v827 = vunpack.c.l.b16 %v254
      %v828 = vunpack.c.h.b16 %v254
      %v829 = vunpack.c.l.b16 %v255
      %v830 = vunpack.c.h.b16 %v255
      %v831 = vunpack.c.l.b16 %v256
      %v832 = vunpack.c.h.b16 %v256
      %v833 = vunpack.c.l.b16 %v257
      %v834 = vunpack.c.h.b16 %v257
      %v835 = vunpack.c.l.b16 %v258
      %v836 = vunpack.c.h.b16 %v258
      %v837 = vunpack.c.l.b16 %v259
      %v838 = vunpack.c.h.b16 %v259
      %v839 = vunpack.c.l.b16 %v260
      %v840 = vunpack.c.h.b16 %v260
      %v841 = vunpack.c.l.b16 %v261
      %v842 = vunpack.c.h.b16 %v261
      %v843 = vunpack.c.l.b16 %v262
      %v844 = vunpack.c.h.b16 %v262
      %v845 = vunpack.c.l.b16 %v263
      %v846 = vunpack.c.h.b16 %v263
      %v847 = vunpack.c.l.b16 %v264
      %v848 = vunpack.c.h.b16 %v264
      %v849 = vunpack.c.l.b16 %v265
      %v850 = vunpack.c.h.b16 %v265
      %v851 = vunpack.c.l.b16 %v266
      %v852 = vunpack.c.h.b16 %v266
      %v853 = vunpack.c.l.b16 %v267
      %v854 = vunpack.c.h.b16 %v267
      %v855 = vunpack.c.l.b16 %v268
      %v856 = vunpack.c.h.b16 %v268
      %v857 = vunpack.c.l.b16 %v269
      %v858 = vunpack.c.h.b16 %v269
      %v859 = vunpack.c.l.b16 %v270
      %v860 = vunpack.c.h.b16 %v270
      %v861 = vunpack.c.l.b16 %v271
      %v862 = vunpack.c.h.b16 %v271
      %v863 = vunpack.c.l.b16 %v272
      %v864 = vunpack.c.h.b16 %v272
      %v865 = vunpack.c.l.b16 %v273
      %v866 = vunpack.c.h.b16 %v273
      %v867 = vunpack.c.l.b16 %v274
      %v868 = vunpack.c.h.b16 %v274
      %v869 = vunpack.c.l.b16 %v275
      %v870 = vunpack.c.h.b16 %v275
      %v871 = vunpack.c.l.b16 %v276
      %v872 = vunpack.c.h.b16 %v276
      %v873 = vunpack.c.l.b16 %v277
      %v874 = vunpack.c.h.b16 %v277
      %v875 = vpack.c.b16 %v695, %v677
      %v876 = vpack.c.b16 %v696, %v678
      %v877 = vpack.c.b16 %v697, %v679
      %v878 = vpack.c.b16 %v698, %v680
      %v879 = vpack.c.b16 %v699, %v681
      %v880 = vpack.c.b16 %v700, %v682
      %v881 = vpack.c.b16 %v701, %v683
      %v882 = vpack.c.b16 %v702, %v684
      %v883 = vpack.c.b16 %v703, %v685
      %v884 = vpack.c.b16 %v704, %v686
      %v885 = vpack.c.b16 %v705, %v687
      %v886 = vpack.c.b16 %v706, %v688
      %v887 = vpack.c.b16 %v707, %v689
      %v888 = vpack.c.b16 %v708, %v690
      %v889 = vpack.c.b16 %v709, %v691
      %v890 = vpack.c.b16 %v710, %v692
      %v891 = vpack.c.b16 %v711, %v693
      %v892 = vpack.c.b16 %v712, %v694
      %v893 = vpack.c.b16 %v731, %v713
      %v894 = vpack.c.b16 %v732, %v714
      %v895 = vpack.c.b16 %v733, %v715
      %v896 = vpack.c.b16 %v734, %v716
      %v897 = vpack.c.b16 %v735, %v717
      %v898 = vpack.c.b16 %v736, %v718
      %v899 = vpack.c.b16 %v737, %v719
      %v900 = vpack.c.b16 %v738, %v720
      %v901 = vpack.c.b16 %v739, %v721
      %v902 = vpack.c.b16 %v740, %v722
      %v903 = vpack.c.b16 %v741, %v723
      %v904 = vpack.c.b16 %v742, %v724
      %v905 = vpack.c.b16 %v743, %v725
      %v906 = vpack.c.b16 %v744, %v726
      %v907 = vpack.c.b16 %v745, %v727
      %v908 = vpack.c.b16 %v746, %v728
      %v909 = vpack.c.b16 %v747, %v729
      %v910 = vpack.c.b16 %v748, %v730
      %v911 = vpack.c.b16 %v767, %v749
      %v912 = vpack.c.b16 %v768, %v750
      %v913 = vpack.c.b16 %v769, %v751
      %v914 = vpack.c.b16 %v770, %v752
      %v915 = vpack.c.b16 %v771, %v753
      %v916 = vpack.c.b16 %v772, %v754
      %v917 = vpack.c.b16 %v773, %v755
      %v918 = vpack.c.b16 %v774, %v756
      %v919 = vpack.c.b16 %v775, %v757
      %v920 = vpack.c.b16 %v776, %v758
      %v921 = vpack.c.b16 %v777, %v759
      %v922 = vpack.c.b16 %v778, %v760
      %v923 = vpack.c.b16 %v779, %v761
      %v924 = vpack.c.b16 %v780, %v762
      %v925 = vpack.c.b16 %v781, %v763
      %v926 = vpack.c.b16 %v782, %v764
      %v927 = vpack.c.b16 %v783, %v765
      %v928 = vpack.c.b16 %v784, %v766
      %v929 = vpack.c.b16 %v803, %v785
      %v930 = vpack.c.b16 %v804, %v786
      %v931 = vpack.c.b16 %v805, %v787
      %v932 = vpack.c.b16 %v806, %v788
      %v933 = vpack.c.b16 %v807, %v789
      %v934 = vpack.c.b16 %v808, %v790
      %v935 = vpack.c.b16 %v809, %v791
      %v936 = vpack.c.b16 %v810, %v792
      %v937 = vpack.c.b16 %v811, %v793
      %v938 = vpack.c.b16 %v812, %v794
      %v939 = vpack.c.b16 %v813, %v795
      %v940 = vpack.c.b16 %v814, %v796
      %v941 = vpack.c.b16 %v815, %v797
      %v942 = vpack.c.b16 %v816, %v798
      %v943 = vpack.c.b16 %v817, %v799
      %v944 = vpack.c.b16 %v818, %v800
      %v945 = vpack.c.b16 %v819, %v801
      %v946 = vpack.c.b16 %v820, %v802
      %v947 = vpack.c.b16 %v839, %v821
      %v948 = vpack.c.b16 %v840, %v822
      %v949 = vpack.c.b16 %v841, %v823
      %v950 = vpack.c.b16 %v842, %v824
      %v951 = vpack.c.b16 %v843, %v825
      %v952 = vpack.c.b16 %v844, %v826
      %v953 = vpack.c.b16 %v845, %v827
      %v954 = vpack.c.b16 %v846, %v828
      %v955 = vpack.c.b16 %v847, %v829
      %v956 = vpack.c.b16 %v848, %v830
      %v957 = vpack.c.b16 %v849, %v831
      %v958 = vpack.c.b16 %v850, %v832
      %v959 = vpack.c.b16 %v851, %v833
      %v960 = vpack.c.b16 %v852, %v834
      %v961 = vpack.c.b16 %v853, %v835
      %v962 = vpack.c.b16 %v854, %v836
      %v963 = vpack.c.b16 %v855, %v837
      %v964 = vpack.c.b16 %v856, %v838
      %v965 = vpack.c.b16 %v857, %v857
      %v966 = vpack.c.b16 %v858, %v858
      %v967 = vpack.c.b16 %v859, %v859
      %v968 = vpack.c.b16 %v860, %v860
      %v969 = vpack.c.b16 %v861, %v861
      %v970 = vpack.c.b16 %v862, %v862
      %v971 = vpack.c.b16 %v863, %v863
      %v972 = vpack.c.b16 %v864, %v864
      %v973 = vpack.c.b16 %v865, %v865
      %v974 = vpack.c.b16 %v866, %v866
      %v975 = vpack.c.b16 %v867, %v867
      %v976 = vpack.c.b16 %v868, %v868
      %v977 = vpack.c.b16 %v869, %v869
      %v978 = vpack.c.b16 %v870, %v870
      %v979 = vpack.c.b16 %v871, %v871
      %v980 = vpack.c.b16 %v872, %v872
      %v981 = vpack.c.b16 %v873, %v873
      %v982 = vpack.c.b16 %v874, %v874
      %v1379 = vunpack.c.l.b16 %v278
      %v1380 = vunpack.c.h.b16 %v278
      %v1381 = vunpack.c.l.b16 %v279
      %v1382 = vunpack.c.h.b16 %v279
      %v1383 = vunpack.c.l.b16 %v280
      %v1384 = vunpack.c.h.b16 %v280
      %v1385 = vunpack.c.l.b16 %v281
      %v1386 = vunpack.c.h.b16 %v281
      %v1387 = vunpack.c.l.b16 %v282
      %v1388 = vunpack.c.h.b16 %v282
      %v1389 = vunpack.c.l.b16 %v283
      %v1390 = vunpack.c.h.b16 %v283
      %v1391 = vunpack.c.l.b16 %v284
      %v1392 = vunpack.c.h.b16 %v284
      %v1393 = vunpack.c.l.b16 %v285
      %v1394 = vunpack.c.h.b16 %v285
      %v1395 = vunpack.c.l.b16 %v286
      %v1396 = vunpack.c.h.b16 %v286
      %v1397 = vunpack.c.l.b16 %v287
      %v1398 = vunpack.c.h.b16 %v287
      %v1399 = vunpack.c.l.b16 %v288
      %v1400 = vunpack.c.h.b16 %v288
      %v1401 = vunpack.c.l.b16 %v289
      %v1402 = vunpack.c.h.b16 %v289
      %v1403 = vunpack.c.l.b16 %v290
      %v1404 = vunpack.c.h.b16 %v290
      %v1405 = vunpack.c.l.b16 %v291
      %v1406 = vunpack.c.h.b16 %v291
      %v1407 = vunpack.c.l.b16 %v292
      %v1408 = vunpack.c.h.b16 %v292
      %v1409 = vunpack.c.l.b16 %v293
      %v1410 = vunpack.c.h.b16 %v293
      %v1411 = vunpack.c.l.b16 %v294
      %v1412 = vunpack.c.h.b16 %v294
      %v1413 = vunpack.c.l.b16 %v295
      %v1414 = vunpack.c.h.b16 %v295
      %v1415 = vunpack.c.l.b16 %v296
      %v1416 = vunpack.c.h.b16 %v296
      %v1417 = vunpack.c.l.b16 %v297
      %v1418 = vunpack.c.h.b16 %v297
      %v1419 = vunpack.c.l.b16 %v298
      %v1420 = vunpack.c.h.b16 %v298
      %v1421 = vunpack.c.l.b16 %v299
      %v1422 = vunpack.c.h.b16 %v299
      %v1423 = vunpack.c.l.b16 %v300
      %v1424 = vunpack.c.h.b16 %v300
      %v1425 = vunpack.c.l.b16 %v301
      %v1426 = vunpack.c.h.b16 %v301
      %v1427 = vunpack.c.l.b16 %v302
      %v1428 = vunpack.c.h.b16 %v302
      %v1429 = vunpack.c.l.b16 %v303
      %v1430 = vunpack.c.h.b16 %v303
      %v1431 = vunpack.c.l.b16 %v304
      %v1432 = vunpack.c.h.b16 %v304
      %v1433 = vunpack.c.l.b16 %v305
      %v1434 = vunpack.c.h.b16 %v305
      %v1435 = vunpack.c.l.b16 %v306
      %v1436 = vunpack.c.h.b16 %v306
      %v1437 = vunpack.c.l.b16 %v307
      %v1438 = vunpack.c.h.b16 %v307
      %v1439 = vunpack.c.l.b16 %v308
      %v1440 = vunpack.c.h.b16 %v308
      %v1441 = vunpack.c.l.b16 %v309
      %v1442 = vunpack.c.h.b16 %v309
      %v1443 = vunpack.c.l.b16 %v310
      %v1444 = vunpack.c.h.b16 %v310
      %v1445 = vunpack.c.l.b16 %v311
      %v1446 = vunpack.c.h.b16 %v311
      %v1447 = vunpack.c.l.b16 %v312
      %v1448 = vunpack.c.h.b16 %v312
      %v1449 = vunpack.c.l.b16 %v313
      %v1450 = vunpack.c.h.b16 %v313
      %v1451 = vunpack.c.l.b16 %v314
      %v1452 = vunpack.c.h.b16 %v314
      %v1453 = vunpack.c.l.b16 %v315
      %v1454 = vunpack.c.h.b16 %v315
      %v1455 = vunpack.c.l.b16 %v316
      %v1456 = vunpack.c.h.b16 %v316
      %v1457 = vunpack.c.l.b16 %v317
      %v1458 = vunpack.c.h.b16 %v317
      %v1459 = vunpack.c.l.b16 %v318
      %v1460 = vunpack.c.h.b16 %v318
      %v1461 = vunpack.c.l.b16 %v319
      %v1462 = vunpack.c.h.b16 %v319
      %v1463 = vunpack.c.l.b16 %v320
      %v1464 = vunpack.c.h.b16 %v320
      %v1465 = vunpack.c.l.b16 %v321
      %v1466 = vunpack.c.h.b16 %v321
      %v1467 = vunpack.c.l.b16 %v322
      %v1468 = vunpack.c.h.b16 %v322
      %v1469 = vunpack.c.l.b16 %v323
      %v1470 = vunpack.c.h.b16 %v323
      %v1471 = vunpack.c.l.b16 %v324
      %v1472 = vunpack.c.h.b16 %v324
      %v1473 = vunpack.c.l.b16 %v325
      %v1474 = vunpack.c.h.b16 %v325
      %v1475 = vunpack.c.l.b16 %v326
      %v1476 = vunpack.c.h.b16 %v326
      %v1477 = vunpack.c.l.b16 %v327
      %v1478 = vunpack.c.h.b16 %v327
      %v1479 = vunpack.c.l.b16 %v328
      %v1480 = vunpack.c.h.b16 %v328
      %v1481 = vunpack.c.l.b16 %v329
      %v1482 = vunpack.c.h.b16 %v329
      %v1483 = vunpack.c.l.b16 %v330
      %v1484 = vunpack.c.h.b16 %v330
      %v1485 = vunpack.c.l.b16 %v331
      %v1486 = vunpack.c.h.b16 %v331
      %v1487 = vunpack.c.l.b16 %v332
      %v1488 = vunpack.c.h.b16 %v332
      %v1489 = vunpack.c.l.b16 %v333
      %v1490 = vunpack.c.h.b16 %v333
      %v1491 = vunpack.c.l.b16 %v334
      %v1492 = vunpack.c.h.b16 %v334
      %v1493 = vunpack.c.l.b16 %v335
      %v1494 = vunpack.c.h.b16 %v335
      %v1495 = vunpack.c.l.b16 %v336
      %v1496 = vunpack.c.h.b16 %v336
      %v1497 = vunpack.c.l.b16 %v337
      %v1498 = vunpack.c.h.b16 %v337
      %v1499 = vunpack.c.l.b16 %v338
      %v1500 = vunpack.c.h.b16 %v338
      %v1501 = vunpack.c.l.b16 %v339
      %v1502 = vunpack.c.h.b16 %v339
      %v1503 = vunpack.c.l.b16 %v340
      %v1504 = vunpack.c.h.b16 %v340
      %v1505 = vunpack.c.l.b16 %v341
      %v1506 = vunpack.c.h.b16 %v341
      %v1507 = vunpack.c.l.b16 %v342
      %v1508 = vunpack.c.h.b16 %v342
      %v1509 = vunpack.c.l.b16 %v343
      %v1510 = vunpack.c.h.b16 %v343
      %v1511 = vunpack.c.l.b16 %v344
      %v1512 = vunpack.c.h.b16 %v344
      %v1513 = vunpack.c.l.b16 %v345
      %v1514 = vunpack.c.h.b16 %v345
      %v1515 = vunpack.c.l.b16 %v346
      %v1516 = vunpack.c.h.b16 %v346
      %v1517 = vunpack.c.l.b16 %v347
      %v1518 = vunpack.c.h.b16 %v347
      %v1519 = vunpack.c.l.b16 %v348
      %v1520 = vunpack.c.h.b16 %v348
      %v1521 = vunpack.c.l.b16 %v349
      %v1522 = vunpack.c.h.b16 %v349
      %v1523 = vunpack.c.l.b16 %v350
      %v1524 = vunpack.c.h.b16 %v350
      %v1525 = vunpack.c.l.b16 %v351
      %v1526 = vunpack.c.h.b16 %v351
      %v1527 = vunpack.c.l.b16 %v352
      %v1528 = vunpack.c.h.b16 %v352
      %v1529 = vunpack.c.l.b16 %v353
      %v1530 = vunpack.c.h.b16 %v353
      %v1531 = vunpack.c.l.b16 %v354
      %v1532 = vunpack.c.h.b16 %v354
      %v1533 = vunpack.c.l.b16 %v355
      %v1534 = vunpack.c.h.b16 %v355
      %v1535 = vunpack.c.l.b16 %v356
      %v1536 = vunpack.c.h.b16 %v356
      %v1537 = vunpack.c.l.b16 %v357
      %v1538 = vunpack.c.h.b16 %v357
      %v1539 = vunpack.c.l.b16 %v358
      %v1540 = vunpack.c.h.b16 %v358
      %v1541 = vunpack.c.l.b16 %v359
      %v1542 = vunpack.c.h.b16 %v359
      %v1543 = vunpack.c.l.b16 %v360
      %v1544 = vunpack.c.h.b16 %v360
      %v1545 = vunpack.c.l.b16 %v361
      %v1546 = vunpack.c.h.b16 %v361
      %v1547 = vunpack.c.l.b16 %v362
      %v1548 = vunpack.c.h.b16 %v362
      %v1549 = vunpack.c.l.b16 %v363
      %v1550 = vunpack.c.h.b16 %v363
      %v1551 = vunpack.c.l.b16 %v364
      %v1552 = vunpack.c.h.b16 %v364
      %v1553 = vunpack.c.l.b16 %v365
      %v1554 = vunpack.c.h.b16 %v365
      %v1555 = vunpack.c.l.b16 %v366
      %v1556 = vunpack.c.h.b16 %v366
      %v1557 = vunpack.c.l.b16 %v367
      %v1558 = vunpack.c.h.b16 %v367
      %v1559 = vunpack.c.l.b16 %v368
      %v1560 = vunpack.c.h.b16 %v368
      %v1561 = vunpack.c.l.b16 %v369
      %v1562 = vunpack.c.h.b16 %v369
      %v1563 = vunpack.c.l.b16 %v370
      %v1564 = vunpack.c.h.b16 %v370
      %v1565 = vunpack.c.l.b16 %v371
      %v1566 = vunpack.c.h.b16 %v371
      %v1567 = vunpack.c.l.b16 %v372
      %v1568 = vunpack.c.h.b16 %v372
      %v1569 = vunpack.c.l.b16 %v373
      %v1570 = vunpack.c.h.b16 %v373
      %v1571 = vunpack.c.l.b16 %v374
      %v1572 = vunpack.c.h.b16 %v374
      %v1573 = vunpack.c.l.b16 %v375
      %v1574 = vunpack.c.h.b16 %v375
      %v1575 = vunpack.c.l.b16 %v376
      %v1576 = vunpack.c.h.b16 %v376
      %v1577 = vunpack.c.l.b16 %v377
      %v1578 = vunpack.c.h.b16 %v377
      %v1579 = vunpack.c.l.b16 %v378
      %v1580 = vunpack.c.h.b16 %v378
      %v1581 = vunpack.c.l.b16 %v379
      %v1582 = vunpack.c.h.b16 %v379
      %v1583 = vunpack.c.l.b16 %v380
      %v1584 = vunpack.c.h.b16 %v380
      %v1585 = vunpack.c.l.b16 %v381
      %v1586 = vunpack.c.h.b16 %v381
      %v1587 = vunpack.c.l.b16 %v382
      %v1588 = vunpack.c.h.b16 %v382
      %v1589 = vunpack.c.l.b16 %v383
      %v1590 = vunpack.c.h.b16 %v383
      %v1591 = vunpack.c.l.b16 %v384
      %v1592 = vunpack.c.h.b16 %v384
      %v1593 = vunpack.c.l.b16 %v385
      %v1594 = vunpack.c.h.b16 %v385
      %v1595 = vunpack.c.l.b16 %v386
      %v1596 = vunpack.c.h.b16 %v386
      %v1597 = vunpack.c.l.b16 %v387
      %v1598 = vunpack.c.h.b16 %v387
      %v1599 = vunpack.c.l.b16 %v388
      %v1600 = vunpack.c.h.b16 %v388
      %v1601 = vunpack.c.l.b16 %v389
      %v1602 = vunpack.c.h.b16 %v389
      %v1603 = vunpack.c.l.b16 %v390
      %v1604 = vunpack.c.h.b16 %v390
      %v1605 = vunpack.c.l.b16 %v391
      %v1606 = vunpack.c.h.b16 %v391
      %v1607 = vunpack.c.l.b16 %v392
      %v1608 = vunpack.c.h.b16 %v392
      %v1609 = vunpack.c.l.b16 %v393
      %v1610 = vunpack.c.h.b16 %v393
      %v1611 = vunpack.c.l.b16 %v394
      %v1612 = vunpack.c.h.b16 %v394
      %v1613 = vunpack.c.l.b16 %v395
      %v1614 = vunpack.c.h.b16 %v395
      %v1615 = vunpack.c.l.b16 %v396
      %v1616 = vunpack.c.h.b16 %v396
      %v1617 = vunpack.c.l.b16 %v397
      %v1618 = vunpack.c.h.b16 %v397
      %v1619 = vunpack.c.l.b16 %v398
      %v1620 = vunpack.c.h.b16 %v398
      %v1621 = vunpack.c.l.b16 %v399
      %v1622 = vunpack.c.h.b16 %v399
      %v1623 = vunpack.c.l.b16 %v400
      %v1624 = vunpack.c.h.b16 %v400
      %v1625 = vunpack.c.l.b16 %v401
      %v1626 = vunpack.c.h.b16 %v401
      %v1627 = vunpack.c.l.b16 %v402
      %v1628 = vunpack.c.h.b16 %v402
      %v1629 = vunpack.c.l.b16 %v403
      %v1630 = vunpack.c.h.b16 %v403
      %v1631 = vunpack.c.l.b16 %v404
      %v1632 = vunpack.c.h.b16 %v404
      %v1633 = vunpack.c.l.b16 %v405
      %v1634 = vunpack.c.h.b16 %v405
      %v1635 = vunpack.c.l.b16 %v406
      %v1636 = vunpack.c.h.b16 %v406
      %v1637 = vunpack.c.l.b16 %v407
      %v1638 = vunpack.c.h.b16 %v407
      %v1639 = vunpack.c.l.b16 %v408
      %v1640 = vunpack.c.h.b16 %v408
      %v1641 = vunpack.c.l.b16 %v409
      %v1642 = vunpack.c.h.b16 %v409
      %v1643 = vunpack.c.l.b16 %v410
      %v1644 = vunpack.c.h.b16 %v410
      %v1645 = vunpack.c.l.b16 %v411
      %v1646 = vunpack.c.h.b16 %v411
      %v1647 = vunpack.c.l.b16 %v412
      %v1648 = vunpack.c.h.b16 %v412
      %v1649 = vunpack.c.l.b16 %v413
      %v1650 = vunpack.c.h.b16 %v413
      %v1651 = vunpack.c.l.b16 %v414
      %v1652 = vunpack.c.h.b16 %v414
      %v1653 = vunpack.c.l.b16 %v415
      %v1654 = vunpack.c.h.b16 %v415
      %v1655 = vunpack.c.l.b16 %v416
      %v1656 = vunpack.c.h.b16 %v416
      %v1657 = vunpack.c.l.b16 %v417
      %v1658 = vunpack.c.h.b16 %v417
      %v1659 = vunpack.c.l.b16 %v418
      %v1660 = vunpack.c.h.b16 %v418
      %v1661 = vunpack.c.l.b16 %v419
      %v1662 = vunpack.c.h.b16 %v419
      %v1663 = vunpack.c.l.b16 %v420
      %v1664 = vunpack.c.h.b16 %v420
      %v1665 = vunpack.c.l.b16 %v421
      %v1666 = vunpack.c.h.b16 %v421
      %v1667 = vunpack.c.l.b16 %v422
      %v1668 = vunpack.c.h.b16 %v422
      %v1669 = vunpack.c.l.b16 %v423
      %v1670 = vunpack.c.h.b16 %v423
      %v1671 = vunpack.c.l.b16 %v424
      %v1672 = vunpack.c.h.b16 %v424
      %v1673 = vunpack.c.l.b16 %v425
      %v1674 = vunpack.c.h.b16 %v425
      %v1675 = vunpack.c.l.b16 %v426
      %v1676 = vunpack.c.h.b16 %v426
      %v1677 = vunpack.c.l.b16 %v427
      %v1678 = vunpack.c.h.b16 %v427
      %v1679 = vunpack.c.l.b16 %v428
      %v1680 = vunpack.c.h.b16 %v428
      %v1681 = vunpack.c.l.b16 %v429
      %v1682 = vunpack.c.h.b16 %v429
      %v1683 = vunpack.c.l.b16 %v430
      %v1684 = vunpack.c.h.b16 %v430
      %v1685 = vunpack.c.l.b16 %v431
      %v1686 = vunpack.c.h.b16 %v431
      %v1687 = vunpack.c.l.b16 %v432
      %v1688 = vunpack.c.h.b16 %v432
      %v1689 = vunpack.c.l.b16 %v433
      %v1690 = vunpack.c.h.b16 %v433
      %v1691 = vunpack.c.l.b16 %v434
      %v1692 = vunpack.c.h.b16 %v434
      %v1693 = vunpack.c.l.b16 %v435
      %v1694 = vunpack.c.h.b16 %v435
      %v1695 = vunpack.c.l.b16 %v436
      %v1696 = vunpack.c.h.b16 %v436
      %v1697 = vunpack.c.l.b16 %v437
      %v1698 = vunpack.c.h.b16 %v437
      %v1699 = vunpack.c.l.b16 %v438
      %v1700 = vunpack.c.h.b16 %v438
      %v1701 = vunpack.c.l.b16 %v439
      %v1702 = vunpack.c.h.b16 %v439
      %v1703 = vunpack.c.l.b16 %v440
      %v1704 = vunpack.c.h.b16 %v440
      %v1705 = vunpack.c.l.b16 %v441
      %v1706 = vunpack.c.h.b16 %v441
      %v1707 = vunpack.c.l.b16 %v442
      %v1708 = vunpack.c.h.b16 %v442
      %v1709 = vunpack.c.l.b16 %v443
      %v1710 = vunpack.c.h.b16 %v443
      %v1711 = vunpack.c.l.b16 %v444
      %v1712 = vunpack.c.h.b16 %v444
      %v1713 = vunpack.c.l.b16 %v445
      %v1714 = vunpack.c.h.b16 %v445
      %v1715 = vunpack.c.l.b16 %v446
      %v1716 = vunpack.c.h.b16 %v446
      %v1717 = vunpack.c.l.b16 %v447
      %v1718 = vunpack.c.h.b16 %v447
      %v1719 = vunpack.c.l.b16 %v448
      %v1720 = vunpack.c.h.b16 %v448
      %v1721 = vunpack.c.l.b16 %v449
      %v1722 = vunpack.c.h.b16 %v449
      %v1723 = vunpack.c.l.b16 %v450
      %v1724 = vunpack.c.h.b16 %v450
      %v1725 = vunpack.c.l.b16 %v451
      %v1726 = vunpack.c.h.b16 %v451
      %v1727 = vunpack.c.l.b16 %v452
      %v1728 = vunpack.c.h.b16 %v452
      %v1729 = vunpack.c.l.b16 %v453
      %v1730 = vunpack.c.h.b16 %v453
      %v1731 = vunpack.c.l.b16 %v454
      %v1732 = vunpack.c.h.b16 %v454
      %v1733 = vunpack.c.l.b16 %v455
      %v1734 = vunpack.c.h.b16 %v455
      %v1735 = vunpack.c.l.b16 %v456
      %v1736 = vunpack.c.h.b16 %v456
      %v1737 = vunpack.c.l.b16 %v457
      %v1738 = vunpack.c.h.b16 %v457
      %v1739 = vunpack.c.l.b16 %v458
      %v1740 = vunpack.c.h.b16 %v458
      %v1741 = vunpack.c.l.b16 %v459
      %v1742 = vunpack.c.h.b16 %v459
      %v1743 = vunpack.c.l.b16 %v460
      %v1744 = vunpack.c.h.b16 %v460
      %v1745 = vunpack.c.l.b16 %v461
      %v1746 = vunpack.c.h.b16 %v461
      %v1747 = vunpack.c.l.b16 %v462
      %v1748 = vunpack.c.h.b16 %v462
      %v1749 = vunpack.c.l.b16 %v463
      %v1750 = vunpack.c.h.b16 %v463
      %v1751 = vunpack.c.l.b16 %v464
      %v1752 = vunpack.c.h.b16 %v464
      %v1753 = vunpack.c.l.b16 %v465
      %v1754 = vunpack.c.h.b16 %v465
      %v1755 = vunpack.c.l.b16 %v466
      %v1756 = vunpack.c.h.b16 %v466
      %v1757 = vunpack.c.l.b16 %v467
      %v1758 = vunpack.c.h.b16 %v467
      %v1759 = vunpack.c.l.b16 %v468
      %v1760 = vunpack.c.h.b16 %v468
      %v1761 = vunpack.c.l.b16 %v469
      %v1762 = vunpack.c.h.b16 %v469
      %v1763 = vunpack.c.l.b16 %v470
      %v1764 = vunpack.c.h.b16 %v470
      %v1765 = vunpack.c.l.b16 %v471
      %v1766 = vunpack.c.h.b16 %v471
      %v1767 = vunpack.c.l.b16 %v472
      %v1768 = vunpack.c.h.b16 %v472
      %v1769 = vunpack.c.l.b16 %v473
      %v1770 = vunpack.c.h.b16 %v473
      %v1771 = vunpack.c.l.b16 %v474
      %v1772 = vunpack.c.h.b16 %v474
      %v1773 = vunpack.c.l.b16 %v475
      %v1774 = vunpack.c.h.b16 %v475
      %v1775 = vunpack.c.l.b16 %v476
      %v1776 = vunpack.c.h.b16 %v476
      %v1777 = vunpack.c.l.b16 %v477
      %v1778 = vunpack.c.h.b16 %v477
      %v1779 = vunpack.c.l.b16 %v478
      %v1780 = vunpack.c.h.b16 %v478
      %v1781 = vunpack.c.l.b16 %v479
      %v1782 = vunpack.c.h.b16 %v479
      %v1783 = vunpack.c.l.b16 %v480
      %v1784 = vunpack.c.h.b16 %v480
      %v1785 = vunpack.c.l.b16 %v481
      %v1786 = vunpack.c.h.b16 %v481
      %v1787 = vunpack.c.l.b16 %v482
      %v1788 = vunpack.c.h.b16 %v482
      %v1789 = vunpack.c.l.b16 %v483
      %v1790 = vunpack.c.h.b16 %v483
      %v1791 = vunpack.c.l.b16 %v484
      %v1792 = vunpack.c.h.b16 %v484
      %v1793 = vunpack.c.l.b16 %v485
      %v1794 = vunpack.c.h.b16 %v485
      %v1795 = vunpack.c.l.b16 %v486
      %v1796 = vunpack.c.h.b16 %v486
      %v1797 = vunpack.c.l.b16 %v487
      %v1798 = vunpack.c.h.b16 %v487
      %v1799 = vunpack.c.l.b16 %v488
      %v1800 = vunpack.c.h.b16 %v488
      %v1801 = vunpack.c.l.b16 %v489
      %v1802 = vunpack.c.h.b16 %v489
      %v1803 = vunpack.c.l.b16 %v490
      %v1804 = vunpack.c.h.b16 %v490
      %v1805 = vunpack.c.l.b16 %v491
      %v1806 = vunpack.c.h.b16 %v491
      %v1807 = vunpack.c.l.b16 %v492
      %v1808 = vunpack.c.h.b16 %v492
      %v1809 = vunpack.c.l.b16 %v493
      %v1810 = vunpack.c.h.b16 %v493
      %v1811 = vunpack.c.l.b16 %v494
      %v1812 = vunpack.c.h.b16 %v494
      %v1813 = vunpack.c.l.b16 %v495
      %v1814 = vunpack.c.h.b16 %v495
      %v1815 = vunpack.c.l.b16 %v496
      %v1816 = vunpack.c.h.b16 %v496
      %v1817 = vunpack.c.l.b16 %v497
      %v1818 = vunpack.c.h.b16 %v497
      %v1819 = vunpack.c.l.b16 %v498
      %v1820 = vunpack.c.h.b16 %v498
      %v1821 = vunpack.c.l.b16 %v499
      %v1822 = vunpack.c.h.b16 %v499
      %v1823 = vunpack.c.l.b16 %v500
      %v1824 = vunpack.c.h.b16 %v500
      %v1825 = vunpack.c.l.b16 %v501
      %v1826 = vunpack.c.h.b16 %v501
      %v1827 = vunpack.c.l.b16 %v502
      %v1828 = vunpack.c.h.b16 %v502
      %v1829 = vunpack.c.l.b16 %v503
      %v1830 = vunpack.c.h.b16 %v503
      %v1831 = vunpack.c.l.b16 %v504
      %v1832 = vunpack.c.h.b16 %v504
      %v1833 = vunpack.c.l.b16 %v505
      %v1834 = vunpack.c.h.b16 %v505
      %v1835 = vunpack.c.l.b16 %v506
      %v1836 = vunpack.c.h.b16 %v506
      %v1837 = vunpack.c.l.b16 %v507
      %v1838 = vunpack.c.h.b16 %v507
      %v1839 = vunpack.c.l.b16 %v508
      %v1840 = vunpack.c.h.b16 %v508
      %v1841 = vunpack.c.l.b16 %v509
      %v1842 = vunpack.c.h.b16 %v509
      %v1843 = vunpack.c.l.b16 %v510
      %v1844 = vunpack.c.h.b16 %v510
      %v1845 = vunpack.c.l.b16 %v511
      %v1846 = vunpack.c.h.b16 %v511
      %v1847 = vunpack.c.l.b16 %v512
      %v1848 = vunpack.c.h.b16 %v512
      %v1849 = vunpack.c.l.b16 %v513
      %v1850 = vunpack.c.h.b16 %v513
      %v1851 = vunpack.c.l.b16 %v514
      %v1852 = vunpack.c.h.b16 %v514
      %v1853 = vunpack.c.l.b16 %v515
      %v1854 = vunpack.c.h.b16 %v515
      %v1855 = vunpack.c.l.b16 %v516
      %v1856 = vunpack.c.h.b16 %v516
      %v1857 = vunpack.c.l.b16 %v517
      %v1858 = vunpack.c.h.b16 %v517
      %v1859 = vunpack.c.l.b16 %v518
      %v1860 = vunpack.c.h.b16 %v518
      %v1861 = vunpack.c.l.b16 %v519
      %v1862 = vunpack.c.h.b16 %v519
      %v1863 = vunpack.c.l.b16 %v520
      %v1864 = vunpack.c.h.b16 %v520
      %v1865 = vunpack.c.l.b16 %v521
      %v1866 = vunpack.c.h.b16 %v521
      %v1867 = vunpack.c.l.b16 %v522
      %v1868 = vunpack.c.h.b16 %v522
      %v1869 = vunpack.c.l.b16 %v523
      %v1870 = vunpack.c.h.b16 %v523
      %v1871 = vunpack.c.l.b16 %v524
      %v1872 = vunpack.c.h.b16 %v524
      %v1873 = vunpack.c.l.b16 %v525
      %v1874 = vunpack.c.h.b16 %v525
      %v1875 = vunpack.c.l.b16 %v526
      %v1876 = vunpack.c.h.b16 %v526
      %v1877 = vunpack.c.l.b16 %v527
      %v1878 = vunpack.c.h.b16 %v527
      %v1879 = vunpack.c.l.b16 %v528
      %v1880 = vunpack.c.h.b16 %v528
      %v1881 = vunpack.c.l.b16 %v529
      %v1882 = vunpack.c.h.b16 %v529
      %v1883 = vunpack.c.l.b16 %v530
      %v1884 = vunpack.c.h.b16 %v530
      %v1885 = vunpack.c.l.b16 %v531
      %v1886 = vunpack.c.h.b16 %v531
      %v1887 = vunpack.c.l.b16 %v532
      %v1888 = vunpack.c.h.b16 %v532
      %v1889 = vunpack.c.l.b16 %v533
      %v1890 = vunpack.c.h.b16 %v533
      %v1891 = vunpack.c.l.b16 %v534
      %v1892 = vunpack.c.h.b16 %v534
      %v1893 = vunpack.c.l.b16 %v535
      %v1894 = vunpack.c.h.b16 %v535
      %v1895 = vunpack.c.l.b16 %v536
      %v1896 = vunpack.c.h.b16 %v536
      %v1897 = vunpack.c.l.b16 %v537
      %v1898 = vunpack.c.h.b16 %v537
      %v1899 = vunpack.c.l.b16 %v538
      %v1900 = vunpack.c.h.b16 %v538
      %v1901 = vunpack.c.l.b16 %v539
      %v1902 = vunpack.c.h.b16 %v539
      %v1903 = vunpack.c.l.b16 %v540
      %v1904 = vunpack.c.h.b16 %v540
      %v1905 = vunpack.c.l.b16 %v541
      %v1906 = vunpack.c.h.b16 %v541
      %v1907 = vunpack.c.l.b16 %v542
      %v1908 = vunpack.c.h.b16 %v542
      %v1909 = vunpack.c.l.b16 %v543
      %v1910 = vunpack.c.h.b16 %v543
      %v1911 = vunpack.c.l.b16 %v544
      %v1912 = vunpack.c.h.b16 %v544
      %v1913 = vunpack.c.l.b16 %v545
      %v1914 = vunpack.c.h.b16 %v545
      %v1915 = vunpack.c.l.b16 %v546
      %v1916 = vunpack.c.h.b16 %v546
      %v1917 = vunpack.c.l.b16 %v547
      %v1918 = vunpack.c.h.b16 %v547
      %v1919 = vunpack.c.l.b16 %v548
      %v1920 = vunpack.c.h.b16 %v548
      %v1921 = vunpack.c.l.b16 %v549
      %v1922 = vunpack.c.h.b16 %v549
      %v1923 = vunpack.c.l.b16 %v550
      %v1924 = vunpack.c.h.b16 %v550
      %v1925 = vunpack.c.l.b16 %v551
      %v1926 = vunpack.c.h.b16 %v551
      %v1927 = vunpack.c.l.b16 %v552
      %v1928 = vunpack.c.h.b16 %v552
      %v1929 = vunpack.c.l.b16 %v553
      %v1930 = vunpack.c.h.b16 %v553
      %v1931 = vunpack.c.l.b16 %v554
      %v1932 = vunpack.c.h.b16 %v554
      %v1933 = vunpack.c.l.b16 %v555
      %v1934 = vunpack.c.h.b16 %v555
      %v1935 = vunpack.c.l.b16 %v556
      %v1936 = vunpack.c.h.b16 %v556
      %v1937 = vunpack.c.l.b16 %v557
      %v1938 = vunpack.c.h.b16 %v557
      %v1939 = vunpack.c.l.b16 %v558
      %v1940 = vunpack.c.h.b16 %v558
      %v1941 = vunpack.c.l.b16 %v559
      %v1942 = vunpack.c.h.b16 %v559
      %v1943 = vunpack.c.l.b16 %v560
      %v1944 = vunpack.c.h.b16 %v560
      %v1945 = vunpack.c.l.b16 %v561
      %v1946 = vunpack.c.h.b16 %v561
      %v1947 = vunpack.c.l.b16 %v562
      %v1948 = vunpack.c.h.b16 %v562
      %v1949 = vunpack.c.l.b16 %v563
      %v1950 = vunpack.c.h.b16 %v563
      %v1951 = vunpack.c.l.b16 %v564
      %v1952 = vunpack.c.h.b16 %v564
      %v1953 = vunpack.c.l.b16 %v565
      %v1954 = vunpack.c.h.b16 %v565
      %v1955 = vpack.c.b16 %v1381, %v1379
      %v1956 = vpack.c.b16 %v1382, %v1380
      %v1957 = vpack.c.b16 %v1385, %v1383
      %v1958 = vpack.c.b16 %v1386, %v1384
      %v1959 = vpack.c.b16 %v1389, %v1387
      %v1960 = vpack.c.b16 %v1390, %v1388
      %v1961 = vpack.c.b16 %v1393, %v1391
      %v1962 = vpack.c.b16 %v1394, %v1392
      %v1963 = vpack.c.b16 %v1397, %v1395
      %v1964 = vpack.c.b16 %v1398, %v1396
      %v1965 = vpack.c.b16 %v1401, %v1399
      %v1966 = vpack.c.b16 %v1402, %v1400
      %v1967 = vpack.c.b16 %v1405, %v1403
      %v1968 = vpack.c.b16 %v1406, %v1404
      %v1969 = vpack.c.b16 %v1409, %v1407
      %v1970 = vpack.c.b16 %v1410, %v1408
      %v1971 = vpack.c.b16 %v1413, %v1411
      %v1972 = vpack.c.b16 %v1414, %v1412
      %v1973 = vpack.c.b16 %v1417, %v1415
      %v1974 = vpack.c.b16 %v1418, %v1416
      %v1975 = vpack.c.b16 %v1421, %v1419
      %v1976 = vpack.c.b16 %v1422, %v1420
      %v1977 = vpack.c.b16 %v1425, %v1423
      %v1978 = vpack.c.b16 %v1426, %v1424
      %v1979 = vpack.c.b16 %v1429, %v1427
      %v1980 = vpack.c.b16 %v1430, %v1428
      %v1981 = vpack.c.b16 %v1433, %v1431
      %v1982 = vpack.c.b16 %v1434, %v1432
      %v1983 = vpack.c.b16 %v1437, %v1435
      %v1984 = vpack.c.b16 %v1438, %v1436
      %v1985 = vpack.c.b16 %v1441, %v1439
      %v1986 = vpack.c.b16 %v1442, %v1440
      %v1987 = vpack.c.b16 %v1445, %v1443
      %v1988 = vpack.c.b16 %v1446, %v1444
      %v1989 = vpack.c.b16 %v1449, %v1447
      %v1990 = vpack.c.b16 %v1450, %v1448
      %v1991 = vpack.c.b16 %v1453, %v1451
      %v1992 = vpack.c.b16 %v1454, %v1452
      %v1993 = vpack.c.b16 %v1457, %v1455
      %v1994 = vpack.c.b16 %v1458, %v1456
      %v1995 = vpack.c.b16 %v1461, %v1459
      %v1996 = vpack.c.b16 %v1462, %v1460
      %v1997 = vpack.c.b16 %v1465, %v1463
      %v1998 = vpack.c.b16 %v1466, %v1464
      %v1999 = vpack.c.b16 %v1469, %v1467
      %v2000 = vpack.c.b16 %v1470, %v1468
      %v2001 = vpack.c.b16 %v1473, %v1471
      %v2002 = vpack.c.b16 %v1474, %v1472
      %v2003 = vpack.c.b16 %v1477, %v1475
      %v2004 = vpack.c.b16 %v1478, %v1476
      %v2005 = vpack.c.b16 %v1481, %v1479
      %v2006 = vpack.c.b16 %v1482, %v1480
      %v2007 = vpack.c.b16 %v1485, %v1483
      %v2008 = vpack.c.b16 %v1486, %v1484
      %v2009 = vpack.c.b16 %v1489, %v1487
      %v2010 = vpack.c.b16 %v1490, %v1488
      %v2011 = vpack.c.b16 %v1493, %v1491
      %v2012 = vpack.c.b16 %v1494, %v1492
      %v2013 = vpack.c.b16 %v1497, %v1495
      %v2014 = vpack.c.b16 %v1498, %v1496
      %v2015 = vpack.c.b16 %v1501, %v1499
      %v2016 = vpack.c.b16 %v1502, %v1500
      %v2017 = vpack.c.b16 %v1505, %v1503
      %v2018 = vpack.c.b16 %v1506, %v1504
      %v2019 = vpack.c.b16 %v1509, %v1507
      %v2020 = vpack.c.b16 %v1510, %v1508
      %v2021 = vpack.c.b16 %v1513, %v1511
      %v2022 = vpack.c.b16 %v1514, %v1512
      %v2023 = vpack.c.b16 %v1517, %v1515
      %v2024 = vpack.c.b16 %v1518, %v1516
      %v2025 = vpack.c.b16 %v1521, %v1519
      %v2026 = vpack.c.b16 %v1522, %v1520
      %v2027 = vpack.c.b16 %v1525, %v1523
      %v2028 = vpack.c.b16 %v1526, %v1524
      %v2029 = vpack.c.b16 %v1529, %v1527
      %v2030 = vpack.c.b16 %v1530, %v1528
      %v2031 = vpack.c.b16 %v1533, %v1531
      %v2032 = vpack.c.b16 %v1534, %v1532
      %v2033 = vpack.c.b16 %v1537, %v1535
      %v2034 = vpack.c.b16 %v1538, %v1536
      %v2035 = vpack.c.b16 %v1541, %v1539
      %v2036 = vpack.c.b16 %v1542, %v1540
      %v2037 = vpack.c.b16 %v1545, %v1543
      %v2038 = vpack.c.b16 %v1546, %v1544
      %v2039 = vpack.c.b16 %v1549, %v1547
      %v2040 = vpack.c.b16 %v1550, %v1548
      %v2041 = vpack.c.b16 %v1553, %v1551
      %v2042 = vpack.c.b16 %v1554, %v1552
      %v2043 = vpack.c.b16 %v1557, %v1555
      %v2044 = vpack.c.b16 %v1558, %v1556
      %v2045 = vpack.c.b16 %v1561, %v1559
      %v2046 = vpack.c.b16 %v1562, %v1560
      %v2047 = vpack.c.b16 %v1565, %v1563
      %v2048 = vpack.c.b16 %v1566, %v1564
      %v2049 = vpack.c.b16 %v1569, %v1567
      %v2050 = vpack.c.b16 %v1570, %v1568
      %v2051 = vpack.c.b16 %v1573, %v1571
      %v2052 = vpack.c.b16 %v1574, %v1572
      %v2053 = vpack.c.b16 %v1577, %v1575
      %v2054 = vpack.c.b16 %v1578, %v1576
      %v2055 = vpack.c.b16 %v1581, %v1579
      %v2056 = vpack.c.b16 %v1582, %v1580
      %v2057 = vpack.c.b16 %v1585, %v1583
      %v2058 = vpack.c.b16 %v1586, %v1584
      %v2059 = vpack.c.b16 %v1589, %v1587
      %v2060 = vpack.c.b16 %v1590, %v1588
      %v2061 = vpack.c.b16 %v1593, %v1591
      %v2062 = vpack.c.b16 %v1594, %v1592
      %v2063 = vpack.c.b16 %v1597, %v1595
      %v2064 = vpack.c.b16 %v1598, %v1596
      %v2065 = vpack.c.b16 %v1601, %v1599
      %v2066 = vpack.c.b16 %v1602, %v1600
      %v2067 = vpack.c.b16 %v1605, %v1603
      %v2068 = vpack.c.b16 %v1606, %v1604
      %v2069 = vpack.c.b16 %v1609, %v1607
      %v2070 = vpack.c.b16 %v1610, %v1608
      %v2071 = vpack.c.b16 %v1613, %v1611
      %v2072 = vpack.c.b16 %v1614, %v1612
      %v2073 = vpack.c.b16 %v1617, %v1615
      %v2074 = vpack.c.b16 %v1618, %v1616
      %v2075 = vpack.c.b16 %v1621, %v1619
      %v2076 = vpack.c.b16 %v1622, %v1620
      %v2077 = vpack.c.b16 %v1625, %v1623
      %v2078 = vpack.c.b16 %v1626, %v1624
      %v2079 = vpack.c.b16 %v1629, %v1627
      %v2080 = vpack.c.b16 %v1630, %v1628
      %v2081 = vpack.c.b16 %v1633, %v1631
      %v2082 = vpack.c.b16 %v1634, %v1632
      %v2083 = vpack.c.b16 %v1637, %v1635
      %v2084 = vpack.c.b16 %v1638, %v1636
      %v2085 = vpack.c.b16 %v1641, %v1639
      %v2086 = vpack.c.b16 %v1642, %v1640
      %v2087 = vpack.c.b16 %v1645, %v1643
      %v2088 = vpack.c.b16 %v1646, %v1644
      %v2089 = vpack.c.b16 %v1649, %v1647
      %v2090 = vpack.c.b16 %v1650, %v1648
      %v2091 = vpack.c.b16 %v1653, %v1651
      %v2092 = vpack.c.b16 %v1654, %v1652
      %v2093 = vpack.c.b16 %v1657, %v1655
      %v2094 = vpack.c.b16 %v1658, %v1656
      %v2095 = vpack.c.b16 %v1661, %v1659
      %v2096 = vpack.c.b16 %v1662, %v1660
      %v2097 = vpack.c.b16 %v1665, %v1663
      %v2098 = vpack.c.b16 %v1666, %v1664
      %v2099 = vpack.c.b16 %v1669, %v1667
      %v2100 = vpack.c.b16 %v1670, %v1668
      %v2101 = vpack.c.b16 %v1673, %v1671
      %v2102 = vpack.c.b16 %v1674, %v1672
      %v2103 = vpack.c.b16 %v1677, %v1675
      %v2104 = vpack.c.b16 %v1678, %v1676
      %v2105 = vpack.c.b16 %v1681, %v1679
      %v2106 = vpack.c.b16 %v1682, %v1680
      %v2107 = vpack.c.b16 %v1685, %v1683
      %v2108 = vpack.c.b16 %v1686, %v1684
      %v2109 = vpack.c.b16 %v1689, %v1687
      %v2110 = vpack.c.b16 %v1690, %v1688
      %v2111 = vpack.c.b16 %v1693, %v1691
      %v2112 = vpack.c.b16 %v1694, %v1692
      %v2113 = vpack.c.b16 %v1697, %v1695
      %v2114 = vpack.c.b16 %v1698, %v1696
      %v2115 = vpack.c.b16 %v1701, %v1699
      %v2116 = vpack.c.b16 %v1702, %v1700
      %v2117 = vpack.c.b16 %v1705, %v1703
      %v2118 = vpack.c.b16 %v1706, %v1704
      %v2119 = vpack.c.b16 %v1709, %v1707
      %v2120 = vpack.c.b16 %v1710, %v1708
      %v2121 = vpack.c.b16 %v1713, %v1711
      %v2122 = vpack.c.b16 %v1714, %v1712
      %v2123 = vpack.c.b16 %v1717, %v1715
      %v2124 = vpack.c.b16 %v1718, %v1716
      %v2125 = vpack.c.b16 %v1721, %v1719
      %v2126 = vpack.c.b16 %v1722, %v1720
      %v2127 = vpack.c.b16 %v1725, %v1723
      %v2128 = vpack.c.b16 %v1726, %v1724
      %v2129 = vpack.c.b16 %v1729, %v1727
      %v2130 = vpack.c.b16 %v1730, %v1728
      %v2131 = vpack.c.b16 %v1733, %v1731
      %v2132 = vpack.c.b16 %v1734, %v1732
      %v2133 = vpack.c.b16 %v1737, %v1735
      %v2134 = vpack.c.b16 %v1738, %v1736
      %v2135 = vpack.c.b16 %v1741, %v1739
      %v2136 = vpack.c.b16 %v1742, %v1740
      %v2137 = vpack.c.b16 %v1745, %v1743
      %v2138 = vpack.c.b16 %v1746, %v1744
      %v2139 = vpack.c.b16 %v1749, %v1747
      %v2140 = vpack.c.b16 %v1750, %v1748
      %v2141 = vpack.c.b16 %v1753, %v1751
      %v2142 = vpack.c.b16 %v1754, %v1752
      %v2143 = vpack.c.b16 %v1757, %v1755
      %v2144 = vpack.c.b16 %v1758, %v1756
      %v2145 = vpack.c.b16 %v1761, %v1759
      %v2146 = vpack.c.b16 %v1762, %v1760
      %v2147 = vpack.c.b16 %v1765, %v1763
      %v2148 = vpack.c.b16 %v1766, %v1764
      %v2149 = vpack.c.b16 %v1769, %v1767
      %v2150 = vpack.c.b16 %v1770, %v1768
      %v2151 = vpack.c.b16 %v1773, %v1771
      %v2152 = vpack.c.b16 %v1774, %v1772
      %v2153 = vpack.c.b16 %v1777, %v1775
      %v2154 = vpack.c.b16 %v1778, %v1776
      %v2155 = vpack.c.b16 %v1781, %v1779
      %v2156 = vpack.c.b16 %v1782, %v1780
      %v2157 = vpack.c.b16 %v1785, %v1783
      %v2158 = vpack.c.b16 %v1786, %v1784
      %v2159 = vpack.c.b16 %v1789, %v1787
      %v2160 = vpack.c.b16 %v1790, %v1788
      %v2161 = vpack.c.b16 %v1793, %v1791
      %v2162 = vpack.c.b16 %v1794, %v1792
      %v2163 = vpack.c.b16 %v1797, %v1795
      %v2164 = vpack.c.b16 %v1798, %v1796
      %v2165 = vpack.c.b16 %v1801, %v1799
      %v2166 = vpack.c.b16 %v1802, %v1800
      %v2167 = vpack.c.b16 %v1805, %v1803
      %v2168 = vpack.c.b16 %v1806, %v1804
      %v2169 = vpack.c.b16 %v1809, %v1807
      %v2170 = vpack.c.b16 %v1810, %v1808
      %v2171 = vpack.c.b16 %v1813, %v1811
      %v2172 = vpack.c.b16 %v1814, %v1812
      %v2173 = vpack.c.b16 %v1817, %v1815
      %v2174 = vpack.c.b16 %v1818, %v1816
      %v2175 = vpack.c.b16 %v1821, %v1819
      %v2176 = vpack.c.b16 %v1822, %v1820
      %v2177 = vpack.c.b16 %v1825, %v1823
      %v2178 = vpack.c.b16 %v1826, %v1824
      %v2179 = vpack.c.b16 %v1829, %v1827
      %v2180 = vpack.c.b16 %v1830, %v1828
      %v2181 = vpack.c.b16 %v1833, %v1831
      %v2182 = vpack.c.b16 %v1834, %v1832
      %v2183 = vpack.c.b16 %v1837, %v1835
      %v2184 = vpack.c.b16 %v1838, %v1836
      %v2185 = vpack.c.b16 %v1841, %v1839
      %v2186 = vpack.c.b16 %v1842, %v1840
      %v2187 = vpack.c.b16 %v1845, %v1843
      %v2188 = vpack.c.b16 %v1846, %v1844
      %v2189 = vpack.c.b16 %v1849, %v1847
      %v2190 = vpack.c.b16 %v1850, %v1848
      %v2191 = vpack.c.b16 %v1853, %v1851
      %v2192 = vpack.c.b16 %v1854, %v1852
      %v2193 = vpack.c.b16 %v1857, %v1855
      %v2194 = vpack.c.b16 %v1858, %v1856
      %v2195 = vpack.c.b16 %v1861, %v1859
      %v2196 = vpack.c.b16 %v1862, %v1860
      %v2197 = vpack.c.b16 %v1865, %v1863
      %v2198 = vpack.c.b16 %v1866, %v1864
      %v2199 = vpack.c.b16 %v1869, %v1867
      %v2200 = vpack.c.b16 %v1870, %v1868
      %v2201 = vpack.c.b16 %v1873, %v1871
      %v2202 = vpack.c.b16 %v1874, %v1872
      %v2203 = vpack.c.b16 %v1877, %v1875
      %v2204 = vpack.c.b16 %v1878, %v1876
      %v2205 = vpack.c.b16 %v1881, %v1879
      %v2206 = vpack.c.b16 %v1882, %v1880
      %v2207 = vpack.c.b16 %v1885, %v1883
      %v2208 = vpack.c.b16 %v1886, %v1884
      %v2209 = vpack.c.b16 %v1889, %v1887
      %v2210 = vpack.c.b16 %v1890, %v1888
      %v2211 = vpack.c.b16 %v1893, %v1891
      %v2212 = vpack.c.b16 %v1894, %v1892
      %v2213 = vpack.c.b16 %v1897, %v1895
      %v2214 = vpack.c.b16 %v1898, %v1896
      %v2215 = vpack.c.b16 %v1901, %v1899
      %v2216 = vpack.c.b16 %v1902, %v1900
      %v2217 = vpack.c.b16 %v1905, %v1903
      %v2218 = vpack.c.b16 %v1906, %v1904
      %v2219 = vpack.c.b16 %v1909, %v1907
      %v2220 = vpack.c.b16 %v1910, %v1908
      %v2221 = vpack.c.b16 %v1913, %v1911
      %v2222 = vpack.c.b16 %v1914, %v1912
      %v2223 = vpack.c.b16 %v1917, %v1915
      %v2224 = vpack.c.b16 %v1918, %v1916
      %v2225 = vpack.c.b16 %v1921, %v1919
      %v2226 = vpack.c.b16 %v1922, %v1920
      %v2227 = vpack.c.b16 %v1925, %v1923
      %v2228 = vpack.c.b16 %v1926, %v1924
      %v2229 = vpack.c.b16 %v1929, %v1927
      %v2230 = vpack.c.b16 %v1930, %v1928
      %v2231 = vpack.c.b16 %v1933, %v1931
      %v2232 = vpack.c.b16 %v1934, %v1932
      %v2233 = vpack.c.b16 %v1937, %v1935
      %v2234 = vpack.c.b16 %v1938, %v1936
      %v2235 = vpack.c.b16 %v1941, %v1939
      %v2236 = vpack.c.b16 %v1942, %v1940
      %v2237 = vpack.c.b16 %v1945, %v1943
      %v2238 = vpack.c.b16 %v1946, %v1944
      %v2239 = vpack.c.b16 %v1949, %v1947
      %v2240 = vpack.c.b16 %v1950, %v1948
      %v2241 = vpack.c.b16 %v1953, %v1951
      %v2242 = vpack.c.b16 %v1954, %v1952
      %2531 = vmatprep.subr.bf16.mxu0 %v1970
      %2532 = vmatpush1.bf16.msra.mxu0 %v1969
      %2533 = vmatprep.subr.bf16.mxu0 %v1968
      %2534 = vmatpush1.bf16.msra.mxu0 %v1967
      %2535 = vmatprep.subr.bf16.mxu0 %v1966
      %2536 = vmatpush1.bf16.msra.mxu0 %v1965
      %2537 = vmatprep.subr.bf16.mxu0 %v1964
      %2538 = vmatpush1.bf16.msra.mxu0 %v1963
      %2539 = vmatprep.subr.bf16.mxu0 %v1962
      %2540 = vmatpush1.bf16.msra.mxu0 %v1961
      %2541 = vmatprep.subr.bf16.mxu0 %v1960
      %2542 = vmatpush1.bf16.msra.mxu0 %v1959
      %2543 = vmatprep.subr.bf16.mxu0 %v1958
      %2544 = vmatpush1.bf16.msra.mxu0 %v1957
      %2545 = vmatprep.subr.bf16.mxu0 %v1956
      %2546 = vmatpush1.bf16.msra.mxu0 %v1955
      %2547 = vmatprep.subr.bf16.mxu0 %v1986
      %2548 = vmatpush2.bf16.msra.mxu0 %v1985
      %2549 = vmatprep.subr.bf16.mxu0 %v1984
      %2550 = vmatpush2.bf16.msra.mxu0 %v1983
      %2551 = vmatprep.subr.bf16.mxu0 %v1982
      %2552 = vmatpush2.bf16.msra.mxu0 %v1981
      %2553 = vmatprep.subr.bf16.mxu0 %v1980
      %2554 = vmatpush2.bf16.msra.mxu0 %v1979
      %2555 = vmatprep.subr.bf16.mxu0 %v1978
      %2556 = vmatpush2.bf16.msra.mxu0 %v1977
      %2557 = vmatprep.subr.bf16.mxu0 %v1976
      %2558 = vmatpush2.bf16.msra.mxu0 %v1975
      %2559 = vmatprep.subr.bf16.mxu0 %v1974
      %2560 = vmatpush2.bf16.msra.mxu0 %v1973
      %2561 = vmatprep.subr.bf16.mxu0 %v1972
      %2562 = vmatpush2.bf16.msra.mxu0 %v1971
      %2563 = vmatprep.mubr.bf16.mxu0 %v876
      %2564 = vmatmul.mubr.bf16.gmra.mxu0 %v875
      %v2565 = vpop.f32.mrf.mxu0
      %v2566 = vadd.f32 %v571, %v2565
      %v2567 = vpop.f32.mrf.mxu0
      %v2568 = vadd.f32 %v575, %v2567
      %v2569 = vpop.f32.mrf.mxu0
      %v2570 = vadd.f32 %v571, %v2569
      %v2571 = vpop.f32.mrf.mxu0
      %v2572 = vadd.f32 %v575, %v2571
      %2573 = vmatprep.mubr.bf16.mxu0 %v894
      %2574 = vmatmul.mubr.bf16.gmra.mxu0 %v893
      %v2575 = vpop.f32.mrf.mxu0
      %v2576 = vadd.f32 %v571, %v2575
      %v2577 = vpop.f32.mrf.mxu0
      %v2578 = vadd.f32 %v575, %v2577
      %v2579 = vpop.f32.mrf.mxu0
      %v2580 = vadd.f32 %v571, %v2579
      %v2581 = vpop.f32.mrf.mxu0
      %v2582 = vadd.f32 %v575, %v2581
      %2583 = vmatprep.mubr.bf16.mxu0 %v912
      %2584 = vmatmul.mubr.bf16.gmra.mxu0 %v911
      %v2585 = vpop.f32.mrf.mxu0
      %v2586 = vadd.f32 %v571, %v2585
      %v2587 = vpop.f32.mrf.mxu0
      %v2588 = vadd.f32 %v575, %v2587
      %v2589 = vpop.f32.mrf.mxu0
      %v2590 = vadd.f32 %v571, %v2589
      %v2591 = vpop.f32.mrf.mxu0
      %v2592 = vadd.f32 %v575, %v2591
      %2593 = vmatprep.mubr.bf16.mxu0 %v930
      %2594 = vmatmul.mubr.bf16.gmra.mxu0 %v929
      %v2595 = vpop.f32.mrf.mxu0
      %v2596 = vadd.f32 %v571, %v2595
      %v2597 = vpop.f32.mrf.mxu0
      %v2598 = vadd.f32 %v575, %v2597
      %v2599 = vpop.f32.mrf.mxu0
      %v2600 = vadd.f32 %v571, %v2599
      %v2601 = vpop.f32.mrf.mxu0
      %v2602 = vadd.f32 %v575, %v2601
      %2603 = vmatprep.mubr.bf16.mxu0 %v948
      %2604 = vmatmul.mubr.bf16.gmra.mxu0 %v947
      %v2605 = vpop.f32.mrf.mxu0
      %v2606 = vadd.f32 %v571, %v2605
      %v2607 = vpop.f32.mrf.mxu0
      %v2608 = vadd.f32 %v575, %v2607
      %v2609 = vpop.f32.mrf.mxu0
      %v2610 = vadd.f32 %v571, %v2609
      %v2611 = vpop.f32.mrf.mxu0
      %v2612 = vadd.f32 %v575, %v2611
      %2613 = vmatprep.mubr.bf16.mxu0 %v966
      %2614 = vmatmul.mubr.bf16.gmra.mxu0 %v965
      %v2615 = vpop.f32.mrf.mxu0
      %v2616 = vadd.f32 %v571, %v2615
      %v2617 = vpop.f32.mrf.mxu0
      %v2618 = vadd.f32 %v575, %v2617
      %v2619 = vpop.f32.mrf.mxu0
      %v2620 = vpop.f32.mrf.mxu0
      %2621 = vdwg.mxu0
      %2622 = vmatprep.subr.bf16.mxu0 %v2002
      %2623 = vmatpush1.bf16.msra.mxu0 %v2001
      %2624 = vmatprep.subr.bf16.mxu0 %v2000
      %2625 = vmatpush1.bf16.msra.mxu0 %v1999
      %2626 = vmatprep.subr.bf16.mxu0 %v1998
      %2627 = vmatpush1.bf16.msra.mxu0 %v1997
      %2628 = vmatprep.subr.bf16.mxu0 %v1996
      %2629 = vmatpush1.bf16.msra.mxu0 %v1995
      %2630 = vmatprep.subr.bf16.mxu0 %v1994
      %2631 = vmatpush1.bf16.msra.mxu0 %v1993
      %2632 = vmatprep.subr.bf16.mxu0 %v1992
      %2633 = vmatpush1.bf16.msra.mxu0 %v1991
      %2634 = vmatprep.subr.bf16.mxu0 %v1990
      %2635 = vmatpush1.bf16.msra.mxu0 %v1989
      %2636 = vmatprep.subr.bf16.mxu0 %v1988
      %2637 = vmatpush1.bf16.msra.mxu0 %v1987
      %2638 = vmatprep.subr.bf16.mxu0 %v2018
      %2639 = vmatpush2.bf16.msra.mxu0 %v2017
      %2640 = vmatprep.subr.bf16.mxu0 %v2016
      %2641 = vmatpush2.bf16.msra.mxu0 %v2015
      %2642 = vmatprep.subr.bf16.mxu0 %v2014
      %2643 = vmatpush2.bf16.msra.mxu0 %v2013
      %2644 = vmatprep.subr.bf16.mxu0 %v2012
      %2645 = vmatpush2.bf16.msra.mxu0 %v2011
      %2646 = vmatprep.subr.bf16.mxu0 %v2010
      %2647 = vmatpush2.bf16.msra.mxu0 %v2009
      %2648 = vmatprep.subr.bf16.mxu0 %v2008
      %2649 = vmatpush2.bf16.msra.mxu0 %v2007
      %2650 = vmatprep.subr.bf16.mxu0 %v2006
      %2651 = vmatpush2.bf16.msra.mxu0 %v2005
      %2652 = vmatprep.subr.bf16.mxu0 %v2004
      %2653 = vmatpush2.bf16.msra.mxu0 %v2003
      %2654 = vmatprep.mubr.bf16.mxu0 %v878
      %2655 = vmatmul.mubr.bf16.gmra.mxu0 %v877
      %v2656 = vpop.f32.mrf.mxu0
      %v2657 = vadd.f32 %v2566, %v2656
      %v2658 = vpop.f32.mrf.mxu0
      %v2659 = vadd.f32 %v2568, %v2658
      %v2660 = vpop.f32.mrf.mxu0
      %v2661 = vadd.f32 %v2570, %v2660
      %v2662 = vpop.f32.mrf.mxu0
      %v2663 = vadd.f32 %v2572, %v2662
      %2664 = vmatprep.mubr.bf16.mxu0 %v896
      %2665 = vmatmul.mubr.bf16.gmra.mxu0 %v895
      %v2666 = vpop.f32.mrf.mxu0
      %v2667 = vadd.f32 %v2576, %v2666
      %v2668 = vpop.f32.mrf.mxu0
      %v2669 = vadd.f32 %v2578, %v2668
      %v2670 = vpop.f32.mrf.mxu0
      %v2671 = vadd.f32 %v2580, %v2670
      %v2672 = vpop.f32.mrf.mxu0
      %v2673 = vadd.f32 %v2582, %v2672
      %2674 = vmatprep.mubr.bf16.mxu0 %v914
      %2675 = vmatmul.mubr.bf16.gmra.mxu0 %v913
      %v2676 = vpop.f32.mrf.mxu0
      %v2677 = vadd.f32 %v2586, %v2676
      %v2678 = vpop.f32.mrf.mxu0
      %v2679 = vadd.f32 %v2588, %v2678
      %v2680 = vpop.f32.mrf.mxu0
      %v2681 = vadd.f32 %v2590, %v2680
      %v2682 = vpop.f32.mrf.mxu0
      %v2683 = vadd.f32 %v2592, %v2682
      %2684 = vmatprep.mubr.bf16.mxu0 %v932
      %2685 = vmatmul.mubr.bf16.gmra.mxu0 %v931
      %v2686 = vpop.f32.mrf.mxu0
      %v2687 = vadd.f32 %v2596, %v2686
      %v2688 = vpop.f32.mrf.mxu0
      %v2689 = vadd.f32 %v2598, %v2688
      %v2690 = vpop.f32.mrf.mxu0
      %v2691 = vadd.f32 %v2600, %v2690
      %v2692 = vpop.f32.mrf.mxu0
      %v2693 = vadd.f32 %v2602, %v2692
      %2694 = vmatprep.mubr.bf16.mxu0 %v950
      %2695 = vmatmul.mubr.bf16.gmra.mxu0 %v949
      %v2696 = vpop.f32.mrf.mxu0
      %v2697 = vadd.f32 %v2606, %v2696
      %v2698 = vpop.f32.mrf.mxu0
      %v2699 = vadd.f32 %v2608, %v2698
      %v2700 = vpop.f32.mrf.mxu0
      %v2701 = vadd.f32 %v2610, %v2700
      %v2702 = vpop.f32.mrf.mxu0
      %v2703 = vadd.f32 %v2612, %v2702
      %2704 = vmatprep.mubr.bf16.mxu0 %v968
      %2705 = vmatmul.mubr.bf16.gmra.mxu0 %v967
      %v2706 = vpop.f32.mrf.mxu0
      %v2707 = vadd.f32 %v2616, %v2706
      %v2708 = vpop.f32.mrf.mxu0
      %v2709 = vadd.f32 %v2618, %v2708
      %v2710 = vpop.f32.mrf.mxu0
      %v2711 = vpop.f32.mrf.mxu0
      %2712 = vdwg.mxu0
      %2713 = vmatprep.subr.bf16.mxu0 %v2034
      %2714 = vmatpush1.bf16.msra.mxu0 %v2033
      %2715 = vmatprep.subr.bf16.mxu0 %v2032
      %2716 = vmatpush1.bf16.msra.mxu0 %v2031
      %2717 = vmatprep.subr.bf16.mxu0 %v2030
      %2718 = vmatpush1.bf16.msra.mxu0 %v2029
      %2719 = vmatprep.subr.bf16.mxu0 %v2028
      %2720 = vmatpush1.bf16.msra.mxu0 %v2027
      %2721 = vmatprep.subr.bf16.mxu0 %v2026
      %2722 = vmatpush1.bf16.msra.mxu0 %v2025
      %2723 = vmatprep.subr.bf16.mxu0 %v2024
      %2724 = vmatpush1.bf16.msra.mxu0 %v2023
      %2725 = vmatprep.subr.bf16.mxu0 %v2022
      %2726 = vmatpush1.bf16.msra.mxu0 %v2021
      %2727 = vmatprep.subr.bf16.mxu0 %v2020
      %2728 = vmatpush1.bf16.msra.mxu0 %v2019
      %2729 = vmatprep.subr.bf16.mxu0 %v2050
      %2730 = vmatpush2.bf16.msra.mxu0 %v2049
      %2731 = vmatprep.subr.bf16.mxu0 %v2048
      %2732 = vmatpush2.bf16.msra.mxu0 %v2047
      %2733 = vmatprep.subr.bf16.mxu0 %v2046
      %2734 = vmatpush2.bf16.msra.mxu0 %v2045
      %2735 = vmatprep.subr.bf16.mxu0 %v2044
      %2736 = vmatpush2.bf16.msra.mxu0 %v2043
      %2737 = vmatprep.subr.bf16.mxu0 %v2042
      %2738 = vmatpush2.bf16.msra.mxu0 %v2041
      %2739 = vmatprep.subr.bf16.mxu0 %v2040
      %2740 = vmatpush2.bf16.msra.mxu0 %v2039
      %2741 = vmatprep.subr.bf16.mxu0 %v2038
      %2742 = vmatpush2.bf16.msra.mxu0 %v2037
      %2743 = vmatprep.subr.bf16.mxu0 %v2036
      %2744 = vmatpush2.bf16.msra.mxu0 %v2035
      %2745 = vmatprep.mubr.bf16.mxu0 %v880
      %2746 = vmatmul.mubr.bf16.gmra.mxu0 %v879
      %v2747 = vpop.f32.mrf.mxu0
      %v2748 = vadd.f32 %v2657, %v2747
      %v2749 = vpop.f32.mrf.mxu0
      %v2750 = vadd.f32 %v2659, %v2749
      %v2751 = vpop.f32.mrf.mxu0
      %v2752 = vadd.f32 %v2661, %v2751
      %v2753 = vpop.f32.mrf.mxu0
      %v2754 = vadd.f32 %v2663, %v2753
      %2755 = vmatprep.mubr.bf16.mxu0 %v898
      %2756 = vmatmul.mubr.bf16.gmra.mxu0 %v897
      %v2757 = vpop.f32.mrf.mxu0
      %v2758 = vadd.f32 %v2667, %v2757
      %v2759 = vpop.f32.mrf.mxu0
      %v2760 = vadd.f32 %v2669, %v2759
      %v2761 = vpop.f32.mrf.mxu0
      %v2762 = vadd.f32 %v2671, %v2761
      %v2763 = vpop.f32.mrf.mxu0
      %v2764 = vadd.f32 %v2673, %v2763
      %2765 = vmatprep.mubr.bf16.mxu0 %v916
      %2766 = vmatmul.mubr.bf16.gmra.mxu0 %v915
      %v2767 = vpop.f32.mrf.mxu0
      %v2768 = vadd.f32 %v2677, %v2767
      %v2769 = vpop.f32.mrf.mxu0
      %v2770 = vadd.f32 %v2679, %v2769
      %v2771 = vpop.f32.mrf.mxu0
      %v2772 = vadd.f32 %v2681, %v2771
      %v2773 = vpop.f32.mrf.mxu0
      %v2774 = vadd.f32 %v2683, %v2773
      %2775 = vmatprep.mubr.bf16.mxu0 %v934
      %2776 = vmatmul.mubr.bf16.gmra.mxu0 %v933
      %v2777 = vpop.f32.mrf.mxu0
      %v2778 = vadd.f32 %v2687, %v2777
      %v2779 = vpop.f32.mrf.mxu0
      %v2780 = vadd.f32 %v2689, %v2779
      %v2781 = vpop.f32.mrf.mxu0
      %v2782 = vadd.f32 %v2691, %v2781
      %v2783 = vpop.f32.mrf.mxu0
      %v2784 = vadd.f32 %v2693, %v2783
      %2785 = vmatprep.mubr.bf16.mxu0 %v952
      %2786 = vmatmul.mubr.bf16.gmra.mxu0 %v951
      %v2787 = vpop.f32.mrf.mxu0
      %v2788 = vadd.f32 %v2697, %v2787
      %v2789 = vpop.f32.mrf.mxu0
      %v2790 = vadd.f32 %v2699, %v2789
      %v2791 = vpop.f32.mrf.mxu0
      %v2792 = vadd.f32 %v2701, %v2791
      %v2793 = vpop.f32.mrf.mxu0
      %v2794 = vadd.f32 %v2703, %v2793
      %2795 = vmatprep.mubr.bf16.mxu0 %v970
      %2796 = vmatmul.mubr.bf16.gmra.mxu0 %v969
      %v2797 = vpop.f32.mrf.mxu0
      %v2798 = vadd.f32 %v2707, %v2797
      %v2799 = vpop.f32.mrf.mxu0
      %v2800 = vadd.f32 %v2709, %v2799
      %v2801 = vpop.f32.mrf.mxu0
      %v2802 = vpop.f32.mrf.mxu0
      %2803 = vdwg.mxu0
      %2804 = vmatprep.subr.bf16.mxu0 %v2066
      %2805 = vmatpush1.bf16.msra.mxu0 %v2065
      %2806 = vmatprep.subr.bf16.mxu0 %v2064
      %2807 = vmatpush1.bf16.msra.mxu0 %v2063
      %2808 = vmatprep.subr.bf16.mxu0 %v2062
      %2809 = vmatpush1.bf16.msra.mxu0 %v2061
      %2810 = vmatprep.subr.bf16.mxu0 %v2060
      %2811 = vmatpush1.bf16.msra.mxu0 %v2059
      %2812 = vmatprep.subr.bf16.mxu0 %v2058
      %2813 = vmatpush1.bf16.msra.mxu0 %v2057
      %2814 = vmatprep.subr.bf16.mxu0 %v2056
      %2815 = vmatpush1.bf16.msra.mxu0 %v2055
      %2816 = vmatprep.subr.bf16.mxu0 %v2054
      %2817 = vmatpush1.bf16.msra.mxu0 %v2053
      %2818 = vmatprep.subr.bf16.mxu0 %v2052
      %2819 = vmatpush1.bf16.msra.mxu0 %v2051
      %2820 = vmatprep.subr.bf16.mxu0 %v2082
      %2821 = vmatpush2.bf16.msra.mxu0 %v2081
      %2822 = vmatprep.subr.bf16.mxu0 %v2080
      %2823 = vmatpush2.bf16.msra.mxu0 %v2079
      %2824 = vmatprep.subr.bf16.mxu0 %v2078
      %2825 = vmatpush2.bf16.msra.mxu0 %v2077
      %2826 = vmatprep.subr.bf16.mxu0 %v2076
      %2827 = vmatpush2.bf16.msra.mxu0 %v2075
      %2828 = vmatprep.subr.bf16.mxu0 %v2074
      %2829 = vmatpush2.bf16.msra.mxu0 %v2073
      %2830 = vmatprep.subr.bf16.mxu0 %v2072
      %2831 = vmatpush2.bf16.msra.mxu0 %v2071
      %2832 = vmatprep.subr.bf16.mxu0 %v2070
      %2833 = vmatpush2.bf16.msra.mxu0 %v2069
      %2834 = vmatprep.subr.bf16.mxu0 %v2068
      %2835 = vmatpush2.bf16.msra.mxu0 %v2067
      %2836 = vmatprep.mubr.bf16.mxu0 %v882
      %2837 = vmatmul.mubr.bf16.gmra.mxu0 %v881
      %v2838 = vpop.f32.mrf.mxu0
      %v2839 = vadd.f32 %v2748, %v2838
      %v2840 = vpop.f32.mrf.mxu0
      %v2841 = vadd.f32 %v2750, %v2840
      %v2842 = vpop.f32.mrf.mxu0
      %v2843 = vadd.f32 %v2752, %v2842
      %v2844 = vpop.f32.mrf.mxu0
      %v2845 = vadd.f32 %v2754, %v2844
      %2846 = vmatprep.mubr.bf16.mxu0 %v900
      %2847 = vmatmul.mubr.bf16.gmra.mxu0 %v899
      %v2848 = vpop.f32.mrf.mxu0
      %v2849 = vadd.f32 %v2758, %v2848
      %v2850 = vpop.f32.mrf.mxu0
      %v2851 = vadd.f32 %v2760, %v2850
      %v2852 = vpop.f32.mrf.mxu0
      %v2853 = vadd.f32 %v2762, %v2852
      %v2854 = vpop.f32.mrf.mxu0
      %v2855 = vadd.f32 %v2764, %v2854
      %2856 = vmatprep.mubr.bf16.mxu0 %v918
      %2857 = vmatmul.mubr.bf16.gmra.mxu0 %v917
      %v2858 = vpop.f32.mrf.mxu0
      %v2859 = vadd.f32 %v2768, %v2858
      %v2860 = vpop.f32.mrf.mxu0
      %v2861 = vadd.f32 %v2770, %v2860
      %v2862 = vpop.f32.mrf.mxu0
      %v2863 = vadd.f32 %v2772, %v2862
      %v2864 = vpop.f32.mrf.mxu0
      %v2865 = vadd.f32 %v2774, %v2864
      %2866 = vmatprep.mubr.bf16.mxu0 %v936
      %2867 = vmatmul.mubr.bf16.gmra.mxu0 %v935
      %v2868 = vpop.f32.mrf.mxu0
      %v2869 = vadd.f32 %v2778, %v2868
      %v2870 = vpop.f32.mrf.mxu0
      %v2871 = vadd.f32 %v2780, %v2870
      %v2872 = vpop.f32.mrf.mxu0
      %v2873 = vadd.f32 %v2782, %v2872
      %v2874 = vpop.f32.mrf.mxu0
      %v2875 = vadd.f32 %v2784, %v2874
      %2876 = vmatprep.mubr.bf16.mxu0 %v954
      %2877 = vmatmul.mubr.bf16.gmra.mxu0 %v953
      %v2878 = vpop.f32.mrf.mxu0
      %v2879 = vadd.f32 %v2788, %v2878
      %v2880 = vpop.f32.mrf.mxu0
      %v2881 = vadd.f32 %v2790, %v2880
      %v2882 = vpop.f32.mrf.mxu0
      %v2883 = vadd.f32 %v2792, %v2882
      %v2884 = vpop.f32.mrf.mxu0
      %v2885 = vadd.f32 %v2794, %v2884
      %2886 = vmatprep.mubr.bf16.mxu0 %v972
      %2887 = vmatmul.mubr.bf16.gmra.mxu0 %v971
      %v2888 = vpop.f32.mrf.mxu0
      %v2889 = vadd.f32 %v2798, %v2888
      %v2890 = vpop.f32.mrf.mxu0
      %v2891 = vadd.f32 %v2800, %v2890
      %v2892 = vpop.f32.mrf.mxu0
      %v2893 = vpop.f32.mrf.mxu0
      %2894 = vdwg.mxu0
      %2895 = vmatprep.subr.bf16.mxu0 %v2098
      %2896 = vmatpush1.bf16.msra.mxu0 %v2097
      %2897 = vmatprep.subr.bf16.mxu0 %v2096
      %2898 = vmatpush1.bf16.msra.mxu0 %v2095
      %2899 = vmatprep.subr.bf16.mxu0 %v2094
      %2900 = vmatpush1.bf16.msra.mxu0 %v2093
      %2901 = vmatprep.subr.bf16.mxu0 %v2092
      %2902 = vmatpush1.bf16.msra.mxu0 %v2091
      %2903 = vmatprep.subr.bf16.mxu0 %v2090
      %2904 = vmatpush1.bf16.msra.mxu0 %v2089
      %2905 = vmatprep.subr.bf16.mxu0 %v2088
      %2906 = vmatpush1.bf16.msra.mxu0 %v2087
      %2907 = vmatprep.subr.bf16.mxu0 %v2086
      %2908 = vmatpush1.bf16.msra.mxu0 %v2085
      %2909 = vmatprep.subr.bf16.mxu0 %v2084
      %2910 = vmatpush1.bf16.msra.mxu0 %v2083
      %2911 = vmatprep.subr.bf16.mxu0 %v2114
      %2912 = vmatpush2.bf16.msra.mxu0 %v2113
      %2913 = vmatprep.subr.bf16.mxu0 %v2112
      %2914 = vmatpush2.bf16.msra.mxu0 %v2111
      %2915 = vmatprep.subr.bf16.mxu0 %v2110
      %2916 = vmatpush2.bf16.msra.mxu0 %v2109
      %2917 = vmatprep.subr.bf16.mxu0 %v2108
      %2918 = vmatpush2.bf16.msra.mxu0 %v2107
      %2919 = vmatprep.subr.bf16.mxu0 %v2106
      %2920 = vmatpush2.bf16.msra.mxu0 %v2105
      %2921 = vmatprep.subr.bf16.mxu0 %v2104
      %2922 = vmatpush2.bf16.msra.mxu0 %v2103
      %2923 = vmatprep.subr.bf16.mxu0 %v2102
      %2924 = vmatpush2.bf16.msra.mxu0 %v2101
      %2925 = vmatprep.subr.bf16.mxu0 %v2100
      %2926 = vmatpush2.bf16.msra.mxu0 %v2099
      %2927 = vmatprep.mubr.bf16.mxu0 %v884
      %2928 = vmatmul.mubr.bf16.gmra.mxu0 %v883
      %v2929 = vpop.f32.mrf.mxu0
      %v2930 = vadd.f32 %v2839, %v2929
      %v2931 = vpop.f32.mrf.mxu0
      %v2932 = vadd.f32 %v2841, %v2931
      %v2933 = vpop.f32.mrf.mxu0
      %v2934 = vadd.f32 %v2843, %v2933
      %v2935 = vpop.f32.mrf.mxu0
      %v2936 = vadd.f32 %v2845, %v2935
      %2937 = vmatprep.mubr.bf16.mxu0 %v902
      %2938 = vmatmul.mubr.bf16.gmra.mxu0 %v901
      %v2939 = vpop.f32.mrf.mxu0
      %v2940 = vadd.f32 %v2849, %v2939
      %v2941 = vpop.f32.mrf.mxu0
      %v2942 = vadd.f32 %v2851, %v2941
      %v2943 = vpop.f32.mrf.mxu0
      %v2944 = vadd.f32 %v2853, %v2943
      %v2945 = vpop.f32.mrf.mxu0
      %v2946 = vadd.f32 %v2855, %v2945
      %2947 = vmatprep.mubr.bf16.mxu0 %v920
      %2948 = vmatmul.mubr.bf16.gmra.mxu0 %v919
      %v2949 = vpop.f32.mrf.mxu0
      %v2950 = vadd.f32 %v2859, %v2949
      %v2951 = vpop.f32.mrf.mxu0
      %v2952 = vadd.f32 %v2861, %v2951
      %v2953 = vpop.f32.mrf.mxu0
      %v2954 = vadd.f32 %v2863, %v2953
      %v2955 = vpop.f32.mrf.mxu0
      %v2956 = vadd.f32 %v2865, %v2955
      %2957 = vmatprep.mubr.bf16.mxu0 %v938
      %2958 = vmatmul.mubr.bf16.gmra.mxu0 %v937
      %v2959 = vpop.f32.mrf.mxu0
      %v2960 = vadd.f32 %v2869, %v2959
      %v2961 = vpop.f32.mrf.mxu0
      %v2962 = vadd.f32 %v2871, %v2961
      %v2963 = vpop.f32.mrf.mxu0
      %v2964 = vadd.f32 %v2873, %v2963
      %v2965 = vpop.f32.mrf.mxu0
      %v2966 = vadd.f32 %v2875, %v2965
      %2967 = vmatprep.mubr.bf16.mxu0 %v956
      %2968 = vmatmul.mubr.bf16.gmra.mxu0 %v955
      %v2969 = vpop.f32.mrf.mxu0
      %v2970 = vadd.f32 %v2879, %v2969
      %v2971 = vpop.f32.mrf.mxu0
      %v2972 = vadd.f32 %v2881, %v2971
      %v2973 = vpop.f32.mrf.mxu0
      %v2974 = vadd.f32 %v2883, %v2973
      %v2975 = vpop.f32.mrf.mxu0
      %v2976 = vadd.f32 %v2885, %v2975
      %2977 = vmatprep.mubr.bf16.mxu0 %v974
      %2978 = vmatmul.mubr.bf16.gmra.mxu0 %v973
      %v2979 = vpop.f32.mrf.mxu0
      %v2980 = vadd.f32 %v2889, %v2979
      %v2981 = vpop.f32.mrf.mxu0
      %v2982 = vadd.f32 %v2891, %v2981
      %v2983 = vpop.f32.mrf.mxu0
      %v2984 = vpop.f32.mrf.mxu0
      %2985 = vdwg.mxu0
      %2986 = vmatprep.subr.bf16.mxu0 %v2130
      %2987 = vmatpush1.bf16.msra.mxu0 %v2129
      %2988 = vmatprep.subr.bf16.mxu0 %v2128
      %2989 = vmatpush1.bf16.msra.mxu0 %v2127
      %2990 = vmatprep.subr.bf16.mxu0 %v2126
      %2991 = vmatpush1.bf16.msra.mxu0 %v2125
      %2992 = vmatprep.subr.bf16.mxu0 %v2124
      %2993 = vmatpush1.bf16.msra.mxu0 %v2123
      %2994 = vmatprep.subr.bf16.mxu0 %v2122
      %2995 = vmatpush1.bf16.msra.mxu0 %v2121
      %2996 = vmatprep.subr.bf16.mxu0 %v2120
      %2997 = vmatpush1.bf16.msra.mxu0 %v2119
      %2998 = vmatprep.subr.bf16.mxu0 %v2118
      %2999 = vmatpush1.bf16.msra.mxu0 %v2117
      %3000 = vmatprep.subr.bf16.mxu0 %v2116
      %3001 = vmatpush1.bf16.msra.mxu0 %v2115
      %3002 = vmatprep.subr.bf16.mxu0 %v2146
      %3003 = vmatpush2.bf16.msra.mxu0 %v2145
      %3004 = vmatprep.subr.bf16.mxu0 %v2144
      %3005 = vmatpush2.bf16.msra.mxu0 %v2143
      %3006 = vmatprep.subr.bf16.mxu0 %v2142
      %3007 = vmatpush2.bf16.msra.mxu0 %v2141
      %3008 = vmatprep.subr.bf16.mxu0 %v2140
      %3009 = vmatpush2.bf16.msra.mxu0 %v2139
      %3010 = vmatprep.subr.bf16.mxu0 %v2138
      %3011 = vmatpush2.bf16.msra.mxu0 %v2137
      %3012 = vmatprep.subr.bf16.mxu0 %v2136
      %3013 = vmatpush2.bf16.msra.mxu0 %v2135
      %3014 = vmatprep.subr.bf16.mxu0 %v2134
      %3015 = vmatpush2.bf16.msra.mxu0 %v2133
      %3016 = vmatprep.subr.bf16.mxu0 %v2132
      %3017 = vmatpush2.bf16.msra.mxu0 %v2131
      %3018 = vmatprep.mubr.bf16.mxu0 %v886
      %3019 = vmatmul.mubr.bf16.gmra.mxu0 %v885
      %v3020 = vpop.f32.mrf.mxu0
      %v3021 = vadd.f32 %v2930, %v3020
      %v3022 = vpop.f32.mrf.mxu0
      %v3023 = vadd.f32 %v2932, %v3022
      %v3024 = vpop.f32.mrf.mxu0
      %v3025 = vadd.f32 %v2934, %v3024
      %v3026 = vpop.f32.mrf.mxu0
      %v3027 = vadd.f32 %v2936, %v3026
      %3028 = vmatprep.mubr.bf16.mxu0 %v904
      %3029 = vmatmul.mubr.bf16.gmra.mxu0 %v903
      %v3030 = vpop.f32.mrf.mxu0
      %v3031 = vadd.f32 %v2940, %v3030
      %v3032 = vpop.f32.mrf.mxu0
      %v3033 = vadd.f32 %v2942, %v3032
      %v3034 = vpop.f32.mrf.mxu0
      %v3035 = vadd.f32 %v2944, %v3034
      %v3036 = vpop.f32.mrf.mxu0
      %v3037 = vadd.f32 %v2946, %v3036
      %3038 = vmatprep.mubr.bf16.mxu0 %v922
      %3039 = vmatmul.mubr.bf16.gmra.mxu0 %v921
      %v3040 = vpop.f32.mrf.mxu0
      %v3041 = vadd.f32 %v2950, %v3040
      %v3042 = vpop.f32.mrf.mxu0
      %v3043 = vadd.f32 %v2952, %v3042
      %v3044 = vpop.f32.mrf.mxu0
      %v3045 = vadd.f32 %v2954, %v3044
      %v3046 = vpop.f32.mrf.mxu0
      %v3047 = vadd.f32 %v2956, %v3046
      %3048 = vmatprep.mubr.bf16.mxu0 %v940
      %3049 = vmatmul.mubr.bf16.gmra.mxu0 %v939
      %v3050 = vpop.f32.mrf.mxu0
      %v3051 = vadd.f32 %v2960, %v3050
      %v3052 = vpop.f32.mrf.mxu0
      %v3053 = vadd.f32 %v2962, %v3052
      %v3054 = vpop.f32.mrf.mxu0
      %v3055 = vadd.f32 %v2964, %v3054
      %v3056 = vpop.f32.mrf.mxu0
      %v3057 = vadd.f32 %v2966, %v3056
      %3058 = vmatprep.mubr.bf16.mxu0 %v958
      %3059 = vmatmul.mubr.bf16.gmra.mxu0 %v957
      %v3060 = vpop.f32.mrf.mxu0
      %v3061 = vadd.f32 %v2970, %v3060
      %v3062 = vpop.f32.mrf.mxu0
      %v3063 = vadd.f32 %v2972, %v3062
      %v3064 = vpop.f32.mrf.mxu0
      %v3065 = vadd.f32 %v2974, %v3064
      %v3066 = vpop.f32.mrf.mxu0
      %v3067 = vadd.f32 %v2976, %v3066
      %3068 = vmatprep.mubr.bf16.mxu0 %v976
      %3069 = vmatmul.mubr.bf16.gmra.mxu0 %v975
      %v3070 = vpop.f32.mrf.mxu0
      %v3071 = vadd.f32 %v2980, %v3070
      %v3072 = vpop.f32.mrf.mxu0
      %v3073 = vadd.f32 %v2982, %v3072
      %v3074 = vpop.f32.mrf.mxu0
      %v3075 = vpop.f32.mrf.mxu0
      %3076 = vdwg.mxu0
      %3077 = vmatprep.subr.bf16.mxu0 %v2162
      %3078 = vmatpush1.bf16.msra.mxu0 %v2161
      %3079 = vmatprep.subr.bf16.mxu0 %v2160
      %3080 = vmatpush1.bf16.msra.mxu0 %v2159
      %3081 = vmatprep.subr.bf16.mxu0 %v2158
      %3082 = vmatpush1.bf16.msra.mxu0 %v2157
      %3083 = vmatprep.subr.bf16.mxu0 %v2156
      %3084 = vmatpush1.bf16.msra.mxu0 %v2155
      %3085 = vmatprep.subr.bf16.mxu0 %v2154
      %3086 = vmatpush1.bf16.msra.mxu0 %v2153
      %3087 = vmatprep.subr.bf16.mxu0 %v2152
      %3088 = vmatpush1.bf16.msra.mxu0 %v2151
      %3089 = vmatprep.subr.bf16.mxu0 %v2150
      %3090 = vmatpush1.bf16.msra.mxu0 %v2149
      %3091 = vmatprep.subr.bf16.mxu0 %v2148
      %3092 = vmatpush1.bf16.msra.mxu0 %v2147
      %3093 = vmatprep.subr.bf16.mxu0 %v2178
      %3094 = vmatpush2.bf16.msra.mxu0 %v2177
      %3095 = vmatprep.subr.bf16.mxu0 %v2176
      %3096 = vmatpush2.bf16.msra.mxu0 %v2175
      %3097 = vmatprep.subr.bf16.mxu0 %v2174
      %3098 = vmatpush2.bf16.msra.mxu0 %v2173
      %3099 = vmatprep.subr.bf16.mxu0 %v2172
      %3100 = vmatpush2.bf16.msra.mxu0 %v2171
      %3101 = vmatprep.subr.bf16.mxu0 %v2170
      %3102 = vmatpush2.bf16.msra.mxu0 %v2169
      %3103 = vmatprep.subr.bf16.mxu0 %v2168
      %3104 = vmatpush2.bf16.msra.mxu0 %v2167
      %3105 = vmatprep.subr.bf16.mxu0 %v2166
      %3106 = vmatpush2.bf16.msra.mxu0 %v2165
      %3107 = vmatprep.subr.bf16.mxu0 %v2164
      %3108 = vmatpush2.bf16.msra.mxu0 %v2163
      %3109 = vmatprep.mubr.bf16.mxu0 %v888
      %3110 = vmatmul.mubr.bf16.gmra.mxu0 %v887
      %v3111 = vpop.f32.mrf.mxu0
      %v3112 = vadd.f32 %v3021, %v3111
      %v3113 = vpop.f32.mrf.mxu0
      %v3114 = vadd.f32 %v3023, %v3113
      %v3115 = vpop.f32.mrf.mxu0
      %v3116 = vadd.f32 %v3025, %v3115
      %v3117 = vpop.f32.mrf.mxu0
      %v3118 = vadd.f32 %v3027, %v3117
      %3119 = vmatprep.mubr.bf16.mxu0 %v906
      %3120 = vmatmul.mubr.bf16.gmra.mxu0 %v905
      %v3121 = vpop.f32.mrf.mxu0
      %v3122 = vadd.f32 %v3031, %v3121
      %v3123 = vpop.f32.mrf.mxu0
      %v3124 = vadd.f32 %v3033, %v3123
      %v3125 = vpop.f32.mrf.mxu0
      %v3126 = vadd.f32 %v3035, %v3125
      %v3127 = vpop.f32.mrf.mxu0
      %v3128 = vadd.f32 %v3037, %v3127
      %3129 = vmatprep.mubr.bf16.mxu0 %v924
      %3130 = vmatmul.mubr.bf16.gmra.mxu0 %v923
      %v3131 = vpop.f32.mrf.mxu0
      %v3132 = vadd.f32 %v3041, %v3131
      %v3133 = vpop.f32.mrf.mxu0
      %v3134 = vadd.f32 %v3043, %v3133
      %v3135 = vpop.f32.mrf.mxu0
      %v3136 = vadd.f32 %v3045, %v3135
      %v3137 = vpop.f32.mrf.mxu0
      %v3138 = vadd.f32 %v3047, %v3137
      %3139 = vmatprep.mubr.bf16.mxu0 %v942
      %3140 = vmatmul.mubr.bf16.gmra.mxu0 %v941
      %v3141 = vpop.f32.mrf.mxu0
      %v3142 = vadd.f32 %v3051, %v3141
      %v3143 = vpop.f32.mrf.mxu0
      %v3144 = vadd.f32 %v3053, %v3143
      %v3145 = vpop.f32.mrf.mxu0
      %v3146 = vadd.f32 %v3055, %v3145
      %v3147 = vpop.f32.mrf.mxu0
      %v3148 = vadd.f32 %v3057, %v3147
      %3149 = vmatprep.mubr.bf16.mxu0 %v960
      %3150 = vmatmul.mubr.bf16.gmra.mxu0 %v959
      %v3151 = vpop.f32.mrf.mxu0
      %v3152 = vadd.f32 %v3061, %v3151
      %v3153 = vpop.f32.mrf.mxu0
      %v3154 = vadd.f32 %v3063, %v3153
      %v3155 = vpop.f32.mrf.mxu0
      %v3156 = vadd.f32 %v3065, %v3155
      %v3157 = vpop.f32.mrf.mxu0
      %v3158 = vadd.f32 %v3067, %v3157
      %3159 = vmatprep.mubr.bf16.mxu0 %v978
      %3160 = vmatmul.mubr.bf16.gmra.mxu0 %v977
      %v3161 = vpop.f32.mrf.mxu0
      %v3162 = vadd.f32 %v3071, %v3161
      %v3163 = vpop.f32.mrf.mxu0
      %v3164 = vadd.f32 %v3073, %v3163
      %v3165 = vpop.f32.mrf.mxu0
      %v3166 = vpop.f32.mrf.mxu0
      %3167 = vdwg.mxu0
      %3168 = vmatprep.subr.bf16.mxu0 %v2194
      %3169 = vmatpush1.bf16.msra.mxu0 %v2193
      %3170 = vmatprep.subr.bf16.mxu0 %v2192
      %3171 = vmatpush1.bf16.msra.mxu0 %v2191
      %3172 = vmatprep.subr.bf16.mxu0 %v2190
      %3173 = vmatpush1.bf16.msra.mxu0 %v2189
      %3174 = vmatprep.subr.bf16.mxu0 %v2188
      %3175 = vmatpush1.bf16.msra.mxu0 %v2187
      %3176 = vmatprep.subr.bf16.mxu0 %v2186
      %3177 = vmatpush1.bf16.msra.mxu0 %v2185
      %3178 = vmatprep.subr.bf16.mxu0 %v2184
      %3179 = vmatpush1.bf16.msra.mxu0 %v2183
      %3180 = vmatprep.subr.bf16.mxu0 %v2182
      %3181 = vmatpush1.bf16.msra.mxu0 %v2181
      %3182 = vmatprep.subr.bf16.mxu0 %v2180
      %3183 = vmatpush1.bf16.msra.mxu0 %v2179
      %3184 = vmatprep.subr.bf16.mxu0 %v2210
      %3185 = vmatpush2.bf16.msra.mxu0 %v2209
      %3186 = vmatprep.subr.bf16.mxu0 %v2208
      %3187 = vmatpush2.bf16.msra.mxu0 %v2207
      %3188 = vmatprep.subr.bf16.mxu0 %v2206
      %3189 = vmatpush2.bf16.msra.mxu0 %v2205
      %3190 = vmatprep.subr.bf16.mxu0 %v2204
      %3191 = vmatpush2.bf16.msra.mxu0 %v2203
      %3192 = vmatprep.subr.bf16.mxu0 %v2202
      %3193 = vmatpush2.bf16.msra.mxu0 %v2201
      %3194 = vmatprep.subr.bf16.mxu0 %v2200
      %3195 = vmatpush2.bf16.msra.mxu0 %v2199
      %3196 = vmatprep.subr.bf16.mxu0 %v2198
      %3197 = vmatpush2.bf16.msra.mxu0 %v2197
      %3198 = vmatprep.subr.bf16.mxu0 %v2196
      %3199 = vmatpush2.bf16.msra.mxu0 %v2195
      %3200 = vmatprep.mubr.bf16.mxu0 %v890
      %3201 = vmatmul.mubr.bf16.gmra.mxu0 %v889
      %v3202 = vpop.f32.mrf.mxu0
      %v3203 = vadd.f32 %v3112, %v3202
      %v3204 = vpop.f32.mrf.mxu0
      %v3205 = vadd.f32 %v3114, %v3204
      %v3206 = vpop.f32.mrf.mxu0
      %v3207 = vadd.f32 %v3116, %v3206
      %v3208 = vpop.f32.mrf.mxu0
      %v3209 = vadd.f32 %v3118, %v3208
      %3210 = vmatprep.mubr.bf16.mxu0 %v908
      %3211 = vmatmul.mubr.bf16.gmra.mxu0 %v907
      %v3212 = vpop.f32.mrf.mxu0
      %v3213 = vadd.f32 %v3122, %v3212
      %v3214 = vpop.f32.mrf.mxu0
      %v3215 = vadd.f32 %v3124, %v3214
      %v3216 = vpop.f32.mrf.mxu0
      %v3217 = vadd.f32 %v3126, %v3216
      %v3218 = vpop.f32.mrf.mxu0
      %v3219 = vadd.f32 %v3128, %v3218
      %3220 = vmatprep.mubr.bf16.mxu0 %v926
      %3221 = vmatmul.mubr.bf16.gmra.mxu0 %v925
      %v3222 = vpop.f32.mrf.mxu0
      %v3223 = vadd.f32 %v3132, %v3222
      %v3224 = vpop.f32.mrf.mxu0
      %v3225 = vadd.f32 %v3134, %v3224
      %v3226 = vpop.f32.mrf.mxu0
      %v3227 = vadd.f32 %v3136, %v3226
      %v3228 = vpop.f32.mrf.mxu0
      %v3229 = vadd.f32 %v3138, %v3228
      %3230 = vmatprep.mubr.bf16.mxu0 %v944
      %3231 = vmatmul.mubr.bf16.gmra.mxu0 %v943
      %v3232 = vpop.f32.mrf.mxu0
      %v3233 = vadd.f32 %v3142, %v3232
      %v3234 = vpop.f32.mrf.mxu0
      %v3235 = vadd.f32 %v3144, %v3234
      %v3236 = vpop.f32.mrf.mxu0
      %v3237 = vadd.f32 %v3146, %v3236
      %v3238 = vpop.f32.mrf.mxu0
      %v3239 = vadd.f32 %v3148, %v3238
      %3240 = vmatprep.mubr.bf16.mxu0 %v962
      %3241 = vmatmul.mubr.bf16.gmra.mxu0 %v961
      %v3242 = vpop.f32.mrf.mxu0
      %v3243 = vadd.f32 %v3152, %v3242
      %v3244 = vpop.f32.mrf.mxu0
      %v3245 = vadd.f32 %v3154, %v3244
      %v3246 = vpop.f32.mrf.mxu0
      %v3247 = vadd.f32 %v3156, %v3246
      %v3248 = vpop.f32.mrf.mxu0
      %v3249 = vadd.f32 %v3158, %v3248
      %3250 = vmatprep.mubr.bf16.mxu0 %v980
      %3251 = vmatmul.mubr.bf16.gmra.mxu0 %v979
      %v3252 = vpop.f32.mrf.mxu0
      %v3253 = vadd.f32 %v3162, %v3252
      %v3254 = vpop.f32.mrf.mxu0
      %v3255 = vadd.f32 %v3164, %v3254
      %v3256 = vpop.f32.mrf.mxu0
      %v3257 = vpop.f32.mrf.mxu0
      %3258 = vdwg.mxu0
      %3259 = vmatprep.subr.bf16.mxu0 %v2226
      %3260 = vmatpush1.bf16.msra.mxu0 %v2225
      %3261 = vmatprep.subr.bf16.mxu0 %v2224
      %3262 = vmatpush1.bf16.msra.mxu0 %v2223
      %3263 = vmatprep.subr.bf16.mxu0 %v2222
      %3264 = vmatpush1.bf16.msra.mxu0 %v2221
      %3265 = vmatprep.subr.bf16.mxu0 %v2220
      %3266 = vmatpush1.bf16.msra.mxu0 %v2219
      %3267 = vmatprep.subr.bf16.mxu0 %v2218
      %3268 = vmatpush1.bf16.msra.mxu0 %v2217
      %3269 = vmatprep.subr.bf16.mxu0 %v2216
      %3270 = vmatpush1.bf16.msra.mxu0 %v2215
      %3271 = vmatprep.subr.bf16.mxu0 %v2214
      %3272 = vmatpush1.bf16.msra.mxu0 %v2213
      %3273 = vmatprep.subr.bf16.mxu0 %v2212
      %3274 = vmatpush1.bf16.msra.mxu0 %v2211
      %3275 = vmatprep.subr.bf16.mxu0 %v2242
      %3276 = vmatpush2.bf16.msra.mxu0 %v2241
      %3277 = vmatprep.subr.bf16.mxu0 %v2240
      %3278 = vmatpush2.bf16.msra.mxu0 %v2239
      %3279 = vmatprep.subr.bf16.mxu0 %v2238
      %3280 = vmatpush2.bf16.msra.mxu0 %v2237
      %3281 = vmatprep.subr.bf16.mxu0 %v2236
      %3282 = vmatpush2.bf16.msra.mxu0 %v2235
      %3283 = vmatprep.subr.bf16.mxu0 %v2234
      %3284 = vmatpush2.bf16.msra.mxu0 %v2233
      %3285 = vmatprep.subr.bf16.mxu0 %v2232
      %3286 = vmatpush2.bf16.msra.mxu0 %v2231
      %3287 = vmatprep.subr.bf16.mxu0 %v2230
      %3288 = vmatpush2.bf16.msra.mxu0 %v2229
      %3289 = vmatprep.subr.bf16.mxu0 %v2228
      %3290 = vmatpush2.bf16.msra.mxu0 %v2227
      %3291 = vmatprep.mubr.bf16.mxu0 %v892
      %3292 = vmatmul.mubr.bf16.gmra.mxu0 %v891
      %v3293 = vpop.f32.mrf.mxu0
      %v3294 = vadd.f32 %v3203, %v3293
      %v3295 = vpop.f32.mrf.mxu0
      %v3296 = vadd.f32 %v3205, %v3295
      %v3297 = vpop.f32.mrf.mxu0
      %v3298 = vadd.f32 %v3207, %v3297
      %v3299 = vpop.f32.mrf.mxu0
      %v3300 = vadd.f32 %v3209, %v3299
      %3301 = vmatprep.mubr.bf16.mxu0 %v910
      %3302 = vmatmul.mubr.bf16.gmra.mxu0 %v909
      %v3303 = vpop.f32.mrf.mxu0
      %v3304 = vadd.f32 %v3213, %v3303
      %v3305 = vpop.f32.mrf.mxu0
      %v3306 = vadd.f32 %v3215, %v3305
      %v3307 = vpop.f32.mrf.mxu0
      %v3308 = vadd.f32 %v3217, %v3307
      %v3309 = vpop.f32.mrf.mxu0
      %v3310 = vadd.f32 %v3219, %v3309
      %3311 = vmatprep.mubr.bf16.mxu0 %v928
      %3312 = vmatmul.mubr.bf16.gmra.mxu0 %v927
      %v3313 = vpop.f32.mrf.mxu0
      %v3314 = vadd.f32 %v3223, %v3313
      %v3315 = vpop.f32.mrf.mxu0
      %v3316 = vadd.f32 %v3225, %v3315
      %v3317 = vpop.f32.mrf.mxu0
      %v3318 = vadd.f32 %v3227, %v3317
      %v3319 = vpop.f32.mrf.mxu0
      %v3320 = vadd.f32 %v3229, %v3319
      %3321 = vmatprep.mubr.bf16.mxu0 %v946
      %3322 = vmatmul.mubr.bf16.gmra.mxu0 %v945
      %v3323 = vpop.f32.mrf.mxu0
      %v3324 = vadd.f32 %v3233, %v3323
      %v3325 = vpop.f32.mrf.mxu0
      %v3326 = vadd.f32 %v3235, %v3325
      %v3327 = vpop.f32.mrf.mxu0
      %v3328 = vadd.f32 %v3237, %v3327
      %v3329 = vpop.f32.mrf.mxu0
      %v3330 = vadd.f32 %v3239, %v3329
      %3331 = vmatprep.mubr.bf16.mxu0 %v964
      %3332 = vmatmul.mubr.bf16.gmra.mxu0 %v963
      %v3333 = vpop.f32.mrf.mxu0
      %v3334 = vadd.f32 %v3243, %v3333
      %v3335 = vpop.f32.mrf.mxu0
      %v3336 = vadd.f32 %v3245, %v3335
      %v3337 = vpop.f32.mrf.mxu0
      %v3338 = vadd.f32 %v3247, %v3337
      %v3339 = vpop.f32.mrf.mxu0
      %v3340 = vadd.f32 %v3249, %v3339
      %3341 = vmatprep.mubr.bf16.mxu0 %v982
      %3342 = vmatmul.mubr.bf16.gmra.mxu0 %v981
      %v3343 = vpop.f32.mrf.mxu0
      %v3344 = vadd.f32 %v3253, %v3343
      %v3345 = vpop.f32.mrf.mxu0
      %v3346 = vadd.f32 %v3255, %v3345
      %v3347 = vpop.f32.mrf.mxu0
      %v3348 = vpop.f32.mrf.mxu0
      %3349 = vdwg.mxu0
      %v3350 = vmax.f32 %v3294, 0.0
      %v3351 = vmax.f32 %v3296, 0.0
      %v3352 = vmax.f32 %v3298, 0.0
      %v3353 = vmax.f32 %v3300, 0.0
      %v3354 = vmax.f32 %v3304, 0.0
      %v3355 = vmax.f32 %v3306, 0.0
      %v3356 = vmax.f32 %v3308, 0.0
      %v3357 = vmax.f32 %v3310, 0.0
      %v3358 = vmax.f32 %v3314, 0.0
      %v3359 = vmax.f32 %v3316, 0.0
      %v3360 = vmax.f32 %v3318, 0.0
      %v3361 = vmax.f32 %v3320, 0.0
      %v3362 = vmax.f32 %v3324, 0.0
      %v3363 = vmax.f32 %v3326, 0.0
      %v3364 = vmax.f32 %v3328, 0.0
      %v3365 = vmax.f32 %v3330, 0.0
      %v3366 = vmax.f32 %v3334, 0.0
      %v3367 = vmax.f32 %v3336, 0.0
      %v3368 = vmax.f32 %v3338, 0.0
      %v3369 = vmax.f32 %v3340, 0.0
      %v3370 = vmax.f32 %v3344, 0.0
      %v3371 = vmax.f32 %v3346, 0.0
      %v3372 = vpack.c.bf16 %v3352, %v3350
      %v3373 = vpack.c.bf16 %v3353, %v3351
      %v3374 = vpack.c.bf16 %v3356, %v3354
      %v3375 = vpack.c.bf16 %v3357, %v3355
      %v3376 = vpack.c.bf16 %v3360, %v3358
      %v3377 = vpack.c.bf16 %v3361, %v3359
      %v3378 = vpack.c.bf16 %v3364, %v3362
      %v3379 = vpack.c.bf16 %v3365, %v3363
      %v3380 = vpack.c.bf16 %v3368, %v3366
      %v3381 = vpack.c.bf16 %v3369, %v3367
      %v3382 = vpack.c.bf16 %v3370, %v3370
      %v3383 = vpack.c.bf16 %v3371, %v3371
      %v3396 = vunpack.c.l.b16 %v3372
      %v3397 = vunpack.c.l.b16 %v3373
      %v3398 = vunpack.c.h.b16 %v3372
      %v3399 = vunpack.c.h.b16 %v3373
      %v3400 = vunpack.c.l.b16 %v3374
      %v3401 = vunpack.c.l.b16 %v3375
      %v3402 = vunpack.c.h.b16 %v3374
      %v3403 = vunpack.c.h.b16 %v3375
      %v3404 = vunpack.c.l.b16 %v3376
      %v3405 = vunpack.c.l.b16 %v3377
      %v3406 = vunpack.c.h.b16 %v3376
      %v3407 = vunpack.c.h.b16 %v3377
      %v3408 = vunpack.c.l.b16 %v3378
      %v3409 = vunpack.c.l.b16 %v3379
      %v3410 = vunpack.c.h.b16 %v3378
      %v3411 = vunpack.c.h.b16 %v3379
      %v3412 = vunpack.c.l.b16 %v3380
      %v3413 = vunpack.c.l.b16 %v3381
      %v3414 = vunpack.c.h.b16 %v3380
      %v3415 = vunpack.c.h.b16 %v3381
      %v3416 = vunpack.c.l.b16 %v3382
      %v3417 = vunpack.c.l.b16 %v3383
      %v3418 = vpack.c.b16 %v3397, %v3396
      %v3419 = vpack.c.b16 %v3399, %v3398
      %v3420 = vpack.c.b16 %v3401, %v3400
      %v3421 = vpack.c.b16 %v3403, %v3402
      %v3422 = vpack.c.b16 %v3405, %v3404
      %v3423 = vpack.c.b16 %v3407, %v3406
      %v3424 = vpack.c.b16 %v3409, %v3408
      %v3425 = vpack.c.b16 %v3411, %v3410
      %v3426 = vpack.c.b16 %v3413, %v3412
      %v3427 = vpack.c.b16 %v3415, %v3414
      %v3428 = vpack.c.b16 %v3417, %v3416
      %3440 = vst [vmem:[%s177] sm:$0xff] %v3418
      %3441 = vst [vmem:[%s177 + $0x8] sm:$0xff] %v3419
      %3442 = vst [vmem:[%s177 + $0x10] sm:$0xff] %v3420
      %3443 = vst [vmem:[%s177 + $0x18] sm:$0xff] %v3421
      %3444 = vst [vmem:[%s177 + $0x20] sm:$0xff] %v3422
      %3445 = vst [vmem:[%s177 + $0x28] sm:$0xff] %v3423
      %3446 = vst [vmem:[%s177 + $0x30] sm:$0xff] %v3424
      %3447 = vst [vmem:[%s177 + $0x38] sm:$0xff] %v3425
      %3448 = vst [vmem:[%s177 + $0x40] sm:$0xff] %v3426
      %3449 = vst [vmem:[%s177 + $0x48] sm:$0xff] %v3427
      %3450 = vst [vmem:[%s177 + $0x50] sm:$0xff] %v3428
      %s3451 = smul.u32 11, %s14
      %p3452 = scmp.lt.s32.totalorder %s3451, 21
      %s3453 = scalar_select %p3452, %s3451, 21
      %s3454 = smul.addr %s3453, 2
      %s3455 = smul.addr %s3454, 4
      %s3456 = scalar_lea.vmem %s3, %s3455
      // Predicated region
      $region33: #{mixed_7a_forward.6} parent=31 // pred_check
        %p3457 = pneg %p100
      $region34: #{mixed_7a_forward.6} parent=31 // pred_check_branch
        %3459 = sbr.rel (%p3457) target = $region36
      $region35: #{mixed_7a_forward.6} parent=31 // pred_region
        %s3460 = smul.u32 11, %s14
      $region36: #{mixed_7a_forward.6} parent=31 // pred_fallthru
        _
    $region32: #{mixed_7a_forward.6} parent=5 // pred_fallthru
      _
    %p3461 = scmp.le.s32.totalorder 2, %s9
    // Predicated region
    $region37: #{mixed_7a_forward.6} parent=5 // pred_check
      %p3462 = pneg %p3461
    $region38: #{mixed_7a_forward.6} parent=5 // pred_check_branch
      %3464 = sbr.rel (%p3462) target = $region40
    $region39: #{mixed_7a_forward.6} parent=5 // pred_region
      %s3465 = ssub.s32 %s9, 2
      // Predicated region
      $region41: #{mixed_7a_forward.6} parent=39 // pred_check
        %p3466 = pneg %p106
      $region42: #{mixed_7a_forward.6} parent=39 // pred_check_branch
        %3468 = sbr.rel (%p3466) target = $region44
      $region43: #{mixed_7a_forward.6} parent=39 // pred_region
        %s3469 = smul.u32 11, %s15
        %p3470 = scmp.lt.s32.totalorder %s3469, 21
        %s3471 = scalar_select %p3470, %s3469, 21
        %s3472 = smul.addr %s3471, 2
        %s3473 = smul.addr %s3472, 4
        %s3474 = scalar_lea.vmem %s3, %s3473
      $region44: #{mixed_7a_forward.6} parent=39 // pred_fallthru
        _
    $region40: #{mixed_7a_forward.6} parent=5 // pred_fallthru
      _
  $region6: #{mixed_7a_forward.6} parent=0 // loop_footer
    %s13 = sadd.s32 1, %s9
  $region7: #{mixed_7a_forward.6} parent=0 // loop_footer_branch
    %8 = sbr.rel target = $region3
  $region8: #{mixed_7a_forward.6} parent=0 // loop_exit
    _

// kernel: mixed_7a_forward.7
$region0: #{mixed_7a_forward.7}
  #allocation0 [shape = 'u32[]', space=smem, size = 0x4, offset = 0x4, fixed_abs, tag = 'smem constant byte address 0x4 - core index']
  #allocation1 [shape = 'u32[144,128]{1,0:T(1,128)}', space=vmem, size = 0x12000, scoped, tag = 'internal scratch']
  %s0 = inlined_call_operand.vmem [shape: bf16[2,32,2304], index: 0, kind: input, shape index: {}]
  %s1 = inlined_call_operand.vmem [shape: bf16[2,2304,256], index: 1, kind: input, shape index: {}]
  %s2 = inlined_call_operand.vmem [shape: f32[2,1,256], index: 2, kind: input, shape index: {}]
  %s3 = inlined_call_operand.vmem [shape: f32[2,32,256], index: 3, kind: output, shape index: {}]
  %s4 = sld [smem:[#allocation0]]
  $region45: #{mixed_7a_forward.7} parent=0
    _
  %s6 = ssub.s32 1, %s4
  %s7 = scalar_select 0, %s6, %s4
  loop: start=0, step=1, limit=4
  $region2: #{mixed_7a_forward.7} parent=0 // loop_pre_header
    _
  $region3: #{mixed_7a_forward.7} parent=0 // loop_header
    %s9 = sphi 0, %s13
    %p10 = scmp.ge.s32.totalorder %s9, 4
    %s16 = sphi 0, %s28
    %s17 = sphi 0, %s24
    %s18 = sphi 0, %s16
    %s19 = sphi 0, %s17
    %s20 = sphi 0, %s18
    %s21 = sphi 0, %s19
    %s33 = sphi 0, %s35
    %s36 = sphi 0, %s33
    %s37 = sphi 0, %s36
    %s53 = sphi 0, %s37
    %s59 = sphi 0, %s61
    %s62 = sphi 0, %s59
    %s63 = sphi 0, %s62
    %s79 = sphi 0, %s63
    %s85 = sphi 0, %s87
    %s88 = sphi 0, %s85
    %s89 = sphi 0, %s88
    %s105 = sphi 0, %s89
    %s113 = sphi 0, %s115
    %s116 = sphi 0, %s113
    %s117 = sphi 0, %s116
    %s133 = sphi 0, %s117
  $region4: #{mixed_7a_forward.7} parent=0 // loop_header_branch
    %12 = sbr.rel (%p10) target = $region8
  $region5: #{mixed_7a_forward.7} parent=0 // loop_body
    %s14 = ssub.s32 %s9, 1
    %s15 = ssub.s32 %s9, 2
    %s22 = sadd.s32 1, %s17
    %p23 = scmp.ge.s32.totalorder %s22, 1
    %s24 = scalar_select %p23, 0, %s22
    %s25 = sadd.s32 1, %s16
    %s26 = scalar_select %p23, %s25, %s16
    %p27 = scmp.ge.s32.totalorder %s26, 2
    %s28 = scalar_select %p27, 0, %s26
    %s29 = ssub.s32 %s16, %s28
    %s30 = ssub.s32 %s17, %s24
    %s31 = sor.u32 %s29, %s30
    %p32 = scmp.eq.s32.totalorder %s31, 0
    %s34 = sadd.s32 %s33, 1
    %s35 = scalar_select %p32, %s33, %s34
    %p38 = pneg %p32
    %p39 = scmp.eq.s32.totalorder %s9, 1
    %p40 = por %p38, %p39
    %p41 = scmp.ne.s32.totalorder %s33, %s36
    %p42 = scmp.eq.s32.totalorder %s9, 0
    %p43 = por %p41, %p42
    %p44 = scmp.ne.s32.totalorder %s33, %s36
    %p45 = scmp.eq.s32.totalorder %s14, 1
    %p46 = por %p44, %p45
    %p47 = scmp.ne.s32.totalorder %s36, %s37
    %p48 = scmp.eq.s32.totalorder %s14, 0
    %p49 = por %p47, %p48
    %p50 = scmp.ne.s32.totalorder %s36, %s37
    %p51 = scmp.eq.s32.totalorder %s15, 1
    %p52 = por %p50, %p51
    %p54 = scmp.ne.s32.totalorder %s37, %s53
    %p55 = scmp.eq.s32.totalorder %s15, 0
    %p56 = por %p54, %p55
    %s57 = ssub.s32 %s16, %s28
    %p58 = scmp.eq.s32.totalorder %s57, 0
    %s60 = sadd.s32 %s59, 1
    %s61 = scalar_select %p58, %s59, %s60
    %p64 = pneg %p58
    %p65 = scmp.eq.s32.totalorder %s9, 1
    %p66 = por %p64, %p65
    %p67 = scmp.ne.s32.totalorder %s59, %s62
    %p68 = scmp.eq.s32.totalorder %s9, 0
    %p69 = por %p67, %p68
    %p70 = scmp.ne.s32.totalorder %s59, %s62
    %p71 = scmp.eq.s32.totalorder %s14, 1
    %p72 = por %p70, %p71
    %p73 = scmp.ne.s32.totalorder %s62, %s63
    %p74 = scmp.eq.s32.totalorder %s14, 0
    %p75 = por %p73, %p74
    %p76 = scmp.ne.s32.totalorder %s62, %s63
    %p77 = scmp.eq.s32.totalorder %s15, 1
    %p78 = por %p76, %p77
    %p80 = scmp.ne.s32.totalorder %s63, %s79
    %p81 = scmp.eq.s32.totalorder %s15, 0
    %p82 = por %p80, %p81
    %s83 = ssub.s32 %s16, %s28
    %p84 = scmp.eq.s32.totalorder %s83, 0
    %s86 = sadd.s32 %s85, 1
    %s87 = scalar_select %p84, %s85, %s86
    %p90 = pneg %p84
    %p91 = scmp.eq.s32.totalorder %s9, 1
    %p92 = por %p90, %p91
    %p93 = scmp.ne.s32.totalorder %s85, %s88
    %p94 = scmp.eq.s32.totalorder %s9, 0
    %p95 = por %p93, %p94
    %p96 = scmp.ne.s32.totalorder %s85, %s88
    %p97 = scmp.eq.s32.totalorder %s14, 1
    %p98 = por %p96, %p97
    %p99 = scmp.ne.s32.totalorder %s88, %s89
    %p100 = scmp.eq.s32.totalorder %s14, 0
    %p101 = por %p99, %p100
    %p102 = scmp.ne.s32.totalorder %s88, %s89
    %p103 = scmp.eq.s32.totalorder %s15, 1
    %p104 = por %p102, %p103
    %p106 = scmp.ne.s32.totalorder %s89, %s105
    %p107 = scmp.eq.s32.totalorder %s15, 0
    %p108 = por %p106, %p107
    %s109 = ssub.s32 %s16, %s28
    %s110 = ssub.s32 %s17, %s24
    %s111 = sor.u32 %s109, %s110
    %p112 = scmp.eq.s32.totalorder %s111, 0
    %s114 = sadd.s32 %s113, 1
    %s115 = scalar_select %p112, %s113, %s114
    %p118 = pneg %p112
    %p119 = scmp.eq.s32.totalorder %s9, 1
    %p120 = por %p118, %p119
    %p121 = scmp.ne.s32.totalorder %s113, %s116
    %p122 = scmp.eq.s32.totalorder %s9, 0
    %p123 = por %p121, %p122
    %p124 = scmp.ne.s32.totalorder %s113, %s116
    %p125 = scmp.eq.s32.totalorder %s14, 1
    %p126 = por %p124, %p125
    %p127 = scmp.ne.s32.totalorder %s116, %s117
    %p128 = scmp.eq.s32.totalorder %s14, 0
    %p129 = por %p127, %p128
    %p130 = scmp.ne.s32.totalorder %s116, %s117
    %p131 = scmp.eq.s32.totalorder %s15, 1
    %p132 = por %p130, %p131
    %p134 = scmp.ne.s32.totalorder %s117, %s133
    %p135 = scmp.eq.s32.totalorder %s15, 0
    %p136 = por %p134, %p135
    %p137 = scmp.le.s32.totalorder 1, %s9
    %p138 = scmp.lt.s32.totalorder %s9, 3
    %p139 = pnand %p137, %p138
    %p140 = pneg %p139
    // Predicated region
    $region9: #{mixed_7a_forward.7} parent=5 // pred_check
      _
    $region10: #{mixed_7a_forward.7} parent=5 // pred_check_branch
      %142 = sbr.rel (%p139) target = $region12
    $region11: #{mixed_7a_forward.7} parent=5 // pred_region
      %s143 = ssub.s32 %s9, 1
    $region12: #{mixed_7a_forward.7} parent=5 // pred_fallthru
      _
    %p144 = scmp.lt.s32.totalorder %s9, 2
    // Predicated region
    $region13: #{mixed_7a_forward.7} parent=5 // pred_check
      %p145 = pneg %p144
    $region14: #{mixed_7a_forward.7} parent=5 // pred_check_branch
      %147 = sbr.rel (%p145) target = $region16
    $region15: #{mixed_7a_forward.7} parent=5 // pred_region
      // Predicated region
      $region17: #{mixed_7a_forward.7} parent=15 // pred_check
        %p148 = pneg %p43
      $region18: #{mixed_7a_forward.7} parent=15 // pred_check_branch
        %150 = sbr.rel (%p148) target = $region20
      $region19: #{mixed_7a_forward.7} parent=15 // pred_region
        %s151 = smul.u32 4, %s17
        %p152 = scmp.lt.s32.totalorder %s16, 1
        %s153 = scalar_select %p152, %s16, 1
        %p154 = scmp.lt.s32.totalorder %s151, 3
        %s155 = scalar_select %p154, %s151, 3
        %s156 = smul.addr %s155, 18
        %s157 = smul.addr %s153, 72
        %s158 = sadd.s32 %s156, %s157
        %s159 = smul.addr %s158, 4
        %s160 = scalar_lea.vmem %s0, %s159
        %s161 = smul.u32 4, %s17
      $region20: #{mixed_7a_forward.7} parent=15 // pred_fallthru
        _
      // Predicated region
      $region21: #{mixed_7a_forward.7} parent=15 // pred_check
        %p162 = pneg %p69
      $region22: #{mixed_7a_forward.7} parent=15 // pred_check_branch
        %164 = sbr.rel (%p162) target = $region24
      $region23: #{mixed_7a_forward.7} parent=15 // pred_region
        %p165 = scmp.lt.s32.totalorder %s16, 1
        %s166 = scalar_select %p165, %s16, 1
        %s167 = smul.addr %s166, 576
        %s168 = smul.addr %s167, 4
        %s169 = scalar_lea.vmem %s1, %s168
      $region24: #{mixed_7a_forward.7} parent=15 // pred_fallthru
        _
      // Predicated region
      $region25: #{mixed_7a_forward.7} parent=15 // pred_check
        %p170 = pneg %p95
      $region26: #{mixed_7a_forward.7} parent=15 // pred_check_branch
        %172 = sbr.rel (%p170) target = $region28
      $region27: #{mixed_7a_forward.7} parent=15 // pred_region
        %p173 = scmp.lt.s32.totalorder %s16, 1
        %s174 = scalar_select %p173, %s16, 1
        %s175 = smul.addr %s174, 2
        %s176 = scalar_lea.vmem %s2, %s175
      $region28: #{mixed_7a_forward.7} parent=15 // pred_fallthru
        _
    $region16: #{mixed_7a_forward.7} parent=5 // pred_fallthru
      _
    %p177 = scmp.le.s32.totalorder 1, %s9
    %p178 = scmp.lt.s32.totalorder %s9, 3
    %p179 = pnand %p177, %p178
    %p180 = pneg %p179
    // Predicated region
    $region29: #{mixed_7a_forward.7} parent=5 // pred_check
      _
    $region30: #{mixed_7a_forward.7} parent=5 // pred_check_branch
      %182 = sbr.rel (%p179) target = $region32
    $region31: #{mixed_7a_forward.7} parent=5 // pred_region
      %s183 = ssub.s32 %s9, 1
      %s184 = smul.u32 4, %s19
      %p185 = scmp.lt.s32.totalorder %s18, 1
      %s186 = scalar_select %p185, %s18, 1
      %p187 = scmp.lt.s32.totalorder %s184, 3
      %s188 = scalar_select %p187, %s184, 3
      %s189 = smul.addr %s188, 18
      %s190 = smul.addr %s186, 72
      %s191 = sadd.s32 %s189, %s190
      %s192 = smul.addr %s191, 4
      %s193 = scalar_lea.vmem %s0, %s192
      %p194 = pneg %p49
      %p195 = pneg %p46
      %p196 = scmp.lt.s32.totalorder %s18, 1
      %s197 = scalar_select %p196, %s18, 1
      %s198 = smul.addr %s197, 576
      %s199 = smul.addr %s198, 4
      %s200 = scalar_lea.vmem %s1, %s199
      %p201 = pneg %p75
      %p202 = pneg %p72
      %p203 = scmp.lt.s32.totalorder %s18, 1
      %s204 = scalar_select %p203, %s18, 1
      %s205 = smul.addr %s204, 2
      %s206 = scalar_lea.vmem %s2, %s205
      %p207 = pneg %p101
      %p208 = pneg %p98
      %p209 = pneg %p129
      %p210 = pneg %p126
      %s211 = smul.u32 4, %s19
      %p212 = scmp.lt.s32.totalorder %s18, 1
      %s213 = scalar_select %p212, %s18, 1
      %p214 = scmp.lt.s32.totalorder %s211, 3
      %s215 = scalar_select %p214, %s211, 3
      %s216 = smul.addr %s215, 2
      %s217 = smul.addr %s213, 8
      %s218 = sadd.s32 %s216, %s217
      %s219 = smul.addr %s218, 8
      %s220 = scalar_lea.vmem %s3, %s219
      %s221 = smul.u32 4, %s19
      %p222 = scmp.lt.s32.totalorder %s18, 1
      %s223 = scalar_select %p222, %s18, 1
      %p224 = scmp.lt.s32.totalorder %s221, 3
      %s225 = scalar_select %p224, %s221, 3
      %s226 = smul.addr %s225, 18
      %s227 = smul.addr %s223, 72
      %s228 = sadd.s32 %s226, %s227
      %s229 = smul.addr %s228, 4
      %s230 = scalar_lea.vmem %s0, %s229
      %s231 = smul.u32 4, %s19
      %p232 = scmp.lt.s32.totalorder %s18, 1
      %s233 = scalar_select %p232, %s18, 1
      %s234 = smul.addr %s233, 576
      %s235 = smul.addr %s234, 4
      %s236 = scalar_lea.vmem %s1, %s235
      %p237 = scmp.lt.s32.totalorder %s18, 1
      %s238 = scalar_select %p237, %s18, 1
      %s239 = smul.addr %s238, 2
      %s240 = scalar_lea.vmem %s2, %s239
      %s241 = smul.u32 4, %s19
      %p242 = scmp.lt.s32.totalorder %s18, 1
      %s243 = scalar_select %p242, %s18, 1
      %p244 = scmp.lt.s32.totalorder %s241, 3
      %s245 = scalar_select %p244, %s241, 3
      %s246 = smul.addr %s245, 2
      %s247 = smul.addr %s243, 8
      %s248 = sadd.s32 %s246, %s247
      %s249 = smul.addr %s248, 8
      %s250 = scalar_lea.vmem %s3, %s249
      %s251 = smul.u32 4, %s19
      %v252 = vld [vmem:[%s230] sm:$0xff]
      %v253 = vld [vmem:[%s230 + $0x8] sm:$0xff]
      %v254 = vld [vmem:[%s230 + $0x10] sm:$0xff]
      %v255 = vld [vmem:[%s230 + $0x18] sm:$0xff]
      %v256 = vld [vmem:[%s230 + $0x20] sm:$0xff]
      %v257 = vld [vmem:[%s230 + $0x28] sm:$0xff]
      %v258 = vld [vmem:[%s230 + $0x30] sm:$0xff]
      %v259 = vld [vmem:[%s230 + $0x38] sm:$0xff]
      %v260 = vld [vmem:[%s230 + $0x40] sm:$0xff]
      %v261 = vld [vmem:[%s230 + $0x48] sm:$0xff]
      %v262 = vld [vmem:[%s230 + $0x50] sm:$0xff]
      %v263 = vld [vmem:[%s230 + $0x58] sm:$0xff]
      %v264 = vld [vmem:[%s230 + $0x60] sm:$0xff]
      %v265 = vld [vmem:[%s230 + $0x68] sm:$0xff]
      %v266 = vld [vmem:[%s230 + $0x70] sm:$0xff]
      %v267 = vld [vmem:[%s230 + $0x78] sm:$0xff]
      %v268 = vld [vmem:[%s230 + $0x80] sm:$0xff]
      %v269 = vld [vmem:[%s230 + $0x88] sm:$0xff]
      %v270 = vld [vmem:[%s230 + $0x90] sm:$0xff]
      %v271 = vld [vmem:[%s230 + $0x98] sm:$0xff]
      %v272 = vld [vmem:[%s230 + $0xa0] sm:$0xff]
      %v273 = vld [vmem:[%s230 + $0xa8] sm:$0xff]
      %v274 = vld [vmem:[%s230 + $0xb0] sm:$0xff]
      %v275 = vld [vmem:[%s230 + $0xb8] sm:$0xff]
      %v276 = vld [vmem:[%s230 + $0xc0] sm:$0xff]
      %v277 = vld [vmem:[%s230 + $0xc8] sm:$0xff]
      %v278 = vld [vmem:[%s230 + $0xd0] sm:$0xff]
      %v279 = vld [vmem:[%s230 + $0xd8] sm:$0xff]
      %v280 = vld [vmem:[%s230 + $0xe0] sm:$0xff]
      %v281 = vld [vmem:[%s230 + $0xe8] sm:$0xff]
      %v282 = vld [vmem:[%s230 + $0xf0] sm:$0xff]
      %v283 = vld [vmem:[%s230 + $0xf8] sm:$0xff]
      %v284 = vld [vmem:[%s230 + $0x100] sm:$0xff]
      %v285 = vld [vmem:[%s230 + $0x108] sm:$0xff]
      %v286 = vld [vmem:[%s230 + $0x110] sm:$0xff]
      %v287 = vld [vmem:[%s230 + $0x118] sm:$0xff]
      %v288 = vld [vmem:[%s236] sm:$0xff]
      %v289 = vld [vmem:[%s236 + $0x8] sm:$0xff]
      %v290 = vld [vmem:[%s236 + $0x10] sm:$0xff]
      %v291 = vld [vmem:[%s236 + $0x18] sm:$0xff]
      %v292 = vld [vmem:[%s236 + $0x20] sm:$0xff]
      %v293 = vld [vmem:[%s236 + $0x28] sm:$0xff]
      %v294 = vld [vmem:[%s236 + $0x30] sm:$0xff]
      %v295 = vld [vmem:[%s236 + $0x38] sm:$0xff]
      %v296 = vld [vmem:[%s236 + $0x40] sm:$0xff]
      %v297 = vld [vmem:[%s236 + $0x48] sm:$0xff]
      %v298 = vld [vmem:[%s236 + $0x50] sm:$0xff]
      %v299 = vld [vmem:[%s236 + $0x58] sm:$0xff]
      %v300 = vld [vmem:[%s236 + $0x60] sm:$0xff]
      %v301 = vld [vmem:[%s236 + $0x68] sm:$0xff]
      %v302 = vld [vmem:[%s236 + $0x70] sm:$0xff]
      %v303 = vld [vmem:[%s236 + $0x78] sm:$0xff]
      %v304 = vld [vmem:[%s236 + $0x80] sm:$0xff]
      %v305 = vld [vmem:[%s236 + $0x88] sm:$0xff]
      %v306 = vld [vmem:[%s236 + $0x90] sm:$0xff]
      %v307 = vld [vmem:[%s236 + $0x98] sm:$0xff]
      %v308 = vld [vmem:[%s236 + $0xa0] sm:$0xff]
      %v309 = vld [vmem:[%s236 + $0xa8] sm:$0xff]
      %v310 = vld [vmem:[%s236 + $0xb0] sm:$0xff]
      %v311 = vld [vmem:[%s236 + $0xb8] sm:$0xff]
      %v312 = vld [vmem:[%s236 + $0xc0] sm:$0xff]
      %v313 = vld [vmem:[%s236 + $0xc8] sm:$0xff]
      %v314 = vld [vmem:[%s236 + $0xd0] sm:$0xff]
      %v315 = vld [vmem:[%s236 + $0xd8] sm:$0xff]
      %v316 = vld [vmem:[%s236 + $0xe0] sm:$0xff]
      %v317 = vld [vmem:[%s236 + $0xe8] sm:$0xff]
      %v318 = vld [vmem:[%s236 + $0xf0] sm:$0xff]
      %v319 = vld [vmem:[%s236 + $0xf8] sm:$0xff]
      %v320 = vld [vmem:[%s236 + $0x100] sm:$0xff]
      %v321 = vld [vmem:[%s236 + $0x108] sm:$0xff]
      %v322 = vld [vmem:[%s236 + $0x110] sm:$0xff]
      %v323 = vld [vmem:[%s236 + $0x118] sm:$0xff]
      %v324 = vld [vmem:[%s236 + $0x120] sm:$0xff]
      %v325 = vld [vmem:[%s236 + $0x128] sm:$0xff]
      %v326 = vld [vmem:[%s236 + $0x130] sm:$0xff]
      %v327 = vld [vmem:[%s236 + $0x138] sm:$0xff]
      %v328 = vld [vmem:[%s236 + $0x140] sm:$0xff]
      %v329 = vld [vmem:[%s236 + $0x148] sm:$0xff]
      %v330 = vld [vmem:[%s236 + $0x150] sm:$0xff]
      %v331 = vld [vmem:[%s236 + $0x158] sm:$0xff]
      %v332 = vld [vmem:[%s236 + $0x160] sm:$0xff]
      %v333 = vld [vmem:[%s236 + $0x168] sm:$0xff]
      %v334 = vld [vmem:[%s236 + $0x170] sm:$0xff]
      %v335 = vld [vmem:[%s236 + $0x178] sm:$0xff]
      %v336 = vld [vmem:[%s236 + $0x180] sm:$0xff]
      %v337 = vld [vmem:[%s236 + $0x188] sm:$0xff]
      %v338 = vld [vmem:[%s236 + $0x190] sm:$0xff]
      %v339 = vld [vmem:[%s236 + $0x198] sm:$0xff]
      %v340 = vld [vmem:[%s236 + $0x1a0] sm:$0xff]
      %v341 = vld [vmem:[%s236 + $0x1a8] sm:$0xff]
      %v342 = vld [vmem:[%s236 + $0x1b0] sm:$0xff]
      %v343 = vld [vmem:[%s236 + $0x1b8] sm:$0xff]
      %v344 = vld [vmem:[%s236 + $0x1c0] sm:$0xff]
      %v345 = vld [vmem:[%s236 + $0x1c8] sm:$0xff]
      %v346 = vld [vmem:[%s236 + $0x1d0] sm:$0xff]
      %v347 = vld [vmem:[%s236 + $0x1d8] sm:$0xff]
      %v348 = vld [vmem:[%s236 + $0x1e0] sm:$0xff]
      %v349 = vld [vmem:[%s236 + $0x1e8] sm:$0xff]
      %v350 = vld [vmem:[%s236 + $0x1f0] sm:$0xff]
      %v351 = vld [vmem:[%s236 + $0x1f8] sm:$0xff]
      %v352 = vld [vmem:[%s236 + $0x200] sm:$0xff]
      %v353 = vld [vmem:[%s236 + $0x208] sm:$0xff]
      %v354 = vld [vmem:[%s236 + $0x210] sm:$0xff]
      %v355 = vld [vmem:[%s236 + $0x218] sm:$0xff]
      %v356 = vld [vmem:[%s236 + $0x220] sm:$0xff]
      %v357 = vld [vmem:[%s236 + $0x228] sm:$0xff]
      %v358 = vld [vmem:[%s236 + $0x230] sm:$0xff]
      %v359 = vld [vmem:[%s236 + $0x238] sm:$0xff]
      %v360 = vld [vmem:[%s236 + $0x240] sm:$0xff]
      %v361 = vld [vmem:[%s236 + $0x248] sm:$0xff]
      %v362 = vld [vmem:[%s236 + $0x250] sm:$0xff]
      %v363 = vld [vmem:[%s236 + $0x258] sm:$0xff]
      %v364 = vld [vmem:[%s236 + $0x260] sm:$0xff]
      %v365 = vld [vmem:[%s236 + $0x268] sm:$0xff]
      %v366 = vld [vmem:[%s236 + $0x270] sm:$0xff]
      %v367 = vld [vmem:[%s236 + $0x278] sm:$0xff]
      %v368 = vld [vmem:[%s236 + $0x280] sm:$0xff]
      %v369 = vld [vmem:[%s236 + $0x288] sm:$0xff]
      %v370 = vld [vmem:[%s236 + $0x290] sm:$0xff]
      %v371 = vld [vmem:[%s236 + $0x298] sm:$0xff]
      %v372 = vld [vmem:[%s236 + $0x2a0] sm:$0xff]
      %v373 = vld [vmem:[%s236 + $0x2a8] sm:$0xff]
      %v374 = vld [vmem:[%s236 + $0x2b0] sm:$0xff]
      %v375 = vld [vmem:[%s236 + $0x2b8] sm:$0xff]
      %v376 = vld [vmem:[%s236 + $0x2c0] sm:$0xff]
      %v377 = vld [vmem:[%s236 + $0x2c8] sm:$0xff]
      %v378 = vld [vmem:[%s236 + $0x2d0] sm:$0xff]
      %v379 = vld [vmem:[%s236 + $0x2d8] sm:$0xff]
      %v380 = vld [vmem:[%s236 + $0x2e0] sm:$0xff]
      %v381 = vld [vmem:[%s236 + $0x2e8] sm:$0xff]
      %v382 = vld [vmem:[%s236 + $0x2f0] sm:$0xff]
      %v383 = vld [vmem:[%s236 + $0x2f8] sm:$0xff]
      %v384 = vld [vmem:[%s236 + $0x300] sm:$0xff]
      %v385 = vld [vmem:[%s236 + $0x308] sm:$0xff]
      %v386 = vld [vmem:[%s236 + $0x310] sm:$0xff]
      %v387 = vld [vmem:[%s236 + $0x318] sm:$0xff]
      %v388 = vld [vmem:[%s236 + $0x320] sm:$0xff]
      %v389 = vld [vmem:[%s236 + $0x328] sm:$0xff]
      %v390 = vld [vmem:[%s236 + $0x330] sm:$0xff]
      %v391 = vld [vmem:[%s236 + $0x338] sm:$0xff]
      %v392 = vld [vmem:[%s236 + $0x340] sm:$0xff]
      %v393 = vld [vmem:[%s236 + $0x348] sm:$0xff]
      %v394 = vld [vmem:[%s236 + $0x350] sm:$0xff]
      %v395 = vld [vmem:[%s236 + $0x358] sm:$0xff]
      %v396 = vld [vmem:[%s236 + $0x360] sm:$0xff]
      %v397 = vld [vmem:[%s236 + $0x368] sm:$0xff]
      %v398 = vld [vmem:[%s236 + $0x370] sm:$0xff]
      %v399 = vld [vmem:[%s236 + $0x378] sm:$0xff]
      %v400 = vld [vmem:[%s236 + $0x380] sm:$0xff]
      %v401 = vld [vmem:[%s236 + $0x388] sm:$0xff]
      %v402 = vld [vmem:[%s236 + $0x390] sm:$0xff]
      %v403 = vld [vmem:[%s236 + $0x398] sm:$0xff]
      %v404 = vld [vmem:[%s236 + $0x3a0] sm:$0xff]
      %v405 = vld [vmem:[%s236 + $0x3a8] sm:$0xff]
      %v406 = vld [vmem:[%s236 + $0x3b0] sm:$0xff]
      %v407 = vld [vmem:[%s236 + $0x3b8] sm:$0xff]
      %v408 = vld [vmem:[%s236 + $0x3c0] sm:$0xff]
      %v409 = vld [vmem:[%s236 + $0x3c8] sm:$0xff]
      %v410 = vld [vmem:[%s236 + $0x3d0] sm:$0xff]
      %v411 = vld [vmem:[%s236 + $0x3d8] sm:$0xff]
      %v412 = vld [vmem:[%s236 + $0x3e0] sm:$0xff]
      %v413 = vld [vmem:[%s236 + $0x3e8] sm:$0xff]
      %v414 = vld [vmem:[%s236 + $0x3f0] sm:$0xff]
      %v415 = vld [vmem:[%s236 + $0x3f8] sm:$0xff]
      %v416 = vld [vmem:[%s236 + $0x400] sm:$0xff]
      %v417 = vld [vmem:[%s236 + $0x408] sm:$0xff]
      %v418 = vld [vmem:[%s236 + $0x410] sm:$0xff]
      %v419 = vld [vmem:[%s236 + $0x418] sm:$0xff]
      %v420 = vld [vmem:[%s236 + $0x420] sm:$0xff]
      %v421 = vld [vmem:[%s236 + $0x428] sm:$0xff]
      %v422 = vld [vmem:[%s236 + $0x430] sm:$0xff]
      %v423 = vld [vmem:[%s236 + $0x438] sm:$0xff]
      %v424 = vld [vmem:[%s236 + $0x440] sm:$0xff]
      %v425 = vld [vmem:[%s236 + $0x448] sm:$0xff]
      %v426 = vld [vmem:[%s236 + $0x450] sm:$0xff]
      %v427 = vld [vmem:[%s236 + $0x458] sm:$0xff]
      %v428 = vld [vmem:[%s236 + $0x460] sm:$0xff]
      %v429 = vld [vmem:[%s236 + $0x468] sm:$0xff]
      %v430 = vld [vmem:[%s236 + $0x470] sm:$0xff]
      %v431 = vld [vmem:[%s236 + $0x478] sm:$0xff]
      %v432 = vld [vmem:[%s236 + $0x480] sm:$0xff]
      %v433 = vld [vmem:[%s236 + $0x488] sm:$0xff]
      %v434 = vld [vmem:[%s236 + $0x490] sm:$0xff]
      %v435 = vld [vmem:[%s236 + $0x498] sm:$0xff]
      %v436 = vld [vmem:[%s236 + $0x4a0] sm:$0xff]
      %v437 = vld [vmem:[%s236 + $0x4a8] sm:$0xff]
      %v438 = vld [vmem:[%s236 + $0x4b0] sm:$0xff]
      %v439 = vld [vmem:[%s236 + $0x4b8] sm:$0xff]
      %v440 = vld [vmem:[%s236 + $0x4c0] sm:$0xff]
      %v441 = vld [vmem:[%s236 + $0x4c8] sm:$0xff]
      %v442 = vld [vmem:[%s236 + $0x4d0] sm:$0xff]
      %v443 = vld [vmem:[%s236 + $0x4d8] sm:$0xff]
      %v444 = vld [vmem:[%s236 + $0x4e0] sm:$0xff]
      %v445 = vld [vmem:[%s236 + $0x4e8] sm:$0xff]
      %v446 = vld [vmem:[%s236 + $0x4f0] sm:$0xff]
      %v447 = vld [vmem:[%s236 + $0x4f8] sm:$0xff]
      %v448 = vld [vmem:[%s236 + $0x500] sm:$0xff]
      %v449 = vld [vmem:[%s236 + $0x508] sm:$0xff]
      %v450 = vld [vmem:[%s236 + $0x510] sm:$0xff]
      %v451 = vld [vmem:[%s236 + $0x518] sm:$0xff]
      %v452 = vld [vmem:[%s236 + $0x520] sm:$0xff]
      %v453 = vld [vmem:[%s236 + $0x528] sm:$0xff]
      %v454 = vld [vmem:[%s236 + $0x530] sm:$0xff]
      %v455 = vld [vmem:[%s236 + $0x538] sm:$0xff]
      %v456 = vld [vmem:[%s236 + $0x540] sm:$0xff]
      %v457 = vld [vmem:[%s236 + $0x548] sm:$0xff]
      %v458 = vld [vmem:[%s236 + $0x550] sm:$0xff]
      %v459 = vld [vmem:[%s236 + $0x558] sm:$0xff]
      %v460 = vld [vmem:[%s236 + $0x560] sm:$0xff]
      %v461 = vld [vmem:[%s236 + $0x568] sm:$0xff]
      %v462 = vld [vmem:[%s236 + $0x570] sm:$0xff]
      %v463 = vld [vmem:[%s236 + $0x578] sm:$0xff]
      %v464 = vld [vmem:[%s236 + $0x580] sm:$0xff]
      %v465 = vld [vmem:[%s236 + $0x588] sm:$0xff]
      %v466 = vld [vmem:[%s236 + $0x590] sm:$0xff]
      %v467 = vld [vmem:[%s236 + $0x598] sm:$0xff]
      %v468 = vld [vmem:[%s236 + $0x5a0] sm:$0xff]
      %v469 = vld [vmem:[%s236 + $0x5a8] sm:$0xff]
      %v470 = vld [vmem:[%s236 + $0x5b0] sm:$0xff]
      %v471 = vld [vmem:[%s236 + $0x5b8] sm:$0xff]
      %v472 = vld [vmem:[%s236 + $0x5c0] sm:$0xff]
      %v473 = vld [vmem:[%s236 + $0x5c8] sm:$0xff]
      %v474 = vld [vmem:[%s236 + $0x5d0] sm:$0xff]
      %v475 = vld [vmem:[%s236 + $0x5d8] sm:$0xff]
      %v476 = vld [vmem:[%s236 + $0x5e0] sm:$0xff]
      %v477 = vld [vmem:[%s236 + $0x5e8] sm:$0xff]
      %v478 = vld [vmem:[%s236 + $0x5f0] sm:$0xff]
      %v479 = vld [vmem:[%s236 + $0x5f8] sm:$0xff]
      %v480 = vld [vmem:[%s236 + $0x600] sm:$0xff]
      %v481 = vld [vmem:[%s236 + $0x608] sm:$0xff]
      %v482 = vld [vmem:[%s236 + $0x610] sm:$0xff]
      %v483 = vld [vmem:[%s236 + $0x618] sm:$0xff]
      %v484 = vld [vmem:[%s236 + $0x620] sm:$0xff]
      %v485 = vld [vmem:[%s236 + $0x628] sm:$0xff]
      %v486 = vld [vmem:[%s236 + $0x630] sm:$0xff]
      %v487 = vld [vmem:[%s236 + $0x638] sm:$0xff]
      %v488 = vld [vmem:[%s236 + $0x640] sm:$0xff]
      %v489 = vld [vmem:[%s236 + $0x648] sm:$0xff]
      %v490 = vld [vmem:[%s236 + $0x650] sm:$0xff]
      %v491 = vld [vmem:[%s236 + $0x658] sm:$0xff]
      %v492 = vld [vmem:[%s236 + $0x660] sm:$0xff]
      %v493 = vld [vmem:[%s236 + $0x668] sm:$0xff]
      %v494 = vld [vmem:[%s236 + $0x670] sm:$0xff]
      %v495 = vld [vmem:[%s236 + $0x678] sm:$0xff]
      %v496 = vld [vmem:[%s236 + $0x680] sm:$0xff]
      %v497 = vld [vmem:[%s236 + $0x688] sm:$0xff]
      %v498 = vld [vmem:[%s236 + $0x690] sm:$0xff]
      %v499 = vld [vmem:[%s236 + $0x698] sm:$0xff]
      %v500 = vld [vmem:[%s236 + $0x6a0] sm:$0xff]
      %v501 = vld [vmem:[%s236 + $0x6a8] sm:$0xff]
      %v502 = vld [vmem:[%s236 + $0x6b0] sm:$0xff]
      %v503 = vld [vmem:[%s236 + $0x6b8] sm:$0xff]
      %v504 = vld [vmem:[%s236 + $0x6c0] sm:$0xff]
      %v505 = vld [vmem:[%s236 + $0x6c8] sm:$0xff]
      %v506 = vld [vmem:[%s236 + $0x6d0] sm:$0xff]
      %v507 = vld [vmem:[%s236 + $0x6d8] sm:$0xff]
      %v508 = vld [vmem:[%s236 + $0x6e0] sm:$0xff]
      %v509 = vld [vmem:[%s236 + $0x6e8] sm:$0xff]
      %v510 = vld [vmem:[%s236 + $0x6f0] sm:$0xff]
      %v511 = vld [vmem:[%s236 + $0x6f8] sm:$0xff]
      %v512 = vld [vmem:[%s236 + $0x700] sm:$0xff]
      %v513 = vld [vmem:[%s236 + $0x708] sm:$0xff]
      %v514 = vld [vmem:[%s236 + $0x710] sm:$0xff]
      %v515 = vld [vmem:[%s236 + $0x718] sm:$0xff]
      %v516 = vld [vmem:[%s236 + $0x720] sm:$0xff]
      %v517 = vld [vmem:[%s236 + $0x728] sm:$0xff]
      %v518 = vld [vmem:[%s236 + $0x730] sm:$0xff]
      %v519 = vld [vmem:[%s236 + $0x738] sm:$0xff]
      %v520 = vld [vmem:[%s236 + $0x740] sm:$0xff]
      %v521 = vld [vmem:[%s236 + $0x748] sm:$0xff]
      %v522 = vld [vmem:[%s236 + $0x750] sm:$0xff]
      %v523 = vld [vmem:[%s236 + $0x758] sm:$0xff]
      %v524 = vld [vmem:[%s236 + $0x760] sm:$0xff]
      %v525 = vld [vmem:[%s236 + $0x768] sm:$0xff]
      %v526 = vld [vmem:[%s236 + $0x770] sm:$0xff]
      %v527 = vld [vmem:[%s236 + $0x778] sm:$0xff]
      %v528 = vld [vmem:[%s236 + $0x780] sm:$0xff]
      %v529 = vld [vmem:[%s236 + $0x788] sm:$0xff]
      %v530 = vld [vmem:[%s236 + $0x790] sm:$0xff]
      %v531 = vld [vmem:[%s236 + $0x798] sm:$0xff]
      %v532 = vld [vmem:[%s236 + $0x7a0] sm:$0xff]
      %v533 = vld [vmem:[%s236 + $0x7a8] sm:$0xff]
      %v534 = vld [vmem:[%s236 + $0x7b0] sm:$0xff]
      %v535 = vld [vmem:[%s236 + $0x7b8] sm:$0xff]
      %v536 = vld [vmem:[%s236 + $0x7c0] sm:$0xff]
      %v537 = vld [vmem:[%s236 + $0x7c8] sm:$0xff]
      %v538 = vld [vmem:[%s236 + $0x7d0] sm:$0xff]
      %v539 = vld [vmem:[%s236 + $0x7d8] sm:$0xff]
      %v540 = vld [vmem:[%s236 + $0x7e0] sm:$0xff]
      %v541 = vld [vmem:[%s236 + $0x7e8] sm:$0xff]
      %v542 = vld [vmem:[%s236 + $0x7f0] sm:$0xff]
      %v543 = vld [vmem:[%s236 + $0x7f8] sm:$0xff]
      %v544 = vld [vmem:[%s236 + $0x800] sm:$0xff]
      %v545 = vld [vmem:[%s236 + $0x808] sm:$0xff]
      %v546 = vld [vmem:[%s236 + $0x810] sm:$0xff]
      %v547 = vld [vmem:[%s236 + $0x818] sm:$0xff]
      %v548 = vld [vmem:[%s236 + $0x820] sm:$0xff]
      %v549 = vld [vmem:[%s236 + $0x828] sm:$0xff]
      %v550 = vld [vmem:[%s236 + $0x830] sm:$0xff]
      %v551 = vld [vmem:[%s236 + $0x838] sm:$0xff]
      %v552 = vld [vmem:[%s236 + $0x840] sm:$0xff]
      %v553 = vld [vmem:[%s236 + $0x848] sm:$0xff]
      %v554 = vld [vmem:[%s236 + $0x850] sm:$0xff]
      %v555 = vld [vmem:[%s236 + $0x858] sm:$0xff]
      %v556 = vld [vmem:[%s236 + $0x860] sm:$0xff]
      %v557 = vld [vmem:[%s236 + $0x868] sm:$0xff]
      %v558 = vld [vmem:[%s236 + $0x870] sm:$0xff]
      %v559 = vld [vmem:[%s236 + $0x878] sm:$0xff]
      %v560 = vld [vmem:[%s236 + $0x880] sm:$0xff]
      %v561 = vld [vmem:[%s236 + $0x888] sm:$0xff]
      %v562 = vld [vmem:[%s236 + $0x890] sm:$0xff]
      %v563 = vld [vmem:[%s236 + $0x898] sm:$0xff]
      %v564 = vld [vmem:[%s236 + $0x8a0] sm:$0xff]
      %v565 = vld [vmem:[%s236 + $0x8a8] sm:$0xff]
      %v566 = vld [vmem:[%s236 + $0x8b0] sm:$0xff]
      %v567 = vld [vmem:[%s236 + $0x8b8] sm:$0xff]
      %v568 = vld [vmem:[%s236 + $0x8c0] sm:$0xff]
      %v569 = vld [vmem:[%s236 + $0x8c8] sm:$0xff]
      %v570 = vld [vmem:[%s236 + $0x8d0] sm:$0xff]
      %v571 = vld [vmem:[%s236 + $0x8d8] sm:$0xff]
      %v572 = vld [vmem:[%s236 + $0x8e0] sm:$0xff]
      %v573 = vld [vmem:[%s236 + $0x8e8] sm:$0xff]
      %v574 = vld [vmem:[%s236 + $0x8f0] sm:$0xff]
      %v575 = vld [vmem:[%s236 + $0x8f8] sm:$0xff]
      %v576 = vld [vmem:[%s240] sm:$0x3]
      %v578 = vlaneseq
      %v579 = vshrl.u32 %v578, 7
      %v580 = vsub.s32 0, %v579
      %v581 = vrot.slane %v576, %v580
      %v582 = vlaneseq
      %v583 = vshrl.u32 %v582, 7
      %v584 = vsub.s32 1, %v583
      %v585 = vrot.slane %v576, %v584
      %v624 = vunpack.c.l.b16 %v252
      %v625 = vunpack.c.h.b16 %v252
      %v626 = vunpack.c.l.b16 %v253
      %v627 = vunpack.c.h.b16 %v253
      %v628 = vunpack.c.l.b16 %v254
      %v629 = vunpack.c.h.b16 %v254
      %v630 = vunpack.c.l.b16 %v255
      %v631 = vunpack.c.h.b16 %v255
      %v632 = vunpack.c.l.b16 %v256
      %v633 = vunpack.c.h.b16 %v256
      %v634 = vunpack.c.l.b16 %v257
      %v635 = vunpack.c.h.b16 %v257
      %v636 = vunpack.c.l.b16 %v258
      %v637 = vunpack.c.h.b16 %v258
      %v638 = vunpack.c.l.b16 %v259
      %v639 = vunpack.c.h.b16 %v259
      %v640 = vunpack.c.l.b16 %v260
      %v641 = vunpack.c.h.b16 %v260
      %v642 = vunpack.c.l.b16 %v261
      %v643 = vunpack.c.h.b16 %v261
      %v644 = vunpack.c.l.b16 %v262
      %v645 = vunpack.c.h.b16 %v262
      %v646 = vunpack.c.l.b16 %v263
      %v647 = vunpack.c.h.b16 %v263
      %v648 = vunpack.c.l.b16 %v264
      %v649 = vunpack.c.h.b16 %v264
      %v650 = vunpack.c.l.b16 %v265
      %v651 = vunpack.c.h.b16 %v265
      %v652 = vunpack.c.l.b16 %v266
      %v653 = vunpack.c.h.b16 %v266
      %v654 = vunpack.c.l.b16 %v267
      %v655 = vunpack.c.h.b16 %v267
      %v656 = vunpack.c.l.b16 %v268
      %v657 = vunpack.c.h.b16 %v268
      %v658 = vunpack.c.l.b16 %v269
      %v659 = vunpack.c.h.b16 %v269
      %v660 = vunpack.c.l.b16 %v270
      %v661 = vunpack.c.h.b16 %v270
      %v662 = vunpack.c.l.b16 %v271
      %v663 = vunpack.c.h.b16 %v271
      %v664 = vunpack.c.l.b16 %v272
      %v665 = vunpack.c.h.b16 %v272
      %v666 = vunpack.c.l.b16 %v273
      %v667 = vunpack.c.h.b16 %v273
      %v668 = vunpack.c.l.b16 %v274
      %v669 = vunpack.c.h.b16 %v274
      %v670 = vunpack.c.l.b16 %v275
      %v671 = vunpack.c.h.b16 %v275
      %v672 = vunpack.c.l.b16 %v276
      %v673 = vunpack.c.h.b16 %v276
      %v674 = vunpack.c.l.b16 %v277
      %v675 = vunpack.c.h.b16 %v277
      %v676 = vunpack.c.l.b16 %v278
      %v677 = vunpack.c.h.b16 %v278
      %v678 = vunpack.c.l.b16 %v279
      %v679 = vunpack.c.h.b16 %v279
      %v680 = vunpack.c.l.b16 %v280
      %v681 = vunpack.c.h.b16 %v280
      %v682 = vunpack.c.l.b16 %v281
      %v683 = vunpack.c.h.b16 %v281
      %v684 = vunpack.c.l.b16 %v282
      %v685 = vunpack.c.h.b16 %v282
      %v686 = vunpack.c.l.b16 %v283
      %v687 = vunpack.c.h.b16 %v283
      %v688 = vunpack.c.l.b16 %v284
      %v689 = vunpack.c.h.b16 %v284
      %v690 = vunpack.c.l.b16 %v285
      %v691 = vunpack.c.h.b16 %v285
      %v692 = vunpack.c.l.b16 %v286
      %v693 = vunpack.c.h.b16 %v286
      %v694 = vunpack.c.l.b16 %v287
      %v695 = vunpack.c.h.b16 %v287
      %v696 = vpack.c.b16 %v642, %v624
      %v697 = vpack.c.b16 %v643, %v625
      %v698 = vpack.c.b16 %v644, %v626
      %v699 = vpack.c.b16 %v645, %v627
      %v700 = vpack.c.b16 %v646, %v628
      %v701 = vpack.c.b16 %v647, %v629
      %v702 = vpack.c.b16 %v648, %v630
      %v703 = vpack.c.b16 %v649, %v631
      %v704 = vpack.c.b16 %v650, %v632
      %v705 = vpack.c.b16 %v651, %v633
      %v706 = vpack.c.b16 %v652, %v634
      %v707 = vpack.c.b16 %v653, %v635
      %v708 = vpack.c.b16 %v654, %v636
      %v709 = vpack.c.b16 %v655, %v637
      %v710 = vpack.c.b16 %v656, %v638
      %v711 = vpack.c.b16 %v657, %v639
      %v712 = vpack.c.b16 %v658, %v640
      %v713 = vpack.c.b16 %v659, %v641
      %v714 = vpack.c.b16 %v678, %v660
      %v715 = vpack.c.b16 %v679, %v661
      %v716 = vpack.c.b16 %v680, %v662
      %v717 = vpack.c.b16 %v681, %v663
      %v718 = vpack.c.b16 %v682, %v664
      %v719 = vpack.c.b16 %v683, %v665
      %v720 = vpack.c.b16 %v684, %v666
      %v721 = vpack.c.b16 %v685, %v667
      %v722 = vpack.c.b16 %v686, %v668
      %v723 = vpack.c.b16 %v687, %v669
      %v724 = vpack.c.b16 %v688, %v670
      %v725 = vpack.c.b16 %v689, %v671
      %v726 = vpack.c.b16 %v690, %v672
      %v727 = vpack.c.b16 %v691, %v673
      %v728 = vpack.c.b16 %v692, %v674
      %v729 = vpack.c.b16 %v693, %v675
      %v730 = vpack.c.b16 %v694, %v676
      %v731 = vpack.c.b16 %v695, %v677
      %v1056 = vunpack.c.l.b16 %v288
      %v1057 = vunpack.c.h.b16 %v288
      %v1058 = vunpack.c.l.b16 %v289
      %v1059 = vunpack.c.h.b16 %v289
      %v1060 = vunpack.c.l.b16 %v290
      %v1061 = vunpack.c.h.b16 %v290
      %v1062 = vunpack.c.l.b16 %v291
      %v1063 = vunpack.c.h.b16 %v291
      %v1064 = vunpack.c.l.b16 %v292
      %v1065 = vunpack.c.h.b16 %v292
      %v1066 = vunpack.c.l.b16 %v293
      %v1067 = vunpack.c.h.b16 %v293
      %v1068 = vunpack.c.l.b16 %v294
      %v1069 = vunpack.c.h.b16 %v294
      %v1070 = vunpack.c.l.b16 %v295
      %v1071 = vunpack.c.h.b16 %v295
      %v1072 = vunpack.c.l.b16 %v296
      %v1073 = vunpack.c.h.b16 %v296
      %v1074 = vunpack.c.l.b16 %v297
      %v1075 = vunpack.c.h.b16 %v297
      %v1076 = vunpack.c.l.b16 %v298
      %v1077 = vunpack.c.h.b16 %v298
      %v1078 = vunpack.c.l.b16 %v299
      %v1079 = vunpack.c.h.b16 %v299
      %v1080 = vunpack.c.l.b16 %v300
      %v1081 = vunpack.c.h.b16 %v300
      %v1082 = vunpack.c.l.b16 %v301
      %v1083 = vunpack.c.h.b16 %v301
      %v1084 = vunpack.c.l.b16 %v302
      %v1085 = vunpack.c.h.b16 %v302
      %v1086 = vunpack.c.l.b16 %v303
      %v1087 = vunpack.c.h.b16 %v303
      %v1088 = vunpack.c.l.b16 %v304
      %v1089 = vunpack.c.h.b16 %v304
      %v1090 = vunpack.c.l.b16 %v305
      %v1091 = vunpack.c.h.b16 %v305
      %v1092 = vunpack.c.l.b16 %v306
      %v1093 = vunpack.c.h.b16 %v306
      %v1094 = vunpack.c.l.b16 %v307
      %v1095 = vunpack.c.h.b16 %v307
      %v1096 = vunpack.c.l.b16 %v308
      %v1097 = vunpack.c.h.b16 %v308
      %v1098 = vunpack.c.l.b16 %v309
      %v1099 = vunpack.c.h.b16 %v309
      %v1100 = vunpack.c.l.b16 %v310
      %v1101 = vunpack.c.h.b16 %v310
      %v1102 = vunpack.c.l.b16 %v311
      %v1103 = vunpack.c.h.b16 %v311
      %v1104 = vunpack.c.l.b16 %v312
      %v1105 = vunpack.c.h.b16 %v312
      %v1106 = vunpack.c.l.b16 %v313
      %v1107 = vunpack.c.h.b16 %v313
      %v1108 = vunpack.c.l.b16 %v314
      %v1109 = vunpack.c.h.b16 %v314
      %v1110 = vunpack.c.l.b16 %v315
      %v1111 = vunpack.c.h.b16 %v315
      %v1112 = vunpack.c.l.b16 %v316
      %v1113 = vunpack.c.h.b16 %v316
      %v1114 = vunpack.c.l.b16 %v317
      %v1115 = vunpack.c.h.b16 %v317
      %v1116 = vunpack.c.l.b16 %v318
      %v1117 = vunpack.c.h.b16 %v318
      %v1118 = vunpack.c.l.b16 %v319
      %v1119 = vunpack.c.h.b16 %v319
      %v1120 = vunpack.c.l.b16 %v320
      %v1121 = vunpack.c.h.b16 %v320
      %v1122 = vunpack.c.l.b16 %v321
      %v1123 = vunpack.c.h.b16 %v321
      %v1124 = vunpack.c.l.b16 %v322
      %v1125 = vunpack.c.h.b16 %v322
      %v1126 = vunpack.c.l.b16 %v323
      %v1127 = vunpack.c.h.b16 %v323
      %v1128 = vunpack.c.l.b16 %v324
      %v1129 = vunpack.c.h.b16 %v324
      %v1130 = vunpack.c.l.b16 %v325
      %v1131 = vunpack.c.h.b16 %v325
      %v1132 = vunpack.c.l.b16 %v326
      %v1133 = vunpack.c.h.b16 %v326
      %v1134 = vunpack.c.l.b16 %v327
      %v1135 = vunpack.c.h.b16 %v327
      %v1136 = vunpack.c.l.b16 %v328
      %v1137 = vunpack.c.h.b16 %v328
      %v1138 = vunpack.c.l.b16 %v329
      %v1139 = vunpack.c.h.b16 %v329
      %v1140 = vunpack.c.l.b16 %v330
      %v1141 = vunpack.c.h.b16 %v330
      %v1142 = vunpack.c.l.b16 %v331
      %v1143 = vunpack.c.h.b16 %v331
      %v1144 = vunpack.c.l.b16 %v332
      %v1145 = vunpack.c.h.b16 %v332
      %v1146 = vunpack.c.l.b16 %v333
      %v1147 = vunpack.c.h.b16 %v333
      %v1148 = vunpack.c.l.b16 %v334
      %v1149 = vunpack.c.h.b16 %v334
      %v1150 = vunpack.c.l.b16 %v335
      %v1151 = vunpack.c.h.b16 %v335
      %v1152 = vunpack.c.l.b16 %v336
      %v1153 = vunpack.c.h.b16 %v336
      %v1154 = vunpack.c.l.b16 %v337
      %v1155 = vunpack.c.h.b16 %v337
      %v1156 = vunpack.c.l.b16 %v338
      %v1157 = vunpack.c.h.b16 %v338
      %v1158 = vunpack.c.l.b16 %v339
      %v1159 = vunpack.c.h.b16 %v339
      %v1160 = vunpack.c.l.b16 %v340
      %v1161 = vunpack.c.h.b16 %v340
      %v1162 = vunpack.c.l.b16 %v341
      %v1163 = vunpack.c.h.b16 %v341
      %v1164 = vunpack.c.l.b16 %v342
      %v1165 = vunpack.c.h.b16 %v342
      %v1166 = vunpack.c.l.b16 %v343
      %v1167 = vunpack.c.h.b16 %v343
      %v1168 = vunpack.c.l.b16 %v344
      %v1169 = vunpack.c.h.b16 %v344
      %v1170 = vunpack.c.l.b16 %v345
      %v1171 = vunpack.c.h.b16 %v345
      %v1172 = vunpack.c.l.b16 %v346
      %v1173 = vunpack.c.h.b16 %v346
      %v1174 = vunpack.c.l.b16 %v347
      %v1175 = vunpack.c.h.b16 %v347
      %v1176 = vunpack.c.l.b16 %v348
      %v1177 = vunpack.c.h.b16 %v348
      %v1178 = vunpack.c.l.b16 %v349
      %v1179 = vunpack.c.h.b16 %v349
      %v1180 = vunpack.c.l.b16 %v350
      %v1181 = vunpack.c.h.b16 %v350
      %v1182 = vunpack.c.l.b16 %v351
      %v1183 = vunpack.c.h.b16 %v351
      %v1184 = vunpack.c.l.b16 %v352
      %v1185 = vunpack.c.h.b16 %v352
      %v1186 = vunpack.c.l.b16 %v353
      %v1187 = vunpack.c.h.b16 %v353
      %v1188 = vunpack.c.l.b16 %v354
      %v1189 = vunpack.c.h.b16 %v354
      %v1190 = vunpack.c.l.b16 %v355
      %v1191 = vunpack.c.h.b16 %v355
      %v1192 = vunpack.c.l.b16 %v356
      %v1193 = vunpack.c.h.b16 %v356
      %v1194 = vunpack.c.l.b16 %v357
      %v1195 = vunpack.c.h.b16 %v357
      %v1196 = vunpack.c.l.b16 %v358
      %v1197 = vunpack.c.h.b16 %v358
      %v1198 = vunpack.c.l.b16 %v359
      %v1199 = vunpack.c.h.b16 %v359
      %v1200 = vunpack.c.l.b16 %v360
      %v1201 = vunpack.c.h.b16 %v360
      %v1202 = vunpack.c.l.b16 %v361
      %v1203 = vunpack.c.h.b16 %v361
      %v1204 = vunpack.c.l.b16 %v362
      %v1205 = vunpack.c.h.b16 %v362
      %v1206 = vunpack.c.l.b16 %v363
      %v1207 = vunpack.c.h.b16 %v363
      %v1208 = vunpack.c.l.b16 %v364
      %v1209 = vunpack.c.h.b16 %v364
      %v1210 = vunpack.c.l.b16 %v365
      %v1211 = vunpack.c.h.b16 %v365
      %v1212 = vunpack.c.l.b16 %v366
      %v1213 = vunpack.c.h.b16 %v366
      %v1214 = vunpack.c.l.b16 %v367
      %v1215 = vunpack.c.h.b16 %v367
      %v1216 = vunpack.c.l.b16 %v368
      %v1217 = vunpack.c.h.b16 %v368
      %v1218 = vunpack.c.l.b16 %v369
      %v1219 = vunpack.c.h.b16 %v369
      %v1220 = vunpack.c.l.b16 %v370
      %v1221 = vunpack.c.h.b16 %v370
      %v1222 = vunpack.c.l.b16 %v371
      %v1223 = vunpack.c.h.b16 %v371
      %v1224 = vunpack.c.l.b16 %v372
      %v1225 = vunpack.c.h.b16 %v372
      %v1226 = vunpack.c.l.b16 %v373
      %v1227 = vunpack.c.h.b16 %v373
      %v1228 = vunpack.c.l.b16 %v374
      %v1229 = vunpack.c.h.b16 %v374
      %v1230 = vunpack.c.l.b16 %v375
      %v1231 = vunpack.c.h.b16 %v375
      %v1232 = vunpack.c.l.b16 %v376
      %v1233 = vunpack.c.h.b16 %v376
      %v1234 = vunpack.c.l.b16 %v377
      %v1235 = vunpack.c.h.b16 %v377
      %v1236 = vunpack.c.l.b16 %v378
      %v1237 = vunpack.c.h.b16 %v378
      %v1238 = vunpack.c.l.b16 %v379
      %v1239 = vunpack.c.h.b16 %v379
      %v1240 = vunpack.c.l.b16 %v380
      %v1241 = vunpack.c.h.b16 %v380
      %v1242 = vunpack.c.l.b16 %v381
      %v1243 = vunpack.c.h.b16 %v381
      %v1244 = vunpack.c.l.b16 %v382
      %v1245 = vunpack.c.h.b16 %v382
      %v1246 = vunpack.c.l.b16 %v383
      %v1247 = vunpack.c.h.b16 %v383
      %v1248 = vunpack.c.l.b16 %v384
      %v1249 = vunpack.c.h.b16 %v384
      %v1250 = vunpack.c.l.b16 %v385
      %v1251 = vunpack.c.h.b16 %v385
      %v1252 = vunpack.c.l.b16 %v386
      %v1253 = vunpack.c.h.b16 %v386
      %v1254 = vunpack.c.l.b16 %v387
      %v1255 = vunpack.c.h.b16 %v387
      %v1256 = vunpack.c.l.b16 %v388
      %v1257 = vunpack.c.h.b16 %v388
      %v1258 = vunpack.c.l.b16 %v389
      %v1259 = vunpack.c.h.b16 %v389
      %v1260 = vunpack.c.l.b16 %v390
      %v1261 = vunpack.c.h.b16 %v390
      %v1262 = vunpack.c.l.b16 %v391
      %v1263 = vunpack.c.h.b16 %v391
      %v1264 = vunpack.c.l.b16 %v392
      %v1265 = vunpack.c.h.b16 %v392
      %v1266 = vunpack.c.l.b16 %v393
      %v1267 = vunpack.c.h.b16 %v393
      %v1268 = vunpack.c.l.b16 %v394
      %v1269 = vunpack.c.h.b16 %v394
      %v1270 = vunpack.c.l.b16 %v395
      %v1271 = vunpack.c.h.b16 %v395
      %v1272 = vunpack.c.l.b16 %v396
      %v1273 = vunpack.c.h.b16 %v396
      %v1274 = vunpack.c.l.b16 %v397
      %v1275 = vunpack.c.h.b16 %v397
      %v1276 = vunpack.c.l.b16 %v398
      %v1277 = vunpack.c.h.b16 %v398
      %v1278 = vunpack.c.l.b16 %v399
      %v1279 = vunpack.c.h.b16 %v399
      %v1280 = vunpack.c.l.b16 %v400
      %v1281 = vunpack.c.h.b16 %v400
      %v1282 = vunpack.c.l.b16 %v401
      %v1283 = vunpack.c.h.b16 %v401
      %v1284 = vunpack.c.l.b16 %v402
      %v1285 = vunpack.c.h.b16 %v402
      %v1286 = vunpack.c.l.b16 %v403
      %v1287 = vunpack.c.h.b16 %v403
      %v1288 = vunpack.c.l.b16 %v404
      %v1289 = vunpack.c.h.b16 %v404
      %v1290 = vunpack.c.l.b16 %v405
      %v1291 = vunpack.c.h.b16 %v405
      %v1292 = vunpack.c.l.b16 %v406
      %v1293 = vunpack.c.h.b16 %v406
      %v1294 = vunpack.c.l.b16 %v407
      %v1295 = vunpack.c.h.b16 %v407
      %v1296 = vunpack.c.l.b16 %v408
      %v1297 = vunpack.c.h.b16 %v408
      %v1298 = vunpack.c.l.b16 %v409
      %v1299 = vunpack.c.h.b16 %v409
      %v1300 = vunpack.c.l.b16 %v410
      %v1301 = vunpack.c.h.b16 %v410
      %v1302 = vunpack.c.l.b16 %v411
      %v1303 = vunpack.c.h.b16 %v411
      %v1304 = vunpack.c.l.b16 %v412
      %v1305 = vunpack.c.h.b16 %v412
      %v1306 = vunpack.c.l.b16 %v413
      %v1307 = vunpack.c.h.b16 %v413
      %v1308 = vunpack.c.l.b16 %v414
      %v1309 = vunpack.c.h.b16 %v414
      %v1310 = vunpack.c.l.b16 %v415
      %v1311 = vunpack.c.h.b16 %v415
      %v1312 = vunpack.c.l.b16 %v416
      %v1313 = vunpack.c.h.b16 %v416
      %v1314 = vunpack.c.l.b16 %v417
      %v1315 = vunpack.c.h.b16 %v417
      %v1316 = vunpack.c.l.b16 %v418
      %v1317 = vunpack.c.h.b16 %v418
      %v1318 = vunpack.c.l.b16 %v419
      %v1319 = vunpack.c.h.b16 %v419
      %v1320 = vunpack.c.l.b16 %v420
      %v1321 = vunpack.c.h.b16 %v420
      %v1322 = vunpack.c.l.b16 %v421
      %v1323 = vunpack.c.h.b16 %v421
      %v1324 = vunpack.c.l.b16 %v422
      %v1325 = vunpack.c.h.b16 %v422
      %v1326 = vunpack.c.l.b16 %v423
      %v1327 = vunpack.c.h.b16 %v423
      %v1328 = vunpack.c.l.b16 %v424
      %v1329 = vunpack.c.h.b16 %v424
      %v1330 = vunpack.c.l.b16 %v425
      %v1331 = vunpack.c.h.b16 %v425
      %v1332 = vunpack.c.l.b16 %v426
      %v1333 = vunpack.c.h.b16 %v426
      %v1334 = vunpack.c.l.b16 %v427
      %v1335 = vunpack.c.h.b16 %v427
      %v1336 = vunpack.c.l.b16 %v428
      %v1337 = vunpack.c.h.b16 %v428
      %v1338 = vunpack.c.l.b16 %v429
      %v1339 = vunpack.c.h.b16 %v429
      %v1340 = vunpack.c.l.b16 %v430
      %v1341 = vunpack.c.h.b16 %v430
      %v1342 = vunpack.c.l.b16 %v431
      %v1343 = vunpack.c.h.b16 %v431
      %v1344 = vunpack.c.l.b16 %v432
      %v1345 = vunpack.c.h.b16 %v432
      %v1346 = vunpack.c.l.b16 %v433
      %v1347 = vunpack.c.h.b16 %v433
      %v1348 = vunpack.c.l.b16 %v434
      %v1349 = vunpack.c.h.b16 %v434
      %v1350 = vunpack.c.l.b16 %v435
      %v1351 = vunpack.c.h.b16 %v435
      %v1352 = vunpack.c.l.b16 %v436
      %v1353 = vunpack.c.h.b16 %v436
      %v1354 = vunpack.c.l.b16 %v437
      %v1355 = vunpack.c.h.b16 %v437
      %v1356 = vunpack.c.l.b16 %v438
      %v1357 = vunpack.c.h.b16 %v438
      %v1358 = vunpack.c.l.b16 %v439
      %v1359 = vunpack.c.h.b16 %v439
      %v1360 = vunpack.c.l.b16 %v440
      %v1361 = vunpack.c.h.b16 %v440
      %v1362 = vunpack.c.l.b16 %v441
      %v1363 = vunpack.c.h.b16 %v441
      %v1364 = vunpack.c.l.b16 %v442
      %v1365 = vunpack.c.h.b16 %v442
      %v1366 = vunpack.c.l.b16 %v443
      %v1367 = vunpack.c.h.b16 %v443
      %v1368 = vunpack.c.l.b16 %v444
      %v1369 = vunpack.c.h.b16 %v444
      %v1370 = vunpack.c.l.b16 %v445
      %v1371 = vunpack.c.h.b16 %v445
      %v1372 = vunpack.c.l.b16 %v446
      %v1373 = vunpack.c.h.b16 %v446
      %v1374 = vunpack.c.l.b16 %v447
      %v1375 = vunpack.c.h.b16 %v447
      %v1376 = vunpack.c.l.b16 %v448
      %v1377 = vunpack.c.h.b16 %v448
      %v1378 = vunpack.c.l.b16 %v449
      %v1379 = vunpack.c.h.b16 %v449
      %v1380 = vunpack.c.l.b16 %v450
      %v1381 = vunpack.c.h.b16 %v450
      %v1382 = vunpack.c.l.b16 %v451
      %v1383 = vunpack.c.h.b16 %v451
      %v1384 = vunpack.c.l.b16 %v452
      %v1385 = vunpack.c.h.b16 %v452
      %v1386 = vunpack.c.l.b16 %v453
      %v1387 = vunpack.c.h.b16 %v453
      %v1388 = vunpack.c.l.b16 %v454
      %v1389 = vunpack.c.h.b16 %v454
      %v1390 = vunpack.c.l.b16 %v455
      %v1391 = vunpack.c.h.b16 %v455
      %v1392 = vunpack.c.l.b16 %v456
      %v1393 = vunpack.c.h.b16 %v456
      %v1394 = vunpack.c.l.b16 %v457
      %v1395 = vunpack.c.h.b16 %v457
      %v1396 = vunpack.c.l.b16 %v458
      %v1397 = vunpack.c.h.b16 %v458
      %v1398 = vunpack.c.l.b16 %v459
      %v1399 = vunpack.c.h.b16 %v459
      %v1400 = vunpack.c.l.b16 %v460
      %v1401 = vunpack.c.h.b16 %v460
      %v1402 = vunpack.c.l.b16 %v461
      %v1403 = vunpack.c.h.b16 %v461
      %v1404 = vunpack.c.l.b16 %v462
      %v1405 = vunpack.c.h.b16 %v462
      %v1406 = vunpack.c.l.b16 %v463
      %v1407 = vunpack.c.h.b16 %v463
      %v1408 = vunpack.c.l.b16 %v464
      %v1409 = vunpack.c.h.b16 %v464
      %v1410 = vunpack.c.l.b16 %v465
      %v1411 = vunpack.c.h.b16 %v465
      %v1412 = vunpack.c.l.b16 %v466
      %v1413 = vunpack.c.h.b16 %v466
      %v1414 = vunpack.c.l.b16 %v467
      %v1415 = vunpack.c.h.b16 %v467
      %v1416 = vunpack.c.l.b16 %v468
      %v1417 = vunpack.c.h.b16 %v468
      %v1418 = vunpack.c.l.b16 %v469
      %v1419 = vunpack.c.h.b16 %v469
      %v1420 = vunpack.c.l.b16 %v470
      %v1421 = vunpack.c.h.b16 %v470
      %v1422 = vunpack.c.l.b16 %v471
      %v1423 = vunpack.c.h.b16 %v471
      %v1424 = vunpack.c.l.b16 %v472
      %v1425 = vunpack.c.h.b16 %v472
      %v1426 = vunpack.c.l.b16 %v473
      %v1427 = vunpack.c.h.b16 %v473
      %v1428 = vunpack.c.l.b16 %v474
      %v1429 = vunpack.c.h.b16 %v474
      %v1430 = vunpack.c.l.b16 %v475
      %v1431 = vunpack.c.h.b16 %v475
      %v1432 = vunpack.c.l.b16 %v476
      %v1433 = vunpack.c.h.b16 %v476
      %v1434 = vunpack.c.l.b16 %v477
      %v1435 = vunpack.c.h.b16 %v477
      %v1436 = vunpack.c.l.b16 %v478
      %v1437 = vunpack.c.h.b16 %v478
      %v1438 = vunpack.c.l.b16 %v479
      %v1439 = vunpack.c.h.b16 %v479
      %v1440 = vunpack.c.l.b16 %v480
      %v1441 = vunpack.c.h.b16 %v480
      %v1442 = vunpack.c.l.b16 %v481
      %v1443 = vunpack.c.h.b16 %v481
      %v1444 = vunpack.c.l.b16 %v482
      %v1445 = vunpack.c.h.b16 %v482
      %v1446 = vunpack.c.l.b16 %v483
      %v1447 = vunpack.c.h.b16 %v483
      %v1448 = vunpack.c.l.b16 %v484
      %v1449 = vunpack.c.h.b16 %v484
      %v1450 = vunpack.c.l.b16 %v485
      %v1451 = vunpack.c.h.b16 %v485
      %v1452 = vunpack.c.l.b16 %v486
      %v1453 = vunpack.c.h.b16 %v486
      %v1454 = vunpack.c.l.b16 %v487
      %v1455 = vunpack.c.h.b16 %v487
      %v1456 = vunpack.c.l.b16 %v488
      %v1457 = vunpack.c.h.b16 %v488
      %v1458 = vunpack.c.l.b16 %v489
      %v1459 = vunpack.c.h.b16 %v489
      %v1460 = vunpack.c.l.b16 %v490
      %v1461 = vunpack.c.h.b16 %v490
      %v1462 = vunpack.c.l.b16 %v491
      %v1463 = vunpack.c.h.b16 %v491
      %v1464 = vunpack.c.l.b16 %v492
      %v1465 = vunpack.c.h.b16 %v492
      %v1466 = vunpack.c.l.b16 %v493
      %v1467 = vunpack.c.h.b16 %v493
      %v1468 = vunpack.c.l.b16 %v494
      %v1469 = vunpack.c.h.b16 %v494
      %v1470 = vunpack.c.l.b16 %v495
      %v1471 = vunpack.c.h.b16 %v495
      %v1472 = vunpack.c.l.b16 %v496
      %v1473 = vunpack.c.h.b16 %v496
      %v1474 = vunpack.c.l.b16 %v497
      %v1475 = vunpack.c.h.b16 %v497
      %v1476 = vunpack.c.l.b16 %v498
      %v1477 = vunpack.c.h.b16 %v498
      %v1478 = vunpack.c.l.b16 %v499
      %v1479 = vunpack.c.h.b16 %v499
      %v1480 = vunpack.c.l.b16 %v500
      %v1481 = vunpack.c.h.b16 %v500
      %v1482 = vunpack.c.l.b16 %v501
      %v1483 = vunpack.c.h.b16 %v501
      %v1484 = vunpack.c.l.b16 %v502
      %v1485 = vunpack.c.h.b16 %v502
      %v1486 = vunpack.c.l.b16 %v503
      %v1487 = vunpack.c.h.b16 %v503
      %v1488 = vunpack.c.l.b16 %v504
      %v1489 = vunpack.c.h.b16 %v504
      %v1490 = vunpack.c.l.b16 %v505
      %v1491 = vunpack.c.h.b16 %v505
      %v1492 = vunpack.c.l.b16 %v506
      %v1493 = vunpack.c.h.b16 %v506
      %v1494 = vunpack.c.l.b16 %v507
      %v1495 = vunpack.c.h.b16 %v507
      %v1496 = vunpack.c.l.b16 %v508
      %v1497 = vunpack.c.h.b16 %v508
      %v1498 = vunpack.c.l.b16 %v509
      %v1499 = vunpack.c.h.b16 %v509
      %v1500 = vunpack.c.l.b16 %v510
      %v1501 = vunpack.c.h.b16 %v510
      %v1502 = vunpack.c.l.b16 %v511
      %v1503 = vunpack.c.h.b16 %v511
      %v1504 = vunpack.c.l.b16 %v512
      %v1505 = vunpack.c.h.b16 %v512
      %v1506 = vunpack.c.l.b16 %v513
      %v1507 = vunpack.c.h.b16 %v513
      %v1508 = vunpack.c.l.b16 %v514
      %v1509 = vunpack.c.h.b16 %v514
      %v1510 = vunpack.c.l.b16 %v515
      %v1511 = vunpack.c.h.b16 %v515
      %v1512 = vunpack.c.l.b16 %v516
      %v1513 = vunpack.c.h.b16 %v516
      %v1514 = vunpack.c.l.b16 %v517
      %v1515 = vunpack.c.h.b16 %v517
      %v1516 = vunpack.c.l.b16 %v518
      %v1517 = vunpack.c.h.b16 %v518
      %v1518 = vunpack.c.l.b16 %v519
      %v1519 = vunpack.c.h.b16 %v519
      %v1520 = vunpack.c.l.b16 %v520
      %v1521 = vunpack.c.h.b16 %v520
      %v1522 = vunpack.c.l.b16 %v521
      %v1523 = vunpack.c.h.b16 %v521
      %v1524 = vunpack.c.l.b16 %v522
      %v1525 = vunpack.c.h.b16 %v522
      %v1526 = vunpack.c.l.b16 %v523
      %v1527 = vunpack.c.h.b16 %v523
      %v1528 = vunpack.c.l.b16 %v524
      %v1529 = vunpack.c.h.b16 %v524
      %v1530 = vunpack.c.l.b16 %v525
      %v1531 = vunpack.c.h.b16 %v525
      %v1532 = vunpack.c.l.b16 %v526
      %v1533 = vunpack.c.h.b16 %v526
      %v1534 = vunpack.c.l.b16 %v527
      %v1535 = vunpack.c.h.b16 %v527
      %v1536 = vunpack.c.l.b16 %v528
      %v1537 = vunpack.c.h.b16 %v528
      %v1538 = vunpack.c.l.b16 %v529
      %v1539 = vunpack.c.h.b16 %v529
      %v1540 = vunpack.c.l.b16 %v530
      %v1541 = vunpack.c.h.b16 %v530
      %v1542 = vunpack.c.l.b16 %v531
      %v1543 = vunpack.c.h.b16 %v531
      %v1544 = vunpack.c.l.b16 %v532
      %v1545 = vunpack.c.h.b16 %v532
      %v1546 = vunpack.c.l.b16 %v533
      %v1547 = vunpack.c.h.b16 %v533
      %v1548 = vunpack.c.l.b16 %v534
      %v1549 = vunpack.c.h.b16 %v534
      %v1550 = vunpack.c.l.b16 %v535
      %v1551 = vunpack.c.h.b16 %v535
      %v1552 = vunpack.c.l.b16 %v536
      %v1553 = vunpack.c.h.b16 %v536
      %v1554 = vunpack.c.l.b16 %v537
      %v1555 = vunpack.c.h.b16 %v537
      %v1556 = vunpack.c.l.b16 %v538
      %v1557 = vunpack.c.h.b16 %v538
      %v1558 = vunpack.c.l.b16 %v539
      %v1559 = vunpack.c.h.b16 %v539
      %v1560 = vunpack.c.l.b16 %v540
      %v1561 = vunpack.c.h.b16 %v540
      %v1562 = vunpack.c.l.b16 %v541
      %v1563 = vunpack.c.h.b16 %v541
      %v1564 = vunpack.c.l.b16 %v542
      %v1565 = vunpack.c.h.b16 %v542
      %v1566 = vunpack.c.l.b16 %v543
      %v1567 = vunpack.c.h.b16 %v543
      %v1568 = vunpack.c.l.b16 %v544
      %v1569 = vunpack.c.h.b16 %v544
      %v1570 = vunpack.c.l.b16 %v545
      %v1571 = vunpack.c.h.b16 %v545
      %v1572 = vunpack.c.l.b16 %v546
      %v1573 = vunpack.c.h.b16 %v546
      %v1574 = vunpack.c.l.b16 %v547
      %v1575 = vunpack.c.h.b16 %v547
      %v1576 = vunpack.c.l.b16 %v548
      %v1577 = vunpack.c.h.b16 %v548
      %v1578 = vunpack.c.l.b16 %v549
      %v1579 = vunpack.c.h.b16 %v549
      %v1580 = vunpack.c.l.b16 %v550
      %v1581 = vunpack.c.h.b16 %v550
      %v1582 = vunpack.c.l.b16 %v551
      %v1583 = vunpack.c.h.b16 %v551
      %v1584 = vunpack.c.l.b16 %v552
      %v1585 = vunpack.c.h.b16 %v552
      %v1586 = vunpack.c.l.b16 %v553
      %v1587 = vunpack.c.h.b16 %v553
      %v1588 = vunpack.c.l.b16 %v554
      %v1589 = vunpack.c.h.b16 %v554
      %v1590 = vunpack.c.l.b16 %v555
      %v1591 = vunpack.c.h.b16 %v555
      %v1592 = vunpack.c.l.b16 %v556
      %v1593 = vunpack.c.h.b16 %v556
      %v1594 = vunpack.c.l.b16 %v557
      %v1595 = vunpack.c.h.b16 %v557
      %v1596 = vunpack.c.l.b16 %v558
      %v1597 = vunpack.c.h.b16 %v558
      %v1598 = vunpack.c.l.b16 %v559
      %v1599 = vunpack.c.h.b16 %v559
      %v1600 = vunpack.c.l.b16 %v560
      %v1601 = vunpack.c.h.b16 %v560
      %v1602 = vunpack.c.l.b16 %v561
      %v1603 = vunpack.c.h.b16 %v561
      %v1604 = vunpack.c.l.b16 %v562
      %v1605 = vunpack.c.h.b16 %v562
      %v1606 = vunpack.c.l.b16 %v563
      %v1607 = vunpack.c.h.b16 %v563
      %v1608 = vunpack.c.l.b16 %v564
      %v1609 = vunpack.c.h.b16 %v564
      %v1610 = vunpack.c.l.b16 %v565
      %v1611 = vunpack.c.h.b16 %v565
      %v1612 = vunpack.c.l.b16 %v566
      %v1613 = vunpack.c.h.b16 %v566
      %v1614 = vunpack.c.l.b16 %v567
      %v1615 = vunpack.c.h.b16 %v567
      %v1616 = vunpack.c.l.b16 %v568
      %v1617 = vunpack.c.h.b16 %v568
      %v1618 = vunpack.c.l.b16 %v569
      %v1619 = vunpack.c.h.b16 %v569
      %v1620 = vunpack.c.l.b16 %v570
      %v1621 = vunpack.c.h.b16 %v570
      %v1622 = vunpack.c.l.b16 %v571
      %v1623 = vunpack.c.h.b16 %v571
      %v1624 = vunpack.c.l.b16 %v572
      %v1625 = vunpack.c.h.b16 %v572
      %v1626 = vunpack.c.l.b16 %v573
      %v1627 = vunpack.c.h.b16 %v573
      %v1628 = vunpack.c.l.b16 %v574
      %v1629 = vunpack.c.h.b16 %v574
      %v1630 = vunpack.c.l.b16 %v575
      %v1631 = vunpack.c.h.b16 %v575
      %v1632 = vpack.c.b16 %v1058, %v1056
      %v1633 = vpack.c.b16 %v1059, %v1057
      %v1634 = vpack.c.b16 %v1062, %v1060
      %v1635 = vpack.c.b16 %v1063, %v1061
      %v1636 = vpack.c.b16 %v1066, %v1064
      %v1637 = vpack.c.b16 %v1067, %v1065
      %v1638 = vpack.c.b16 %v1070, %v1068
      %v1639 = vpack.c.b16 %v1071, %v1069
      %v1640 = vpack.c.b16 %v1074, %v1072
      %v1641 = vpack.c.b16 %v1075, %v1073
      %v1642 = vpack.c.b16 %v1078, %v1076
      %v1643 = vpack.c.b16 %v1079, %v1077
      %v1644 = vpack.c.b16 %v1082, %v1080
      %v1645 = vpack.c.b16 %v1083, %v1081
      %v1646 = vpack.c.b16 %v1086, %v1084
      %v1647 = vpack.c.b16 %v1087, %v1085
      %v1648 = vpack.c.b16 %v1090, %v1088
      %v1649 = vpack.c.b16 %v1091, %v1089
      %v1650 = vpack.c.b16 %v1094, %v1092
      %v1651 = vpack.c.b16 %v1095, %v1093
      %v1652 = vpack.c.b16 %v1098, %v1096
      %v1653 = vpack.c.b16 %v1099, %v1097
      %v1654 = vpack.c.b16 %v1102, %v1100
      %v1655 = vpack.c.b16 %v1103, %v1101
      %v1656 = vpack.c.b16 %v1106, %v1104
      %v1657 = vpack.c.b16 %v1107, %v1105
      %v1658 = vpack.c.b16 %v1110, %v1108
      %v1659 = vpack.c.b16 %v1111, %v1109
      %v1660 = vpack.c.b16 %v1114, %v1112
      %v1661 = vpack.c.b16 %v1115, %v1113
      %v1662 = vpack.c.b16 %v1118, %v1116
      %v1663 = vpack.c.b16 %v1119, %v1117
      %v1664 = vpack.c.b16 %v1122, %v1120
      %v1665 = vpack.c.b16 %v1123, %v1121
      %v1666 = vpack.c.b16 %v1126, %v1124
      %v1667 = vpack.c.b16 %v1127, %v1125
      %v1668 = vpack.c.b16 %v1130, %v1128
      %v1669 = vpack.c.b16 %v1131, %v1129
      %v1670 = vpack.c.b16 %v1134, %v1132
      %v1671 = vpack.c.b16 %v1135, %v1133
      %v1672 = vpack.c.b16 %v1138, %v1136
      %v1673 = vpack.c.b16 %v1139, %v1137
      %v1674 = vpack.c.b16 %v1142, %v1140
      %v1675 = vpack.c.b16 %v1143, %v1141
      %v1676 = vpack.c.b16 %v1146, %v1144
      %v1677 = vpack.c.b16 %v1147, %v1145
      %v1678 = vpack.c.b16 %v1150, %v1148
      %v1679 = vpack.c.b16 %v1151, %v1149
      %v1680 = vpack.c.b16 %v1154, %v1152
      %v1681 = vpack.c.b16 %v1155, %v1153
      %v1682 = vpack.c.b16 %v1158, %v1156
      %v1683 = vpack.c.b16 %v1159, %v1157
      %v1684 = vpack.c.b16 %v1162, %v1160
      %v1685 = vpack.c.b16 %v1163, %v1161
      %v1686 = vpack.c.b16 %v1166, %v1164
      %v1687 = vpack.c.b16 %v1167, %v1165
      %v1688 = vpack.c.b16 %v1170, %v1168
      %v1689 = vpack.c.b16 %v1171, %v1169
      %v1690 = vpack.c.b16 %v1174, %v1172
      %v1691 = vpack.c.b16 %v1175, %v1173
      %v1692 = vpack.c.b16 %v1178, %v1176
      %v1693 = vpack.c.b16 %v1179, %v1177
      %v1694 = vpack.c.b16 %v1182, %v1180
      %v1695 = vpack.c.b16 %v1183, %v1181
      %v1696 = vpack.c.b16 %v1186, %v1184
      %v1697 = vpack.c.b16 %v1187, %v1185
      %v1698 = vpack.c.b16 %v1190, %v1188
      %v1699 = vpack.c.b16 %v1191, %v1189
      %v1700 = vpack.c.b16 %v1194, %v1192
      %v1701 = vpack.c.b16 %v1195, %v1193
      %v1702 = vpack.c.b16 %v1198, %v1196
      %v1703 = vpack.c.b16 %v1199, %v1197
      %v1704 = vpack.c.b16 %v1202, %v1200
      %v1705 = vpack.c.b16 %v1203, %v1201
      %v1706 = vpack.c.b16 %v1206, %v1204
      %v1707 = vpack.c.b16 %v1207, %v1205
      %v1708 = vpack.c.b16 %v1210, %v1208
      %v1709 = vpack.c.b16 %v1211, %v1209
      %v1710 = vpack.c.b16 %v1214, %v1212
      %v1711 = vpack.c.b16 %v1215, %v1213
      %v1712 = vpack.c.b16 %v1218, %v1216
      %v1713 = vpack.c.b16 %v1219, %v1217
      %v1714 = vpack.c.b16 %v1222, %v1220
      %v1715 = vpack.c.b16 %v1223, %v1221
      %v1716 = vpack.c.b16 %v1226, %v1224
      %v1717 = vpack.c.b16 %v1227, %v1225
      %v1718 = vpack.c.b16 %v1230, %v1228
      %v1719 = vpack.c.b16 %v1231, %v1229
      %v1720 = vpack.c.b16 %v1234, %v1232
      %v1721 = vpack.c.b16 %v1235, %v1233
      %v1722 = vpack.c.b16 %v1238, %v1236
      %v1723 = vpack.c.b16 %v1239, %v1237
      %v1724 = vpack.c.b16 %v1242, %v1240
      %v1725 = vpack.c.b16 %v1243, %v1241
      %v1726 = vpack.c.b16 %v1246, %v1244
      %v1727 = vpack.c.b16 %v1247, %v1245
      %v1728 = vpack.c.b16 %v1250, %v1248
      %v1729 = vpack.c.b16 %v1251, %v1249
      %v1730 = vpack.c.b16 %v1254, %v1252
      %v1731 = vpack.c.b16 %v1255, %v1253
      %v1732 = vpack.c.b16 %v1258, %v1256
      %v1733 = vpack.c.b16 %v1259, %v1257
      %v1734 = vpack.c.b16 %v1262, %v1260
      %v1735 = vpack.c.b16 %v1263, %v1261
      %v1736 = vpack.c.b16 %v1266, %v1264
      %v1737 = vpack.c.b16 %v1267, %v1265
      %v1738 = vpack.c.b16 %v1270, %v1268
      %v1739 = vpack.c.b16 %v1271, %v1269
      %v1740 = vpack.c.b16 %v1274, %v1272
      %v1741 = vpack.c.b16 %v1275, %v1273
      %v1742 = vpack.c.b16 %v1278, %v1276
      %v1743 = vpack.c.b16 %v1279, %v1277
      %v1744 = vpack.c.b16 %v1282, %v1280
      %v1745 = vpack.c.b16 %v1283, %v1281
      %v1746 = vpack.c.b16 %v1286, %v1284
      %v1747 = vpack.c.b16 %v1287, %v1285
      %v1748 = vpack.c.b16 %v1290, %v1288
      %v1749 = vpack.c.b16 %v1291, %v1289
      %v1750 = vpack.c.b16 %v1294, %v1292
      %v1751 = vpack.c.b16 %v1295, %v1293
      %v1752 = vpack.c.b16 %v1298, %v1296
      %v1753 = vpack.c.b16 %v1299, %v1297
      %v1754 = vpack.c.b16 %v1302, %v1300
      %v1755 = vpack.c.b16 %v1303, %v1301
      %v1756 = vpack.c.b16 %v1306, %v1304
      %v1757 = vpack.c.b16 %v1307, %v1305
      %v1758 = vpack.c.b16 %v1310, %v1308
      %v1759 = vpack.c.b16 %v1311, %v1309
      %v1760 = vpack.c.b16 %v1314, %v1312
      %v1761 = vpack.c.b16 %v1315, %v1313
      %v1762 = vpack.c.b16 %v1318, %v1316
      %v1763 = vpack.c.b16 %v1319, %v1317
      %v1764 = vpack.c.b16 %v1322, %v1320
      %v1765 = vpack.c.b16 %v1323, %v1321
      %v1766 = vpack.c.b16 %v1326, %v1324
      %v1767 = vpack.c.b16 %v1327, %v1325
      %v1768 = vpack.c.b16 %v1330, %v1328
      %v1769 = vpack.c.b16 %v1331, %v1329
      %v1770 = vpack.c.b16 %v1334, %v1332
      %v1771 = vpack.c.b16 %v1335, %v1333
      %v1772 = vpack.c.b16 %v1338, %v1336
      %v1773 = vpack.c.b16 %v1339, %v1337
      %v1774 = vpack.c.b16 %v1342, %v1340
      %v1775 = vpack.c.b16 %v1343, %v1341
      %v1776 = vpack.c.b16 %v1346, %v1344
      %v1777 = vpack.c.b16 %v1347, %v1345
      %v1778 = vpack.c.b16 %v1350, %v1348
      %v1779 = vpack.c.b16 %v1351, %v1349
      %v1780 = vpack.c.b16 %v1354, %v1352
      %v1781 = vpack.c.b16 %v1355, %v1353
      %v1782 = vpack.c.b16 %v1358, %v1356
      %v1783 = vpack.c.b16 %v1359, %v1357
      %v1784 = vpack.c.b16 %v1362, %v1360
      %v1785 = vpack.c.b16 %v1363, %v1361
      %v1786 = vpack.c.b16 %v1366, %v1364
      %v1787 = vpack.c.b16 %v1367, %v1365
      %v1788 = vpack.c.b16 %v1370, %v1368
      %v1789 = vpack.c.b16 %v1371, %v1369
      %v1790 = vpack.c.b16 %v1374, %v1372
      %v1791 = vpack.c.b16 %v1375, %v1373
      %v1792 = vpack.c.b16 %v1378, %v1376
      %v1793 = vpack.c.b16 %v1379, %v1377
      %v1794 = vpack.c.b16 %v1382, %v1380
      %v1795 = vpack.c.b16 %v1383, %v1381
      %v1796 = vpack.c.b16 %v1386, %v1384
      %v1797 = vpack.c.b16 %v1387, %v1385
      %v1798 = vpack.c.b16 %v1390, %v1388
      %v1799 = vpack.c.b16 %v1391, %v1389
      %v1800 = vpack.c.b16 %v1394, %v1392
      %v1801 = vpack.c.b16 %v1395, %v1393
      %v1802 = vpack.c.b16 %v1398, %v1396
      %v1803 = vpack.c.b16 %v1399, %v1397
      %v1804 = vpack.c.b16 %v1402, %v1400
      %v1805 = vpack.c.b16 %v1403, %v1401
      %v1806 = vpack.c.b16 %v1406, %v1404
      %v1807 = vpack.c.b16 %v1407, %v1405
      %v1808 = vpack.c.b16 %v1410, %v1408
      %v1809 = vpack.c.b16 %v1411, %v1409
      %v1810 = vpack.c.b16 %v1414, %v1412
      %v1811 = vpack.c.b16 %v1415, %v1413
      %v1812 = vpack.c.b16 %v1418, %v1416
      %v1813 = vpack.c.b16 %v1419, %v1417
      %v1814 = vpack.c.b16 %v1422, %v1420
      %v1815 = vpack.c.b16 %v1423, %v1421
      %v1816 = vpack.c.b16 %v1426, %v1424
      %v1817 = vpack.c.b16 %v1427, %v1425
      %v1818 = vpack.c.b16 %v1430, %v1428
      %v1819 = vpack.c.b16 %v1431, %v1429
      %v1820 = vpack.c.b16 %v1434, %v1432
      %v1821 = vpack.c.b16 %v1435, %v1433
      %v1822 = vpack.c.b16 %v1438, %v1436
      %v1823 = vpack.c.b16 %v1439, %v1437
      %v1824 = vpack.c.b16 %v1442, %v1440
      %v1825 = vpack.c.b16 %v1443, %v1441
      %v1826 = vpack.c.b16 %v1446, %v1444
      %v1827 = vpack.c.b16 %v1447, %v1445
      %v1828 = vpack.c.b16 %v1450, %v1448
      %v1829 = vpack.c.b16 %v1451, %v1449
      %v1830 = vpack.c.b16 %v1454, %v1452
      %v1831 = vpack.c.b16 %v1455, %v1453
      %v1832 = vpack.c.b16 %v1458, %v1456
      %v1833 = vpack.c.b16 %v1459, %v1457
      %v1834 = vpack.c.b16 %v1462, %v1460
      %v1835 = vpack.c.b16 %v1463, %v1461
      %v1836 = vpack.c.b16 %v1466, %v1464
      %v1837 = vpack.c.b16 %v1467, %v1465
      %v1838 = vpack.c.b16 %v1470, %v1468
      %v1839 = vpack.c.b16 %v1471, %v1469
      %v1840 = vpack.c.b16 %v1474, %v1472
      %v1841 = vpack.c.b16 %v1475, %v1473
      %v1842 = vpack.c.b16 %v1478, %v1476
      %v1843 = vpack.c.b16 %v1479, %v1477
      %v1844 = vpack.c.b16 %v1482, %v1480
      %v1845 = vpack.c.b16 %v1483, %v1481
      %v1846 = vpack.c.b16 %v1486, %v1484
      %v1847 = vpack.c.b16 %v1487, %v1485
      %v1848 = vpack.c.b16 %v1490, %v1488
      %v1849 = vpack.c.b16 %v1491, %v1489
      %v1850 = vpack.c.b16 %v1494, %v1492
      %v1851 = vpack.c.b16 %v1495, %v1493
      %v1852 = vpack.c.b16 %v1498, %v1496
      %v1853 = vpack.c.b16 %v1499, %v1497
      %v1854 = vpack.c.b16 %v1502, %v1500
      %v1855 = vpack.c.b16 %v1503, %v1501
      %v1856 = vpack.c.b16 %v1506, %v1504
      %v1857 = vpack.c.b16 %v1507, %v1505
      %v1858 = vpack.c.b16 %v1510, %v1508
      %v1859 = vpack.c.b16 %v1511, %v1509
      %v1860 = vpack.c.b16 %v1514, %v1512
      %v1861 = vpack.c.b16 %v1515, %v1513
      %v1862 = vpack.c.b16 %v1518, %v1516
      %v1863 = vpack.c.b16 %v1519, %v1517
      %v1864 = vpack.c.b16 %v1522, %v1520
      %v1865 = vpack.c.b16 %v1523, %v1521
      %v1866 = vpack.c.b16 %v1526, %v1524
      %v1867 = vpack.c.b16 %v1527, %v1525
      %v1868 = vpack.c.b16 %v1530, %v1528
      %v1869 = vpack.c.b16 %v1531, %v1529
      %v1870 = vpack.c.b16 %v1534, %v1532
      %v1871 = vpack.c.b16 %v1535, %v1533
      %v1872 = vpack.c.b16 %v1538, %v1536
      %v1873 = vpack.c.b16 %v1539, %v1537
      %v1874 = vpack.c.b16 %v1542, %v1540
      %v1875 = vpack.c.b16 %v1543, %v1541
      %v1876 = vpack.c.b16 %v1546, %v1544
      %v1877 = vpack.c.b16 %v1547, %v1545
      %v1878 = vpack.c.b16 %v1550, %v1548
      %v1879 = vpack.c.b16 %v1551, %v1549
      %v1880 = vpack.c.b16 %v1554, %v1552
      %v1881 = vpack.c.b16 %v1555, %v1553
      %v1882 = vpack.c.b16 %v1558, %v1556
      %v1883 = vpack.c.b16 %v1559, %v1557
      %v1884 = vpack.c.b16 %v1562, %v1560
      %v1885 = vpack.c.b16 %v1563, %v1561
      %v1886 = vpack.c.b16 %v1566, %v1564
      %v1887 = vpack.c.b16 %v1567, %v1565
      %v1888 = vpack.c.b16 %v1570, %v1568
      %v1889 = vpack.c.b16 %v1571, %v1569
      %v1890 = vpack.c.b16 %v1574, %v1572
      %v1891 = vpack.c.b16 %v1575, %v1573
      %v1892 = vpack.c.b16 %v1578, %v1576
      %v1893 = vpack.c.b16 %v1579, %v1577
      %v1894 = vpack.c.b16 %v1582, %v1580
      %v1895 = vpack.c.b16 %v1583, %v1581
      %v1896 = vpack.c.b16 %v1586, %v1584
      %v1897 = vpack.c.b16 %v1587, %v1585
      %v1898 = vpack.c.b16 %v1590, %v1588
      %v1899 = vpack.c.b16 %v1591, %v1589
      %v1900 = vpack.c.b16 %v1594, %v1592
      %v1901 = vpack.c.b16 %v1595, %v1593
      %v1902 = vpack.c.b16 %v1598, %v1596
      %v1903 = vpack.c.b16 %v1599, %v1597
      %v1904 = vpack.c.b16 %v1602, %v1600
      %v1905 = vpack.c.b16 %v1603, %v1601
      %v1906 = vpack.c.b16 %v1606, %v1604
      %v1907 = vpack.c.b16 %v1607, %v1605
      %v1908 = vpack.c.b16 %v1610, %v1608
      %v1909 = vpack.c.b16 %v1611, %v1609
      %v1910 = vpack.c.b16 %v1614, %v1612
      %v1911 = vpack.c.b16 %v1615, %v1613
      %v1912 = vpack.c.b16 %v1618, %v1616
      %v1913 = vpack.c.b16 %v1619, %v1617
      %v1914 = vpack.c.b16 %v1622, %v1620
      %v1915 = vpack.c.b16 %v1623, %v1621
      %v1916 = vpack.c.b16 %v1626, %v1624
      %v1917 = vpack.c.b16 %v1627, %v1625
      %v1918 = vpack.c.b16 %v1630, %v1628
      %v1919 = vpack.c.b16 %v1631, %v1629
      %2208 = vmatprep.subr.bf16.mxu0 %v1647
      %2209 = vmatpush1.bf16.msra.mxu0 %v1646
      %2210 = vmatprep.subr.bf16.mxu0 %v1645
      %2211 = vmatpush1.bf16.msra.mxu0 %v1644
      %2212 = vmatprep.subr.bf16.mxu0 %v1643
      %2213 = vmatpush1.bf16.msra.mxu0 %v1642
      %2214 = vmatprep.subr.bf16.mxu0 %v1641
      %2215 = vmatpush1.bf16.msra.mxu0 %v1640
      %2216 = vmatprep.subr.bf16.mxu0 %v1639
      %2217 = vmatpush1.bf16.msra.mxu0 %v1638
      %2218 = vmatprep.subr.bf16.mxu0 %v1637
      %2219 = vmatpush1.bf16.msra.mxu0 %v1636
      %2220 = vmatprep.subr.bf16.mxu0 %v1635
      %2221 = vmatpush1.bf16.msra.mxu0 %v1634
      %2222 = vmatprep.subr.bf16.mxu0 %v1633
      %2223 = vmatpush1.bf16.msra.mxu0 %v1632
      %2224 = vmatprep.subr.bf16.mxu0 %v1663
      %2225 = vmatpush2.bf16.msra.mxu0 %v1662
      %2226 = vmatprep.subr.bf16.mxu0 %v1661
      %2227 = vmatpush2.bf16.msra.mxu0 %v1660
      %2228 = vmatprep.subr.bf16.mxu0 %v1659
      %2229 = vmatpush2.bf16.msra.mxu0 %v1658
      %2230 = vmatprep.subr.bf16.mxu0 %v1657
      %2231 = vmatpush2.bf16.msra.mxu0 %v1656
      %2232 = vmatprep.subr.bf16.mxu0 %v1655
      %2233 = vmatpush2.bf16.msra.mxu0 %v1654
      %2234 = vmatprep.subr.bf16.mxu0 %v1653
      %2235 = vmatpush2.bf16.msra.mxu0 %v1652
      %2236 = vmatprep.subr.bf16.mxu0 %v1651
      %2237 = vmatpush2.bf16.msra.mxu0 %v1650
      %2238 = vmatprep.subr.bf16.mxu0 %v1649
      %2239 = vmatpush2.bf16.msra.mxu0 %v1648
      %2240 = vmatprep.mubr.bf16.mxu0 %v697
      %2241 = vmatmul.mubr.bf16.gmra.mxu0 %v696
      %v2242 = vpop.f32.mrf.mxu0
      %v2243 = vadd.f32 %v581, %v2242
      %v2244 = vpop.f32.mrf.mxu0
      %v2245 = vadd.f32 %v585, %v2244
      %v2246 = vpop.f32.mrf.mxu0
      %v2247 = vadd.f32 %v581, %v2246
      %v2248 = vpop.f32.mrf.mxu0
      %v2249 = vadd.f32 %v585, %v2248
      %2250 = vmatprep.mubr.bf16.mxu0 %v715
      %2251 = vmatmul.mubr.bf16.gmra.mxu0 %v714
      %v2252 = vpop.f32.mrf.mxu0
      %v2253 = vadd.f32 %v581, %v2252
      %v2254 = vpop.f32.mrf.mxu0
      %v2255 = vadd.f32 %v585, %v2254
      %v2256 = vpop.f32.mrf.mxu0
      %v2257 = vadd.f32 %v581, %v2256
      %v2258 = vpop.f32.mrf.mxu0
      %v2259 = vadd.f32 %v585, %v2258
      %2260 = vdwg.mxu0
      %2261 = vmatprep.subr.bf16.mxu0 %v1679
      %2262 = vmatpush1.bf16.msra.mxu0 %v1678
      %2263 = vmatprep.subr.bf16.mxu0 %v1677
      %2264 = vmatpush1.bf16.msra.mxu0 %v1676
      %2265 = vmatprep.subr.bf16.mxu0 %v1675
      %2266 = vmatpush1.bf16.msra.mxu0 %v1674
      %2267 = vmatprep.subr.bf16.mxu0 %v1673
      %2268 = vmatpush1.bf16.msra.mxu0 %v1672
      %2269 = vmatprep.subr.bf16.mxu0 %v1671
      %2270 = vmatpush1.bf16.msra.mxu0 %v1670
      %2271 = vmatprep.subr.bf16.mxu0 %v1669
      %2272 = vmatpush1.bf16.msra.mxu0 %v1668
      %2273 = vmatprep.subr.bf16.mxu0 %v1667
      %2274 = vmatpush1.bf16.msra.mxu0 %v1666
      %2275 = vmatprep.subr.bf16.mxu0 %v1665
      %2276 = vmatpush1.bf16.msra.mxu0 %v1664
      %2277 = vmatprep.subr.bf16.mxu0 %v1695
      %2278 = vmatpush2.bf16.msra.mxu0 %v1694
      %2279 = vmatprep.subr.bf16.mxu0 %v1693
      %2280 = vmatpush2.bf16.msra.mxu0 %v1692
      %2281 = vmatprep.subr.bf16.mxu0 %v1691
      %2282 = vmatpush2.bf16.msra.mxu0 %v1690
      %2283 = vmatprep.subr.bf16.mxu0 %v1689
      %2284 = vmatpush2.bf16.msra.mxu0 %v1688
      %2285 = vmatprep.subr.bf16.mxu0 %v1687
      %2286 = vmatpush2.bf16.msra.mxu0 %v1686
      %2287 = vmatprep.subr.bf16.mxu0 %v1685
      %2288 = vmatpush2.bf16.msra.mxu0 %v1684
      %2289 = vmatprep.subr.bf16.mxu0 %v1683
      %2290 = vmatpush2.bf16.msra.mxu0 %v1682
      %2291 = vmatprep.subr.bf16.mxu0 %v1681
      %2292 = vmatpush2.bf16.msra.mxu0 %v1680
      %2293 = vmatprep.mubr.bf16.mxu0 %v699
      %2294 = vmatmul.mubr.bf16.gmra.mxu0 %v698
      %v2295 = vpop.f32.mrf.mxu0
      %v2296 = vadd.f32 %v2243, %v2295
      %v2297 = vpop.f32.mrf.mxu0
      %v2298 = vadd.f32 %v2245, %v2297
      %v2299 = vpop.f32.mrf.mxu0
      %v2300 = vadd.f32 %v2247, %v2299
      %v2301 = vpop.f32.mrf.mxu0
      %v2302 = vadd.f32 %v2249, %v2301
      %2303 = vmatprep.mubr.bf16.mxu0 %v717
      %2304 = vmatmul.mubr.bf16.gmra.mxu0 %v716
      %v2305 = vpop.f32.mrf.mxu0
      %v2306 = vadd.f32 %v2253, %v2305
      %v2307 = vpop.f32.mrf.mxu0
      %v2308 = vadd.f32 %v2255, %v2307
      %v2309 = vpop.f32.mrf.mxu0
      %v2310 = vadd.f32 %v2257, %v2309
      %v2311 = vpop.f32.mrf.mxu0
      %v2312 = vadd.f32 %v2259, %v2311
      %2313 = vdwg.mxu0
      %2314 = vmatprep.subr.bf16.mxu0 %v1711
      %2315 = vmatpush1.bf16.msra.mxu0 %v1710
      %2316 = vmatprep.subr.bf16.mxu0 %v1709
      %2317 = vmatpush1.bf16.msra.mxu0 %v1708
      %2318 = vmatprep.subr.bf16.mxu0 %v1707
      %2319 = vmatpush1.bf16.msra.mxu0 %v1706
      %2320 = vmatprep.subr.bf16.mxu0 %v1705
      %2321 = vmatpush1.bf16.msra.mxu0 %v1704
      %2322 = vmatprep.subr.bf16.mxu0 %v1703
      %2323 = vmatpush1.bf16.msra.mxu0 %v1702
      %2324 = vmatprep.subr.bf16.mxu0 %v1701
      %2325 = vmatpush1.bf16.msra.mxu0 %v1700
      %2326 = vmatprep.subr.bf16.mxu0 %v1699
      %2327 = vmatpush1.bf16.msra.mxu0 %v1698
      %2328 = vmatprep.subr.bf16.mxu0 %v1697
      %2329 = vmatpush1.bf16.msra.mxu0 %v1696
      %2330 = vmatprep.subr.bf16.mxu0 %v1727
      %2331 = vmatpush2.bf16.msra.mxu0 %v1726
      %2332 = vmatprep.subr.bf16.mxu0 %v1725
      %2333 = vmatpush2.bf16.msra.mxu0 %v1724
      %2334 = vmatprep.subr.bf16.mxu0 %v1723
      %2335 = vmatpush2.bf16.msra.mxu0 %v1722
      %2336 = vmatprep.subr.bf16.mxu0 %v1721
      %2337 = vmatpush2.bf16.msra.mxu0 %v1720
      %2338 = vmatprep.subr.bf16.mxu0 %v1719
      %2339 = vmatpush2.bf16.msra.mxu0 %v1718
      %2340 = vmatprep.subr.bf16.mxu0 %v1717
      %2341 = vmatpush2.bf16.msra.mxu0 %v1716
      %2342 = vmatprep.subr.bf16.mxu0 %v1715
      %2343 = vmatpush2.bf16.msra.mxu0 %v1714
      %2344 = vmatprep.subr.bf16.mxu0 %v1713
      %2345 = vmatpush2.bf16.msra.mxu0 %v1712
      %2346 = vmatprep.mubr.bf16.mxu0 %v701
      %2347 = vmatmul.mubr.bf16.gmra.mxu0 %v700
      %v2348 = vpop.f32.mrf.mxu0
      %v2349 = vadd.f32 %v2296, %v2348
      %v2350 = vpop.f32.mrf.mxu0
      %v2351 = vadd.f32 %v2298, %v2350
      %v2352 = vpop.f32.mrf.mxu0
      %v2353 = vadd.f32 %v2300, %v2352
      %v2354 = vpop.f32.mrf.mxu0
      %v2355 = vadd.f32 %v2302, %v2354
      %2356 = vmatprep.mubr.bf16.mxu0 %v719
      %2357 = vmatmul.mubr.bf16.gmra.mxu0 %v718
      %v2358 = vpop.f32.mrf.mxu0
      %v2359 = vadd.f32 %v2306, %v2358
      %v2360 = vpop.f32.mrf.mxu0
      %v2361 = vadd.f32 %v2308, %v2360
      %v2362 = vpop.f32.mrf.mxu0
      %v2363 = vadd.f32 %v2310, %v2362
      %v2364 = vpop.f32.mrf.mxu0
      %v2365 = vadd.f32 %v2312, %v2364
      %2366 = vdwg.mxu0
      %2367 = vmatprep.subr.bf16.mxu0 %v1743
      %2368 = vmatpush1.bf16.msra.mxu0 %v1742
      %2369 = vmatprep.subr.bf16.mxu0 %v1741
      %2370 = vmatpush1.bf16.msra.mxu0 %v1740
      %2371 = vmatprep.subr.bf16.mxu0 %v1739
      %2372 = vmatpush1.bf16.msra.mxu0 %v1738
      %2373 = vmatprep.subr.bf16.mxu0 %v1737
      %2374 = vmatpush1.bf16.msra.mxu0 %v1736
      %2375 = vmatprep.subr.bf16.mxu0 %v1735
      %2376 = vmatpush1.bf16.msra.mxu0 %v1734
      %2377 = vmatprep.subr.bf16.mxu0 %v1733
      %2378 = vmatpush1.bf16.msra.mxu0 %v1732
      %2379 = vmatprep.subr.bf16.mxu0 %v1731
      %2380 = vmatpush1.bf16.msra.mxu0 %v1730
      %2381 = vmatprep.subr.bf16.mxu0 %v1729
      %2382 = vmatpush1.bf16.msra.mxu0 %v1728
      %2383 = vmatprep.subr.bf16.mxu0 %v1759
      %2384 = vmatpush2.bf16.msra.mxu0 %v1758
      %2385 = vmatprep.subr.bf16.mxu0 %v1757
      %2386 = vmatpush2.bf16.msra.mxu0 %v1756
      %2387 = vmatprep.subr.bf16.mxu0 %v1755
      %2388 = vmatpush2.bf16.msra.mxu0 %v1754
      %2389 = vmatprep.subr.bf16.mxu0 %v1753
      %2390 = vmatpush2.bf16.msra.mxu0 %v1752
      %2391 = vmatprep.subr.bf16.mxu0 %v1751
      %2392 = vmatpush2.bf16.msra.mxu0 %v1750
      %2393 = vmatprep.subr.bf16.mxu0 %v1749
      %2394 = vmatpush2.bf16.msra.mxu0 %v1748
      %2395 = vmatprep.subr.bf16.mxu0 %v1747
      %2396 = vmatpush2.bf16.msra.mxu0 %v1746
      %2397 = vmatprep.subr.bf16.mxu0 %v1745
      %2398 = vmatpush2.bf16.msra.mxu0 %v1744
      %2399 = vmatprep.mubr.bf16.mxu0 %v703
      %2400 = vmatmul.mubr.bf16.gmra.mxu0 %v702
      %v2401 = vpop.f32.mrf.mxu0
      %v2402 = vadd.f32 %v2349, %v2401
      %v2403 = vpop.f32.mrf.mxu0
      %v2404 = vadd.f32 %v2351, %v2403
      %v2405 = vpop.f32.mrf.mxu0
      %v2406 = vadd.f32 %v2353, %v2405
      %v2407 = vpop.f32.mrf.mxu0
      %v2408 = vadd.f32 %v2355, %v2407
      %2409 = vmatprep.mubr.bf16.mxu0 %v721
      %2410 = vmatmul.mubr.bf16.gmra.mxu0 %v720
      %v2411 = vpop.f32.mrf.mxu0
      %v2412 = vadd.f32 %v2359, %v2411
      %v2413 = vpop.f32.mrf.mxu0
      %v2414 = vadd.f32 %v2361, %v2413
      %v2415 = vpop.f32.mrf.mxu0
      %v2416 = vadd.f32 %v2363, %v2415
      %v2417 = vpop.f32.mrf.mxu0
      %v2418 = vadd.f32 %v2365, %v2417
      %2419 = vdwg.mxu0
      %2420 = vmatprep.subr.bf16.mxu0 %v1775
      %2421 = vmatpush1.bf16.msra.mxu0 %v1774
      %2422 = vmatprep.subr.bf16.mxu0 %v1773
      %2423 = vmatpush1.bf16.msra.mxu0 %v1772
      %2424 = vmatprep.subr.bf16.mxu0 %v1771
      %2425 = vmatpush1.bf16.msra.mxu0 %v1770
      %2426 = vmatprep.subr.bf16.mxu0 %v1769
      %2427 = vmatpush1.bf16.msra.mxu0 %v1768
      %2428 = vmatprep.subr.bf16.mxu0 %v1767
      %2429 = vmatpush1.bf16.msra.mxu0 %v1766
      %2430 = vmatprep.subr.bf16.mxu0 %v1765
      %2431 = vmatpush1.bf16.msra.mxu0 %v1764
      %2432 = vmatprep.subr.bf16.mxu0 %v1763
      %2433 = vmatpush1.bf16.msra.mxu0 %v1762
      %2434 = vmatprep.subr.bf16.mxu0 %v1761
      %2435 = vmatpush1.bf16.msra.mxu0 %v1760
      %2436 = vmatprep.subr.bf16.mxu0 %v1791
      %2437 = vmatpush2.bf16.msra.mxu0 %v1790
      %2438 = vmatprep.subr.bf16.mxu0 %v1789
      %2439 = vmatpush2.bf16.msra.mxu0 %v1788
      %2440 = vmatprep.subr.bf16.mxu0 %v1787
      %2441 = vmatpush2.bf16.msra.mxu0 %v1786
      %2442 = vmatprep.subr.bf16.mxu0 %v1785
      %2443 = vmatpush2.bf16.msra.mxu0 %v1784
      %2444 = vmatprep.subr.bf16.mxu0 %v1783
      %2445 = vmatpush2.bf16.msra.mxu0 %v1782
      %2446 = vmatprep.subr.bf16.mxu0 %v1781
      %2447 = vmatpush2.bf16.msra.mxu0 %v1780
      %2448 = vmatprep.subr.bf16.mxu0 %v1779
      %2449 = vmatpush2.bf16.msra.mxu0 %v1778
      %2450 = vmatprep.subr.bf16.mxu0 %v1777
      %2451 = vmatpush2.bf16.msra.mxu0 %v1776
      %2452 = vmatprep.mubr.bf16.mxu0 %v705
      %2453 = vmatmul.mubr.bf16.gmra.mxu0 %v704
      %v2454 = vpop.f32.mrf.mxu0
      %v2455 = vadd.f32 %v2402, %v2454
      %v2456 = vpop.f32.mrf.mxu0
      %v2457 = vadd.f32 %v2404, %v2456
      %v2458 = vpop.f32.mrf.mxu0
      %v2459 = vadd.f32 %v2406, %v2458
      %v2460 = vpop.f32.mrf.mxu0
      %v2461 = vadd.f32 %v2408, %v2460
      %2462 = vmatprep.mubr.bf16.mxu0 %v723
      %2463 = vmatmul.mubr.bf16.gmra.mxu0 %v722
      %v2464 = vpop.f32.mrf.mxu0
      %v2465 = vadd.f32 %v2412, %v2464
      %v2466 = vpop.f32.mrf.mxu0
      %v2467 = vadd.f32 %v2414, %v2466
      %v2468 = vpop.f32.mrf.mxu0
      %v2469 = vadd.f32 %v2416, %v2468
      %v2470 = vpop.f32.mrf.mxu0
      %v2471 = vadd.f32 %v2418, %v2470
      %2472 = vdwg.mxu0
      %2473 = vmatprep.subr.bf16.mxu0 %v1807
      %2474 = vmatpush1.bf16.msra.mxu0 %v1806
      %2475 = vmatprep.subr.bf16.mxu0 %v1805
      %2476 = vmatpush1.bf16.msra.mxu0 %v1804
      %2477 = vmatprep.subr.bf16.mxu0 %v1803
      %2478 = vmatpush1.bf16.msra.mxu0 %v1802
      %2479 = vmatprep.subr.bf16.mxu0 %v1801
      %2480 = vmatpush1.bf16.msra.mxu0 %v1800
      %2481 = vmatprep.subr.bf16.mxu0 %v1799
      %2482 = vmatpush1.bf16.msra.mxu0 %v1798
      %2483 = vmatprep.subr.bf16.mxu0 %v1797
      %2484 = vmatpush1.bf16.msra.mxu0 %v1796
      %2485 = vmatprep.subr.bf16.mxu0 %v1795
      %2486 = vmatpush1.bf16.msra.mxu0 %v1794
      %2487 = vmatprep.subr.bf16.mxu0 %v1793
      %2488 = vmatpush1.bf16.msra.mxu0 %v1792
      %2489 = vmatprep.subr.bf16.mxu0 %v1823
      %2490 = vmatpush2.bf16.msra.mxu0 %v1822
      %2491 = vmatprep.subr.bf16.mxu0 %v1821
      %2492 = vmatpush2.bf16.msra.mxu0 %v1820
      %2493 = vmatprep.subr.bf16.mxu0 %v1819
      %2494 = vmatpush2.bf16.msra.mxu0 %v1818
      %2495 = vmatprep.subr.bf16.mxu0 %v1817
      %2496 = vmatpush2.bf16.msra.mxu0 %v1816
      %2497 = vmatprep.subr.bf16.mxu0 %v1815
      %2498 = vmatpush2.bf16.msra.mxu0 %v1814
      %2499 = vmatprep.subr.bf16.mxu0 %v1813
      %2500 = vmatpush2.bf16.msra.mxu0 %v1812
      %2501 = vmatprep.subr.bf16.mxu0 %v1811
      %2502 = vmatpush2.bf16.msra.mxu0 %v1810
      %2503 = vmatprep.subr.bf16.mxu0 %v1809
      %2504 = vmatpush2.bf16.msra.mxu0 %v1808
      %2505 = vmatprep.mubr.bf16.mxu0 %v707
      %2506 = vmatmul.mubr.bf16.gmra.mxu0 %v706
      %v2507 = vpop.f32.mrf.mxu0
      %v2508 = vadd.f32 %v2455, %v2507
      %v2509 = vpop.f32.mrf.mxu0
      %v2510 = vadd.f32 %v2457, %v2509
      %v2511 = vpop.f32.mrf.mxu0
      %v2512 = vadd.f32 %v2459, %v2511
      %v2513 = vpop.f32.mrf.mxu0
      %v2514 = vadd.f32 %v2461, %v2513
      %2515 = vmatprep.mubr.bf16.mxu0 %v725
      %2516 = vmatmul.mubr.bf16.gmra.mxu0 %v724
      %v2517 = vpop.f32.mrf.mxu0
      %v2518 = vadd.f32 %v2465, %v2517
      %v2519 = vpop.f32.mrf.mxu0
      %v2520 = vadd.f32 %v2467, %v2519
      %v2521 = vpop.f32.mrf.mxu0
      %v2522 = vadd.f32 %v2469, %v2521
      %v2523 = vpop.f32.mrf.mxu0
      %v2524 = vadd.f32 %v2471, %v2523
      %2525 = vdwg.mxu0
      %2526 = vmatprep.subr.bf16.mxu0 %v1839
      %2527 = vmatpush1.bf16.msra.mxu0 %v1838
      %2528 = vmatprep.subr.bf16.mxu0 %v1837
      %2529 = vmatpush1.bf16.msra.mxu0 %v1836
      %2530 = vmatprep.subr.bf16.mxu0 %v1835
      %2531 = vmatpush1.bf16.msra.mxu0 %v1834
      %2532 = vmatprep.subr.bf16.mxu0 %v1833
      %2533 = vmatpush1.bf16.msra.mxu0 %v1832
      %2534 = vmatprep.subr.bf16.mxu0 %v1831
      %2535 = vmatpush1.bf16.msra.mxu0 %v1830
      %2536 = vmatprep.subr.bf16.mxu0 %v1829
      %2537 = vmatpush1.bf16.msra.mxu0 %v1828
      %2538 = vmatprep.subr.bf16.mxu0 %v1827
      %2539 = vmatpush1.bf16.msra.mxu0 %v1826
      %2540 = vmatprep.subr.bf16.mxu0 %v1825
      %2541 = vmatpush1.bf16.msra.mxu0 %v1824
      %2542 = vmatprep.subr.bf16.mxu0 %v1855
      %2543 = vmatpush2.bf16.msra.mxu0 %v1854
      %2544 = vmatprep.subr.bf16.mxu0 %v1853
      %2545 = vmatpush2.bf16.msra.mxu0 %v1852
      %2546 = vmatprep.subr.bf16.mxu0 %v1851
      %2547 = vmatpush2.bf16.msra.mxu0 %v1850
      %2548 = vmatprep.subr.bf16.mxu0 %v1849
      %2549 = vmatpush2.bf16.msra.mxu0 %v1848
      %2550 = vmatprep.subr.bf16.mxu0 %v1847
      %2551 = vmatpush2.bf16.msra.mxu0 %v1846
      %2552 = vmatprep.subr.bf16.mxu0 %v1845
      %2553 = vmatpush2.bf16.msra.mxu0 %v1844
      %2554 = vmatprep.subr.bf16.mxu0 %v1843
      %2555 = vmatpush2.bf16.msra.mxu0 %v1842
      %2556 = vmatprep.subr.bf16.mxu0 %v1841
      %2557 = vmatpush2.bf16.msra.mxu0 %v1840
      %2558 = vmatprep.mubr.bf16.mxu0 %v709
      %2559 = vmatmul.mubr.bf16.gmra.mxu0 %v708
      %v2560 = vpop.f32.mrf.mxu0
      %v2561 = vadd.f32 %v2508, %v2560
      %v2562 = vpop.f32.mrf.mxu0
      %v2563 = vadd.f32 %v2510, %v2562
      %v2564 = vpop.f32.mrf.mxu0
      %v2565 = vadd.f32 %v2512, %v2564
      %v2566 = vpop.f32.mrf.mxu0
      %v2567 = vadd.f32 %v2514, %v2566
      %2568 = vmatprep.mubr.bf16.mxu0 %v727
      %2569 = vmatmul.mubr.bf16.gmra.mxu0 %v726
      %v2570 = vpop.f32.mrf.mxu0
      %v2571 = vadd.f32 %v2518, %v2570
      %v2572 = vpop.f32.mrf.mxu0
      %v2573 = vadd.f32 %v2520, %v2572
      %v2574 = vpop.f32.mrf.mxu0
      %v2575 = vadd.f32 %v2522, %v2574
      %v2576 = vpop.f32.mrf.mxu0
      %v2577 = vadd.f32 %v2524, %v2576
      %2578 = vdwg.mxu0
      %2579 = vmatprep.subr.bf16.mxu0 %v1871
      %2580 = vmatpush1.bf16.msra.mxu0 %v1870
      %2581 = vmatprep.subr.bf16.mxu0 %v1869
      %2582 = vmatpush1.bf16.msra.mxu0 %v1868
      %2583 = vmatprep.subr.bf16.mxu0 %v1867
      %2584 = vmatpush1.bf16.msra.mxu0 %v1866
      %2585 = vmatprep.subr.bf16.mxu0 %v1865
      %2586 = vmatpush1.bf16.msra.mxu0 %v1864
      %2587 = vmatprep.subr.bf16.mxu0 %v1863
      %2588 = vmatpush1.bf16.msra.mxu0 %v1862
      %2589 = vmatprep.subr.bf16.mxu0 %v1861
      %2590 = vmatpush1.bf16.msra.mxu0 %v1860
      %2591 = vmatprep.subr.bf16.mxu0 %v1859
      %2592 = vmatpush1.bf16.msra.mxu0 %v1858
      %2593 = vmatprep.subr.bf16.mxu0 %v1857
      %2594 = vmatpush1.bf16.msra.mxu0 %v1856
      %2595 = vmatprep.subr.bf16.mxu0 %v1887
      %2596 = vmatpush2.bf16.msra.mxu0 %v1886
      %2597 = vmatprep.subr.bf16.mxu0 %v1885
      %2598 = vmatpush2.bf16.msra.mxu0 %v1884
      %2599 = vmatprep.subr.bf16.mxu0 %v1883
      %2600 = vmatpush2.bf16.msra.mxu0 %v1882
      %2601 = vmatprep.subr.bf16.mxu0 %v1881
      %2602 = vmatpush2.bf16.msra.mxu0 %v1880
      %2603 = vmatprep.subr.bf16.mxu0 %v1879
      %2604 = vmatpush2.bf16.msra.mxu0 %v1878
      %2605 = vmatprep.subr.bf16.mxu0 %v1877
      %2606 = vmatpush2.bf16.msra.mxu0 %v1876
      %2607 = vmatprep.subr.bf16.mxu0 %v1875
      %2608 = vmatpush2.bf16.msra.mxu0 %v1874
      %2609 = vmatprep.subr.bf16.mxu0 %v1873
      %2610 = vmatpush2.bf16.msra.mxu0 %v1872
      %2611 = vmatprep.mubr.bf16.mxu0 %v711
      %2612 = vmatmul.mubr.bf16.gmra.mxu0 %v710
      %v2613 = vpop.f32.mrf.mxu0
      %v2614 = vadd.f32 %v2561, %v2613
      %v2615 = vpop.f32.mrf.mxu0
      %v2616 = vadd.f32 %v2563, %v2615
      %v2617 = vpop.f32.mrf.mxu0
      %v2618 = vadd.f32 %v2565, %v2617
      %v2619 = vpop.f32.mrf.mxu0
      %v2620 = vadd.f32 %v2567, %v2619
      %2621 = vmatprep.mubr.bf16.mxu0 %v729
      %2622 = vmatmul.mubr.bf16.gmra.mxu0 %v728
      %v2623 = vpop.f32.mrf.mxu0
      %v2624 = vadd.f32 %v2571, %v2623
      %v2625 = vpop.f32.mrf.mxu0
      %v2626 = vadd.f32 %v2573, %v2625
      %v2627 = vpop.f32.mrf.mxu0
      %v2628 = vadd.f32 %v2575, %v2627
      %v2629 = vpop.f32.mrf.mxu0
      %v2630 = vadd.f32 %v2577, %v2629
      %2631 = vdwg.mxu0
      %2632 = vmatprep.subr.bf16.mxu0 %v1903
      %2633 = vmatpush1.bf16.msra.mxu0 %v1902
      %2634 = vmatprep.subr.bf16.mxu0 %v1901
      %2635 = vmatpush1.bf16.msra.mxu0 %v1900
      %2636 = vmatprep.subr.bf16.mxu0 %v1899
      %2637 = vmatpush1.bf16.msra.mxu0 %v1898
      %2638 = vmatprep.subr.bf16.mxu0 %v1897
      %2639 = vmatpush1.bf16.msra.mxu0 %v1896
      %2640 = vmatprep.subr.bf16.mxu0 %v1895
      %2641 = vmatpush1.bf16.msra.mxu0 %v1894
      %2642 = vmatprep.subr.bf16.mxu0 %v1893
      %2643 = vmatpush1.bf16.msra.mxu0 %v1892
      %2644 = vmatprep.subr.bf16.mxu0 %v1891
      %2645 = vmatpush1.bf16.msra.mxu0 %v1890
      %2646 = vmatprep.subr.bf16.mxu0 %v1889
      %2647 = vmatpush1.bf16.msra.mxu0 %v1888
      %2648 = vmatprep.subr.bf16.mxu0 %v1919
      %2649 = vmatpush2.bf16.msra.mxu0 %v1918
      %2650 = vmatprep.subr.bf16.mxu0 %v1917
      %2651 = vmatpush2.bf16.msra.mxu0 %v1916
      %2652 = vmatprep.subr.bf16.mxu0 %v1915
      %2653 = vmatpush2.bf16.msra.mxu0 %v1914
      %2654 = vmatprep.subr.bf16.mxu0 %v1913
      %2655 = vmatpush2.bf16.msra.mxu0 %v1912
      %2656 = vmatprep.subr.bf16.mxu0 %v1911
      %2657 = vmatpush2.bf16.msra.mxu0 %v1910
      %2658 = vmatprep.subr.bf16.mxu0 %v1909
      %2659 = vmatpush2.bf16.msra.mxu0 %v1908
      %2660 = vmatprep.subr.bf16.mxu0 %v1907
      %2661 = vmatpush2.bf16.msra.mxu0 %v1906
      %2662 = vmatprep.subr.bf16.mxu0 %v1905
      %2663 = vmatpush2.bf16.msra.mxu0 %v1904
      %2664 = vmatprep.mubr.bf16.mxu0 %v713
      %2665 = vmatmul.mubr.bf16.gmra.mxu0 %v712
      %v2666 = vpop.f32.mrf.mxu0
      %v2667 = vadd.f32 %v2614, %v2666
      %v2668 = vpop.f32.mrf.mxu0
      %v2669 = vadd.f32 %v2616, %v2668
      %v2670 = vpop.f32.mrf.mxu0
      %v2671 = vadd.f32 %v2618, %v2670
      %v2672 = vpop.f32.mrf.mxu0
      %v2673 = vadd.f32 %v2620, %v2672
      %2674 = vmatprep.mubr.bf16.mxu0 %v731
      %2675 = vmatmul.mubr.bf16.gmra.mxu0 %v730
      %v2676 = vpop.f32.mrf.mxu0
      %v2677 = vadd.f32 %v2624, %v2676
      %v2678 = vpop.f32.mrf.mxu0
      %v2679 = vadd.f32 %v2626, %v2678
      %v2680 = vpop.f32.mrf.mxu0
      %v2681 = vadd.f32 %v2628, %v2680
      %v2682 = vpop.f32.mrf.mxu0
      %v2683 = vadd.f32 %v2630, %v2682
      %2684 = vdwg.mxu0
      %v2685 = vmax.f32 %v2667, 0.0
      %v2686 = vmax.f32 %v2669, 0.0
      %v2687 = vmax.f32 %v2671, 0.0
      %v2688 = vmax.f32 %v2673, 0.0
      %v2689 = vmax.f32 %v2677, 0.0
      %v2690 = vmax.f32 %v2679, 0.0
      %v2691 = vmax.f32 %v2681, 0.0
      %v2692 = vmax.f32 %v2683, 0.0
      %2693 = vst [vmem:[%s250] sm:$0xff] %v2685
      %2694 = vst [vmem:[%s250 + $0x8] sm:$0xff] %v2686
      %2695 = vst [vmem:[%s250 + $0x10] sm:$0xff] %v2687
      %2696 = vst [vmem:[%s250 + $0x18] sm:$0xff] %v2688
      %2697 = vst [vmem:[%s250 + $0x20] sm:$0xff] %v2689
      %2698 = vst [vmem:[%s250 + $0x28] sm:$0xff] %v2690
      %2699 = vst [vmem:[%s250 + $0x30] sm:$0xff] %v2691
      %2700 = vst [vmem:[%s250 + $0x38] sm:$0xff] %v2692
      %s2701 = smul.u32 4, %s19
      %p2702 = scmp.lt.s32.totalorder %s18, 1
      %s2703 = scalar_select %p2702, %s18, 1
      %p2704 = scmp.lt.s32.totalorder %s2701, 3
      %s2705 = scalar_select %p2704, %s2701, 3
      %s2706 = smul.addr %s2705, 2
      %s2707 = smul.addr %s2703, 8
      %s2708 = sadd.s32 %s2706, %s2707
      %s2709 = smul.addr %s2708, 8
      %s2710 = scalar_lea.vmem %s3, %s2709
      // Predicated region
      $region33: #{mixed_7a_forward.7} parent=31 // pred_check
        %p2711 = pneg %p126
      $region34: #{mixed_7a_forward.7} parent=31 // pred_check_branch
        %2713 = sbr.rel (%p2711) target = $region36
      $region35: #{mixed_7a_forward.7} parent=31 // pred_region
        %s2714 = smul.u32 4, %s19
      $region36: #{mixed_7a_forward.7} parent=31 // pred_fallthru
        _
    $region32: #{mixed_7a_forward.7} parent=5 // pred_fallthru
      _
    %p2715 = scmp.le.s32.totalorder 2, %s9
    // Predicated region
    $region37: #{mixed_7a_forward.7} parent=5 // pred_check
      %p2716 = pneg %p2715
    $region38: #{mixed_7a_forward.7} parent=5 // pred_check_branch
      %2718 = sbr.rel (%p2716) target = $region40
    $region39: #{mixed_7a_forward.7} parent=5 // pred_region
      %s2719 = ssub.s32 %s9, 2
      // Predicated region
      $region41: #{mixed_7a_forward.7} parent=39 // pred_check
        %p2720 = pneg %p132
      $region42: #{mixed_7a_forward.7} parent=39 // pred_check_branch
        %2722 = sbr.rel (%p2720) target = $region44
      $region43: #{mixed_7a_forward.7} parent=39 // pred_region
        %s2723 = smul.u32 4, %s21
        %p2724 = scmp.lt.s32.totalorder %s20, 1
        %s2725 = scalar_select %p2724, %s20, 1
        %p2726 = scmp.lt.s32.totalorder %s2723, 3
        %s2727 = scalar_select %p2726, %s2723, 3
        %s2728 = smul.addr %s2727, 2
        %s2729 = smul.addr %s2725, 8
        %s2730 = sadd.s32 %s2728, %s2729
        %s2731 = smul.addr %s2730, 8
        %s2732 = scalar_lea.vmem %s3, %s2731
      $region44: #{mixed_7a_forward.7} parent=39 // pred_fallthru
        _
    $region40: #{mixed_7a_forward.7} parent=5 // pred_fallthru
      _
  $region6: #{mixed_7a_forward.7} parent=0 // loop_footer
    %s13 = sadd.s32 1, %s9
  $region7: #{mixed_7a_forward.7} parent=0 // loop_footer_branch
    %8 = sbr.rel target = $region3
  $region8: #{mixed_7a_forward.7} parent=0 // loop_exit
    _

</llo_original>
